<compile_context>
chip_gen: v5e
topology: v5e:2x2
jax: 0.10.0
libtpu: 0.0.40
codegen_flags: <defaults>
</compile_context>

<pallas_src>
import functools

import jax
import jax.numpy as jnp
from jax import lax
from jax.experimental import pallas as pl
from jax.experimental.pallas import tpu as pltpu

BN_EPS = 1e-5


# ----------------------------------------------------------------------------
# Fused ConvBlockRes Pallas kernel
# ----------------------------------------------------------------------------
def _convblockres_kernel(*refs, has_sc: bool):
    """Fused ConvBlockRes for one batch element.

    x_ref:      (H, W, Cin)       input tile, f32
    w1_ref:     (9, Cin, Cout)    conv1 taps in (dy*3+dx) order, bf16
    s1/b1_ref:  (1, Cout)         folded BatchNorm1 affine, f32
    w2_ref:     (9, Cout, Cout)   conv2 taps, bf16
    s2/b2_ref:  (1, Cout)         folded BatchNorm2 affine, f32
    ws/bs_ref:  (Cin, Cout)/(1, Cout)  optional 1x1 shortcut (bf16 / f32)
    out_ref:    (H, W, Cout)
    xpad_ref:   (H+2, W+2, Cin)   VMEM scratch, zero-padded input (halo)
    hpad_ref:   (H+2, W+2, Cout)  VMEM scratch, zero-padded intermediate h
    """
    if has_sc:
        (x_ref, w1_ref, s1_ref, b1_ref, w2_ref, s2_ref, b2_ref,
         ws_ref, bs_ref, out_ref, xpad_ref, hpad_ref) = refs
    else:
        (x_ref, w1_ref, s1_ref, b1_ref, w2_ref, s2_ref, b2_ref,
         out_ref, xpad_ref, hpad_ref) = refs
        ws_ref = bs_ref = None

    H, W, Cin = x_ref.shape
    Cout = out_ref.shape[-1]

    def conv3x3(pad_ref, w_ref, cin):
        """3x3 conv (pad already applied in the scratch) -> f32 (H*W, Cout)."""
        xp = pad_ref[...]                                   # (H+2, W+2, cin) f32
        acc = jnp.zeros((H * W, Cout), jnp.float32)
        for t in range(9):
            dy, dx = divmod(t, 3)
            slab = xp[dy:dy + H, dx:dx + W, :].reshape(H * W, cin)
            acc = acc + jnp.dot(slab.astype(jnp.bfloat16), w_ref[t],
                                preferred_element_type=jnp.float32)
        return acc

    # ---- conv1 + BN1 + ReLU (halo handled on-chip, no HBM pad copy) --------
    xpad_ref[...] = jnp.zeros_like(xpad_ref)
    xpad_ref[1:H + 1, 1:W + 1, :] = x_ref[...]
    h = conv3x3(xpad_ref, w1_ref, Cin)
    h = jnp.maximum(h * s1_ref[...] + b1_ref[...], 0.0)     # f32 epilogue

    # ---- conv2 + BN2 + ReLU (h never leaves VMEM) ---------------------------
    hpad_ref[...] = jnp.zeros_like(hpad_ref)
    hpad_ref[1:H + 1, 1:W + 1, :] = h.reshape(H, W, Cout)
    y = conv3x3(hpad_ref, w2_ref, Cout)
    y = jnp.maximum(y * s2_ref[...] + b2_ref[...], 0.0)     # f32 epilogue

    # ---- residual -----------------------------------------------------------
    if has_sc:
        xb = x_ref[...].reshape(H * W, Cin).astype(jnp.bfloat16)
        res = jnp.dot(xb, ws_ref[...], preferred_element_type=jnp.float32)
        res = res + bs_ref[...]
    else:
        res = x_ref[...].reshape(H * W, Cin)                 # identity (Cin==Cout)

    out_ref[...] = (y + res).reshape(H, W, Cout).astype(out_ref.dtype)


# ----------------------------------------------------------------------------
# pallas_call wrapper (grid over the batch dimension)
# ----------------------------------------------------------------------------
def _bn_fold(g, be, m, v):
    s = g / jnp.sqrt(v + BN_EPS)
    return s, be - m * s


def convblockres_fwd(x, p):
    """One fused ConvBlockRes.  x: (B, H, W, Cin) NHWC float32."""
    B, H, W, Cin = x.shape
    Cout = p["w1"].shape[3]
    has_sc = "ws" in p

    # Weight prep: flatten taps, cast to bf16 for the MXU; BN folded in f32.
    w1 = p["w1"].reshape(9, Cin, Cout).astype(jnp.bfloat16)
    w2 = p["w2"].reshape(9, Cout, Cout).astype(jnp.bfloat16)
    s1, b1 = _bn_fold(p["g1"], p["be1"], p["m1"], p["v1"])
    s2, b2 = _bn_fold(p["g2"], p["be2"], p["m2"], p["v2"])

    args = [x, w1, s1.reshape(1, Cout), b1.reshape(1, Cout),
            w2, s2.reshape(1, Cout), b2.reshape(1, Cout)]
    in_specs = [
        pl.BlockSpec((None, H, W, Cin), lambda b: (b, 0, 0, 0)),
        pl.BlockSpec((9, Cin, Cout), lambda b: (0, 0, 0)),
        pl.BlockSpec((1, Cout), lambda b: (0, 0)),
        pl.BlockSpec((1, Cout), lambda b: (0, 0)),
        pl.BlockSpec((9, Cout, Cout), lambda b: (0, 0, 0)),
        pl.BlockSpec((1, Cout), lambda b: (0, 0)),
        pl.BlockSpec((1, Cout), lambda b: (0, 0)),
    ]
    if has_sc:
        args += [p["ws"].astype(jnp.bfloat16), p["bs"].reshape(1, Cout)]
        in_specs += [pl.BlockSpec((Cin, Cout), lambda b: (0, 0)),
                     pl.BlockSpec((1, Cout), lambda b: (0, 0))]

    flops = 2 * B * H * W * (9 * Cin * Cout + 9 * Cout * Cout
                             + (Cin * Cout if has_sc else 0))
    bytes_accessed = (4 * B * H * W * (Cin + Cout)          # activations in + out
                      + 2 * (int(w1.size) + int(w2.size))   # bf16 weights
                      + 4 * 4 * Cout
                      + (2 * Cin * Cout + 4 * Cout if has_sc else 0))

    return pl.pallas_call(
        functools.partial(_convblockres_kernel, has_sc=has_sc),
        out_shape=jax.ShapeDtypeStruct((B, H, W, Cout), x.dtype),
        grid=(B,),
        in_specs=in_specs,
        out_specs=pl.BlockSpec((None, H, W, Cout), lambda b: (b, 0, 0, 0)),
        scratch_shapes=[pltpu.VMEM((H + 2, W + 2, Cin), jnp.float32),
                        pltpu.VMEM((H + 2, W + 2, Cout), jnp.float32)],
        compiler_params=pltpu.CompilerParams(
            dimension_semantics=("parallel",)),
        cost_estimate=pl.CostEstimate(flops=flops, transcendentals=0,
                                      bytes_accessed=bytes_accessed),
    )(*args)


# ----------------------------------------------------------------------------
# Parameters & model forward
# ----------------------------------------------------------------------------
def init_convblockres(key, cin, cout):
    ks = jax.random.split(key, 12)
    p = {
        "w1": 0.1 * jax.random.normal(ks[0], (3, 3, cin, cout), jnp.float32),  # HWIO
        "g1": 1.0 + 0.1 * jax.random.normal(ks[1], (cout,), jnp.float32),
        "be1": 0.1 * jax.random.normal(ks[2], (cout,), jnp.float32),
        "m1": 0.1 * jax.random.normal(ks[3], (cout,), jnp.float32),
        "v1": 0.5 + jax.random.uniform(ks[4], (cout,), jnp.float32),
        "w2": 0.1 * jax.random.normal(ks[5], (3, 3, cout, cout), jnp.float32),
        "g2": 1.0 + 0.1 * jax.random.normal(ks[6], (cout,), jnp.float32),
        "be2": 0.1 * jax.random.normal(ks[7], (cout,), jnp.float32),
        "m2": 0.1 * jax.random.normal(ks[8], (cout,), jnp.float32),
        "v2": 0.5 + jax.random.uniform(ks[9], (cout,), jnp.float32),
    }
    if cin != cout:  # shortcut: 1x1 conv WITH bias (PyTorch default)
        p["ws"] = 0.1 * jax.random.normal(ks[10], (cin, cout), jnp.float32)
        p["bs"] = 0.1 * jax.random.normal(ks[11], (cout,), jnp.float32)
    return p


def init_intermediate(key, cin, cout, n_inters, n_blocks):
    layers = []
    for i in range(n_inters):
        blocks = []
        for j in range(n_blocks):
            key, sub = jax.random.split(key)
            bcin = cin if (i == 0 and j == 0) else cout
            blocks.append(init_convblockres(sub, bcin, cout))
        layers.append(blocks)
    return layers


def intermediate_fwd_nhwc(x_nhwc, layers):
    """NHWC fast path (no boundary transposes)."""
    for blocks in layers:                    # ResEncoderBlock (kernel_size=None)
        for p in blocks:                     # ConvBlockRes (fused kernel)
            x_nhwc = convblockres_fwd(x_nhwc, p)
    return x_nhwc


def intermediate_fwd(x_nchw, layers):
    """PyTorch-compatible entry point: NCHW in / NCHW out."""
    x = jnp.transpose(x_nchw, (0, 2, 3, 1))  # NCHW -> NHWC (once per stack)
    x = intermediate_fwd_nhwc(x, layers)
    return jnp.transpose(x, (0, 3, 1, 2))    # NHWC -> NCHW


# ----------------------------------------------------------------------------
# Pure-JAX reference (for correctness check)
# ----------------------------------------------------------------------------
def _ref_conv3x3(x, w):
    return lax.conv_general_dilated(
        x, w, (1, 1), "SAME",
        dimension_numbers=("NHWC", "HWIO", "NHWC"),
        precision=lax.Precision.HIGHEST,
    )


def _ref_convblockres(x, p):
    s1, b1 = _bn_fold(p["g1"], p["be1"], p["m1"], p["v1"])
    s2, b2 = _bn_fold(p["g2"], p["be2"], p["m2"], p["v2"])
    h = jnp.maximum(_ref_conv3x3(x, p["w1"]) * s1 + b1, 0.0)
    h = jnp.maximum(_ref_conv3x3(h, p["w2"]) * s2 + b2, 0.0)
    if "ws" in p:
        res = jnp.einsum("nhwc,co->nhwo", x, p["ws"],
                         precision=lax.Precision.HIGHEST) + p["bs"]
    else:
        res = x
    return h + res


def intermediate_ref(x_nchw, layers):
    x = jnp.transpose(x_nchw, (0, 2, 3, 1))
    for blocks in layers:
        for p in blocks:
            x = _ref_convblockres(x, p)
    return jnp.transpose(x, (0, 3, 1, 2))


# ----------------------------------------------------------------------------
if __name__ == "__main__":
    key = jax.random.PRNGKey(0)
    kx, kp = jax.random.split(key)

    B, Cin, Cout, H, W = 2, 4, 8, 16, 16
    n_inters, n_blocks = 2, 2

    x = jax.random.normal(kx, (B, Cin, H, W), jnp.float32)      # NCHW like PyTorch
    layers = init_intermediate(kp, Cin, Cout, n_inters, n_blocks)

    fwd = jax.jit(intermediate_fwd)
    out = jax.block_until_ready(fwd(x, layers))

    ref = jax.block_until_ready(intermediate_ref(x, layers))
    assert out.shape == (B, Cout, H, W), out.shape
    # bf16 MXU inputs with f32 accumulation: allow a slightly looser tolerance.
    assert jnp.allclose(out, ref, rtol=2e-2, atol=2e-2), \
        f"max abs err {jnp.max(jnp.abs(out - ref))}"

    print("KERNEL_OK")
</pallas_src>

<mosaic_0001>
module attributes {stable_mosaic.version = 11 : i64} {
  func.func @_convblockres_kernel(%arg0: i32, %arg1: memref<1x16x16x8xf32, #tpu.memory_space<vmem>>, %arg2: memref<9x8x8xbf16, #tpu.memory_space<vmem>>, %arg3: memref<1x8xf32, #tpu.memory_space<vmem>>, %arg4: memref<1x8xf32, #tpu.memory_space<vmem>>, %arg5: memref<9x8x8xbf16, #tpu.memory_space<vmem>>, %arg6: memref<1x8xf32, #tpu.memory_space<vmem>>, %arg7: memref<1x8xf32, #tpu.memory_space<vmem>>, %arg8: memref<1x16x16x8xf32, #tpu.memory_space<vmem>>, %arg9: memref<18x18x8xf32, #tpu.memory_space<vmem>>, %arg10: memref<18x18x8xf32, #tpu.memory_space<vmem>>) attributes {dimension_semantics = [#tpu.dimension_semantics<parallel>], iteration_bounds = array<i64: 2>, scalar_prefetch = 0 : i64, scratch_operands = 2 : i64, tpu.core_type = #tpu.core_type<tc>, window_params = [{transform_indices = @transform_0, window_bounds = array<i64: 1, 16, 16, 8>}, {pipeline_mode = #tpu.pipeline_mode<synchronous>, transform_indices = @transform_1, window_bounds = array<i64: 9, 8, 8>}, {pipeline_mode = #tpu.pipeline_mode<synchronous>, transform_indices = @transform_2, window_bounds = array<i64: 1, 8>}, {pipeline_mode = #tpu.pipeline_mode<synchronous>, transform_indices = @transform_3, window_bounds = array<i64: 1, 8>}, {pipeline_mode = #tpu.pipeline_mode<synchronous>, transform_indices = @transform_4, window_bounds = array<i64: 9, 8, 8>}, {pipeline_mode = #tpu.pipeline_mode<synchronous>, transform_indices = @transform_5, window_bounds = array<i64: 1, 8>}, {pipeline_mode = #tpu.pipeline_mode<synchronous>, transform_indices = @transform_6, window_bounds = array<i64: 1, 8>}, {transform_indices = @transform_7, window_bounds = array<i64: 1, 16, 16, 8>}]} {
    %cst = arith.constant 0.000000e+00 : f32
    %0 = vector.broadcast %cst : f32 to vector<18x18x8xf32>
    %c0 = arith.constant 0 : index
    %c0_0 = arith.constant 0 : index
    %c0_1 = arith.constant 0 : index
    %1 = vector.load %arg9[%c0, %c0_0, %c0_1] : memref<18x18x8xf32, #tpu.memory_space<vmem>>, vector<18x18x8xf32>
    tpu.vector_store %arg9[%c0, %c0_0, %c0_1], %0 {strides = array<i32>} : memref<18x18x8xf32, #tpu.memory_space<vmem>>, vector<18x18x8xf32>,
    %c0_2 = arith.constant 0 : index
    %c0_3 = arith.constant 0 : index
    %c0_4 = arith.constant 0 : index
    %c0_5 = arith.constant 0 : index
    %2 = vector.load %arg1[%c0_2, %c0_3, %c0_4, %c0_5] : memref<1x16x16x8xf32, #tpu.memory_space<vmem>>, vector<1x16x16x8xf32>
    %3 = vector.shape_cast %2 : vector<1x16x16x8xf32> to vector<16x16x8xf32>
    %c1 = arith.constant 1 : index
    %c1_6 = arith.constant 1 : index
    %c0_7 = arith.constant 0 : index
    %4 = vector.load %arg9[%c1, %c1_6, %c0_7] : memref<18x18x8xf32, #tpu.memory_space<vmem>>, vector<16x16x8xf32>
    tpu.vector_store %arg9[%c1, %c1_6, %c0_7], %3 {strides = array<i32>} : memref<18x18x8xf32, #tpu.memory_space<vmem>>, vector<16x16x8xf32>,
    %c0_8 = arith.constant 0 : index
    %c0_9 = arith.constant 0 : index
    %c0_10 = arith.constant 0 : index
    %5 = vector.load %arg9[%c0_8, %c0_9, %c0_10] : memref<18x18x8xf32, #tpu.memory_space<vmem>>, vector<18x18x8xf32>
    %cst_11 = arith.constant 0.000000e+00 : f32
    %6 = vector.broadcast %cst_11 : f32 to vector<256x8xf32>
    %7 = vector.extract_strided_slice %5 {offsets = [0, 0, 0], sizes = [16, 16, 8], strides = [1, 1, 1]} : vector<18x18x8xf32> to vector<16x16x8xf32>
    %8 = vector.shape_cast %7 : vector<16x16x8xf32> to vector<256x8xf32>
    %9 = arith.truncf %8 : vector<256x8xf32> to vector<256x8xbf16>
    %c0_12 = arith.constant 0 : index
    %c0_13 = arith.constant 0 : index
    %c0_14 = arith.constant 0 : index
    %10 = vector.load %arg2[%c0_12, %c0_13, %c0_14] : memref<9x8x8xbf16, #tpu.memory_space<vmem>>, vector<1x8x8xbf16>
    %11 = vector.shape_cast %10 : vector<1x8x8xbf16> to vector<8x8xbf16>
    %cst_15 = arith.constant dense<0.000000e+00> : vector<256x8xf32>
    %12 = tpu.matmul %9, %11, %cst_15 {dimension_numbers = #tpu.dot_dimension_numbers<[1], [0], [0], [1], [0, 0, 1, 1], [], []>} : vector<256x8xbf16>, vector<8x8xbf16>, vector<256x8xf32> -> vector<256x8xf32>
    %13 = arith.addf %6, %12 : vector<256x8xf32>
    %14 = vector.extract_strided_slice %5 {offsets = [0, 1, 0], sizes = [16, 16, 8], strides = [1, 1, 1]} : vector<18x18x8xf32> to vector<16x16x8xf32>
    %15 = vector.shape_cast %14 : vector<16x16x8xf32> to vector<256x8xf32>
    %16 = arith.truncf %15 : vector<256x8xf32> to vector<256x8xbf16>
    %c1_16 = arith.constant 1 : index
    %c0_17 = arith.constant 0 : index
    %c0_18 = arith.constant 0 : index
    %17 = vector.load %arg2[%c1_16, %c0_17, %c0_18] : memref<9x8x8xbf16, #tpu.memory_space<vmem>>, vector<1x8x8xbf16>
    %18 = vector.shape_cast %17 : vector<1x8x8xbf16> to vector<8x8xbf16>
    %cst_19 = arith.constant dense<0.000000e+00> : vector<256x8xf32>
    %19 = tpu.matmul %16, %18, %cst_19 {dimension_numbers = #tpu.dot_dimension_numbers<[1], [0], [0], [1], [0, 0, 1, 1], [], []>} : vector<256x8xbf16>, vector<8x8xbf16>, vector<256x8xf32> -> vector<256x8xf32>
    %20 = arith.addf %13, %19 : vector<256x8xf32>
    %21 = vector.extract_strided_slice %5 {offsets = [0, 2, 0], sizes = [16, 16, 8], strides = [1, 1, 1]} : vector<18x18x8xf32> to vector<16x16x8xf32>
    %22 = vector.shape_cast %21 : vector<16x16x8xf32> to vector<256x8xf32>
    %23 = arith.truncf %22 : vector<256x8xf32> to vector<256x8xbf16>
    %c2 = arith.constant 2 : index
    %c0_20 = arith.constant 0 : index
    %c0_21 = arith.constant 0 : index
    %24 = vector.load %arg2[%c2, %c0_20, %c0_21] : memref<9x8x8xbf16, #tpu.memory_space<vmem>>, vector<1x8x8xbf16>
    %25 = vector.shape_cast %24 : vector<1x8x8xbf16> to vector<8x8xbf16>
    %cst_22 = arith.constant dense<0.000000e+00> : vector<256x8xf32>
    %26 = tpu.matmul %23, %25, %cst_22 {dimension_numbers = #tpu.dot_dimension_numbers<[1], [0], [0], [1], [0, 0, 1, 1], [], []>} : vector<256x8xbf16>, vector<8x8xbf16>, vector<256x8xf32> -> vector<256x8xf32>
    %27 = arith.addf %20, %26 : vector<256x8xf32>
    %28 = vector.extract_strided_slice %5 {offsets = [1, 0, 0], sizes = [16, 16, 8], strides = [1, 1, 1]} : vector<18x18x8xf32> to vector<16x16x8xf32>
    %29 = vector.shape_cast %28 : vector<16x16x8xf32> to vector<256x8xf32>
    %30 = arith.truncf %29 : vector<256x8xf32> to vector<256x8xbf16>
    %c3 = arith.constant 3 : index
    %c0_23 = arith.constant 0 : index
    %c0_24 = arith.constant 0 : index
    %31 = vector.load %arg2[%c3, %c0_23, %c0_24] : memref<9x8x8xbf16, #tpu.memory_space<vmem>>, vector<1x8x8xbf16>
    %32 = vector.shape_cast %31 : vector<1x8x8xbf16> to vector<8x8xbf16>
    %cst_25 = arith.constant dense<0.000000e+00> : vector<256x8xf32>
    %33 = tpu.matmul %30, %32, %cst_25 {dimension_numbers = #tpu.dot_dimension_numbers<[1], [0], [0], [1], [0, 0, 1, 1], [], []>} : vector<256x8xbf16>, vector<8x8xbf16>, vector<256x8xf32> -> vector<256x8xf32>
    %34 = arith.addf %27, %33 : vector<256x8xf32>
    %35 = vector.extract_strided_slice %5 {offsets = [1, 1, 0], sizes = [16, 16, 8], strides = [1, 1, 1]} : vector<18x18x8xf32> to vector<16x16x8xf32>
    %36 = vector.shape_cast %35 : vector<16x16x8xf32> to vector<256x8xf32>
    %37 = arith.truncf %36 : vector<256x8xf32> to vector<256x8xbf16>
    %c4 = arith.constant 4 : index
    %c0_26 = arith.constant 0 : index
    %c0_27 = arith.constant 0 : index
    %38 = vector.load %arg2[%c4, %c0_26, %c0_27] : memref<9x8x8xbf16, #tpu.memory_space<vmem>>, vector<1x8x8xbf16>
    %39 = vector.shape_cast %38 : vector<1x8x8xbf16> to vector<8x8xbf16>
    %cst_28 = arith.constant dense<0.000000e+00> : vector<256x8xf32>
    %40 = tpu.matmul %37, %39, %cst_28 {dimension_numbers = #tpu.dot_dimension_numbers<[1], [0], [0], [1], [0, 0, 1, 1], [], []>} : vector<256x8xbf16>, vector<8x8xbf16>, vector<256x8xf32> -> vector<256x8xf32>
    %41 = arith.addf %34, %40 : vector<256x8xf32>
    %42 = vector.extract_strided_slice %5 {offsets = [1, 2, 0], sizes = [16, 16, 8], strides = [1, 1, 1]} : vector<18x18x8xf32> to vector<16x16x8xf32>
    %43 = vector.shape_cast %42 : vector<16x16x8xf32> to vector<256x8xf32>
    %44 = arith.truncf %43 : vector<256x8xf32> to vector<256x8xbf16>
    %c5 = arith.constant 5 : index
    %c0_29 = arith.constant 0 : index
    %c0_30 = arith.constant 0 : index
    %45 = vector.load %arg2[%c5, %c0_29, %c0_30] : memref<9x8x8xbf16, #tpu.memory_space<vmem>>, vector<1x8x8xbf16>
    %46 = vector.shape_cast %45 : vector<1x8x8xbf16> to vector<8x8xbf16>
    %cst_31 = arith.constant dense<0.000000e+00> : vector<256x8xf32>
    %47 = tpu.matmul %44, %46, %cst_31 {dimension_numbers = #tpu.dot_dimension_numbers<[1], [0], [0], [1], [0, 0, 1, 1], [], []>} : vector<256x8xbf16>, vector<8x8xbf16>, vector<256x8xf32> -> vector<256x8xf32>
    %48 = arith.addf %41, %47 : vector<256x8xf32>
    %49 = vector.extract_strided_slice %5 {offsets = [2, 0, 0], sizes = [16, 16, 8], strides = [1, 1, 1]} : vector<18x18x8xf32> to vector<16x16x8xf32>
    %50 = vector.shape_cast %49 : vector<16x16x8xf32> to vector<256x8xf32>
    %51 = arith.truncf %50 : vector<256x8xf32> to vector<256x8xbf16>
    %c6 = arith.constant 6 : index
    %c0_32 = arith.constant 0 : index
    %c0_33 = arith.constant 0 : index
    %52 = vector.load %arg2[%c6, %c0_32, %c0_33] : memref<9x8x8xbf16, #tpu.memory_space<vmem>>, vector<1x8x8xbf16>
    %53 = vector.shape_cast %52 : vector<1x8x8xbf16> to vector<8x8xbf16>
    %cst_34 = arith.constant dense<0.000000e+00> : vector<256x8xf32>
    %54 = tpu.matmul %51, %53, %cst_34 {dimension_numbers = #tpu.dot_dimension_numbers<[1], [0], [0], [1], [0, 0, 1, 1], [], []>} : vector<256x8xbf16>, vector<8x8xbf16>, vector<256x8xf32> -> vector<256x8xf32>
    %55 = arith.addf %48, %54 : vector<256x8xf32>
    %56 = vector.extract_strided_slice %5 {offsets = [2, 1, 0], sizes = [16, 16, 8], strides = [1, 1, 1]} : vector<18x18x8xf32> to vector<16x16x8xf32>
    %57 = vector.shape_cast %56 : vector<16x16x8xf32> to vector<256x8xf32>
    %58 = arith.truncf %57 : vector<256x8xf32> to vector<256x8xbf16>
    %c7 = arith.constant 7 : index
    %c0_35 = arith.constant 0 : index
    %c0_36 = arith.constant 0 : index
    %59 = vector.load %arg2[%c7, %c0_35, %c0_36] : memref<9x8x8xbf16, #tpu.memory_space<vmem>>, vector<1x8x8xbf16>
    %60 = vector.shape_cast %59 : vector<1x8x8xbf16> to vector<8x8xbf16>
    %cst_37 = arith.constant dense<0.000000e+00> : vector<256x8xf32>
    %61 = tpu.matmul %58, %60, %cst_37 {dimension_numbers = #tpu.dot_dimension_numbers<[1], [0], [0], [1], [0, 0, 1, 1], [], []>} : vector<256x8xbf16>, vector<8x8xbf16>, vector<256x8xf32> -> vector<256x8xf32>
    %62 = arith.addf %55, %61 : vector<256x8xf32>
    %63 = vector.extract_strided_slice %5 {offsets = [2, 2, 0], sizes = [16, 16, 8], strides = [1, 1, 1]} : vector<18x18x8xf32> to vector<16x16x8xf32>
    %64 = vector.shape_cast %63 : vector<16x16x8xf32> to vector<256x8xf32>
    %65 = arith.truncf %64 : vector<256x8xf32> to vector<256x8xbf16>
    %c8 = arith.constant 8 : index
    %c0_38 = arith.constant 0 : index
    %c0_39 = arith.constant 0 : index
    %66 = vector.load %arg2[%c8, %c0_38, %c0_39] : memref<9x8x8xbf16, #tpu.memory_space<vmem>>, vector<1x8x8xbf16>
    %67 = vector.shape_cast %66 : vector<1x8x8xbf16> to vector<8x8xbf16>
    %cst_40 = arith.constant dense<0.000000e+00> : vector<256x8xf32>
    %68 = tpu.matmul %65, %67, %cst_40 {dimension_numbers = #tpu.dot_dimension_numbers<[1], [0], [0], [1], [0, 0, 1, 1], [], []>} : vector<256x8xbf16>, vector<8x8xbf16>, vector<256x8xf32> -> vector<256x8xf32>
    %69 = arith.addf %62, %68 : vector<256x8xf32>
    %c0_41 = arith.constant 0 : index
    %c0_42 = arith.constant 0 : index
    %70 = vector.load %arg3[%c0_41, %c0_42] : memref<1x8xf32, #tpu.memory_space<vmem>>, vector<1x8xf32>
    %71 = vector.broadcast %70 : vector<1x8xf32> to vector<256x8xf32>
    %72 = arith.mulf %69, %71 : vector<256x8xf32>
    %c0_43 = arith.constant 0 : index
    %c0_44 = arith.constant 0 : index
    %73 = vector.load %arg4[%c0_43, %c0_44] : memref<1x8xf32, #tpu.memory_space<vmem>>, vector<1x8xf32>
    %74 = vector.broadcast %73 : vector<1x8xf32> to vector<256x8xf32>
    %75 = arith.addf %72, %74 : vector<256x8xf32>
    %cst_45 = arith.constant 0.000000e+00 : f32
    %76 = vector.broadcast %cst_45 : f32 to vector<256x8xf32>
    %77 = arith.maximumf %75, %76 : vector<256x8xf32>
    %cst_46 = arith.constant 0.000000e+00 : f32
    %78 = vector.broadcast %cst_46 : f32 to vector<18x18x8xf32>
    %c0_47 = arith.constant 0 : index
    %c0_48 = arith.constant 0 : index
    %c0_49 = arith.constant 0 : index
    %79 = vector.load %arg10[%c0_47, %c0_48, %c0_49] : memref<18x18x8xf32, #tpu.memory_space<vmem>>, vector<18x18x8xf32>
    tpu.vector_store %arg10[%c0_47, %c0_48, %c0_49], %78 {strides = array<i32>} : memref<18x18x8xf32, #tpu.memory_space<vmem>>, vector<18x18x8xf32>,
    %80 = vector.shape_cast %77 : vector<256x8xf32> to vector<16x16x8xf32>
    %c1_50 = arith.constant 1 : index
    %c1_51 = arith.constant 1 : index
    %c0_52 = arith.constant 0 : index
    %81 = vector.load %arg10[%c1_50, %c1_51, %c0_52] : memref<18x18x8xf32, #tpu.memory_space<vmem>>, vector<16x16x8xf32>
    tpu.vector_store %arg10[%c1_50, %c1_51, %c0_52], %80 {strides = array<i32>} : memref<18x18x8xf32, #tpu.memory_space<vmem>>, vector<16x16x8xf32>,
    %c0_53 = arith.constant 0 : index
    %c0_54 = arith.constant 0 : index
    %c0_55 = arith.constant 0 : index
    %82 = vector.load %arg10[%c0_53, %c0_54, %c0_55] : memref<18x18x8xf32, #tpu.memory_space<vmem>>, vector<18x18x8xf32>
    %cst_56 = arith.constant 0.000000e+00 : f32
    %83 = vector.broadcast %cst_56 : f32 to vector<256x8xf32>
    %84 = vector.extract_strided_slice %82 {offsets = [0, 0, 0], sizes = [16, 16, 8], strides = [1, 1, 1]} : vector<18x18x8xf32> to vector<16x16x8xf32>
    %85 = vector.shape_cast %84 : vector<16x16x8xf32> to vector<256x8xf32>
    %86 = arith.truncf %85 : vector<256x8xf32> to vector<256x8xbf16>
    %c0_57 = arith.constant 0 : index
    %c0_58 = arith.constant 0 : index
    %c0_59 = arith.constant 0 : index
    %87 = vector.load %arg5[%c0_57, %c0_58, %c0_59] : memref<9x8x8xbf16, #tpu.memory_space<vmem>>, vector<1x8x8xbf16>
    %88 = vector.shape_cast %87 : vector<1x8x8xbf16> to vector<8x8xbf16>
    %cst_60 = arith.constant dense<0.000000e+00> : vector<256x8xf32>
    %89 = tpu.matmul %86, %88, %cst_60 {dimension_numbers = #tpu.dot_dimension_numbers<[1], [0], [0], [1], [0, 0, 1, 1], [], []>} : vector<256x8xbf16>, vector<8x8xbf16>, vector<256x8xf32> -> vector<256x8xf32>
    %90 = arith.addf %83, %89 : vector<256x8xf32>
    %91 = vector.extract_strided_slice %82 {offsets = [0, 1, 0], sizes = [16, 16, 8], strides = [1, 1, 1]} : vector<18x18x8xf32> to vector<16x16x8xf32>
    %92 = vector.shape_cast %91 : vector<16x16x8xf32> to vector<256x8xf32>
    %93 = arith.truncf %92 : vector<256x8xf32> to vector<256x8xbf16>
    %c1_61 = arith.constant 1 : index
    %c0_62 = arith.constant 0 : index
    %c0_63 = arith.constant 0 : index
    %94 = vector.load %arg5[%c1_61, %c0_62, %c0_63] : memref<9x8x8xbf16, #tpu.memory_space<vmem>>, vector<1x8x8xbf16>
    %95 = vector.shape_cast %94 : vector<1x8x8xbf16> to vector<8x8xbf16>
    %cst_64 = arith.constant dense<0.000000e+00> : vector<256x8xf32>
    %96 = tpu.matmul %93, %95, %cst_64 {dimension_numbers = #tpu.dot_dimension_numbers<[1], [0], [0], [1], [0, 0, 1, 1], [], []>} : vector<256x8xbf16>, vector<8x8xbf16>, vector<256x8xf32> -> vector<256x8xf32>
    %97 = arith.addf %90, %96 : vector<256x8xf32>
    %98 = vector.extract_strided_slice %82 {offsets = [0, 2, 0], sizes = [16, 16, 8], strides = [1, 1, 1]} : vector<18x18x8xf32> to vector<16x16x8xf32>
    %99 = vector.shape_cast %98 : vector<16x16x8xf32> to vector<256x8xf32>
    %100 = arith.truncf %99 : vector<256x8xf32> to vector<256x8xbf16>
    %c2_65 = arith.constant 2 : index
    %c0_66 = arith.constant 0 : index
    %c0_67 = arith.constant 0 : index
    %101 = vector.load %arg5[%c2_65, %c0_66, %c0_67] : memref<9x8x8xbf16, #tpu.memory_space<vmem>>, vector<1x8x8xbf16>
    %102 = vector.shape_cast %101 : vector<1x8x8xbf16> to vector<8x8xbf16>
    %cst_68 = arith.constant dense<0.000000e+00> : vector<256x8xf32>
    %103 = tpu.matmul %100, %102, %cst_68 {dimension_numbers = #tpu.dot_dimension_numbers<[1], [0], [0], [1], [0, 0, 1, 1], [], []>} : vector<256x8xbf16>, vector<8x8xbf16>, vector<256x8xf32> -> vector<256x8xf32>
    %104 = arith.addf %97, %103 : vector<256x8xf32>
    %105 = vector.extract_strided_slice %82 {offsets = [1, 0, 0], sizes = [16, 16, 8], strides = [1, 1, 1]} : vector<18x18x8xf32> to vector<16x16x8xf32>
    %106 = vector.shape_cast %105 : vector<16x16x8xf32> to vector<256x8xf32>
    %107 = arith.truncf %106 : vector<256x8xf32> to vector<256x8xbf16>
    %c3_69 = arith.constant 3 : index
    %c0_70 = arith.constant 0 : index
    %c0_71 = arith.constant 0 : index
    %108 = vector.load %arg5[%c3_69, %c0_70, %c0_71] : memref<9x8x8xbf16, #tpu.memory_space<vmem>>, vector<1x8x8xbf16>
    %109 = vector.shape_cast %108 : vector<1x8x8xbf16> to vector<8x8xbf16>
    %cst_72 = arith.constant dense<0.000000e+00> : vector<256x8xf32>
    %110 = tpu.matmul %107, %109, %cst_72 {dimension_numbers = #tpu.dot_dimension_numbers<[1], [0], [0], [1], [0, 0, 1, 1], [], []>} : vector<256x8xbf16>, vector<8x8xbf16>, vector<256x8xf32> -> vector<256x8xf32>
    %111 = arith.addf %104, %110 : vector<256x8xf32>
    %112 = vector.extract_strided_slice %82 {offsets = [1, 1, 0], sizes = [16, 16, 8], strides = [1, 1, 1]} : vector<18x18x8xf32> to vector<16x16x8xf32>
    %113 = vector.shape_cast %112 : vector<16x16x8xf32> to vector<256x8xf32>
    %114 = arith.truncf %113 : vector<256x8xf32> to vector<256x8xbf16>
    %c4_73 = arith.constant 4 : index
    %c0_74 = arith.constant 0 : index
    %c0_75 = arith.constant 0 : index
    %115 = vector.load %arg5[%c4_73, %c0_74, %c0_75] : memref<9x8x8xbf16, #tpu.memory_space<vmem>>, vector<1x8x8xbf16>
    %116 = vector.shape_cast %115 : vector<1x8x8xbf16> to vector<8x8xbf16>
    %cst_76 = arith.constant dense<0.000000e+00> : vector<256x8xf32>
    %117 = tpu.matmul %114, %116, %cst_76 {dimension_numbers = #tpu.dot_dimension_numbers<[1], [0], [0], [1], [0, 0, 1, 1], [], []>} : vector<256x8xbf16>, vector<8x8xbf16>, vector<256x8xf32> -> vector<256x8xf32>
    %118 = arith.addf %111, %117 : vector<256x8xf32>
    %119 = vector.extract_strided_slice %82 {offsets = [1, 2, 0], sizes = [16, 16, 8], strides = [1, 1, 1]} : vector<18x18x8xf32> to vector<16x16x8xf32>
    %120 = vector.shape_cast %119 : vector<16x16x8xf32> to vector<256x8xf32>
    %121 = arith.truncf %120 : vector<256x8xf32> to vector<256x8xbf16>
    %c5_77 = arith.constant 5 : index
    %c0_78 = arith.constant 0 : index
    %c0_79 = arith.constant 0 : index
    %122 = vector.load %arg5[%c5_77, %c0_78, %c0_79] : memref<9x8x8xbf16, #tpu.memory_space<vmem>>, vector<1x8x8xbf16>
    %123 = vector.shape_cast %122 : vector<1x8x8xbf16> to vector<8x8xbf16>
    %cst_80 = arith.constant dense<0.000000e+00> : vector<256x8xf32>
    %124 = tpu.matmul %121, %123, %cst_80 {dimension_numbers = #tpu.dot_dimension_numbers<[1], [0], [0], [1], [0, 0, 1, 1], [], []>} : vector<256x8xbf16>, vector<8x8xbf16>, vector<256x8xf32> -> vector<256x8xf32>
    %125 = arith.addf %118, %124 : vector<256x8xf32>
    %126 = vector.extract_strided_slice %82 {offsets = [2, 0, 0], sizes = [16, 16, 8], strides = [1, 1, 1]} : vector<18x18x8xf32> to vector<16x16x8xf32>
    %127 = vector.shape_cast %126 : vector<16x16x8xf32> to vector<256x8xf32>
    %128 = arith.truncf %127 : vector<256x8xf32> to vector<256x8xbf16>
    %c6_81 = arith.constant 6 : index
    %c0_82 = arith.constant 0 : index
    %c0_83 = arith.constant 0 : index
    %129 = vector.load %arg5[%c6_81, %c0_82, %c0_83] : memref<9x8x8xbf16, #tpu.memory_space<vmem>>, vector<1x8x8xbf16>
    %130 = vector.shape_cast %129 : vector<1x8x8xbf16> to vector<8x8xbf16>
    %cst_84 = arith.constant dense<0.000000e+00> : vector<256x8xf32>
    %131 = tpu.matmul %128, %130, %cst_84 {dimension_numbers = #tpu.dot_dimension_numbers<[1], [0], [0], [1], [0, 0, 1, 1], [], []>} : vector<256x8xbf16>, vector<8x8xbf16>, vector<256x8xf32> -> vector<256x8xf32>
    %132 = arith.addf %125, %131 : vector<256x8xf32>
    %133 = vector.extract_strided_slice %82 {offsets = [2, 1, 0], sizes = [16, 16, 8], strides = [1, 1, 1]} : vector<18x18x8xf32> to vector<16x16x8xf32>
    %134 = vector.shape_cast %133 : vector<16x16x8xf32> to vector<256x8xf32>
    %135 = arith.truncf %134 : vector<256x8xf32> to vector<256x8xbf16>
    %c7_85 = arith.constant 7 : index
    %c0_86 = arith.constant 0 : index
    %c0_87 = arith.constant 0 : index
    %136 = vector.load %arg5[%c7_85, %c0_86, %c0_87] : memref<9x8x8xbf16, #tpu.memory_space<vmem>>, vector<1x8x8xbf16>
    %137 = vector.shape_cast %136 : vector<1x8x8xbf16> to vector<8x8xbf16>
    %cst_88 = arith.constant dense<0.000000e+00> : vector<256x8xf32>
    %138 = tpu.matmul %135, %137, %cst_88 {dimension_numbers = #tpu.dot_dimension_numbers<[1], [0], [0], [1], [0, 0, 1, 1], [], []>} : vector<256x8xbf16>, vector<8x8xbf16>, vector<256x8xf32> -> vector<256x8xf32>
    %139 = arith.addf %132, %138 : vector<256x8xf32>
    %140 = vector.extract_strided_slice %82 {offsets = [2, 2, 0], sizes = [16, 16, 8], strides = [1, 1, 1]} : vector<18x18x8xf32> to vector<16x16x8xf32>
    %141 = vector.shape_cast %140 : vector<16x16x8xf32> to vector<256x8xf32>
    %142 = arith.truncf %141 : vector<256x8xf32> to vector<256x8xbf16>
    %c8_89 = arith.constant 8 : index
    %c0_90 = arith.constant 0 : index
    %c0_91 = arith.constant 0 : index
    %143 = vector.load %arg5[%c8_89, %c0_90, %c0_91] : memref<9x8x8xbf16, #tpu.memory_space<vmem>>, vector<1x8x8xbf16>
    %144 = vector.shape_cast %143 : vector<1x8x8xbf16> to vector<8x8xbf16>
    %cst_92 = arith.constant dense<0.000000e+00> : vector<256x8xf32>
    %145 = tpu.matmul %142, %144, %cst_92 {dimension_numbers = #tpu.dot_dimension_numbers<[1], [0], [0], [1], [0, 0, 1, 1], [], []>} : vector<256x8xbf16>, vector<8x8xbf16>, vector<256x8xf32> -> vector<256x8xf32>
    %146 = arith.addf %139, %145 : vector<256x8xf32>
    %c0_93 = arith.constant 0 : index
    %c0_94 = arith.constant 0 : index
    %147 = vector.load %arg6[%c0_93, %c0_94] : memref<1x8xf32, #tpu.memory_space<vmem>>, vector<1x8xf32>
    %148 = vector.broadcast %147 : vector<1x8xf32> to vector<256x8xf32>
    %149 = arith.mulf %146, %148 : vector<256x8xf32>
    %c0_95 = arith.constant 0 : index
    %c0_96 = arith.constant 0 : index
    %150 = vector.load %arg7[%c0_95, %c0_96] : memref<1x8xf32, #tpu.memory_space<vmem>>, vector<1x8xf32>
    %151 = vector.broadcast %150 : vector<1x8xf32> to vector<256x8xf32>
    %152 = arith.addf %149, %151 : vector<256x8xf32>
    %cst_97 = arith.constant 0.000000e+00 : f32
    %153 = vector.broadcast %cst_97 : f32 to vector<256x8xf32>
    %154 = arith.maximumf %152, %153 : vector<256x8xf32>
    %c0_98 = arith.constant 0 : index
    %c0_99 = arith.constant 0 : index
    %c0_100 = arith.constant 0 : index
    %c0_101 = arith.constant 0 : index
    %155 = vector.load %arg1[%c0_98, %c0_99, %c0_100, %c0_101] : memref<1x16x16x8xf32, #tpu.memory_space<vmem>>, vector<1x16x16x8xf32>
    %156 = vector.shape_cast %155 : vector<1x16x16x8xf32> to vector<16x16x8xf32>
    %157 = vector.shape_cast %156 : vector<16x16x8xf32> to vector<256x8xf32>
    %158 = arith.addf %154, %157 : vector<256x8xf32>
    %159 = vector.shape_cast %158 : vector<256x8xf32> to vector<16x16x8xf32>
    %c0_102 = arith.constant 0 : index
    %c0_103 = arith.constant 0 : index
    %c0_104 = arith.constant 0 : index
    %c0_105 = arith.constant 0 : index
    %160 = vector.load %arg8[%c0_102, %c0_103, %c0_104, %c0_105] : memref<1x16x16x8xf32, #tpu.memory_space<vmem>>, vector<1x16x16x8xf32>
    %161 = vector.shape_cast %160 : vector<1x16x16x8xf32> to vector<16x16x8xf32>
    %162 = vector.shape_cast %159 : vector<16x16x8xf32> to vector<1x16x16x8xf32>
    tpu.vector_store %arg8[%c0_102, %c0_103, %c0_104, %c0_105], %162 {strides = array<i32>} : memref<1x16x16x8xf32, #tpu.memory_space<vmem>>, vector<1x16x16x8xf32>,
    return
  }
  func.func @transform_0(%arg0: i32) -> (i32, i32, i32, i32) {
    %c0_i32 = arith.constant 0 : i32
    %c0_i32_0 = arith.constant 0 : i32
    %c0_i32_1 = arith.constant 0 : i32
    %c0_i32_2 = arith.constant 0 : i32
    return %arg0, %c0_i32, %c0_i32_0, %c0_i32_1 : i32, i32, i32, i32
  }
  func.func @transform_1(%arg0: i32) -> (i32, i32, i32) {
    %c0_i32 = arith.constant 0 : i32
    %c0_i32_0 = arith.constant 0 : i32
    %c0_i32_1 = arith.constant 0 : i32
    %c0_i32_2 = arith.constant 0 : i32
    return %c0_i32, %c0_i32_0, %c0_i32_1 : i32, i32, i32
  }
  func.func @transform_2(%arg0: i32) -> (i32, i32) {
    %c0_i32 = arith.constant 0 : i32
    %c0_i32_0 = arith.constant 0 : i32
    %c0_i32_1 = arith.constant 0 : i32
    return %c0_i32, %c0_i32_0 : i32, i32
  }
  func.func @transform_3(%arg0: i32) -> (i32, i32) {
    %c0_i32 = arith.constant 0 : i32
    %c0_i32_0 = arith.constant 0 : i32
    %c0_i32_1 = arith.constant 0 : i32
    return %c0_i32, %c0_i32_0 : i32, i32
  }
  func.func @transform_4(%arg0: i32) -> (i32, i32, i32) {
    %c0_i32 = arith.constant 0 : i32
    %c0_i32_0 = arith.constant 0 : i32
    %c0_i32_1 = arith.constant 0 : i32
    %c0_i32_2 = arith.constant 0 : i32
    return %c0_i32, %c0_i32_0, %c0_i32_1 : i32, i32, i32
  }
  func.func @transform_5(%arg0: i32) -> (i32, i32) {
    %c0_i32 = arith.constant 0 : i32
    %c0_i32_0 = arith.constant 0 : i32
    %c0_i32_1 = arith.constant 0 : i32
    return %c0_i32, %c0_i32_0 : i32, i32
  }
  func.func @transform_6(%arg0: i32) -> (i32, i32) {
    %c0_i32 = arith.constant 0 : i32
    %c0_i32_0 = arith.constant 0 : i32
    %c0_i32_1 = arith.constant 0 : i32
    return %c0_i32, %c0_i32_0 : i32, i32
  }
  func.func @transform_7(%arg0: i32) -> (i32, i32, i32, i32) {
    %c0_i32 = arith.constant 0 : i32
    %c0_i32_0 = arith.constant 0 : i32
    %c0_i32_1 = arith.constant 0 : i32
    %c0_i32_2 = arith.constant 0 : i32
    return %arg0, %c0_i32, %c0_i32_0, %c0_i32_1 : i32, i32, i32, i32
  }
}

module attributes {stable_mosaic.version = 11 : i64} {
  func.func @_convblockres_kernel(%arg0: i32, %arg1: memref<1x16x16x4xf32, #tpu.memory_space<vmem>>, %arg2: memref<9x4x8xbf16, #tpu.memory_space<vmem>>, %arg3: memref<1x8xf32, #tpu.memory_space<vmem>>, %arg4: memref<1x8xf32, #tpu.memory_space<vmem>>, %arg5: memref<9x8x8xbf16, #tpu.memory_space<vmem>>, %arg6: memref<1x8xf32, #tpu.memory_space<vmem>>, %arg7: memref<1x8xf32, #tpu.memory_space<vmem>>, %arg8: memref<4x8xbf16, #tpu.memory_space<vmem>>, %arg9: memref<1x8xf32, #tpu.memory_space<vmem>>, %arg10: memref<1x16x16x8xf32, #tpu.memory_space<vmem>>, %arg11: memref<18x18x4xf32, #tpu.memory_space<vmem>>, %arg12: memref<18x18x8xf32, #tpu.memory_space<vmem>>) attributes {dimension_semantics = [#tpu.dimension_semantics<parallel>], iteration_bounds = array<i64: 2>, scalar_prefetch = 0 : i64, scratch_operands = 2 : i64, tpu.core_type = #tpu.core_type<tc>, window_params = [{transform_indices = @transform_0, window_bounds = array<i64: 1, 16, 16, 4>}, {pipeline_mode = #tpu.pipeline_mode<synchronous>, transform_indices = @transform_1, window_bounds = array<i64: 9, 4, 8>}, {pipeline_mode = #tpu.pipeline_mode<synchronous>, transform_indices = @transform_2, window_bounds = array<i64: 1, 8>}, {pipeline_mode = #tpu.pipeline_mode<synchronous>, transform_indices = @transform_3, window_bounds = array<i64: 1, 8>}, {pipeline_mode = #tpu.pipeline_mode<synchronous>, transform_indices = @transform_4, window_bounds = array<i64: 9, 8, 8>}, {pipeline_mode = #tpu.pipeline_mode<synchronous>, transform_indices = @transform_5, window_bounds = array<i64: 1, 8>}, {pipeline_mode = #tpu.pipeline_mode<synchronous>, transform_indices = @transform_6, window_bounds = array<i64: 1, 8>}, {pipeline_mode = #tpu.pipeline_mode<synchronous>, transform_indices = @transform_7, window_bounds = array<i64: 4, 8>}, {pipeline_mode = #tpu.pipeline_mode<synchronous>, transform_indices = @transform_8, window_bounds = array<i64: 1, 8>}, {transform_indices = @transform_9, window_bounds = array<i64: 1, 16, 16, 8>}]} {
    %cst = arith.constant 0.000000e+00 : f32
    %0 = vector.broadcast %cst : f32 to vector<18x18x4xf32>
    %c0 = arith.constant 0 : index
    %c0_0 = arith.constant 0 : index
    %c0_1 = arith.constant 0 : index
    %1 = vector.load %arg11[%c0, %c0_0, %c0_1] : memref<18x18x4xf32, #tpu.memory_space<vmem>>, vector<18x18x4xf32>
    tpu.vector_store %arg11[%c0, %c0_0, %c0_1], %0 {strides = array<i32>} : memref<18x18x4xf32, #tpu.memory_space<vmem>>, vector<18x18x4xf32>,
    %c0_2 = arith.constant 0 : index
    %c0_3 = arith.constant 0 : index
    %c0_4 = arith.constant 0 : index
    %c0_5 = arith.constant 0 : index
    %2 = vector.load %arg1[%c0_2, %c0_3, %c0_4, %c0_5] : memref<1x16x16x4xf32, #tpu.memory_space<vmem>>, vector<1x16x16x4xf32>
    %3 = vector.shape_cast %2 : vector<1x16x16x4xf32> to vector<16x16x4xf32>
    %c1 = arith.constant 1 : index
    %c1_6 = arith.constant 1 : index
    %c0_7 = arith.constant 0 : index
    %4 = vector.load %arg11[%c1, %c1_6, %c0_7] : memref<18x18x4xf32, #tpu.memory_space<vmem>>, vector<16x16x4xf32>
    tpu.vector_store %arg11[%c1, %c1_6, %c0_7], %3 {strides = array<i32>} : memref<18x18x4xf32, #tpu.memory_space<vmem>>, vector<16x16x4xf32>,
    %c0_8 = arith.constant 0 : index
    %c0_9 = arith.constant 0 : index
    %c0_10 = arith.constant 0 : index
    %5 = vector.load %arg11[%c0_8, %c0_9, %c0_10] : memref<18x18x4xf32, #tpu.memory_space<vmem>>, vector<18x18x4xf32>
    %cst_11 = arith.constant 0.000000e+00 : f32
    %6 = vector.broadcast %cst_11 : f32 to vector<256x8xf32>
    %7 = vector.extract_strided_slice %5 {offsets = [0, 0, 0], sizes = [16, 16, 4], strides = [1, 1, 1]} : vector<18x18x4xf32> to vector<16x16x4xf32>
    %8 = vector.shape_cast %7 : vector<16x16x4xf32> to vector<256x4xf32>
    %9 = arith.truncf %8 : vector<256x4xf32> to vector<256x4xbf16>
    %c0_12 = arith.constant 0 : index
    %c0_13 = arith.constant 0 : index
    %c0_14 = arith.constant 0 : index
    %10 = vector.load %arg2[%c0_12, %c0_13, %c0_14] : memref<9x4x8xbf16, #tpu.memory_space<vmem>>, vector<1x4x8xbf16>
    %11 = vector.shape_cast %10 : vector<1x4x8xbf16> to vector<4x8xbf16>
    %cst_15 = arith.constant dense<0.000000e+00> : vector<256x8xf32>
    %12 = tpu.matmul %9, %11, %cst_15 {dimension_numbers = #tpu.dot_dimension_numbers<[1], [0], [0], [1], [0, 0, 1, 1], [], []>} : vector<256x4xbf16>, vector<4x8xbf16>, vector<256x8xf32> -> vector<256x8xf32>
    %13 = arith.addf %6, %12 : vector<256x8xf32>
    %14 = vector.extract_strided_slice %5 {offsets = [0, 1, 0], sizes = [16, 16, 4], strides = [1, 1, 1]} : vector<18x18x4xf32> to vector<16x16x4xf32>
    %15 = vector.shape_cast %14 : vector<16x16x4xf32> to vector<256x4xf32>
    %16 = arith.truncf %15 : vector<256x4xf32> to vector<256x4xbf16>
    %c1_16 = arith.constant 1 : index
    %c0_17 = arith.constant 0 : index
    %c0_18 = arith.constant 0 : index
    %17 = vector.load %arg2[%c1_16, %c0_17, %c0_18] : memref<9x4x8xbf16, #tpu.memory_space<vmem>>, vector<1x4x8xbf16>
    %18 = vector.shape_cast %17 : vector<1x4x8xbf16> to vector<4x8xbf16>
    %cst_19 = arith.constant dense<0.000000e+00> : vector<256x8xf32>
    %19 = tpu.matmul %16, %18, %cst_19 {dimension_numbers = #tpu.dot_dimension_numbers<[1], [0], [0], [1], [0, 0, 1, 1], [], []>} : vector<256x4xbf16>, vector<4x8xbf16>, vector<256x8xf32> -> vector<256x8xf32>
    %20 = arith.addf %13, %19 : vector<256x8xf32>
    %21 = vector.extract_strided_slice %5 {offsets = [0, 2, 0], sizes = [16, 16, 4], strides = [1, 1, 1]} : vector<18x18x4xf32> to vector<16x16x4xf32>
    %22 = vector.shape_cast %21 : vector<16x16x4xf32> to vector<256x4xf32>
    %23 = arith.truncf %22 : vector<256x4xf32> to vector<256x4xbf16>
    %c2 = arith.constant 2 : index
    %c0_20 = arith.constant 0 : index
    %c0_21 = arith.constant 0 : index
    %24 = vector.load %arg2[%c2, %c0_20, %c0_21] : memref<9x4x8xbf16, #tpu.memory_space<vmem>>, vector<1x4x8xbf16>
    %25 = vector.shape_cast %24 : vector<1x4x8xbf16> to vector<4x8xbf16>
    %cst_22 = arith.constant dense<0.000000e+00> : vector<256x8xf32>
    %26 = tpu.matmul %23, %25, %cst_22 {dimension_numbers = #tpu.dot_dimension_numbers<[1], [0], [0], [1], [0, 0, 1, 1], [], []>} : vector<256x4xbf16>, vector<4x8xbf16>, vector<256x8xf32> -> vector<256x8xf32>
    %27 = arith.addf %20, %26 : vector<256x8xf32>
    %28 = vector.extract_strided_slice %5 {offsets = [1, 0, 0], sizes = [16, 16, 4], strides = [1, 1, 1]} : vector<18x18x4xf32> to vector<16x16x4xf32>
    %29 = vector.shape_cast %28 : vector<16x16x4xf32> to vector<256x4xf32>
    %30 = arith.truncf %29 : vector<256x4xf32> to vector<256x4xbf16>
    %c3 = arith.constant 3 : index
    %c0_23 = arith.constant 0 : index
    %c0_24 = arith.constant 0 : index
    %31 = vector.load %arg2[%c3, %c0_23, %c0_24] : memref<9x4x8xbf16, #tpu.memory_space<vmem>>, vector<1x4x8xbf16>
    %32 = vector.shape_cast %31 : vector<1x4x8xbf16> to vector<4x8xbf16>
    %cst_25 = arith.constant dense<0.000000e+00> : vector<256x8xf32>
    %33 = tpu.matmul %30, %32, %cst_25 {dimension_numbers = #tpu.dot_dimension_numbers<[1], [0], [0], [1], [0, 0, 1, 1], [], []>} : vector<256x4xbf16>, vector<4x8xbf16>, vector<256x8xf32> -> vector<256x8xf32>
    %34 = arith.addf %27, %33 : vector<256x8xf32>
    %35 = vector.extract_strided_slice %5 {offsets = [1, 1, 0], sizes = [16, 16, 4], strides = [1, 1, 1]} : vector<18x18x4xf32> to vector<16x16x4xf32>
    %36 = vector.shape_cast %35 : vector<16x16x4xf32> to vector<256x4xf32>
    %37 = arith.truncf %36 : vector<256x4xf32> to vector<256x4xbf16>
    %c4 = arith.constant 4 : index
    %c0_26 = arith.constant 0 : index
    %c0_27 = arith.constant 0 : index
    %38 = vector.load %arg2[%c4, %c0_26, %c0_27] : memref<9x4x8xbf16, #tpu.memory_space<vmem>>, vector<1x4x8xbf16>
    %39 = vector.shape_cast %38 : vector<1x4x8xbf16> to vector<4x8xbf16>
    %cst_28 = arith.constant dense<0.000000e+00> : vector<256x8xf32>
    %40 = tpu.matmul %37, %39, %cst_28 {dimension_numbers = #tpu.dot_dimension_numbers<[1], [0], [0], [1], [0, 0, 1, 1], [], []>} : vector<256x4xbf16>, vector<4x8xbf16>, vector<256x8xf32> -> vector<256x8xf32>
    %41 = arith.addf %34, %40 : vector<256x8xf32>
    %42 = vector.extract_strided_slice %5 {offsets = [1, 2, 0], sizes = [16, 16, 4], strides = [1, 1, 1]} : vector<18x18x4xf32> to vector<16x16x4xf32>
    %43 = vector.shape_cast %42 : vector<16x16x4xf32> to vector<256x4xf32>
    %44 = arith.truncf %43 : vector<256x4xf32> to vector<256x4xbf16>
    %c5 = arith.constant 5 : index
    %c0_29 = arith.constant 0 : index
    %c0_30 = arith.constant 0 : index
    %45 = vector.load %arg2[%c5, %c0_29, %c0_30] : memref<9x4x8xbf16, #tpu.memory_space<vmem>>, vector<1x4x8xbf16>
    %46 = vector.shape_cast %45 : vector<1x4x8xbf16> to vector<4x8xbf16>
    %cst_31 = arith.constant dense<0.000000e+00> : vector<256x8xf32>
    %47 = tpu.matmul %44, %46, %cst_31 {dimension_numbers = #tpu.dot_dimension_numbers<[1], [0], [0], [1], [0, 0, 1, 1], [], []>} : vector<256x4xbf16>, vector<4x8xbf16>, vector<256x8xf32> -> vector<256x8xf32>
    %48 = arith.addf %41, %47 : vector<256x8xf32>
    %49 = vector.extract_strided_slice %5 {offsets = [2, 0, 0], sizes = [16, 16, 4], strides = [1, 1, 1]} : vector<18x18x4xf32> to vector<16x16x4xf32>
    %50 = vector.shape_cast %49 : vector<16x16x4xf32> to vector<256x4xf32>
    %51 = arith.truncf %50 : vector<256x4xf32> to vector<256x4xbf16>
    %c6 = arith.constant 6 : index
    %c0_32 = arith.constant 0 : index
    %c0_33 = arith.constant 0 : index
    %52 = vector.load %arg2[%c6, %c0_32, %c0_33] : memref<9x4x8xbf16, #tpu.memory_space<vmem>>, vector<1x4x8xbf16>
    %53 = vector.shape_cast %52 : vector<1x4x8xbf16> to vector<4x8xbf16>
    %cst_34 = arith.constant dense<0.000000e+00> : vector<256x8xf32>
    %54 = tpu.matmul %51, %53, %cst_34 {dimension_numbers = #tpu.dot_dimension_numbers<[1], [0], [0], [1], [0, 0, 1, 1], [], []>} : vector<256x4xbf16>, vector<4x8xbf16>, vector<256x8xf32> -> vector<256x8xf32>
    %55 = arith.addf %48, %54 : vector<256x8xf32>
    %56 = vector.extract_strided_slice %5 {offsets = [2, 1, 0], sizes = [16, 16, 4], strides = [1, 1, 1]} : vector<18x18x4xf32> to vector<16x16x4xf32>
    %57 = vector.shape_cast %56 : vector<16x16x4xf32> to vector<256x4xf32>
    %58 = arith.truncf %57 : vector<256x4xf32> to vector<256x4xbf16>
    %c7 = arith.constant 7 : index
    %c0_35 = arith.constant 0 : index
    %c0_36 = arith.constant 0 : index
    %59 = vector.load %arg2[%c7, %c0_35, %c0_36] : memref<9x4x8xbf16, #tpu.memory_space<vmem>>, vector<1x4x8xbf16>
    %60 = vector.shape_cast %59 : vector<1x4x8xbf16> to vector<4x8xbf16>
    %cst_37 = arith.constant dense<0.000000e+00> : vector<256x8xf32>
    %61 = tpu.matmul %58, %60, %cst_37 {dimension_numbers = #tpu.dot_dimension_numbers<[1], [0], [0], [1], [0, 0, 1, 1], [], []>} : vector<256x4xbf16>, vector<4x8xbf16>, vector<256x8xf32> -> vector<256x8xf32>
    %62 = arith.addf %55, %61 : vector<256x8xf32>
    %63 = vector.extract_strided_slice %5 {offsets = [2, 2, 0], sizes = [16, 16, 4], strides = [1, 1, 1]} : vector<18x18x4xf32> to vector<16x16x4xf32>
    %64 = vector.shape_cast %63 : vector<16x16x4xf32> to vector<256x4xf32>
    %65 = arith.truncf %64 : vector<256x4xf32> to vector<256x4xbf16>
    %c8 = arith.constant 8 : index
    %c0_38 = arith.constant 0 : index
    %c0_39 = arith.constant 0 : index
    %66 = vector.load %arg2[%c8, %c0_38, %c0_39] : memref<9x4x8xbf16, #tpu.memory_space<vmem>>, vector<1x4x8xbf16>
    %67 = vector.shape_cast %66 : vector<1x4x8xbf16> to vector<4x8xbf16>
    %cst_40 = arith.constant dense<0.000000e+00> : vector<256x8xf32>
    %68 = tpu.matmul %65, %67, %cst_40 {dimension_numbers = #tpu.dot_dimension_numbers<[1], [0], [0], [1], [0, 0, 1, 1], [], []>} : vector<256x4xbf16>, vector<4x8xbf16>, vector<256x8xf32> -> vector<256x8xf32>
    %69 = arith.addf %62, %68 : vector<256x8xf32>
    %c0_41 = arith.constant 0 : index
    %c0_42 = arith.constant 0 : index
    %70 = vector.load %arg3[%c0_41, %c0_42] : memref<1x8xf32, #tpu.memory_space<vmem>>, vector<1x8xf32>
    %71 = vector.broadcast %70 : vector<1x8xf32> to vector<256x8xf32>
    %72 = arith.mulf %69, %71 : vector<256x8xf32>
    %c0_43 = arith.constant 0 : index
    %c0_44 = arith.constant 0 : index
    %73 = vector.load %arg4[%c0_43, %c0_44] : memref<1x8xf32, #tpu.memory_space<vmem>>, vector<1x8xf32>
    %74 = vector.broadcast %73 : vector<1x8xf32> to vector<256x8xf32>
    %75 = arith.addf %72, %74 : vector<256x8xf32>
    %cst_45 = arith.constant 0.000000e+00 : f32
    %76 = vector.broadcast %cst_45 : f32 to vector<256x8xf32>
    %77 = arith.maximumf %75, %76 : vector<256x8xf32>
    %cst_46 = arith.constant 0.000000e+00 : f32
    %78 = vector.broadcast %cst_46 : f32 to vector<18x18x8xf32>
    %c0_47 = arith.constant 0 : index
    %c0_48 = arith.constant 0 : index
    %c0_49 = arith.constant 0 : index
    %79 = vector.load %arg12[%c0_47, %c0_48, %c0_49] : memref<18x18x8xf32, #tpu.memory_space<vmem>>, vector<18x18x8xf32>
    tpu.vector_store %arg12[%c0_47, %c0_48, %c0_49], %78 {strides = array<i32>} : memref<18x18x8xf32, #tpu.memory_space<vmem>>, vector<18x18x8xf32>,
    %80 = vector.shape_cast %77 : vector<256x8xf32> to vector<16x16x8xf32>
    %c1_50 = arith.constant 1 : index
    %c1_51 = arith.constant 1 : index
    %c0_52 = arith.constant 0 : index
    %81 = vector.load %arg12[%c1_50, %c1_51, %c0_52] : memref<18x18x8xf32, #tpu.memory_space<vmem>>, vector<16x16x8xf32>
    tpu.vector_store %arg12[%c1_50, %c1_51, %c0_52], %80 {strides = array<i32>} : memref<18x18x8xf32, #tpu.memory_space<vmem>>, vector<16x16x8xf32>,
    %c0_53 = arith.constant 0 : index
    %c0_54 = arith.constant 0 : index
    %c0_55 = arith.constant 0 : index
    %82 = vector.load %arg12[%c0_53, %c0_54, %c0_55] : memref<18x18x8xf32, #tpu.memory_space<vmem>>, vector<18x18x8xf32>
    %cst_56 = arith.constant 0.000000e+00 : f32
    %83 = vector.broadcast %cst_56 : f32 to vector<256x8xf32>
    %84 = vector.extract_strided_slice %82 {offsets = [0, 0, 0], sizes = [16, 16, 8], strides = [1, 1, 1]} : vector<18x18x8xf32> to vector<16x16x8xf32>
    %85 = vector.shape_cast %84 : vector<16x16x8xf32> to vector<256x8xf32>
    %86 = arith.truncf %85 : vector<256x8xf32> to vector<256x8xbf16>
    %c0_57 = arith.constant 0 : index
    %c0_58 = arith.constant 0 : index
    %c0_59 = arith.constant 0 : index
    %87 = vector.load %arg5[%c0_57, %c0_58, %c0_59] : memref<9x8x8xbf16, #tpu.memory_space<vmem>>, vector<1x8x8xbf16>
    %88 = vector.shape_cast %87 : vector<1x8x8xbf16> to vector<8x8xbf16>
    %cst_60 = arith.constant dense<0.000000e+00> : vector<256x8xf32>
    %89 = tpu.matmul %86, %88, %cst_60 {dimension_numbers = #tpu.dot_dimension_numbers<[1], [0], [0], [1], [0, 0, 1, 1], [], []>} : vector<256x8xbf16>, vector<8x8xbf16>, vector<256x8xf32> -> vector<256x8xf32>
    %90 = arith.addf %83, %89 : vector<256x8xf32>
    %91 = vector.extract_strided_slice %82 {offsets = [0, 1, 0], sizes = [16, 16, 8], strides = [1, 1, 1]} : vector<18x18x8xf32> to vector<16x16x8xf32>
    %92 = vector.shape_cast %91 : vector<16x16x8xf32> to vector<256x8xf32>
    %93 = arith.truncf %92 : vector<256x8xf32> to vector<256x8xbf16>
    %c1_61 = arith.constant 1 : index
    %c0_62 = arith.constant 0 : index
    %c0_63 = arith.constant 0 : index
    %94 = vector.load %arg5[%c1_61, %c0_62, %c0_63] : memref<9x8x8xbf16, #tpu.memory_space<vmem>>, vector<1x8x8xbf16>
    %95 = vector.shape_cast %94 : vector<1x8x8xbf16> to vector<8x8xbf16>
    %cst_64 = arith.constant dense<0.000000e+00> : vector<256x8xf32>
    %96 = tpu.matmul %93, %95, %cst_64 {dimension_numbers = #tpu.dot_dimension_numbers<[1], [0], [0], [1], [0, 0, 1, 1], [], []>} : vector<256x8xbf16>, vector<8x8xbf16>, vector<256x8xf32> -> vector<256x8xf32>
    %97 = arith.addf %90, %96 : vector<256x8xf32>
    %98 = vector.extract_strided_slice %82 {offsets = [0, 2, 0], sizes = [16, 16, 8], strides = [1, 1, 1]} : vector<18x18x8xf32> to vector<16x16x8xf32>
    %99 = vector.shape_cast %98 : vector<16x16x8xf32> to vector<256x8xf32>
    %100 = arith.truncf %99 : vector<256x8xf32> to vector<256x8xbf16>
    %c2_65 = arith.constant 2 : index
    %c0_66 = arith.constant 0 : index
    %c0_67 = arith.constant 0 : index
    %101 = vector.load %arg5[%c2_65, %c0_66, %c0_67] : memref<9x8x8xbf16, #tpu.memory_space<vmem>>, vector<1x8x8xbf16>
    %102 = vector.shape_cast %101 : vector<1x8x8xbf16> to vector<8x8xbf16>
    %cst_68 = arith.constant dense<0.000000e+00> : vector<256x8xf32>
    %103 = tpu.matmul %100, %102, %cst_68 {dimension_numbers = #tpu.dot_dimension_numbers<[1], [0], [0], [1], [0, 0, 1, 1], [], []>} : vector<256x8xbf16>, vector<8x8xbf16>, vector<256x8xf32> -> vector<256x8xf32>
    %104 = arith.addf %97, %103 : vector<256x8xf32>
    %105 = vector.extract_strided_slice %82 {offsets = [1, 0, 0], sizes = [16, 16, 8], strides = [1, 1, 1]} : vector<18x18x8xf32> to vector<16x16x8xf32>
    %106 = vector.shape_cast %105 : vector<16x16x8xf32> to vector<256x8xf32>
    %107 = arith.truncf %106 : vector<256x8xf32> to vector<256x8xbf16>
    %c3_69 = arith.constant 3 : index
    %c0_70 = arith.constant 0 : index
    %c0_71 = arith.constant 0 : index
    %108 = vector.load %arg5[%c3_69, %c0_70, %c0_71] : memref<9x8x8xbf16, #tpu.memory_space<vmem>>, vector<1x8x8xbf16>
    %109 = vector.shape_cast %108 : vector<1x8x8xbf16> to vector<8x8xbf16>
    %cst_72 = arith.constant dense<0.000000e+00> : vector<256x8xf32>
    %110 = tpu.matmul %107, %109, %cst_72 {dimension_numbers = #tpu.dot_dimension_numbers<[1], [0], [0], [1], [0, 0, 1, 1], [], []>} : vector<256x8xbf16>, vector<8x8xbf16>, vector<256x8xf32> -> vector<256x8xf32>
    %111 = arith.addf %104, %110 : vector<256x8xf32>
    %112 = vector.extract_strided_slice %82 {offsets = [1, 1, 0], sizes = [16, 16, 8], strides = [1, 1, 1]} : vector<18x18x8xf32> to vector<16x16x8xf32>
    %113 = vector.shape_cast %112 : vector<16x16x8xf32> to vector<256x8xf32>
    %114 = arith.truncf %113 : vector<256x8xf32> to vector<256x8xbf16>
    %c4_73 = arith.constant 4 : index
    %c0_74 = arith.constant 0 : index
    %c0_75 = arith.constant 0 : index
    %115 = vector.load %arg5[%c4_73, %c0_74, %c0_75] : memref<9x8x8xbf16, #tpu.memory_space<vmem>>, vector<1x8x8xbf16>
    %116 = vector.shape_cast %115 : vector<1x8x8xbf16> to vector<8x8xbf16>
    %cst_76 = arith.constant dense<0.000000e+00> : vector<256x8xf32>
    %117 = tpu.matmul %114, %116, %cst_76 {dimension_numbers = #tpu.dot_dimension_numbers<[1], [0], [0], [1], [0, 0, 1, 1], [], []>} : vector<256x8xbf16>, vector<8x8xbf16>, vector<256x8xf32> -> vector<256x8xf32>
    %118 = arith.addf %111, %117 : vector<256x8xf32>
    %119 = vector.extract_strided_slice %82 {offsets = [1, 2, 0], sizes = [16, 16, 8], strides = [1, 1, 1]} : vector<18x18x8xf32> to vector<16x16x8xf32>
    %120 = vector.shape_cast %119 : vector<16x16x8xf32> to vector<256x8xf32>
    %121 = arith.truncf %120 : vector<256x8xf32> to vector<256x8xbf16>
    %c5_77 = arith.constant 5 : index
    %c0_78 = arith.constant 0 : index
    %c0_79 = arith.constant 0 : index
    %122 = vector.load %arg5[%c5_77, %c0_78, %c0_79] : memref<9x8x8xbf16, #tpu.memory_space<vmem>>, vector<1x8x8xbf16>
    %123 = vector.shape_cast %122 : vector<1x8x8xbf16> to vector<8x8xbf16>
    %cst_80 = arith.constant dense<0.000000e+00> : vector<256x8xf32>
    %124 = tpu.matmul %121, %123, %cst_80 {dimension_numbers = #tpu.dot_dimension_numbers<[1], [0], [0], [1], [0, 0, 1, 1], [], []>} : vector<256x8xbf16>, vector<8x8xbf16>, vector<256x8xf32> -> vector<256x8xf32>
    %125 = arith.addf %118, %124 : vector<256x8xf32>
    %126 = vector.extract_strided_slice %82 {offsets = [2, 0, 0], sizes = [16, 16, 8], strides = [1, 1, 1]} : vector<18x18x8xf32> to vector<16x16x8xf32>
    %127 = vector.shape_cast %126 : vector<16x16x8xf32> to vector<256x8xf32>
    %128 = arith.truncf %127 : vector<256x8xf32> to vector<256x8xbf16>
    %c6_81 = arith.constant 6 : index
    %c0_82 = arith.constant 0 : index
    %c0_83 = arith.constant 0 : index
    %129 = vector.load %arg5[%c6_81, %c0_82, %c0_83] : memref<9x8x8xbf16, #tpu.memory_space<vmem>>, vector<1x8x8xbf16>
    %130 = vector.shape_cast %129 : vector<1x8x8xbf16> to vector<8x8xbf16>
    %cst_84 = arith.constant dense<0.000000e+00> : vector<256x8xf32>
    %131 = tpu.matmul %128, %130, %cst_84 {dimension_numbers = #tpu.dot_dimension_numbers<[1], [0], [0], [1], [0, 0, 1, 1], [], []>} : vector<256x8xbf16>, vector<8x8xbf16>, vector<256x8xf32> -> vector<256x8xf32>
    %132 = arith.addf %125, %131 : vector<256x8xf32>
    %133 = vector.extract_strided_slice %82 {offsets = [2, 1, 0], sizes = [16, 16, 8], strides = [1, 1, 1]} : vector<18x18x8xf32> to vector<16x16x8xf32>
    %134 = vector.shape_cast %133 : vector<16x16x8xf32> to vector<256x8xf32>
    %135 = arith.truncf %134 : vector<256x8xf32> to vector<256x8xbf16>
    %c7_85 = arith.constant 7 : index
    %c0_86 = arith.constant 0 : index
    %c0_87 = arith.constant 0 : index
    %136 = vector.load %arg5[%c7_85, %c0_86, %c0_87] : memref<9x8x8xbf16, #tpu.memory_space<vmem>>, vector<1x8x8xbf16>
    %137 = vector.shape_cast %136 : vector<1x8x8xbf16> to vector<8x8xbf16>
    %cst_88 = arith.constant dense<0.000000e+00> : vector<256x8xf32>
    %138 = tpu.matmul %135, %137, %cst_88 {dimension_numbers = #tpu.dot_dimension_numbers<[1], [0], [0], [1], [0, 0, 1, 1], [], []>} : vector<256x8xbf16>, vector<8x8xbf16>, vector<256x8xf32> -> vector<256x8xf32>
    %139 = arith.addf %132, %138 : vector<256x8xf32>
    %140 = vector.extract_strided_slice %82 {offsets = [2, 2, 0], sizes = [16, 16, 8], strides = [1, 1, 1]} : vector<18x18x8xf32> to vector<16x16x8xf32>
    %141 = vector.shape_cast %140 : vector<16x16x8xf32> to vector<256x8xf32>
    %142 = arith.truncf %141 : vector<256x8xf32> to vector<256x8xbf16>
    %c8_89 = arith.constant 8 : index
    %c0_90 = arith.constant 0 : index
    %c0_91 = arith.constant 0 : index
    %143 = vector.load %arg5[%c8_89, %c0_90, %c0_91] : memref<9x8x8xbf16, #tpu.memory_space<vmem>>, vector<1x8x8xbf16>
    %144 = vector.shape_cast %143 : vector<1x8x8xbf16> to vector<8x8xbf16>
    %cst_92 = arith.constant dense<0.000000e+00> : vector<256x8xf32>
    %145 = tpu.matmul %142, %144, %cst_92 {dimension_numbers = #tpu.dot_dimension_numbers<[1], [0], [0], [1], [0, 0, 1, 1], [], []>} : vector<256x8xbf16>, vector<8x8xbf16>, vector<256x8xf32> -> vector<256x8xf32>
    %146 = arith.addf %139, %145 : vector<256x8xf32>
    %c0_93 = arith.constant 0 : index
    %c0_94 = arith.constant 0 : index
    %147 = vector.load %arg6[%c0_93, %c0_94] : memref<1x8xf32, #tpu.memory_space<vmem>>, vector<1x8xf32>
    %148 = vector.broadcast %147 : vector<1x8xf32> to vector<256x8xf32>
    %149 = arith.mulf %146, %148 : vector<256x8xf32>
    %c0_95 = arith.constant 0 : index
    %c0_96 = arith.constant 0 : index
    %150 = vector.load %arg7[%c0_95, %c0_96] : memref<1x8xf32, #tpu.memory_space<vmem>>, vector<1x8xf32>
    %151 = vector.broadcast %150 : vector<1x8xf32> to vector<256x8xf32>
    %152 = arith.addf %149, %151 : vector<256x8xf32>
    %cst_97 = arith.constant 0.000000e+00 : f32
    %153 = vector.broadcast %cst_97 : f32 to vector<256x8xf32>
    %154 = arith.maximumf %152, %153 : vector<256x8xf32>
    %c0_98 = arith.constant 0 : index
    %c0_99 = arith.constant 0 : index
    %c0_100 = arith.constant 0 : index
    %c0_101 = arith.constant 0 : index
    %155 = vector.load %arg1[%c0_98, %c0_99, %c0_100, %c0_101] : memref<1x16x16x4xf32, #tpu.memory_space<vmem>>, vector<1x16x16x4xf32>
    %156 = vector.shape_cast %155 : vector<1x16x16x4xf32> to vector<16x16x4xf32>
    %157 = vector.shape_cast %156 : vector<16x16x4xf32> to vector<256x4xf32>
    %158 = arith.truncf %157 : vector<256x4xf32> to vector<256x4xbf16>
    %c0_102 = arith.constant 0 : index
    %c0_103 = arith.constant 0 : index
    %159 = vector.load %arg8[%c0_102, %c0_103] : memref<4x8xbf16, #tpu.memory_space<vmem>>, vector<4x8xbf16>
    %cst_104 = arith.constant dense<0.000000e+00> : vector<256x8xf32>
    %160 = tpu.matmul %158, %159, %cst_104 {dimension_numbers = #tpu.dot_dimension_numbers<[1], [0], [0], [1], [0, 0, 1, 1], [], []>} : vector<256x4xbf16>, vector<4x8xbf16>, vector<256x8xf32> -> vector<256x8xf32>
    %c0_105 = arith.constant 0 : index
    %c0_106 = arith.constant 0 : index
    %161 = vector.load %arg9[%c0_105, %c0_106] : memref<1x8xf32, #tpu.memory_space<vmem>>, vector<1x8xf32>
    %162 = vector.broadcast %161 : vector<1x8xf32> to vector<256x8xf32>
    %163 = arith.addf %160, %162 : vector<256x8xf32>
    %164 = arith.addf %154, %163 : vector<256x8xf32>
    %165 = vector.shape_cast %164 : vector<256x8xf32> to vector<16x16x8xf32>
    %c0_107 = arith.constant 0 : index
    %c0_108 = arith.constant 0 : index
    %c0_109 = arith.constant 0 : index
    %c0_110 = arith.constant 0 : index
    %166 = vector.load %arg10[%c0_107, %c0_108, %c0_109, %c0_110] : memref<1x16x16x8xf32, #tpu.memory_space<vmem>>, vector<1x16x16x8xf32>
    %167 = vector.shape_cast %166 : vector<1x16x16x8xf32> to vector<16x16x8xf32>
    %168 = vector.shape_cast %165 : vector<16x16x8xf32> to vector<1x16x16x8xf32>
    tpu.vector_store %arg10[%c0_107, %c0_108, %c0_109, %c0_110], %168 {strides = array<i32>} : memref<1x16x16x8xf32, #tpu.memory_space<vmem>>, vector<1x16x16x8xf32>,
    return
  }
  func.func @transform_0(%arg0: i32) -> (i32, i32, i32, i32) {
    %c0_i32 = arith.constant 0 : i32
    %c0_i32_0 = arith.constant 0 : i32
    %c0_i32_1 = arith.constant 0 : i32
    %c0_i32_2 = arith.constant 0 : i32
    return %arg0, %c0_i32, %c0_i32_0, %c0_i32_1 : i32, i32, i32, i32
  }
  func.func @transform_1(%arg0: i32) -> (i32, i32, i32) {
    %c0_i32 = arith.constant 0 : i32
    %c0_i32_0 = arith.constant 0 : i32
    %c0_i32_1 = arith.constant 0 : i32
    %c0_i32_2 = arith.constant 0 : i32
    return %c0_i32, %c0_i32_0, %c0_i32_1 : i32, i32, i32
  }
  func.func @transform_2(%arg0: i32) -> (i32, i32) {
    %c0_i32 = arith.constant 0 : i32
    %c0_i32_0 = arith.constant 0 : i32
    %c0_i32_1 = arith.constant 0 : i32
    return %c0_i32, %c0_i32_0 : i32, i32
  }
  func.func @transform_3(%arg0: i32) -> (i32, i32) {
    %c0_i32 = arith.constant 0 : i32
    %c0_i32_0 = arith.constant 0 : i32
    %c0_i32_1 = arith.constant 0 : i32
    return %c0_i32, %c0_i32_0 : i32, i32
  }
  func.func @transform_4(%arg0: i32) -> (i32, i32, i32) {
    %c0_i32 = arith.constant 0 : i32
    %c0_i32_0 = arith.constant 0 : i32
    %c0_i32_1 = arith.constant 0 : i32
    %c0_i32_2 = arith.constant 0 : i32
    return %c0_i32, %c0_i32_0, %c0_i32_1 : i32, i32, i32
  }
  func.func @transform_5(%arg0: i32) -> (i32, i32) {
    %c0_i32 = arith.constant 0 : i32
    %c0_i32_0 = arith.constant 0 : i32
    %c0_i32_1 = arith.constant 0 : i32
    return %c0_i32, %c0_i32_0 : i32, i32
  }
  func.func @transform_6(%arg0: i32) -> (i32, i32) {
    %c0_i32 = arith.constant 0 : i32
    %c0_i32_0 = arith.constant 0 : i32
    %c0_i32_1 = arith.constant 0 : i32
    return %c0_i32, %c0_i32_0 : i32, i32
  }
  func.func @transform_7(%arg0: i32) -> (i32, i32) {
    %c0_i32 = arith.constant 0 : i32
    %c0_i32_0 = arith.constant 0 : i32
    %c0_i32_1 = arith.constant 0 : i32
    return %c0_i32, %c0_i32_0 : i32, i32
  }
  func.func @transform_8(%arg0: i32) -> (i32, i32) {
    %c0_i32 = arith.constant 0 : i32
    %c0_i32_0 = arith.constant 0 : i32
    %c0_i32_1 = arith.constant 0 : i32
    return %c0_i32, %c0_i32_0 : i32, i32
  }
  func.func @transform_9(%arg0: i32) -> (i32, i32, i32, i32) {
    %c0_i32 = arith.constant 0 : i32
    %c0_i32_0 = arith.constant 0 : i32
    %c0_i32_1 = arith.constant 0 : i32
    %c0_i32_2 = arith.constant 0 : i32
    return %arg0, %c0_i32, %c0_i32_0, %c0_i32_1 : i32, i32, i32, i32
  }
}

</mosaic_0001>

<llo_original>
// kernel: intermediate_fwd.5
$region0: #{intermediate_fwd.5}
  #allocation0 [shape = 'u32[]', space=smem, size = 0x4, offset = 0x4, fixed_abs, tag = 'smem constant byte address 0x4 - core index']
  #allocation1 [shape = 'u32[72,128]{1,0:T(1,128)}', space=vmem, size = 0x9000, scoped, tag = 'internal scratch']
  #allocation2 [shape = 'f32[18,18,8]{2,1,0:T(8,128)}', space=vmem, size = 0x36000, scoped, tag = 'scratch operand']
  #allocation3 [shape = 'f32[18,18,8]{2,1,0:T(8,128)}', space=vmem, size = 0x36000, scoped, tag = 'scratch operand']
  %s0 = inlined_call_operand.vmem [shape: f32[2,16,16,8], index: 0, kind: input, shape index: {}]
  %s1 = inlined_call_operand.vmem [shape: bf16[9,8,8], index: 1, kind: input, shape index: {}]
  %s2 = inlined_call_operand.vmem [shape: f32[1,8], index: 2, kind: input, shape index: {}]
  %s3 = inlined_call_operand.vmem [shape: f32[1,8], index: 3, kind: input, shape index: {}]
  %s4 = inlined_call_operand.vmem [shape: bf16[9,8,8], index: 4, kind: input, shape index: {}]
  %s5 = inlined_call_operand.vmem [shape: f32[1,8], index: 5, kind: input, shape index: {}]
  %s6 = inlined_call_operand.vmem [shape: f32[1,8], index: 6, kind: input, shape index: {}]
  %s7 = inlined_call_operand.vmem [shape: f32[2,16,16,8], index: 7, kind: output, shape index: {}]
  %s8 = sld [smem:[#allocation0]]
  $region61: #{intermediate_fwd.5} parent=0
    _
  %s10 = ssub.s32 1, %s8
  %s11 = scalar_select 0, %s10, %s8
  loop: start=0, step=1, limit=4
  $region2: #{intermediate_fwd.5} parent=0 // loop_pre_header
    _
  $region3: #{intermediate_fwd.5} parent=0 // loop_header
    %s13 = sphi 0, %s17
    %p14 = scmp.ge.s32.totalorder %s13, 4
    %s23 = sphi 0, %s25
    %s26 = sphi 0, %s23
    %s27 = sphi 0, %s26
    %s43 = sphi 0, %s27
    %s47 = sphi 0, %s47
    %s49 = sphi 0, %s47
    %s50 = sphi 0, %s49
    %s64 = sphi 0, %s50
    %s68 = sphi 0, %s68
    %s70 = sphi 0, %s68
    %s71 = sphi 0, %s70
    %s85 = sphi 0, %s71
    %s89 = sphi 0, %s89
    %s91 = sphi 0, %s89
    %s92 = sphi 0, %s91
    %s106 = sphi 0, %s92
    %s110 = sphi 0, %s110
    %s112 = sphi 0, %s110
    %s113 = sphi 0, %s112
    %s127 = sphi 0, %s113
    %s131 = sphi 0, %s131
    %s133 = sphi 0, %s131
    %s134 = sphi 0, %s133
    %s148 = sphi 0, %s134
    %s152 = sphi 0, %s152
    %s154 = sphi 0, %s152
    %s155 = sphi 0, %s154
    %s169 = sphi 0, %s155
    %s175 = sphi 0, %s177
    %s178 = sphi 0, %s175
    %s179 = sphi 0, %s178
    %s195 = sphi 0, %s179
  $region4: #{intermediate_fwd.5} parent=0 // loop_header_branch
    %16 = sbr.rel (%p14) target = $region8
  $region5: #{intermediate_fwd.5} parent=0 // loop_body
    %s18 = ssub.s32 %s13, 1
    %s19 = ssub.s32 %s13, 2
    %s20 = sadd.s32 %s13, 1
    %s21 = ssub.s32 %s13, %s20
    %p22 = scmp.eq.s32.totalorder %s21, 0
    %s24 = sadd.s32 %s23, 1
    %s25 = scalar_select %p22, %s23, %s24
    %p28 = pneg %p22
    %p29 = scmp.eq.s32.totalorder %s13, 1
    %p30 = por %p28, %p29
    %p31 = scmp.ne.s32.totalorder %s23, %s26
    %p32 = scmp.eq.s32.totalorder %s13, 0
    %p33 = por %p31, %p32
    %p34 = scmp.ne.s32.totalorder %s23, %s26
    %p35 = scmp.eq.s32.totalorder %s18, 1
    %p36 = por %p34, %p35
    %p37 = scmp.ne.s32.totalorder %s26, %s27
    %p38 = scmp.eq.s32.totalorder %s18, 0
    %p39 = por %p37, %p38
    %p40 = scmp.ne.s32.totalorder %s26, %s27
    %p41 = scmp.eq.s32.totalorder %s19, 1
    %p42 = por %p40, %p41
    %p44 = scmp.ne.s32.totalorder %s27, %s43
    %p45 = scmp.eq.s32.totalorder %s19, 0
    %p46 = por %p44, %p45
    %s48 = sadd.s32 %s47, 1
    %p51 = scmp.eq.s32.totalorder %s13, 1
    %p52 = scmp.ne.s32.totalorder %s47, %s49
    %p53 = scmp.eq.s32.totalorder %s13, 0
    %p54 = por %p52, %p53
    %p55 = scmp.ne.s32.totalorder %s47, %s49
    %p56 = scmp.eq.s32.totalorder %s18, 1
    %p57 = por %p55, %p56
    %p58 = scmp.ne.s32.totalorder %s49, %s50
    %p59 = scmp.eq.s32.totalorder %s18, 0
    %p60 = por %p58, %p59
    %p61 = scmp.ne.s32.totalorder %s49, %s50
    %p62 = scmp.eq.s32.totalorder %s19, 1
    %p63 = por %p61, %p62
    %p65 = scmp.ne.s32.totalorder %s50, %s64
    %p66 = scmp.eq.s32.totalorder %s19, 0
    %p67 = por %p65, %p66
    %s69 = sadd.s32 %s68, 1
    %p72 = scmp.eq.s32.totalorder %s13, 1
    %p73 = scmp.ne.s32.totalorder %s68, %s70
    %p74 = scmp.eq.s32.totalorder %s13, 0
    %p75 = por %p73, %p74
    %p76 = scmp.ne.s32.totalorder %s68, %s70
    %p77 = scmp.eq.s32.totalorder %s18, 1
    %p78 = por %p76, %p77
    %p79 = scmp.ne.s32.totalorder %s70, %s71
    %p80 = scmp.eq.s32.totalorder %s18, 0
    %p81 = por %p79, %p80
    %p82 = scmp.ne.s32.totalorder %s70, %s71
    %p83 = scmp.eq.s32.totalorder %s19, 1
    %p84 = por %p82, %p83
    %p86 = scmp.ne.s32.totalorder %s71, %s85
    %p87 = scmp.eq.s32.totalorder %s19, 0
    %p88 = por %p86, %p87
    %s90 = sadd.s32 %s89, 1
    %p93 = scmp.eq.s32.totalorder %s13, 1
    %p94 = scmp.ne.s32.totalorder %s89, %s91
    %p95 = scmp.eq.s32.totalorder %s13, 0
    %p96 = por %p94, %p95
    %p97 = scmp.ne.s32.totalorder %s89, %s91
    %p98 = scmp.eq.s32.totalorder %s18, 1
    %p99 = por %p97, %p98
    %p100 = scmp.ne.s32.totalorder %s91, %s92
    %p101 = scmp.eq.s32.totalorder %s18, 0
    %p102 = por %p100, %p101
    %p103 = scmp.ne.s32.totalorder %s91, %s92
    %p104 = scmp.eq.s32.totalorder %s19, 1
    %p105 = por %p103, %p104
    %p107 = scmp.ne.s32.totalorder %s92, %s106
    %p108 = scmp.eq.s32.totalorder %s19, 0
    %p109 = por %p107, %p108
    %s111 = sadd.s32 %s110, 1
    %p114 = scmp.eq.s32.totalorder %s13, 1
    %p115 = scmp.ne.s32.totalorder %s110, %s112
    %p116 = scmp.eq.s32.totalorder %s13, 0
    %p117 = por %p115, %p116
    %p118 = scmp.ne.s32.totalorder %s110, %s112
    %p119 = scmp.eq.s32.totalorder %s18, 1
    %p120 = por %p118, %p119
    %p121 = scmp.ne.s32.totalorder %s112, %s113
    %p122 = scmp.eq.s32.totalorder %s18, 0
    %p123 = por %p121, %p122
    %p124 = scmp.ne.s32.totalorder %s112, %s113
    %p125 = scmp.eq.s32.totalorder %s19, 1
    %p126 = por %p124, %p125
    %p128 = scmp.ne.s32.totalorder %s113, %s127
    %p129 = scmp.eq.s32.totalorder %s19, 0
    %p130 = por %p128, %p129
    %s132 = sadd.s32 %s131, 1
    %p135 = scmp.eq.s32.totalorder %s13, 1
    %p136 = scmp.ne.s32.totalorder %s131, %s133
    %p137 = scmp.eq.s32.totalorder %s13, 0
    %p138 = por %p136, %p137
    %p139 = scmp.ne.s32.totalorder %s131, %s133
    %p140 = scmp.eq.s32.totalorder %s18, 1
    %p141 = por %p139, %p140
    %p142 = scmp.ne.s32.totalorder %s133, %s134
    %p143 = scmp.eq.s32.totalorder %s18, 0
    %p144 = por %p142, %p143
    %p145 = scmp.ne.s32.totalorder %s133, %s134
    %p146 = scmp.eq.s32.totalorder %s19, 1
    %p147 = por %p145, %p146
    %p149 = scmp.ne.s32.totalorder %s134, %s148
    %p150 = scmp.eq.s32.totalorder %s19, 0
    %p151 = por %p149, %p150
    %s153 = sadd.s32 %s152, 1
    %p156 = scmp.eq.s32.totalorder %s13, 1
    %p157 = scmp.ne.s32.totalorder %s152, %s154
    %p158 = scmp.eq.s32.totalorder %s13, 0
    %p159 = por %p157, %p158
    %p160 = scmp.ne.s32.totalorder %s152, %s154
    %p161 = scmp.eq.s32.totalorder %s18, 1
    %p162 = por %p160, %p161
    %p163 = scmp.ne.s32.totalorder %s154, %s155
    %p164 = scmp.eq.s32.totalorder %s18, 0
    %p165 = por %p163, %p164
    %p166 = scmp.ne.s32.totalorder %s154, %s155
    %p167 = scmp.eq.s32.totalorder %s19, 1
    %p168 = por %p166, %p167
    %p170 = scmp.ne.s32.totalorder %s155, %s169
    %p171 = scmp.eq.s32.totalorder %s19, 0
    %p172 = por %p170, %p171
    %s173 = ssub.s32 %s13, %s20
    %p174 = scmp.eq.s32.totalorder %s173, 0
    %s176 = sadd.s32 %s175, 1
    %s177 = scalar_select %p174, %s175, %s176
    %p180 = pneg %p174
    %p181 = scmp.eq.s32.totalorder %s13, 1
    %p182 = por %p180, %p181
    %p183 = scmp.ne.s32.totalorder %s175, %s178
    %p184 = scmp.eq.s32.totalorder %s13, 0
    %p185 = por %p183, %p184
    %p186 = scmp.ne.s32.totalorder %s175, %s178
    %p187 = scmp.eq.s32.totalorder %s18, 1
    %p188 = por %p186, %p187
    %p189 = scmp.ne.s32.totalorder %s178, %s179
    %p190 = scmp.eq.s32.totalorder %s18, 0
    %p191 = por %p189, %p190
    %p192 = scmp.ne.s32.totalorder %s178, %s179
    %p193 = scmp.eq.s32.totalorder %s19, 1
    %p194 = por %p192, %p193
    %p196 = scmp.ne.s32.totalorder %s179, %s195
    %p197 = scmp.eq.s32.totalorder %s19, 0
    %p198 = por %p196, %p197
    %p199 = scmp.le.s32.totalorder 1, %s13
    %p200 = scmp.lt.s32.totalorder %s13, 3
    %p201 = pnand %p199, %p200
    %p202 = pneg %p201
    // Predicated region
    $region9: #{intermediate_fwd.5} parent=5 // pred_check
      _
    $region10: #{intermediate_fwd.5} parent=5 // pred_check_branch
      %204 = sbr.rel (%p201) target = $region12
    $region11: #{intermediate_fwd.5} parent=5 // pred_region
      %s205 = ssub.s32 %s13, 1
      // Predicated region
      $region13: #{intermediate_fwd.5} parent=11 // pred_check
        %p206 = pneg %p60
      $region14: #{intermediate_fwd.5} parent=11 // pred_check_branch
        %208 = sbr.rel (%p206) target = $region16
      $region15: #{intermediate_fwd.5} parent=11 // pred_region
        _
      $region16: #{intermediate_fwd.5} parent=11 // pred_fallthru
        _
      // Predicated region
      $region17: #{intermediate_fwd.5} parent=11 // pred_check
        %p209 = pneg %p81
      $region18: #{intermediate_fwd.5} parent=11 // pred_check_branch
        %211 = sbr.rel (%p209) target = $region20
      $region19: #{intermediate_fwd.5} parent=11 // pred_region
        _
      $region20: #{intermediate_fwd.5} parent=11 // pred_fallthru
        _
      // Predicated region
      $region21: #{intermediate_fwd.5} parent=11 // pred_check
        %p212 = pneg %p102
      $region22: #{intermediate_fwd.5} parent=11 // pred_check_branch
        %214 = sbr.rel (%p212) target = $region24
      $region23: #{intermediate_fwd.5} parent=11 // pred_region
        _
      $region24: #{intermediate_fwd.5} parent=11 // pred_fallthru
        _
      // Predicated region
      $region25: #{intermediate_fwd.5} parent=11 // pred_check
        %p215 = pneg %p123
      $region26: #{intermediate_fwd.5} parent=11 // pred_check_branch
        %217 = sbr.rel (%p215) target = $region28
      $region27: #{intermediate_fwd.5} parent=11 // pred_region
        _
      $region28: #{intermediate_fwd.5} parent=11 // pred_fallthru
        _
      // Predicated region
      $region29: #{intermediate_fwd.5} parent=11 // pred_check
        %p218 = pneg %p144
      $region30: #{intermediate_fwd.5} parent=11 // pred_check_branch
        %220 = sbr.rel (%p218) target = $region32
      $region31: #{intermediate_fwd.5} parent=11 // pred_region
        _
      $region32: #{intermediate_fwd.5} parent=11 // pred_fallthru
        _
      // Predicated region
      $region33: #{intermediate_fwd.5} parent=11 // pred_check
        %p221 = pneg %p165
      $region34: #{intermediate_fwd.5} parent=11 // pred_check_branch
        %223 = sbr.rel (%p221) target = $region36
      $region35: #{intermediate_fwd.5} parent=11 // pred_region
        _
      $region36: #{intermediate_fwd.5} parent=11 // pred_fallthru
        _
    $region12: #{intermediate_fwd.5} parent=5 // pred_fallthru
      _
    %p224 = scmp.lt.s32.totalorder %s13, 2
    // Predicated region
    $region37: #{intermediate_fwd.5} parent=5 // pred_check
      %p225 = pneg %p224
    $region38: #{intermediate_fwd.5} parent=5 // pred_check_branch
      %227 = sbr.rel (%p225) target = $region40
    $region39: #{intermediate_fwd.5} parent=5 // pred_region
      // Predicated region
      $region41: #{intermediate_fwd.5} parent=39 // pred_check
        %p228 = pneg %p33
      $region42: #{intermediate_fwd.5} parent=39 // pred_check_branch
        %230 = sbr.rel (%p228) target = $region44
      $region43: #{intermediate_fwd.5} parent=39 // pred_region
        %p231 = scmp.lt.s32.totalorder %s13, 1
        %s232 = scalar_select %p231, %s13, 1
        %s233 = smul.addr %s232, 32
        %s234 = smul.addr %s233, 8
        %s235 = scalar_lea.vmem %s0, %s234
      $region44: #{intermediate_fwd.5} parent=39 // pred_fallthru
        _
    $region40: #{intermediate_fwd.5} parent=5 // pred_fallthru
      _
    %p236 = scmp.le.s32.totalorder 1, %s13
    %p237 = scmp.lt.s32.totalorder %s13, 3
    %p238 = pnand %p236, %p237
    %p239 = pneg %p238
    // Predicated region
    $region45: #{intermediate_fwd.5} parent=5 // pred_check
      _
    $region46: #{intermediate_fwd.5} parent=5 // pred_check_branch
      %241 = sbr.rel (%p238) target = $region48
    $region47: #{intermediate_fwd.5} parent=5 // pred_region
      %s242 = ssub.s32 %s13, 1
      %p243 = scmp.lt.s32.totalorder %s18, 1
      %s244 = scalar_select %p243, %s18, 1
      %s245 = smul.addr %s244, 32
      %s246 = smul.addr %s245, 8
      %s247 = scalar_lea.vmem %s0, %s246
      %p248 = pneg %p39
      %p249 = pneg %p36
      %p250 = pneg %p60
      %p251 = pneg %p57
      %p252 = pneg %p81
      %p253 = pneg %p78
      %p254 = pneg %p102
      %p255 = pneg %p99
      %p256 = pneg %p123
      %p257 = pneg %p120
      %p258 = pneg %p144
      %p259 = pneg %p141
      %p260 = pneg %p165
      %p261 = pneg %p162
      %p262 = pneg %p191
      %p263 = pneg %p188
      %p264 = scmp.lt.s32.totalorder %s18, 1
      %s265 = scalar_select %p264, %s18, 1
      %s266 = smul.addr %s265, 32
      %s267 = smul.addr %s266, 8
      %s268 = scalar_lea.vmem %s7, %s267
      %p269 = scmp.lt.s32.totalorder %s18, 1
      %s270 = scalar_select %p269, %s18, 1
      %s271 = smul.addr %s270, 32
      %s272 = smul.addr %s271, 8
      %s273 = scalar_lea.vmem %s0, %s272
      %p274 = scmp.lt.s32.totalorder %s18, 1
      %s275 = scalar_select %p274, %s18, 1
      %s276 = smul.addr %s275, 32
      %s277 = smul.addr %s276, 8
      %s278 = scalar_lea.vmem %s7, %s277
      %vm280 = vcmask 64512
      %281 = vst.msk [vmem:[#allocation2] sm:$0xff] %vm280, 0.0
      %282 = vst.msk [vmem:[#allocation2 + $0x8] sm:$0xff] %vm280, 0.0
      %vm283 = vcmask 58368
      %284 = vst.msk [vmem:[#allocation2 + $0x10] sm:$0x3] %vm283, 0.0
      %285 = vst.msk [vmem:[#allocation2 + $0x18] sm:$0xff] %vm280, 0.0
      %286 = vst.msk [vmem:[#allocation2 + $0x20] sm:$0xff] %vm280, 0.0
      %287 = vst.msk [vmem:[#allocation2 + $0x28] sm:$0x3] %vm283, 0.0
      %288 = vst.msk [vmem:[#allocation2 + $0x30] sm:$0xff] %vm280, 0.0
      %289 = vst.msk [vmem:[#allocation2 + $0x38] sm:$0xff] %vm280, 0.0
      %290 = vst.msk [vmem:[#allocation2 + $0x40] sm:$0x3] %vm283, 0.0
      %291 = vst.msk [vmem:[#allocation2 + $0x48] sm:$0xff] %vm280, 0.0
      %292 = vst.msk [vmem:[#allocation2 + $0x50] sm:$0xff] %vm280, 0.0
      %293 = vst.msk [vmem:[#allocation2 + $0x58] sm:$0x3] %vm283, 0.0
      %294 = vst.msk [vmem:[#allocation2 + $0x60] sm:$0xff] %vm280, 0.0
      %295 = vst.msk [vmem:[#allocation2 + $0x68] sm:$0xff] %vm280, 0.0
      %296 = vst.msk [vmem:[#allocation2 + $0x70] sm:$0x3] %vm283, 0.0
      %297 = vst.msk [vmem:[#allocation2 + $0x78] sm:$0xff] %vm280, 0.0
      %298 = vst.msk [vmem:[#allocation2 + $0x80] sm:$0xff] %vm280, 0.0
      %299 = vst.msk [vmem:[#allocation2 + $0x88] sm:$0x3] %vm283, 0.0
      %300 = vst.msk [vmem:[#allocation2 + $0x90] sm:$0xff] %vm280, 0.0
      %301 = vst.msk [vmem:[#allocation2 + $0x98] sm:$0xff] %vm280, 0.0
      %302 = vst.msk [vmem:[#allocation2 + $0xa0] sm:$0x3] %vm283, 0.0
      %303 = vst.msk [vmem:[#allocation2 + $0xa8] sm:$0xff] %vm280, 0.0
      %304 = vst.msk [vmem:[#allocation2 + $0xb0] sm:$0xff] %vm280, 0.0
      %305 = vst.msk [vmem:[#allocation2 + $0xb8] sm:$0x3] %vm283, 0.0
      %306 = vst.msk [vmem:[#allocation2 + $0xc0] sm:$0xff] %vm280, 0.0
      %307 = vst.msk [vmem:[#allocation2 + $0xc8] sm:$0xff] %vm280, 0.0
      %308 = vst.msk [vmem:[#allocation2 + $0xd0] sm:$0x3] %vm283, 0.0
      %309 = vst.msk [vmem:[#allocation2 + $0xd8] sm:$0xff] %vm280, 0.0
      %310 = vst.msk [vmem:[#allocation2 + $0xe0] sm:$0xff] %vm280, 0.0
      %311 = vst.msk [vmem:[#allocation2 + $0xe8] sm:$0x3] %vm283, 0.0
      %312 = vst.msk [vmem:[#allocation2 + $0xf0] sm:$0xff] %vm280, 0.0
      %313 = vst.msk [vmem:[#allocation2 + $0xf8] sm:$0xff] %vm280, 0.0
      %314 = vst.msk [vmem:[#allocation2 + $0x100] sm:$0x3] %vm283, 0.0
      %315 = vst.msk [vmem:[#allocation2 + $0x108] sm:$0xff] %vm280, 0.0
      %316 = vst.msk [vmem:[#allocation2 + $0x110] sm:$0xff] %vm280, 0.0
      %317 = vst.msk [vmem:[#allocation2 + $0x118] sm:$0x3] %vm283, 0.0
      %318 = vst.msk [vmem:[#allocation2 + $0x120] sm:$0xff] %vm280, 0.0
      %319 = vst.msk [vmem:[#allocation2 + $0x128] sm:$0xff] %vm280, 0.0
      %320 = vst.msk [vmem:[#allocation2 + $0x130] sm:$0x3] %vm283, 0.0
      %321 = vst.msk [vmem:[#allocation2 + $0x138] sm:$0xff] %vm280, 0.0
      %322 = vst.msk [vmem:[#allocation2 + $0x140] sm:$0xff] %vm280, 0.0
      %323 = vst.msk [vmem:[#allocation2 + $0x148] sm:$0x3] %vm283, 0.0
      %324 = vst.msk [vmem:[#allocation2 + $0x150] sm:$0xff] %vm280, 0.0
      %325 = vst.msk [vmem:[#allocation2 + $0x158] sm:$0xff] %vm280, 0.0
      %326 = vst.msk [vmem:[#allocation2 + $0x160] sm:$0x3] %vm283, 0.0
      %327 = vst.msk [vmem:[#allocation2 + $0x168] sm:$0xff] %vm280, 0.0
      %328 = vst.msk [vmem:[#allocation2 + $0x170] sm:$0xff] %vm280, 0.0
      %329 = vst.msk [vmem:[#allocation2 + $0x178] sm:$0x3] %vm283, 0.0
      %330 = vst.msk [vmem:[#allocation2 + $0x180] sm:$0xff] %vm280, 0.0
      %331 = vst.msk [vmem:[#allocation2 + $0x188] sm:$0xff] %vm280, 0.0
      %332 = vst.msk [vmem:[#allocation2 + $0x190] sm:$0x3] %vm283, 0.0
      %333 = vst.msk [vmem:[#allocation2 + $0x198] sm:$0xff] %vm280, 0.0
      %334 = vst.msk [vmem:[#allocation2 + $0x1a0] sm:$0xff] %vm280, 0.0
      %335 = vst.msk [vmem:[#allocation2 + $0x1a8] sm:$0x3] %vm283, 0.0
      %v336 = vld [vmem:[%s273] sm:$0xff]
      %v337 = vld [vmem:[%s273 + $0x8] sm:$0xff]
      %v338 = vld [vmem:[%s273 + $0x10] sm:$0xff]
      %v339 = vld [vmem:[%s273 + $0x18] sm:$0xff]
      %v340 = vld [vmem:[%s273 + $0x20] sm:$0xff]
      %v341 = vld [vmem:[%s273 + $0x28] sm:$0xff]
      %v342 = vld [vmem:[%s273 + $0x30] sm:$0xff]
      %v343 = vld [vmem:[%s273 + $0x38] sm:$0xff]
      %v344 = vld [vmem:[%s273 + $0x40] sm:$0xff]
      %v345 = vld [vmem:[%s273 + $0x48] sm:$0xff]
      %v346 = vld [vmem:[%s273 + $0x50] sm:$0xff]
      %v347 = vld [vmem:[%s273 + $0x58] sm:$0xff]
      %v348 = vld [vmem:[%s273 + $0x60] sm:$0xff]
      %v349 = vld [vmem:[%s273 + $0x68] sm:$0xff]
      %v350 = vld [vmem:[%s273 + $0x70] sm:$0xff]
      %v351 = vld [vmem:[%s273 + $0x78] sm:$0xff]
      %v352 = vld [vmem:[%s273 + $0x80] sm:$0xff]
      %v353 = vld [vmem:[%s273 + $0x88] sm:$0xff]
      %v354 = vld [vmem:[%s273 + $0x90] sm:$0xff]
      %v355 = vld [vmem:[%s273 + $0x98] sm:$0xff]
      %v356 = vld [vmem:[%s273 + $0xa0] sm:$0xff]
      %v357 = vld [vmem:[%s273 + $0xa8] sm:$0xff]
      %v358 = vld [vmem:[%s273 + $0xb0] sm:$0xff]
      %v359 = vld [vmem:[%s273 + $0xb8] sm:$0xff]
      %v360 = vld [vmem:[%s273 + $0xc0] sm:$0xff]
      %v361 = vld [vmem:[%s273 + $0xc8] sm:$0xff]
      %v362 = vld [vmem:[%s273 + $0xd0] sm:$0xff]
      %v363 = vld [vmem:[%s273 + $0xd8] sm:$0xff]
      %v364 = vld [vmem:[%s273 + $0xe0] sm:$0xff]
      %v365 = vld [vmem:[%s273 + $0xe8] sm:$0xff]
      %v366 = vld [vmem:[%s273 + $0xf0] sm:$0xff]
      %v367 = vld [vmem:[%s273 + $0xf8] sm:$0xff]
      %s368 = scalar_lea.vmem [#allocation2], 24
      %369 = vst.msk [vmem:[%s368 + $0x1] sm:$0xff] %vm280, %v336
      %370 = vst.msk [vmem:[%s368 + $0x9] sm:$0xff] %vm280, %v337
      %371 = vst.msk [vmem:[%s368 + $0x19] sm:$0xff] %vm280, %v338
      %372 = vst.msk [vmem:[%s368 + $0x21] sm:$0xff] %vm280, %v339
      %373 = vst.msk [vmem:[%s368 + $0x31] sm:$0xff] %vm280, %v340
      %374 = vst.msk [vmem:[%s368 + $0x39] sm:$0xff] %vm280, %v341
      %375 = vst.msk [vmem:[%s368 + $0x49] sm:$0xff] %vm280, %v342
      %376 = vst.msk [vmem:[%s368 + $0x51] sm:$0xff] %vm280, %v343
      %377 = vst.msk [vmem:[%s368 + $0x61] sm:$0xff] %vm280, %v344
      %378 = vst.msk [vmem:[%s368 + $0x69] sm:$0xff] %vm280, %v345
      %379 = vst.msk [vmem:[%s368 + $0x79] sm:$0xff] %vm280, %v346
      %380 = vst.msk [vmem:[%s368 + $0x81] sm:$0xff] %vm280, %v347
      %381 = vst.msk [vmem:[%s368 + $0x91] sm:$0xff] %vm280, %v348
      %382 = vst.msk [vmem:[%s368 + $0x99] sm:$0xff] %vm280, %v349
      %383 = vst.msk [vmem:[%s368 + $0xa9] sm:$0xff] %vm280, %v350
      %384 = vst.msk [vmem:[%s368 + $0xb1] sm:$0xff] %vm280, %v351
      %385 = vst.msk [vmem:[%s368 + $0xc1] sm:$0xff] %vm280, %v352
      %386 = vst.msk [vmem:[%s368 + $0xc9] sm:$0xff] %vm280, %v353
      %387 = vst.msk [vmem:[%s368 + $0xd9] sm:$0xff] %vm280, %v354
      %388 = vst.msk [vmem:[%s368 + $0xe1] sm:$0xff] %vm280, %v355
      %389 = vst.msk [vmem:[%s368 + $0xf1] sm:$0xff] %vm280, %v356
      %390 = vst.msk [vmem:[%s368 + $0xf9] sm:$0xff] %vm280, %v357
      %391 = vst.msk [vmem:[%s368 + $0x109] sm:$0xff] %vm280, %v358
      %392 = vst.msk [vmem:[%s368 + $0x111] sm:$0xff] %vm280, %v359
      %393 = vst.msk [vmem:[%s368 + $0x121] sm:$0xff] %vm280, %v360
      %394 = vst.msk [vmem:[%s368 + $0x129] sm:$0xff] %vm280, %v361
      %395 = vst.msk [vmem:[%s368 + $0x139] sm:$0xff] %vm280, %v362
      %396 = vst.msk [vmem:[%s368 + $0x141] sm:$0xff] %vm280, %v363
      %397 = vst.msk [vmem:[%s368 + $0x151] sm:$0xff] %vm280, %v364
      %398 = vst.msk [vmem:[%s368 + $0x159] sm:$0xff] %vm280, %v365
      %399 = vst.msk [vmem:[%s368 + $0x169] sm:$0xff] %vm280, %v366
      %400 = vst.msk [vmem:[%s368 + $0x171] sm:$0xff] %vm280, %v367
      %v401 = vld [vmem:[#allocation2] sm:$0xff]
      %v402 = vld [vmem:[#allocation2 + $0x8] sm:$0xff]
      %v403 = vld [vmem:[#allocation2 + $0x10] sm:$0x3]
      %v404 = vld [vmem:[#allocation2 + $0x18] sm:$0xff]
      %v405 = vld [vmem:[#allocation2 + $0x20] sm:$0xff]
      %v406 = vld [vmem:[#allocation2 + $0x28] sm:$0x3]
      %v407 = vld [vmem:[#allocation2 + $0x30] sm:$0xff]
      %v408 = vld [vmem:[#allocation2 + $0x38] sm:$0xff]
      %v409 = vld [vmem:[#allocation2 + $0x40] sm:$0x3]
      %v410 = vld [vmem:[#allocation2 + $0x48] sm:$0xff]
      %v411 = vld [vmem:[#allocation2 + $0x50] sm:$0xff]
      %v412 = vld [vmem:[#allocation2 + $0x58] sm:$0x3]
      %v413 = vld [vmem:[#allocation2 + $0x60] sm:$0xff]
      %v414 = vld [vmem:[#allocation2 + $0x68] sm:$0xff]
      %v415 = vld [vmem:[#allocation2 + $0x70] sm:$0x3]
      %v416 = vld [vmem:[#allocation2 + $0x78] sm:$0xff]
      %v417 = vld [vmem:[#allocation2 + $0x80] sm:$0xff]
      %v418 = vld [vmem:[#allocation2 + $0x88] sm:$0x3]
      %v419 = vld [vmem:[#allocation2 + $0x90] sm:$0xff]
      %v420 = vld [vmem:[#allocation2 + $0x98] sm:$0xff]
      %v421 = vld [vmem:[#allocation2 + $0xa0] sm:$0x3]
      %v422 = vld [vmem:[#allocation2 + $0xa8] sm:$0xff]
      %v423 = vld [vmem:[#allocation2 + $0xb0] sm:$0xff]
      %v424 = vld [vmem:[#allocation2 + $0xb8] sm:$0x3]
      %v425 = vld [vmem:[#allocation2 + $0xc0] sm:$0xff]
      %v426 = vld [vmem:[#allocation2 + $0xc8] sm:$0xff]
      %v427 = vld [vmem:[#allocation2 + $0xd0] sm:$0x3]
      %v428 = vld [vmem:[#allocation2 + $0xd8] sm:$0xff]
      %v429 = vld [vmem:[#allocation2 + $0xe0] sm:$0xff]
      %v430 = vld [vmem:[#allocation2 + $0xe8] sm:$0x3]
      %v431 = vld [vmem:[#allocation2 + $0xf0] sm:$0xff]
      %v432 = vld [vmem:[#allocation2 + $0xf8] sm:$0xff]
      %v433 = vld [vmem:[#allocation2 + $0x100] sm:$0x3]
      %v434 = vld [vmem:[#allocation2 + $0x108] sm:$0xff]
      %v435 = vld [vmem:[#allocation2 + $0x110] sm:$0xff]
      %v436 = vld [vmem:[#allocation2 + $0x118] sm:$0x3]
      %v437 = vld [vmem:[#allocation2 + $0x120] sm:$0xff]
      %v438 = vld [vmem:[#allocation2 + $0x128] sm:$0xff]
      %v439 = vld [vmem:[#allocation2 + $0x130] sm:$0x3]
      %v440 = vld [vmem:[#allocation2 + $0x138] sm:$0xff]
      %v441 = vld [vmem:[#allocation2 + $0x140] sm:$0xff]
      %v442 = vld [vmem:[#allocation2 + $0x148] sm:$0x3]
      %v443 = vld [vmem:[#allocation2 + $0x150] sm:$0xff]
      %v444 = vld [vmem:[#allocation2 + $0x158] sm:$0xff]
      %v445 = vld [vmem:[#allocation2 + $0x160] sm:$0x3]
      %v446 = vld [vmem:[#allocation2 + $0x168] sm:$0xff]
      %v447 = vld [vmem:[#allocation2 + $0x170] sm:$0xff]
      %v448 = vld [vmem:[#allocation2 + $0x178] sm:$0x3]
      %v449 = vld [vmem:[#allocation2 + $0x180] sm:$0xff]
      %v450 = vld [vmem:[#allocation2 + $0x188] sm:$0xff]
      %v451 = vld [vmem:[#allocation2 + $0x190] sm:$0x3]
      %v452 = vld [vmem:[#allocation2 + $0x198] sm:$0xff]
      %v453 = vld [vmem:[#allocation2 + $0x1a0] sm:$0xff]
      %v454 = vld [vmem:[#allocation2 + $0x1a8] sm:$0x3]
      %v455 = vpack.c.bf16 %v402, %v401
      %v456 = vpack.c.bf16 %v405, %v404
      %v457 = vpack.c.bf16 %v408, %v407
      %v458 = vpack.c.bf16 %v411, %v410
      %v459 = vpack.c.bf16 %v414, %v413
      %v460 = vpack.c.bf16 %v417, %v416
      %v461 = vpack.c.bf16 %v420, %v419
      %v462 = vpack.c.bf16 %v423, %v422
      %v463 = vpack.c.bf16 %v426, %v425
      %v464 = vpack.c.bf16 %v429, %v428
      %v465 = vpack.c.bf16 %v432, %v431
      %v466 = vpack.c.bf16 %v435, %v434
      %v467 = vpack.c.bf16 %v438, %v437
      %v468 = vpack.c.bf16 %v441, %v440
      %v469 = vpack.c.bf16 %v444, %v443
      %v470 = vpack.c.bf16 %v447, %v446
      %v471 = vld [vmem:[%s1] sm:$0xf]
      %vm520 = vcmask 1046528
      %v521 = vrot.slane %v401, 1
      %v522 = vrot.slane %v402, 1
      %v523 = vsel %vm520, %v521, %v522
      %v524 = vrot.slane %v403, 1
      %v525 = vsel %vm520, %v522, %v524
      %v526 = vrot.slane %v404, 1
      %v527 = vrot.slane %v405, 1
      %v528 = vsel %vm520, %v526, %v527
      %v529 = vrot.slane %v406, 1
      %v530 = vsel %vm520, %v527, %v529
      %v531 = vrot.slane %v407, 1
      %v532 = vrot.slane %v408, 1
      %v533 = vsel %vm520, %v531, %v532
      %v534 = vrot.slane %v409, 1
      %v535 = vsel %vm520, %v532, %v534
      %v536 = vrot.slane %v410, 1
      %v537 = vrot.slane %v411, 1
      %v538 = vsel %vm520, %v536, %v537
      %v539 = vrot.slane %v412, 1
      %v540 = vsel %vm520, %v537, %v539
      %v541 = vrot.slane %v413, 1
      %v542 = vrot.slane %v414, 1
      %v543 = vsel %vm520, %v541, %v542
      %v544 = vrot.slane %v415, 1
      %v545 = vsel %vm520, %v542, %v544
      %v546 = vrot.slane %v416, 1
      %v547 = vrot.slane %v417, 1
      %v548 = vsel %vm520, %v546, %v547
      %v549 = vrot.slane %v418, 1
      %v550 = vsel %vm520, %v547, %v549
      %v551 = vrot.slane %v419, 1
      %v552 = vrot.slane %v420, 1
      %v553 = vsel %vm520, %v551, %v552
      %v554 = vrot.slane %v421, 1
      %v555 = vsel %vm520, %v552, %v554
      %v556 = vrot.slane %v422, 1
      %v557 = vrot.slane %v423, 1
      %v558 = vsel %vm520, %v556, %v557
      %v559 = vrot.slane %v424, 1
      %v560 = vsel %vm520, %v557, %v559
      %v561 = vrot.slane %v425, 1
      %v562 = vrot.slane %v426, 1
      %v563 = vsel %vm520, %v561, %v562
      %v564 = vrot.slane %v427, 1
      %v565 = vsel %vm520, %v562, %v564
      %v566 = vrot.slane %v428, 1
      %v567 = vrot.slane %v429, 1
      %v568 = vsel %vm520, %v566, %v567
      %v569 = vrot.slane %v430, 1
      %v570 = vsel %vm520, %v567, %v569
      %v571 = vrot.slane %v431, 1
      %v572 = vrot.slane %v432, 1
      %v573 = vsel %vm520, %v571, %v572
      %v574 = vrot.slane %v433, 1
      %v575 = vsel %vm520, %v572, %v574
      %v576 = vrot.slane %v434, 1
      %v577 = vrot.slane %v435, 1
      %v578 = vsel %vm520, %v576, %v577
      %v579 = vrot.slane %v436, 1
      %v580 = vsel %vm520, %v577, %v579
      %v581 = vrot.slane %v437, 1
      %v582 = vrot.slane %v438, 1
      %v583 = vsel %vm520, %v581, %v582
      %v584 = vrot.slane %v439, 1
      %v585 = vsel %vm520, %v582, %v584
      %v586 = vrot.slane %v440, 1
      %v587 = vrot.slane %v441, 1
      %v588 = vsel %vm520, %v586, %v587
      %v589 = vrot.slane %v442, 1
      %v590 = vsel %vm520, %v587, %v589
      %v591 = vrot.slane %v443, 1
      %v592 = vrot.slane %v444, 1
      %v593 = vsel %vm520, %v591, %v592
      %v594 = vrot.slane %v445, 1
      %v595 = vsel %vm520, %v592, %v594
      %v596 = vrot.slane %v446, 1
      %v597 = vrot.slane %v447, 1
      %v598 = vsel %vm520, %v596, %v597
      %v599 = vrot.slane %v448, 1
      %v600 = vsel %vm520, %v597, %v599
      %v633 = vpack.c.bf16 %v525, %v523
      %v634 = vpack.c.bf16 %v530, %v528
      %v635 = vpack.c.bf16 %v535, %v533
      %v636 = vpack.c.bf16 %v540, %v538
      %v637 = vpack.c.bf16 %v545, %v543
      %v638 = vpack.c.bf16 %v550, %v548
      %v639 = vpack.c.bf16 %v555, %v553
      %v640 = vpack.c.bf16 %v560, %v558
      %v641 = vpack.c.bf16 %v565, %v563
      %v642 = vpack.c.bf16 %v570, %v568
      %v643 = vpack.c.bf16 %v575, %v573
      %v644 = vpack.c.bf16 %v580, %v578
      %v645 = vpack.c.bf16 %v585, %v583
      %v646 = vpack.c.bf16 %v590, %v588
      %v647 = vpack.c.bf16 %v595, %v593
      %v648 = vpack.c.bf16 %v600, %v598
      %s649 = scalar_lea.vmem %s1, 4
      %v650 = vld [vmem:[%s649] sm:$0xf]
      %v652 = vsel %vm280, %v633, 0
      %v655 = vsel %vm280, %v634, 0
      %v658 = vsel %vm280, %v635, 0
      %v661 = vsel %vm280, %v636, 0
      %v664 = vsel %vm280, %v637, 0
      %v667 = vsel %vm280, %v638, 0
      %v670 = vsel %vm280, %v639, 0
      %v673 = vsel %vm280, %v640, 0
      %v676 = vsel %vm280, %v641, 0
      %v679 = vsel %vm280, %v642, 0
      %v682 = vsel %vm280, %v643, 0
      %v685 = vsel %vm280, %v644, 0
      %v688 = vsel %vm280, %v645, 0
      %v691 = vsel %vm280, %v646, 0
      %v694 = vsel %vm280, %v647, 0
      %v697 = vsel %vm280, %v648, 0
      %vm699 = vcmask 1043456
      %v701 = vsel %vm699, %v650, 0
      %703 = vmatpush.bf16.msra.mxu0 0
      %704 = vmatpush.bf16.msra.mxu0 0
      %705 = vmatpush.bf16.msra.mxu0 0
      %706 = vmatpush.bf16.msra.mxu0 0
      %707 = vmatpush.bf16.msra.mxu0 0
      %708 = vmatpush.bf16.msra.mxu0 0
      %709 = vmatpush.bf16.msra.mxu0 0
      %710 = vmatpush.bf16.msra.mxu0 %v701
      %711 = vmatmul.bf16.gmra.mxu0 %v652
      %v712 = vpop.f32.mrf.mxu0
      %v713 = vadd.f32 0.0, %v712
      %v714 = vpop.f32.mrf.mxu0
      %v715 = vadd.f32 0.0, %v714
      %716 = vmatmul.bf16.gmra.mxu0 %v655
      %v717 = vpop.f32.mrf.mxu0
      %v718 = vadd.f32 0.0, %v717
      %v719 = vpop.f32.mrf.mxu0
      %v720 = vadd.f32 0.0, %v719
      %721 = vmatmul.bf16.gmra.mxu0 %v658
      %v722 = vpop.f32.mrf.mxu0
      %v723 = vadd.f32 0.0, %v722
      %v724 = vpop.f32.mrf.mxu0
      %v725 = vadd.f32 0.0, %v724
      %726 = vmatmul.bf16.gmra.mxu0 %v661
      %v727 = vpop.f32.mrf.mxu0
      %v728 = vadd.f32 0.0, %v727
      %v729 = vpop.f32.mrf.mxu0
      %v730 = vadd.f32 0.0, %v729
      %731 = vmatmul.bf16.gmra.mxu0 %v664
      %v732 = vpop.f32.mrf.mxu0
      %v733 = vadd.f32 0.0, %v732
      %v734 = vpop.f32.mrf.mxu0
      %v735 = vadd.f32 0.0, %v734
      %736 = vmatmul.bf16.gmra.mxu0 %v667
      %v737 = vpop.f32.mrf.mxu0
      %v738 = vadd.f32 0.0, %v737
      %v739 = vpop.f32.mrf.mxu0
      %v740 = vadd.f32 0.0, %v739
      %741 = vmatmul.bf16.gmra.mxu0 %v670
      %v742 = vpop.f32.mrf.mxu0
      %v743 = vadd.f32 0.0, %v742
      %v744 = vpop.f32.mrf.mxu0
      %v745 = vadd.f32 0.0, %v744
      %746 = vmatmul.bf16.gmra.mxu0 %v673
      %v747 = vpop.f32.mrf.mxu0
      %v748 = vadd.f32 0.0, %v747
      %v749 = vpop.f32.mrf.mxu0
      %v750 = vadd.f32 0.0, %v749
      %751 = vmatmul.bf16.gmra.mxu0 %v676
      %v752 = vpop.f32.mrf.mxu0
      %v753 = vadd.f32 0.0, %v752
      %v754 = vpop.f32.mrf.mxu0
      %v755 = vadd.f32 0.0, %v754
      %756 = vmatmul.bf16.gmra.mxu0 %v679
      %v757 = vpop.f32.mrf.mxu0
      %v758 = vadd.f32 0.0, %v757
      %v759 = vpop.f32.mrf.mxu0
      %v760 = vadd.f32 0.0, %v759
      %761 = vmatmul.bf16.gmra.mxu0 %v682
      %v762 = vpop.f32.mrf.mxu0
      %v763 = vadd.f32 0.0, %v762
      %v764 = vpop.f32.mrf.mxu0
      %v765 = vadd.f32 0.0, %v764
      %766 = vmatmul.bf16.gmra.mxu0 %v685
      %v767 = vpop.f32.mrf.mxu0
      %v768 = vadd.f32 0.0, %v767
      %v769 = vpop.f32.mrf.mxu0
      %v770 = vadd.f32 0.0, %v769
      %771 = vmatmul.bf16.gmra.mxu0 %v688
      %v772 = vpop.f32.mrf.mxu0
      %v773 = vadd.f32 0.0, %v772
      %v774 = vpop.f32.mrf.mxu0
      %v775 = vadd.f32 0.0, %v774
      %776 = vmatmul.bf16.gmra.mxu0 %v691
      %v777 = vpop.f32.mrf.mxu0
      %v778 = vadd.f32 0.0, %v777
      %v779 = vpop.f32.mrf.mxu0
      %v780 = vadd.f32 0.0, %v779
      %781 = vmatmul.bf16.gmra.mxu0 %v694
      %v782 = vpop.f32.mrf.mxu0
      %v783 = vadd.f32 0.0, %v782
      %v784 = vpop.f32.mrf.mxu0
      %v785 = vadd.f32 0.0, %v784
      %786 = vmatmul.bf16.gmra.mxu0 %v697
      %v787 = vpop.f32.mrf.mxu0
      %v788 = vadd.f32 0.0, %v787
      %v789 = vpop.f32.mrf.mxu0
      %v790 = vadd.f32 0.0, %v789
      %791 = vdwg.mxu0
      %v793 = vsel %vm280, %v455, 0
      %v796 = vsel %vm280, %v456, 0
      %v799 = vsel %vm280, %v457, 0
      %v802 = vsel %vm280, %v458, 0
      %v805 = vsel %vm280, %v459, 0
      %v808 = vsel %vm280, %v460, 0
      %v811 = vsel %vm280, %v461, 0
      %v814 = vsel %vm280, %v462, 0
      %v817 = vsel %vm280, %v463, 0
      %v820 = vsel %vm280, %v464, 0
      %v823 = vsel %vm280, %v465, 0
      %v826 = vsel %vm280, %v466, 0
      %v829 = vsel %vm280, %v467, 0
      %v832 = vsel %vm280, %v468, 0
      %v835 = vsel %vm280, %v469, 0
      %v838 = vsel %vm280, %v470, 0
      %v841 = vsel %vm699, %v471, 0
      %843 = vmatpush.bf16.msra.mxu0 0
      %844 = vmatpush.bf16.msra.mxu0 0
      %845 = vmatpush.bf16.msra.mxu0 0
      %846 = vmatpush.bf16.msra.mxu0 0
      %847 = vmatpush.bf16.msra.mxu0 0
      %848 = vmatpush.bf16.msra.mxu0 0
      %849 = vmatpush.bf16.msra.mxu0 0
      %850 = vmatpush.bf16.msra.mxu0 %v841
      %851 = vmatmul.bf16.gmra.mxu0 %v793
      %v852 = vpop.f32.mrf.mxu0
      %v853 = vadd.f32 %v713, %v852
      %v854 = vpop.f32.mrf.mxu0
      %v855 = vadd.f32 %v715, %v854
      %856 = vmatmul.bf16.gmra.mxu0 %v796
      %v857 = vpop.f32.mrf.mxu0
      %v858 = vadd.f32 %v718, %v857
      %v859 = vpop.f32.mrf.mxu0
      %v860 = vadd.f32 %v720, %v859
      %861 = vmatmul.bf16.gmra.mxu0 %v799
      %v862 = vpop.f32.mrf.mxu0
      %v863 = vadd.f32 %v723, %v862
      %v864 = vpop.f32.mrf.mxu0
      %v865 = vadd.f32 %v725, %v864
      %866 = vmatmul.bf16.gmra.mxu0 %v802
      %v867 = vpop.f32.mrf.mxu0
      %v868 = vadd.f32 %v728, %v867
      %v869 = vpop.f32.mrf.mxu0
      %v870 = vadd.f32 %v730, %v869
      %871 = vmatmul.bf16.gmra.mxu0 %v805
      %v872 = vpop.f32.mrf.mxu0
      %v873 = vadd.f32 %v733, %v872
      %v874 = vpop.f32.mrf.mxu0
      %v875 = vadd.f32 %v735, %v874
      %876 = vmatmul.bf16.gmra.mxu0 %v808
      %v877 = vpop.f32.mrf.mxu0
      %v878 = vadd.f32 %v738, %v877
      %v879 = vpop.f32.mrf.mxu0
      %v880 = vadd.f32 %v740, %v879
      %881 = vmatmul.bf16.gmra.mxu0 %v811
      %v882 = vpop.f32.mrf.mxu0
      %v883 = vadd.f32 %v743, %v882
      %v884 = vpop.f32.mrf.mxu0
      %v885 = vadd.f32 %v745, %v884
      %886 = vmatmul.bf16.gmra.mxu0 %v814
      %v887 = vpop.f32.mrf.mxu0
      %v888 = vadd.f32 %v748, %v887
      %v889 = vpop.f32.mrf.mxu0
      %v890 = vadd.f32 %v750, %v889
      %891 = vmatmul.bf16.gmra.mxu0 %v817
      %v892 = vpop.f32.mrf.mxu0
      %v893 = vadd.f32 %v753, %v892
      %v894 = vpop.f32.mrf.mxu0
      %v895 = vadd.f32 %v755, %v894
      %896 = vmatmul.bf16.gmra.mxu0 %v820
      %v897 = vpop.f32.mrf.mxu0
      %v898 = vadd.f32 %v758, %v897
      %v899 = vpop.f32.mrf.mxu0
      %v900 = vadd.f32 %v760, %v899
      %901 = vmatmul.bf16.gmra.mxu0 %v823
      %v902 = vpop.f32.mrf.mxu0
      %v903 = vadd.f32 %v763, %v902
      %v904 = vpop.f32.mrf.mxu0
      %v905 = vadd.f32 %v765, %v904
      %906 = vmatmul.bf16.gmra.mxu0 %v826
      %v907 = vpop.f32.mrf.mxu0
      %v908 = vadd.f32 %v768, %v907
      %v909 = vpop.f32.mrf.mxu0
      %v910 = vadd.f32 %v770, %v909
      %911 = vmatmul.bf16.gmra.mxu0 %v829
      %v912 = vpop.f32.mrf.mxu0
      %v913 = vadd.f32 %v773, %v912
      %v914 = vpop.f32.mrf.mxu0
      %v915 = vadd.f32 %v775, %v914
      %916 = vmatmul.bf16.gmra.mxu0 %v832
      %v917 = vpop.f32.mrf.mxu0
      %v918 = vadd.f32 %v778, %v917
      %v919 = vpop.f32.mrf.mxu0
      %v920 = vadd.f32 %v780, %v919
      %921 = vmatmul.bf16.gmra.mxu0 %v835
      %v922 = vpop.f32.mrf.mxu0
      %v923 = vadd.f32 %v783, %v922
      %v924 = vpop.f32.mrf.mxu0
      %v925 = vadd.f32 %v785, %v924
      %926 = vmatmul.bf16.gmra.mxu0 %v838
      %v927 = vpop.f32.mrf.mxu0
      %v928 = vadd.f32 %v788, %v927
      %v929 = vpop.f32.mrf.mxu0
      %v930 = vadd.f32 %v790, %v929
      %931 = vdwg.mxu0
      %vm932 = vcmask 1045504
      %v933 = vrot.slane %v401, 2
      %v934 = vrot.slane %v402, 2
      %v935 = vsel %vm932, %v933, %v934
      %v936 = vrot.slane %v403, 2
      %v937 = vsel %vm932, %v934, %v936
      %v938 = vrot.slane %v404, 2
      %v939 = vrot.slane %v405, 2
      %v940 = vsel %vm932, %v938, %v939
      %v941 = vrot.slane %v406, 2
      %v942 = vsel %vm932, %v939, %v941
      %v943 = vrot.slane %v407, 2
      %v944 = vrot.slane %v408, 2
      %v945 = vsel %vm932, %v943, %v944
      %v946 = vrot.slane %v409, 2
      %v947 = vsel %vm932, %v944, %v946
      %v948 = vrot.slane %v410, 2
      %v949 = vrot.slane %v411, 2
      %v950 = vsel %vm932, %v948, %v949
      %v951 = vrot.slane %v412, 2
      %v952 = vsel %vm932, %v949, %v951
      %v953 = vrot.slane %v413, 2
      %v954 = vrot.slane %v414, 2
      %v955 = vsel %vm932, %v953, %v954
      %v956 = vrot.slane %v415, 2
      %v957 = vsel %vm932, %v954, %v956
      %v958 = vrot.slane %v416, 2
      %v959 = vrot.slane %v417, 2
      %v960 = vsel %vm932, %v958, %v959
      %v961 = vrot.slane %v418, 2
      %v962 = vsel %vm932, %v959, %v961
      %v963 = vrot.slane %v419, 2
      %v964 = vrot.slane %v420, 2
      %v965 = vsel %vm932, %v963, %v964
      %v966 = vrot.slane %v421, 2
      %v967 = vsel %vm932, %v964, %v966
      %v968 = vrot.slane %v422, 2
      %v969 = vrot.slane %v423, 2
      %v970 = vsel %vm932, %v968, %v969
      %v971 = vrot.slane %v424, 2
      %v972 = vsel %vm932, %v969, %v971
      %v973 = vrot.slane %v425, 2
      %v974 = vrot.slane %v426, 2
      %v975 = vsel %vm932, %v973, %v974
      %v976 = vrot.slane %v427, 2
      %v977 = vsel %vm932, %v974, %v976
      %v978 = vrot.slane %v428, 2
      %v979 = vrot.slane %v429, 2
      %v980 = vsel %vm932, %v978, %v979
      %v981 = vrot.slane %v430, 2
      %v982 = vsel %vm932, %v979, %v981
      %v983 = vrot.slane %v431, 2
      %v984 = vrot.slane %v432, 2
      %v985 = vsel %vm932, %v983, %v984
      %v986 = vrot.slane %v433, 2
      %v987 = vsel %vm932, %v984, %v986
      %v988 = vrot.slane %v434, 2
      %v989 = vrot.slane %v435, 2
      %v990 = vsel %vm932, %v988, %v989
      %v991 = vrot.slane %v436, 2
      %v992 = vsel %vm932, %v989, %v991
      %v993 = vrot.slane %v437, 2
      %v994 = vrot.slane %v438, 2
      %v995 = vsel %vm932, %v993, %v994
      %v996 = vrot.slane %v439, 2
      %v997 = vsel %vm932, %v994, %v996
      %v998 = vrot.slane %v440, 2
      %v999 = vrot.slane %v441, 2
      %v1000 = vsel %vm932, %v998, %v999
      %v1001 = vrot.slane %v442, 2
      %v1002 = vsel %vm932, %v999, %v1001
      %v1003 = vrot.slane %v443, 2
      %v1004 = vrot.slane %v444, 2
      %v1005 = vsel %vm932, %v1003, %v1004
      %v1006 = vrot.slane %v445, 2
      %v1007 = vsel %vm932, %v1004, %v1006
      %v1008 = vrot.slane %v446, 2
      %v1009 = vrot.slane %v447, 2
      %v1010 = vsel %vm932, %v1008, %v1009
      %v1011 = vrot.slane %v448, 2
      %v1012 = vsel %vm932, %v1009, %v1011
      %v1045 = vpack.c.bf16 %v937, %v935
      %v1046 = vpack.c.bf16 %v942, %v940
      %v1047 = vpack.c.bf16 %v947, %v945
      %v1048 = vpack.c.bf16 %v952, %v950
      %v1049 = vpack.c.bf16 %v957, %v955
      %v1050 = vpack.c.bf16 %v962, %v960
      %v1051 = vpack.c.bf16 %v967, %v965
      %v1052 = vpack.c.bf16 %v972, %v970
      %v1053 = vpack.c.bf16 %v977, %v975
      %v1054 = vpack.c.bf16 %v982, %v980
      %v1055 = vpack.c.bf16 %v987, %v985
      %v1056 = vpack.c.bf16 %v992, %v990
      %v1057 = vpack.c.bf16 %v997, %v995
      %v1058 = vpack.c.bf16 %v1002, %v1000
      %v1059 = vpack.c.bf16 %v1007, %v1005
      %v1060 = vpack.c.bf16 %v1012, %v1010
      %s1061 = scalar_lea.vmem %s1, 8
      %v1062 = vld [vmem:[%s1061] sm:$0xf]
      %v1064 = vsel %vm280, %v1045, 0
      %v1067 = vsel %vm280, %v1046, 0
      %v1070 = vsel %vm280, %v1047, 0
      %v1073 = vsel %vm280, %v1048, 0
      %v1076 = vsel %vm280, %v1049, 0
      %v1079 = vsel %vm280, %v1050, 0
      %v1082 = vsel %vm280, %v1051, 0
      %v1085 = vsel %vm280, %v1052, 0
      %v1088 = vsel %vm280, %v1053, 0
      %v1091 = vsel %vm280, %v1054, 0
      %v1094 = vsel %vm280, %v1055, 0
      %v1097 = vsel %vm280, %v1056, 0
      %v1100 = vsel %vm280, %v1057, 0
      %v1103 = vsel %vm280, %v1058, 0
      %v1106 = vsel %vm280, %v1059, 0
      %v1109 = vsel %vm280, %v1060, 0
      %v1112 = vsel %vm699, %v1062, 0
      %1114 = vmatpush.bf16.msra.mxu0 0
      %1115 = vmatpush.bf16.msra.mxu0 0
      %1116 = vmatpush.bf16.msra.mxu0 0
      %1117 = vmatpush.bf16.msra.mxu0 0
      %1118 = vmatpush.bf16.msra.mxu0 0
      %1119 = vmatpush.bf16.msra.mxu0 0
      %1120 = vmatpush.bf16.msra.mxu0 0
      %1121 = vmatpush.bf16.msra.mxu0 %v1112
      %1122 = vmatmul.bf16.gmra.mxu0 %v1064
      %v1123 = vpop.f32.mrf.mxu0
      %v1124 = vadd.f32 0.0, %v1123
      %v1125 = vpop.f32.mrf.mxu0
      %v1126 = vadd.f32 0.0, %v1125
      %1127 = vmatmul.bf16.gmra.mxu0 %v1067
      %v1128 = vpop.f32.mrf.mxu0
      %v1129 = vadd.f32 0.0, %v1128
      %v1130 = vpop.f32.mrf.mxu0
      %v1131 = vadd.f32 0.0, %v1130
      %1132 = vmatmul.bf16.gmra.mxu0 %v1070
      %v1133 = vpop.f32.mrf.mxu0
      %v1134 = vadd.f32 0.0, %v1133
      %v1135 = vpop.f32.mrf.mxu0
      %v1136 = vadd.f32 0.0, %v1135
      %1137 = vmatmul.bf16.gmra.mxu0 %v1073
      %v1138 = vpop.f32.mrf.mxu0
      %v1139 = vadd.f32 0.0, %v1138
      %v1140 = vpop.f32.mrf.mxu0
      %v1141 = vadd.f32 0.0, %v1140
      %1142 = vmatmul.bf16.gmra.mxu0 %v1076
      %v1143 = vpop.f32.mrf.mxu0
      %v1144 = vadd.f32 0.0, %v1143
      %v1145 = vpop.f32.mrf.mxu0
      %v1146 = vadd.f32 0.0, %v1145
      %1147 = vmatmul.bf16.gmra.mxu0 %v1079
      %v1148 = vpop.f32.mrf.mxu0
      %v1149 = vadd.f32 0.0, %v1148
      %v1150 = vpop.f32.mrf.mxu0
      %v1151 = vadd.f32 0.0, %v1150
      %1152 = vmatmul.bf16.gmra.mxu0 %v1082
      %v1153 = vpop.f32.mrf.mxu0
      %v1154 = vadd.f32 0.0, %v1153
      %v1155 = vpop.f32.mrf.mxu0
      %v1156 = vadd.f32 0.0, %v1155
      %1157 = vmatmul.bf16.gmra.mxu0 %v1085
      %v1158 = vpop.f32.mrf.mxu0
      %v1159 = vadd.f32 0.0, %v1158
      %v1160 = vpop.f32.mrf.mxu0
      %v1161 = vadd.f32 0.0, %v1160
      %1162 = vmatmul.bf16.gmra.mxu0 %v1088
      %v1163 = vpop.f32.mrf.mxu0
      %v1164 = vadd.f32 0.0, %v1163
      %v1165 = vpop.f32.mrf.mxu0
      %v1166 = vadd.f32 0.0, %v1165
      %1167 = vmatmul.bf16.gmra.mxu0 %v1091
      %v1168 = vpop.f32.mrf.mxu0
      %v1169 = vadd.f32 0.0, %v1168
      %v1170 = vpop.f32.mrf.mxu0
      %v1171 = vadd.f32 0.0, %v1170
      %1172 = vmatmul.bf16.gmra.mxu0 %v1094
      %v1173 = vpop.f32.mrf.mxu0
      %v1174 = vadd.f32 0.0, %v1173
      %v1175 = vpop.f32.mrf.mxu0
      %v1176 = vadd.f32 0.0, %v1175
      %1177 = vmatmul.bf16.gmra.mxu0 %v1097
      %v1178 = vpop.f32.mrf.mxu0
      %v1179 = vadd.f32 0.0, %v1178
      %v1180 = vpop.f32.mrf.mxu0
      %v1181 = vadd.f32 0.0, %v1180
      %1182 = vmatmul.bf16.gmra.mxu0 %v1100
      %v1183 = vpop.f32.mrf.mxu0
      %v1184 = vadd.f32 0.0, %v1183
      %v1185 = vpop.f32.mrf.mxu0
      %v1186 = vadd.f32 0.0, %v1185
      %1187 = vmatmul.bf16.gmra.mxu0 %v1103
      %v1188 = vpop.f32.mrf.mxu0
      %v1189 = vadd.f32 0.0, %v1188
      %v1190 = vpop.f32.mrf.mxu0
      %v1191 = vadd.f32 0.0, %v1190
      %1192 = vmatmul.bf16.gmra.mxu0 %v1106
      %v1193 = vpop.f32.mrf.mxu0
      %v1194 = vadd.f32 0.0, %v1193
      %v1195 = vpop.f32.mrf.mxu0
      %v1196 = vadd.f32 0.0, %v1195
      %1197 = vmatmul.bf16.gmra.mxu0 %v1109
      %v1198 = vpop.f32.mrf.mxu0
      %v1199 = vadd.f32 0.0, %v1198
      %v1200 = vpop.f32.mrf.mxu0
      %v1201 = vadd.f32 0.0, %v1200
      %1202 = vdwg.mxu0
      %v1203 = vadd.f32 %v853, %v1124
      %v1204 = vadd.f32 %v855, %v1126
      %v1205 = vadd.f32 %v858, %v1129
      %v1206 = vadd.f32 %v860, %v1131
      %v1207 = vadd.f32 %v863, %v1134
      %v1208 = vadd.f32 %v865, %v1136
      %v1209 = vadd.f32 %v868, %v1139
      %v1210 = vadd.f32 %v870, %v1141
      %v1211 = vadd.f32 %v873, %v1144
      %v1212 = vadd.f32 %v875, %v1146
      %v1213 = vadd.f32 %v878, %v1149
      %v1214 = vadd.f32 %v880, %v1151
      %v1215 = vadd.f32 %v883, %v1154
      %v1216 = vadd.f32 %v885, %v1156
      %v1217 = vadd.f32 %v888, %v1159
      %v1218 = vadd.f32 %v890, %v1161
      %v1219 = vadd.f32 %v893, %v1164
      %v1220 = vadd.f32 %v895, %v1166
      %v1221 = vadd.f32 %v898, %v1169
      %v1222 = vadd.f32 %v900, %v1171
      %v1223 = vadd.f32 %v903, %v1174
      %v1224 = vadd.f32 %v905, %v1176
      %v1225 = vadd.f32 %v908, %v1179
      %v1226 = vadd.f32 %v910, %v1181
      %v1227 = vadd.f32 %v913, %v1184
      %v1228 = vadd.f32 %v915, %v1186
      %v1229 = vadd.f32 %v918, %v1189
      %v1230 = vadd.f32 %v920, %v1191
      %v1231 = vadd.f32 %v923, %v1194
      %v1232 = vadd.f32 %v925, %v1196
      %v1233 = vadd.f32 %v928, %v1199
      %v1234 = vadd.f32 %v930, %v1201
      %v1235 = vpack.c.bf16 %v450, %v449
      %s1236 = scalar_lea.vmem %s1, 12
      %v1237 = vld [vmem:[%s1236] sm:$0xf]
      %v1239 = vsel %vm280, %v1235, 0
      %v1242 = vsel %vm699, %v1237, 0
      %1244 = vmatpush.bf16.msra.mxu0 0
      %1245 = vmatpush.bf16.msra.mxu0 0
      %1246 = vmatpush.bf16.msra.mxu0 0
      %1247 = vmatpush.bf16.msra.mxu0 0
      %1248 = vmatpush.bf16.msra.mxu0 0
      %1249 = vmatpush.bf16.msra.mxu0 0
      %1250 = vmatpush.bf16.msra.mxu0 0
      %1251 = vmatpush.bf16.msra.mxu0 %v1242
      %1252 = vmatmul.bf16.gmra.mxu0 %v796
      %v1253 = vpop.f32.mrf.mxu0
      %v1254 = vadd.f32 0.0, %v1253
      %v1255 = vpop.f32.mrf.mxu0
      %v1256 = vadd.f32 0.0, %v1255
      %1257 = vmatmul.bf16.gmra.mxu0 %v799
      %v1258 = vpop.f32.mrf.mxu0
      %v1259 = vadd.f32 0.0, %v1258
      %v1260 = vpop.f32.mrf.mxu0
      %v1261 = vadd.f32 0.0, %v1260
      %1262 = vmatmul.bf16.gmra.mxu0 %v802
      %v1263 = vpop.f32.mrf.mxu0
      %v1264 = vadd.f32 0.0, %v1263
      %v1265 = vpop.f32.mrf.mxu0
      %v1266 = vadd.f32 0.0, %v1265
      %1267 = vmatmul.bf16.gmra.mxu0 %v805
      %v1268 = vpop.f32.mrf.mxu0
      %v1269 = vadd.f32 0.0, %v1268
      %v1270 = vpop.f32.mrf.mxu0
      %v1271 = vadd.f32 0.0, %v1270
      %1272 = vmatmul.bf16.gmra.mxu0 %v808
      %v1273 = vpop.f32.mrf.mxu0
      %v1274 = vadd.f32 0.0, %v1273
      %v1275 = vpop.f32.mrf.mxu0
      %v1276 = vadd.f32 0.0, %v1275
      %1277 = vmatmul.bf16.gmra.mxu0 %v811
      %v1278 = vpop.f32.mrf.mxu0
      %v1279 = vadd.f32 0.0, %v1278
      %v1280 = vpop.f32.mrf.mxu0
      %v1281 = vadd.f32 0.0, %v1280
      %1282 = vmatmul.bf16.gmra.mxu0 %v814
      %v1283 = vpop.f32.mrf.mxu0
      %v1284 = vadd.f32 0.0, %v1283
      %v1285 = vpop.f32.mrf.mxu0
      %v1286 = vadd.f32 0.0, %v1285
      %1287 = vmatmul.bf16.gmra.mxu0 %v817
      %v1288 = vpop.f32.mrf.mxu0
      %v1289 = vadd.f32 0.0, %v1288
      %v1290 = vpop.f32.mrf.mxu0
      %v1291 = vadd.f32 0.0, %v1290
      %1292 = vmatmul.bf16.gmra.mxu0 %v820
      %v1293 = vpop.f32.mrf.mxu0
      %v1294 = vadd.f32 0.0, %v1293
      %v1295 = vpop.f32.mrf.mxu0
      %v1296 = vadd.f32 0.0, %v1295
      %1297 = vmatmul.bf16.gmra.mxu0 %v823
      %v1298 = vpop.f32.mrf.mxu0
      %v1299 = vadd.f32 0.0, %v1298
      %v1300 = vpop.f32.mrf.mxu0
      %v1301 = vadd.f32 0.0, %v1300
      %1302 = vmatmul.bf16.gmra.mxu0 %v826
      %v1303 = vpop.f32.mrf.mxu0
      %v1304 = vadd.f32 0.0, %v1303
      %v1305 = vpop.f32.mrf.mxu0
      %v1306 = vadd.f32 0.0, %v1305
      %1307 = vmatmul.bf16.gmra.mxu0 %v829
      %v1308 = vpop.f32.mrf.mxu0
      %v1309 = vadd.f32 0.0, %v1308
      %v1310 = vpop.f32.mrf.mxu0
      %v1311 = vadd.f32 0.0, %v1310
      %1312 = vmatmul.bf16.gmra.mxu0 %v832
      %v1313 = vpop.f32.mrf.mxu0
      %v1314 = vadd.f32 0.0, %v1313
      %v1315 = vpop.f32.mrf.mxu0
      %v1316 = vadd.f32 0.0, %v1315
      %1317 = vmatmul.bf16.gmra.mxu0 %v835
      %v1318 = vpop.f32.mrf.mxu0
      %v1319 = vadd.f32 0.0, %v1318
      %v1320 = vpop.f32.mrf.mxu0
      %v1321 = vadd.f32 0.0, %v1320
      %1322 = vmatmul.bf16.gmra.mxu0 %v838
      %v1323 = vpop.f32.mrf.mxu0
      %v1324 = vadd.f32 0.0, %v1323
      %v1325 = vpop.f32.mrf.mxu0
      %v1326 = vadd.f32 0.0, %v1325
      %1327 = vmatmul.bf16.gmra.mxu0 %v1239
      %v1328 = vpop.f32.mrf.mxu0
      %v1329 = vadd.f32 0.0, %v1328
      %v1330 = vpop.f32.mrf.mxu0
      %v1331 = vadd.f32 0.0, %v1330
      %1332 = vdwg.mxu0
      %v1333 = vadd.f32 %v1203, %v1254
      %v1334 = vadd.f32 %v1204, %v1256
      %v1335 = vadd.f32 %v1205, %v1259
      %v1336 = vadd.f32 %v1206, %v1261
      %v1337 = vadd.f32 %v1207, %v1264
      %v1338 = vadd.f32 %v1208, %v1266
      %v1339 = vadd.f32 %v1209, %v1269
      %v1340 = vadd.f32 %v1210, %v1271
      %v1341 = vadd.f32 %v1211, %v1274
      %v1342 = vadd.f32 %v1212, %v1276
      %v1343 = vadd.f32 %v1213, %v1279
      %v1344 = vadd.f32 %v1214, %v1281
      %v1345 = vadd.f32 %v1215, %v1284
      %v1346 = vadd.f32 %v1216, %v1286
      %v1347 = vadd.f32 %v1217, %v1289
      %v1348 = vadd.f32 %v1218, %v1291
      %v1349 = vadd.f32 %v1219, %v1294
      %v1350 = vadd.f32 %v1220, %v1296
      %v1351 = vadd.f32 %v1221, %v1299
      %v1352 = vadd.f32 %v1222, %v1301
      %v1353 = vadd.f32 %v1223, %v1304
      %v1354 = vadd.f32 %v1224, %v1306
      %v1355 = vadd.f32 %v1225, %v1309
      %v1356 = vadd.f32 %v1226, %v1311
      %v1357 = vadd.f32 %v1227, %v1314
      %v1358 = vadd.f32 %v1228, %v1316
      %v1359 = vadd.f32 %v1229, %v1319
      %v1360 = vadd.f32 %v1230, %v1321
      %v1361 = vadd.f32 %v1231, %v1324
      %v1362 = vadd.f32 %v1232, %v1326
      %v1363 = vadd.f32 %v1233, %v1329
      %v1364 = vadd.f32 %v1234, %v1331
      %v1368 = vrot.slane %v449, 1
      %v1369 = vrot.slane %v450, 1
      %v1370 = vsel %vm520, %v1368, %v1369
      %v1371 = vrot.slane %v451, 1
      %v1372 = vsel %vm520, %v1369, %v1371
      %v1375 = vpack.c.bf16 %v1372, %v1370
      %s1376 = scalar_lea.vmem %s1, 16
      %v1377 = vld [vmem:[%s1376] sm:$0xf]
      %v1379 = vsel %vm280, %v1375, 0
      %v1382 = vsel %vm699, %v1377, 0
      %1384 = vmatpush.bf16.msra.mxu0 0
      %1385 = vmatpush.bf16.msra.mxu0 0
      %1386 = vmatpush.bf16.msra.mxu0 0
      %1387 = vmatpush.bf16.msra.mxu0 0
      %1388 = vmatpush.bf16.msra.mxu0 0
      %1389 = vmatpush.bf16.msra.mxu0 0
      %1390 = vmatpush.bf16.msra.mxu0 0
      %1391 = vmatpush.bf16.msra.mxu0 %v1382
      %1392 = vmatmul.bf16.gmra.mxu0 %v655
      %v1393 = vpop.f32.mrf.mxu0
      %v1394 = vadd.f32 0.0, %v1393
      %v1395 = vpop.f32.mrf.mxu0
      %v1396 = vadd.f32 0.0, %v1395
      %1397 = vmatmul.bf16.gmra.mxu0 %v658
      %v1398 = vpop.f32.mrf.mxu0
      %v1399 = vadd.f32 0.0, %v1398
      %v1400 = vpop.f32.mrf.mxu0
      %v1401 = vadd.f32 0.0, %v1400
      %1402 = vmatmul.bf16.gmra.mxu0 %v661
      %v1403 = vpop.f32.mrf.mxu0
      %v1404 = vadd.f32 0.0, %v1403
      %v1405 = vpop.f32.mrf.mxu0
      %v1406 = vadd.f32 0.0, %v1405
      %1407 = vmatmul.bf16.gmra.mxu0 %v664
      %v1408 = vpop.f32.mrf.mxu0
      %v1409 = vadd.f32 0.0, %v1408
      %v1410 = vpop.f32.mrf.mxu0
      %v1411 = vadd.f32 0.0, %v1410
      %1412 = vmatmul.bf16.gmra.mxu0 %v667
      %v1413 = vpop.f32.mrf.mxu0
      %v1414 = vadd.f32 0.0, %v1413
      %v1415 = vpop.f32.mrf.mxu0
      %v1416 = vadd.f32 0.0, %v1415
      %1417 = vmatmul.bf16.gmra.mxu0 %v670
      %v1418 = vpop.f32.mrf.mxu0
      %v1419 = vadd.f32 0.0, %v1418
      %v1420 = vpop.f32.mrf.mxu0
      %v1421 = vadd.f32 0.0, %v1420
      %1422 = vmatmul.bf16.gmra.mxu0 %v673
      %v1423 = vpop.f32.mrf.mxu0
      %v1424 = vadd.f32 0.0, %v1423
      %v1425 = vpop.f32.mrf.mxu0
      %v1426 = vadd.f32 0.0, %v1425
      %1427 = vmatmul.bf16.gmra.mxu0 %v676
      %v1428 = vpop.f32.mrf.mxu0
      %v1429 = vadd.f32 0.0, %v1428
      %v1430 = vpop.f32.mrf.mxu0
      %v1431 = vadd.f32 0.0, %v1430
      %1432 = vmatmul.bf16.gmra.mxu0 %v679
      %v1433 = vpop.f32.mrf.mxu0
      %v1434 = vadd.f32 0.0, %v1433
      %v1435 = vpop.f32.mrf.mxu0
      %v1436 = vadd.f32 0.0, %v1435
      %1437 = vmatmul.bf16.gmra.mxu0 %v682
      %v1438 = vpop.f32.mrf.mxu0
      %v1439 = vadd.f32 0.0, %v1438
      %v1440 = vpop.f32.mrf.mxu0
      %v1441 = vadd.f32 0.0, %v1440
      %1442 = vmatmul.bf16.gmra.mxu0 %v685
      %v1443 = vpop.f32.mrf.mxu0
      %v1444 = vadd.f32 0.0, %v1443
      %v1445 = vpop.f32.mrf.mxu0
      %v1446 = vadd.f32 0.0, %v1445
      %1447 = vmatmul.bf16.gmra.mxu0 %v688
      %v1448 = vpop.f32.mrf.mxu0
      %v1449 = vadd.f32 0.0, %v1448
      %v1450 = vpop.f32.mrf.mxu0
      %v1451 = vadd.f32 0.0, %v1450
      %1452 = vmatmul.bf16.gmra.mxu0 %v691
      %v1453 = vpop.f32.mrf.mxu0
      %v1454 = vadd.f32 0.0, %v1453
      %v1455 = vpop.f32.mrf.mxu0
      %v1456 = vadd.f32 0.0, %v1455
      %1457 = vmatmul.bf16.gmra.mxu0 %v694
      %v1458 = vpop.f32.mrf.mxu0
      %v1459 = vadd.f32 0.0, %v1458
      %v1460 = vpop.f32.mrf.mxu0
      %v1461 = vadd.f32 0.0, %v1460
      %1462 = vmatmul.bf16.gmra.mxu0 %v697
      %v1463 = vpop.f32.mrf.mxu0
      %v1464 = vadd.f32 0.0, %v1463
      %v1465 = vpop.f32.mrf.mxu0
      %v1466 = vadd.f32 0.0, %v1465
      %1467 = vmatmul.bf16.gmra.mxu0 %v1379
      %v1468 = vpop.f32.mrf.mxu0
      %v1469 = vadd.f32 0.0, %v1468
      %v1470 = vpop.f32.mrf.mxu0
      %v1471 = vadd.f32 0.0, %v1470
      %1472 = vdwg.mxu0
      %v1473 = vadd.f32 %v1333, %v1394
      %v1474 = vadd.f32 %v1334, %v1396
      %v1475 = vadd.f32 %v1335, %v1399
      %v1476 = vadd.f32 %v1336, %v1401
      %v1477 = vadd.f32 %v1337, %v1404
      %v1478 = vadd.f32 %v1338, %v1406
      %v1479 = vadd.f32 %v1339, %v1409
      %v1480 = vadd.f32 %v1340, %v1411
      %v1481 = vadd.f32 %v1341, %v1414
      %v1482 = vadd.f32 %v1342, %v1416
      %v1483 = vadd.f32 %v1343, %v1419
      %v1484 = vadd.f32 %v1344, %v1421
      %v1485 = vadd.f32 %v1345, %v1424
      %v1486 = vadd.f32 %v1346, %v1426
      %v1487 = vadd.f32 %v1347, %v1429
      %v1488 = vadd.f32 %v1348, %v1431
      %v1489 = vadd.f32 %v1349, %v1434
      %v1490 = vadd.f32 %v1350, %v1436
      %v1491 = vadd.f32 %v1351, %v1439
      %v1492 = vadd.f32 %v1352, %v1441
      %v1493 = vadd.f32 %v1353, %v1444
      %v1494 = vadd.f32 %v1354, %v1446
      %v1495 = vadd.f32 %v1355, %v1449
      %v1496 = vadd.f32 %v1356, %v1451
      %v1497 = vadd.f32 %v1357, %v1454
      %v1498 = vadd.f32 %v1358, %v1456
      %v1499 = vadd.f32 %v1359, %v1459
      %v1500 = vadd.f32 %v1360, %v1461
      %v1501 = vadd.f32 %v1361, %v1464
      %v1502 = vadd.f32 %v1362, %v1466
      %v1503 = vadd.f32 %v1363, %v1469
      %v1504 = vadd.f32 %v1364, %v1471
      %v1505 = vrot.slane %v449, 2
      %v1506 = vrot.slane %v450, 2
      %v1507 = vsel %vm932, %v1505, %v1506
      %v1508 = vrot.slane %v451, 2
      %v1509 = vsel %vm932, %v1506, %v1508
      %v1512 = vpack.c.bf16 %v1509, %v1507
      %s1513 = scalar_lea.vmem %s1, 20
      %v1514 = vld [vmem:[%s1513] sm:$0xf]
      %v1516 = vsel %vm280, %v1512, 0
      %v1519 = vsel %vm699, %v1514, 0
      %1521 = vmatpush.bf16.msra.mxu0 0
      %1522 = vmatpush.bf16.msra.mxu0 0
      %1523 = vmatpush.bf16.msra.mxu0 0
      %1524 = vmatpush.bf16.msra.mxu0 0
      %1525 = vmatpush.bf16.msra.mxu0 0
      %1526 = vmatpush.bf16.msra.mxu0 0
      %1527 = vmatpush.bf16.msra.mxu0 0
      %1528 = vmatpush.bf16.msra.mxu0 %v1519
      %1529 = vmatmul.bf16.gmra.mxu0 %v1067
      %v1530 = vpop.f32.mrf.mxu0
      %v1531 = vadd.f32 0.0, %v1530
      %v1532 = vpop.f32.mrf.mxu0
      %v1533 = vadd.f32 0.0, %v1532
      %1534 = vmatmul.bf16.gmra.mxu0 %v1070
      %v1535 = vpop.f32.mrf.mxu0
      %v1536 = vadd.f32 0.0, %v1535
      %v1537 = vpop.f32.mrf.mxu0
      %v1538 = vadd.f32 0.0, %v1537
      %1539 = vmatmul.bf16.gmra.mxu0 %v1073
      %v1540 = vpop.f32.mrf.mxu0
      %v1541 = vadd.f32 0.0, %v1540
      %v1542 = vpop.f32.mrf.mxu0
      %v1543 = vadd.f32 0.0, %v1542
      %1544 = vmatmul.bf16.gmra.mxu0 %v1076
      %v1545 = vpop.f32.mrf.mxu0
      %v1546 = vadd.f32 0.0, %v1545
      %v1547 = vpop.f32.mrf.mxu0
      %v1548 = vadd.f32 0.0, %v1547
      %1549 = vmatmul.bf16.gmra.mxu0 %v1079
      %v1550 = vpop.f32.mrf.mxu0
      %v1551 = vadd.f32 0.0, %v1550
      %v1552 = vpop.f32.mrf.mxu0
      %v1553 = vadd.f32 0.0, %v1552
      %1554 = vmatmul.bf16.gmra.mxu0 %v1082
      %v1555 = vpop.f32.mrf.mxu0
      %v1556 = vadd.f32 0.0, %v1555
      %v1557 = vpop.f32.mrf.mxu0
      %v1558 = vadd.f32 0.0, %v1557
      %1559 = vmatmul.bf16.gmra.mxu0 %v1085
      %v1560 = vpop.f32.mrf.mxu0
      %v1561 = vadd.f32 0.0, %v1560
      %v1562 = vpop.f32.mrf.mxu0
      %v1563 = vadd.f32 0.0, %v1562
      %1564 = vmatmul.bf16.gmra.mxu0 %v1088
      %v1565 = vpop.f32.mrf.mxu0
      %v1566 = vadd.f32 0.0, %v1565
      %v1567 = vpop.f32.mrf.mxu0
      %v1568 = vadd.f32 0.0, %v1567
      %1569 = vmatmul.bf16.gmra.mxu0 %v1091
      %v1570 = vpop.f32.mrf.mxu0
      %v1571 = vadd.f32 0.0, %v1570
      %v1572 = vpop.f32.mrf.mxu0
      %v1573 = vadd.f32 0.0, %v1572
      %1574 = vmatmul.bf16.gmra.mxu0 %v1094
      %v1575 = vpop.f32.mrf.mxu0
      %v1576 = vadd.f32 0.0, %v1575
      %v1577 = vpop.f32.mrf.mxu0
      %v1578 = vadd.f32 0.0, %v1577
      %1579 = vmatmul.bf16.gmra.mxu0 %v1097
      %v1580 = vpop.f32.mrf.mxu0
      %v1581 = vadd.f32 0.0, %v1580
      %v1582 = vpop.f32.mrf.mxu0
      %v1583 = vadd.f32 0.0, %v1582
      %1584 = vmatmul.bf16.gmra.mxu0 %v1100
      %v1585 = vpop.f32.mrf.mxu0
      %v1586 = vadd.f32 0.0, %v1585
      %v1587 = vpop.f32.mrf.mxu0
      %v1588 = vadd.f32 0.0, %v1587
      %1589 = vmatmul.bf16.gmra.mxu0 %v1103
      %v1590 = vpop.f32.mrf.mxu0
      %v1591 = vadd.f32 0.0, %v1590
      %v1592 = vpop.f32.mrf.mxu0
      %v1593 = vadd.f32 0.0, %v1592
      %1594 = vmatmul.bf16.gmra.mxu0 %v1106
      %v1595 = vpop.f32.mrf.mxu0
      %v1596 = vadd.f32 0.0, %v1595
      %v1597 = vpop.f32.mrf.mxu0
      %v1598 = vadd.f32 0.0, %v1597
      %1599 = vmatmul.bf16.gmra.mxu0 %v1109
      %v1600 = vpop.f32.mrf.mxu0
      %v1601 = vadd.f32 0.0, %v1600
      %v1602 = vpop.f32.mrf.mxu0
      %v1603 = vadd.f32 0.0, %v1602
      %1604 = vmatmul.bf16.gmra.mxu0 %v1516
      %v1605 = vpop.f32.mrf.mxu0
      %v1606 = vadd.f32 0.0, %v1605
      %v1607 = vpop.f32.mrf.mxu0
      %v1608 = vadd.f32 0.0, %v1607
      %1609 = vdwg.mxu0
      %v1610 = vadd.f32 %v1473, %v1531
      %v1611 = vadd.f32 %v1474, %v1533
      %v1612 = vadd.f32 %v1475, %v1536
      %v1613 = vadd.f32 %v1476, %v1538
      %v1614 = vadd.f32 %v1477, %v1541
      %v1615 = vadd.f32 %v1478, %v1543
      %v1616 = vadd.f32 %v1479, %v1546
      %v1617 = vadd.f32 %v1480, %v1548
      %v1618 = vadd.f32 %v1481, %v1551
      %v1619 = vadd.f32 %v1482, %v1553
      %v1620 = vadd.f32 %v1483, %v1556
      %v1621 = vadd.f32 %v1484, %v1558
      %v1622 = vadd.f32 %v1485, %v1561
      %v1623 = vadd.f32 %v1486, %v1563
      %v1624 = vadd.f32 %v1487, %v1566
      %v1625 = vadd.f32 %v1488, %v1568
      %v1626 = vadd.f32 %v1489, %v1571
      %v1627 = vadd.f32 %v1490, %v1573
      %v1628 = vadd.f32 %v1491, %v1576
      %v1629 = vadd.f32 %v1492, %v1578
      %v1630 = vadd.f32 %v1493, %v1581
      %v1631 = vadd.f32 %v1494, %v1583
      %v1632 = vadd.f32 %v1495, %v1586
      %v1633 = vadd.f32 %v1496, %v1588
      %v1634 = vadd.f32 %v1497, %v1591
      %v1635 = vadd.f32 %v1498, %v1593
      %v1636 = vadd.f32 %v1499, %v1596
      %v1637 = vadd.f32 %v1500, %v1598
      %v1638 = vadd.f32 %v1501, %v1601
      %v1639 = vadd.f32 %v1502, %v1603
      %v1640 = vadd.f32 %v1503, %v1606
      %v1641 = vadd.f32 %v1504, %v1608
      %v1642 = vpack.c.bf16 %v453, %v452
      %s1643 = scalar_lea.vmem %s1, 24
      %v1644 = vld [vmem:[%s1643] sm:$0xf]
      %v1646 = vsel %vm280, %v1642, 0
      %v1649 = vsel %vm699, %v1644, 0
      %1651 = vmatpush.bf16.msra.mxu0 0
      %1652 = vmatpush.bf16.msra.mxu0 0
      %1653 = vmatpush.bf16.msra.mxu0 0
      %1654 = vmatpush.bf16.msra.mxu0 0
      %1655 = vmatpush.bf16.msra.mxu0 0
      %1656 = vmatpush.bf16.msra.mxu0 0
      %1657 = vmatpush.bf16.msra.mxu0 0
      %1658 = vmatpush.bf16.msra.mxu0 %v1649
      %1659 = vmatmul.bf16.gmra.mxu0 %v799
      %v1660 = vpop.f32.mrf.mxu0
      %v1661 = vadd.f32 0.0, %v1660
      %v1662 = vpop.f32.mrf.mxu0
      %v1663 = vadd.f32 0.0, %v1662
      %1664 = vmatmul.bf16.gmra.mxu0 %v802
      %v1665 = vpop.f32.mrf.mxu0
      %v1666 = vadd.f32 0.0, %v1665
      %v1667 = vpop.f32.mrf.mxu0
      %v1668 = vadd.f32 0.0, %v1667
      %1669 = vmatmul.bf16.gmra.mxu0 %v805
      %v1670 = vpop.f32.mrf.mxu0
      %v1671 = vadd.f32 0.0, %v1670
      %v1672 = vpop.f32.mrf.mxu0
      %v1673 = vadd.f32 0.0, %v1672
      %1674 = vmatmul.bf16.gmra.mxu0 %v808
      %v1675 = vpop.f32.mrf.mxu0
      %v1676 = vadd.f32 0.0, %v1675
      %v1677 = vpop.f32.mrf.mxu0
      %v1678 = vadd.f32 0.0, %v1677
      %1679 = vmatmul.bf16.gmra.mxu0 %v811
      %v1680 = vpop.f32.mrf.mxu0
      %v1681 = vadd.f32 0.0, %v1680
      %v1682 = vpop.f32.mrf.mxu0
      %v1683 = vadd.f32 0.0, %v1682
      %1684 = vmatmul.bf16.gmra.mxu0 %v814
      %v1685 = vpop.f32.mrf.mxu0
      %v1686 = vadd.f32 0.0, %v1685
      %v1687 = vpop.f32.mrf.mxu0
      %v1688 = vadd.f32 0.0, %v1687
      %1689 = vmatmul.bf16.gmra.mxu0 %v817
      %v1690 = vpop.f32.mrf.mxu0
      %v1691 = vadd.f32 0.0, %v1690
      %v1692 = vpop.f32.mrf.mxu0
      %v1693 = vadd.f32 0.0, %v1692
      %1694 = vmatmul.bf16.gmra.mxu0 %v820
      %v1695 = vpop.f32.mrf.mxu0
      %v1696 = vadd.f32 0.0, %v1695
      %v1697 = vpop.f32.mrf.mxu0
      %v1698 = vadd.f32 0.0, %v1697
      %1699 = vmatmul.bf16.gmra.mxu0 %v823
      %v1700 = vpop.f32.mrf.mxu0
      %v1701 = vadd.f32 0.0, %v1700
      %v1702 = vpop.f32.mrf.mxu0
      %v1703 = vadd.f32 0.0, %v1702
      %1704 = vmatmul.bf16.gmra.mxu0 %v826
      %v1705 = vpop.f32.mrf.mxu0
      %v1706 = vadd.f32 0.0, %v1705
      %v1707 = vpop.f32.mrf.mxu0
      %v1708 = vadd.f32 0.0, %v1707
      %1709 = vmatmul.bf16.gmra.mxu0 %v829
      %v1710 = vpop.f32.mrf.mxu0
      %v1711 = vadd.f32 0.0, %v1710
      %v1712 = vpop.f32.mrf.mxu0
      %v1713 = vadd.f32 0.0, %v1712
      %1714 = vmatmul.bf16.gmra.mxu0 %v832
      %v1715 = vpop.f32.mrf.mxu0
      %v1716 = vadd.f32 0.0, %v1715
      %v1717 = vpop.f32.mrf.mxu0
      %v1718 = vadd.f32 0.0, %v1717
      %1719 = vmatmul.bf16.gmra.mxu0 %v835
      %v1720 = vpop.f32.mrf.mxu0
      %v1721 = vadd.f32 0.0, %v1720
      %v1722 = vpop.f32.mrf.mxu0
      %v1723 = vadd.f32 0.0, %v1722
      %1724 = vmatmul.bf16.gmra.mxu0 %v838
      %v1725 = vpop.f32.mrf.mxu0
      %v1726 = vadd.f32 0.0, %v1725
      %v1727 = vpop.f32.mrf.mxu0
      %v1728 = vadd.f32 0.0, %v1727
      %1729 = vmatmul.bf16.gmra.mxu0 %v1239
      %v1730 = vpop.f32.mrf.mxu0
      %v1731 = vadd.f32 0.0, %v1730
      %v1732 = vpop.f32.mrf.mxu0
      %v1733 = vadd.f32 0.0, %v1732
      %1734 = vmatmul.bf16.gmra.mxu0 %v1646
      %v1735 = vpop.f32.mrf.mxu0
      %v1736 = vadd.f32 0.0, %v1735
      %v1737 = vpop.f32.mrf.mxu0
      %v1738 = vadd.f32 0.0, %v1737
      %1739 = vdwg.mxu0
      %v1740 = vadd.f32 %v1610, %v1661
      %v1741 = vadd.f32 %v1611, %v1663
      %v1742 = vadd.f32 %v1612, %v1666
      %v1743 = vadd.f32 %v1613, %v1668
      %v1744 = vadd.f32 %v1614, %v1671
      %v1745 = vadd.f32 %v1615, %v1673
      %v1746 = vadd.f32 %v1616, %v1676
      %v1747 = vadd.f32 %v1617, %v1678
      %v1748 = vadd.f32 %v1618, %v1681
      %v1749 = vadd.f32 %v1619, %v1683
      %v1750 = vadd.f32 %v1620, %v1686
      %v1751 = vadd.f32 %v1621, %v1688
      %v1752 = vadd.f32 %v1622, %v1691
      %v1753 = vadd.f32 %v1623, %v1693
      %v1754 = vadd.f32 %v1624, %v1696
      %v1755 = vadd.f32 %v1625, %v1698
      %v1756 = vadd.f32 %v1626, %v1701
      %v1757 = vadd.f32 %v1627, %v1703
      %v1758 = vadd.f32 %v1628, %v1706
      %v1759 = vadd.f32 %v1629, %v1708
      %v1760 = vadd.f32 %v1630, %v1711
      %v1761 = vadd.f32 %v1631, %v1713
      %v1762 = vadd.f32 %v1632, %v1716
      %v1763 = vadd.f32 %v1633, %v1718
      %v1764 = vadd.f32 %v1634, %v1721
      %v1765 = vadd.f32 %v1635, %v1723
      %v1766 = vadd.f32 %v1636, %v1726
      %v1767 = vadd.f32 %v1637, %v1728
      %v1768 = vadd.f32 %v1638, %v1731
      %v1769 = vadd.f32 %v1639, %v1733
      %v1770 = vadd.f32 %v1640, %v1736
      %v1771 = vadd.f32 %v1641, %v1738
      %v1775 = vrot.slane %v452, 1
      %v1776 = vrot.slane %v453, 1
      %v1777 = vsel %vm520, %v1775, %v1776
      %v1778 = vrot.slane %v454, 1
      %v1779 = vsel %vm520, %v1776, %v1778
      %v1782 = vpack.c.bf16 %v1779, %v1777
      %s1783 = scalar_lea.vmem %s1, 28
      %v1784 = vld [vmem:[%s1783] sm:$0xf]
      %v1786 = vsel %vm280, %v1782, 0
      %v1789 = vsel %vm699, %v1784, 0
      %1791 = vmatpush.bf16.msra.mxu0 0
      %1792 = vmatpush.bf16.msra.mxu0 0
      %1793 = vmatpush.bf16.msra.mxu0 0
      %1794 = vmatpush.bf16.msra.mxu0 0
      %1795 = vmatpush.bf16.msra.mxu0 0
      %1796 = vmatpush.bf16.msra.mxu0 0
      %1797 = vmatpush.bf16.msra.mxu0 0
      %1798 = vmatpush.bf16.msra.mxu0 %v1789
      %1799 = vmatmul.bf16.gmra.mxu0 %v658
      %v1800 = vpop.f32.mrf.mxu0
      %v1801 = vadd.f32 0.0, %v1800
      %v1802 = vpop.f32.mrf.mxu0
      %v1803 = vadd.f32 0.0, %v1802
      %1804 = vmatmul.bf16.gmra.mxu0 %v661
      %v1805 = vpop.f32.mrf.mxu0
      %v1806 = vadd.f32 0.0, %v1805
      %v1807 = vpop.f32.mrf.mxu0
      %v1808 = vadd.f32 0.0, %v1807
      %1809 = vmatmul.bf16.gmra.mxu0 %v664
      %v1810 = vpop.f32.mrf.mxu0
      %v1811 = vadd.f32 0.0, %v1810
      %v1812 = vpop.f32.mrf.mxu0
      %v1813 = vadd.f32 0.0, %v1812
      %1814 = vmatmul.bf16.gmra.mxu0 %v667
      %v1815 = vpop.f32.mrf.mxu0
      %v1816 = vadd.f32 0.0, %v1815
      %v1817 = vpop.f32.mrf.mxu0
      %v1818 = vadd.f32 0.0, %v1817
      %1819 = vmatmul.bf16.gmra.mxu0 %v670
      %v1820 = vpop.f32.mrf.mxu0
      %v1821 = vadd.f32 0.0, %v1820
      %v1822 = vpop.f32.mrf.mxu0
      %v1823 = vadd.f32 0.0, %v1822
      %1824 = vmatmul.bf16.gmra.mxu0 %v673
      %v1825 = vpop.f32.mrf.mxu0
      %v1826 = vadd.f32 0.0, %v1825
      %v1827 = vpop.f32.mrf.mxu0
      %v1828 = vadd.f32 0.0, %v1827
      %1829 = vmatmul.bf16.gmra.mxu0 %v676
      %v1830 = vpop.f32.mrf.mxu0
      %v1831 = vadd.f32 0.0, %v1830
      %v1832 = vpop.f32.mrf.mxu0
      %v1833 = vadd.f32 0.0, %v1832
      %1834 = vmatmul.bf16.gmra.mxu0 %v679
      %v1835 = vpop.f32.mrf.mxu0
      %v1836 = vadd.f32 0.0, %v1835
      %v1837 = vpop.f32.mrf.mxu0
      %v1838 = vadd.f32 0.0, %v1837
      %1839 = vmatmul.bf16.gmra.mxu0 %v682
      %v1840 = vpop.f32.mrf.mxu0
      %v1841 = vadd.f32 0.0, %v1840
      %v1842 = vpop.f32.mrf.mxu0
      %v1843 = vadd.f32 0.0, %v1842
      %1844 = vmatmul.bf16.gmra.mxu0 %v685
      %v1845 = vpop.f32.mrf.mxu0
      %v1846 = vadd.f32 0.0, %v1845
      %v1847 = vpop.f32.mrf.mxu0
      %v1848 = vadd.f32 0.0, %v1847
      %1849 = vmatmul.bf16.gmra.mxu0 %v688
      %v1850 = vpop.f32.mrf.mxu0
      %v1851 = vadd.f32 0.0, %v1850
      %v1852 = vpop.f32.mrf.mxu0
      %v1853 = vadd.f32 0.0, %v1852
      %1854 = vmatmul.bf16.gmra.mxu0 %v691
      %v1855 = vpop.f32.mrf.mxu0
      %v1856 = vadd.f32 0.0, %v1855
      %v1857 = vpop.f32.mrf.mxu0
      %v1858 = vadd.f32 0.0, %v1857
      %1859 = vmatmul.bf16.gmra.mxu0 %v694
      %v1860 = vpop.f32.mrf.mxu0
      %v1861 = vadd.f32 0.0, %v1860
      %v1862 = vpop.f32.mrf.mxu0
      %v1863 = vadd.f32 0.0, %v1862
      %1864 = vmatmul.bf16.gmra.mxu0 %v697
      %v1865 = vpop.f32.mrf.mxu0
      %v1866 = vadd.f32 0.0, %v1865
      %v1867 = vpop.f32.mrf.mxu0
      %v1868 = vadd.f32 0.0, %v1867
      %1869 = vmatmul.bf16.gmra.mxu0 %v1379
      %v1870 = vpop.f32.mrf.mxu0
      %v1871 = vadd.f32 0.0, %v1870
      %v1872 = vpop.f32.mrf.mxu0
      %v1873 = vadd.f32 0.0, %v1872
      %1874 = vmatmul.bf16.gmra.mxu0 %v1786
      %v1875 = vpop.f32.mrf.mxu0
      %v1876 = vadd.f32 0.0, %v1875
      %v1877 = vpop.f32.mrf.mxu0
      %v1878 = vadd.f32 0.0, %v1877
      %1879 = vdwg.mxu0
      %v1880 = vadd.f32 %v1740, %v1801
      %v1881 = vadd.f32 %v1741, %v1803
      %v1882 = vadd.f32 %v1742, %v1806
      %v1883 = vadd.f32 %v1743, %v1808
      %v1884 = vadd.f32 %v1744, %v1811
      %v1885 = vadd.f32 %v1745, %v1813
      %v1886 = vadd.f32 %v1746, %v1816
      %v1887 = vadd.f32 %v1747, %v1818
      %v1888 = vadd.f32 %v1748, %v1821
      %v1889 = vadd.f32 %v1749, %v1823
      %v1890 = vadd.f32 %v1750, %v1826
      %v1891 = vadd.f32 %v1751, %v1828
      %v1892 = vadd.f32 %v1752, %v1831
      %v1893 = vadd.f32 %v1753, %v1833
      %v1894 = vadd.f32 %v1754, %v1836
      %v1895 = vadd.f32 %v1755, %v1838
      %v1896 = vadd.f32 %v1756, %v1841
      %v1897 = vadd.f32 %v1757, %v1843
      %v1898 = vadd.f32 %v1758, %v1846
      %v1899 = vadd.f32 %v1759, %v1848
      %v1900 = vadd.f32 %v1760, %v1851
      %v1901 = vadd.f32 %v1761, %v1853
      %v1902 = vadd.f32 %v1762, %v1856
      %v1903 = vadd.f32 %v1763, %v1858
      %v1904 = vadd.f32 %v1764, %v1861
      %v1905 = vadd.f32 %v1765, %v1863
      %v1906 = vadd.f32 %v1766, %v1866
      %v1907 = vadd.f32 %v1767, %v1868
      %v1908 = vadd.f32 %v1768, %v1871
      %v1909 = vadd.f32 %v1769, %v1873
      %v1910 = vadd.f32 %v1770, %v1876
      %v1911 = vadd.f32 %v1771, %v1878
      %v1912 = vrot.slane %v452, 2
      %v1913 = vrot.slane %v453, 2
      %v1914 = vsel %vm932, %v1912, %v1913
      %v1915 = vrot.slane %v454, 2
      %v1916 = vsel %vm932, %v1913, %v1915
      %v1919 = vpack.c.bf16 %v1916, %v1914
      %s1920 = scalar_lea.vmem %s1, 32
      %v1921 = vld [vmem:[%s1920] sm:$0xf]
      %v1923 = vsel %vm280, %v1919, 0
      %v1926 = vsel %vm699, %v1921, 0
      %1928 = vmatpush.bf16.msra.mxu0 0
      %1929 = vmatpush.bf16.msra.mxu0 0
      %1930 = vmatpush.bf16.msra.mxu0 0
      %1931 = vmatpush.bf16.msra.mxu0 0
      %1932 = vmatpush.bf16.msra.mxu0 0
      %1933 = vmatpush.bf16.msra.mxu0 0
      %1934 = vmatpush.bf16.msra.mxu0 0
      %1935 = vmatpush.bf16.msra.mxu0 %v1926
      %1936 = vmatmul.bf16.gmra.mxu0 %v1070
      %v1937 = vpop.f32.mrf.mxu0
      %v1938 = vadd.f32 0.0, %v1937
      %v1939 = vpop.f32.mrf.mxu0
      %v1940 = vadd.f32 0.0, %v1939
      %1941 = vmatmul.bf16.gmra.mxu0 %v1073
      %v1942 = vpop.f32.mrf.mxu0
      %v1943 = vadd.f32 0.0, %v1942
      %v1944 = vpop.f32.mrf.mxu0
      %v1945 = vadd.f32 0.0, %v1944
      %1946 = vmatmul.bf16.gmra.mxu0 %v1076
      %v1947 = vpop.f32.mrf.mxu0
      %v1948 = vadd.f32 0.0, %v1947
      %v1949 = vpop.f32.mrf.mxu0
      %v1950 = vadd.f32 0.0, %v1949
      %1951 = vmatmul.bf16.gmra.mxu0 %v1079
      %v1952 = vpop.f32.mrf.mxu0
      %v1953 = vadd.f32 0.0, %v1952
      %v1954 = vpop.f32.mrf.mxu0
      %v1955 = vadd.f32 0.0, %v1954
      %1956 = vmatmul.bf16.gmra.mxu0 %v1082
      %v1957 = vpop.f32.mrf.mxu0
      %v1958 = vadd.f32 0.0, %v1957
      %v1959 = vpop.f32.mrf.mxu0
      %v1960 = vadd.f32 0.0, %v1959
      %1961 = vmatmul.bf16.gmra.mxu0 %v1085
      %v1962 = vpop.f32.mrf.mxu0
      %v1963 = vadd.f32 0.0, %v1962
      %v1964 = vpop.f32.mrf.mxu0
      %v1965 = vadd.f32 0.0, %v1964
      %1966 = vmatmul.bf16.gmra.mxu0 %v1088
      %v1967 = vpop.f32.mrf.mxu0
      %v1968 = vadd.f32 0.0, %v1967
      %v1969 = vpop.f32.mrf.mxu0
      %v1970 = vadd.f32 0.0, %v1969
      %1971 = vmatmul.bf16.gmra.mxu0 %v1091
      %v1972 = vpop.f32.mrf.mxu0
      %v1973 = vadd.f32 0.0, %v1972
      %v1974 = vpop.f32.mrf.mxu0
      %v1975 = vadd.f32 0.0, %v1974
      %1976 = vmatmul.bf16.gmra.mxu0 %v1094
      %v1977 = vpop.f32.mrf.mxu0
      %v1978 = vadd.f32 0.0, %v1977
      %v1979 = vpop.f32.mrf.mxu0
      %v1980 = vadd.f32 0.0, %v1979
      %1981 = vmatmul.bf16.gmra.mxu0 %v1097
      %v1982 = vpop.f32.mrf.mxu0
      %v1983 = vadd.f32 0.0, %v1982
      %v1984 = vpop.f32.mrf.mxu0
      %v1985 = vadd.f32 0.0, %v1984
      %1986 = vmatmul.bf16.gmra.mxu0 %v1100
      %v1987 = vpop.f32.mrf.mxu0
      %v1988 = vadd.f32 0.0, %v1987
      %v1989 = vpop.f32.mrf.mxu0
      %v1990 = vadd.f32 0.0, %v1989
      %1991 = vmatmul.bf16.gmra.mxu0 %v1103
      %v1992 = vpop.f32.mrf.mxu0
      %v1993 = vadd.f32 0.0, %v1992
      %v1994 = vpop.f32.mrf.mxu0
      %v1995 = vadd.f32 0.0, %v1994
      %1996 = vmatmul.bf16.gmra.mxu0 %v1106
      %v1997 = vpop.f32.mrf.mxu0
      %v1998 = vadd.f32 0.0, %v1997
      %v1999 = vpop.f32.mrf.mxu0
      %v2000 = vadd.f32 0.0, %v1999
      %2001 = vmatmul.bf16.gmra.mxu0 %v1109
      %v2002 = vpop.f32.mrf.mxu0
      %v2003 = vadd.f32 0.0, %v2002
      %v2004 = vpop.f32.mrf.mxu0
      %v2005 = vadd.f32 0.0, %v2004
      %2006 = vmatmul.bf16.gmra.mxu0 %v1516
      %v2007 = vpop.f32.mrf.mxu0
      %v2008 = vadd.f32 0.0, %v2007
      %v2009 = vpop.f32.mrf.mxu0
      %v2010 = vadd.f32 0.0, %v2009
      %2011 = vmatmul.bf16.gmra.mxu0 %v1923
      %v2012 = vpop.f32.mrf.mxu0
      %v2013 = vadd.f32 0.0, %v2012
      %v2014 = vpop.f32.mrf.mxu0
      %v2015 = vadd.f32 0.0, %v2014
      %2016 = vdwg.mxu0
      %v2017 = vadd.f32 %v1880, %v1938
      %v2018 = vadd.f32 %v1881, %v1940
      %v2019 = vadd.f32 %v1882, %v1943
      %v2020 = vadd.f32 %v1883, %v1945
      %v2021 = vadd.f32 %v1884, %v1948
      %v2022 = vadd.f32 %v1885, %v1950
      %v2023 = vadd.f32 %v1886, %v1953
      %v2024 = vadd.f32 %v1887, %v1955
      %v2025 = vadd.f32 %v1888, %v1958
      %v2026 = vadd.f32 %v1889, %v1960
      %v2027 = vadd.f32 %v1890, %v1963
      %v2028 = vadd.f32 %v1891, %v1965
      %v2029 = vadd.f32 %v1892, %v1968
      %v2030 = vadd.f32 %v1893, %v1970
      %v2031 = vadd.f32 %v1894, %v1973
      %v2032 = vadd.f32 %v1895, %v1975
      %v2033 = vadd.f32 %v1896, %v1978
      %v2034 = vadd.f32 %v1897, %v1980
      %v2035 = vadd.f32 %v1898, %v1983
      %v2036 = vadd.f32 %v1899, %v1985
      %v2037 = vadd.f32 %v1900, %v1988
      %v2038 = vadd.f32 %v1901, %v1990
      %v2039 = vadd.f32 %v1902, %v1993
      %v2040 = vadd.f32 %v1903, %v1995
      %v2041 = vadd.f32 %v1904, %v1998
      %v2042 = vadd.f32 %v1905, %v2000
      %v2043 = vadd.f32 %v1906, %v2003
      %v2044 = vadd.f32 %v1907, %v2005
      %v2045 = vadd.f32 %v1908, %v2008
      %v2046 = vadd.f32 %v1909, %v2010
      %v2047 = vadd.f32 %v1910, %v2013
      %v2048 = vadd.f32 %v1911, %v2015
      %v2049 = vld [vmem:[%s2] sm:$0x1]
      %v2051 = vperm.slane %v2049, 0
      %v2053 = vmul.f32 %v2017, %v2051
      %v2054 = vmul.f32 %v2018, %v2051
      %v2055 = vmul.f32 %v2019, %v2051
      %v2056 = vmul.f32 %v2020, %v2051
      %v2057 = vmul.f32 %v2021, %v2051
      %v2058 = vmul.f32 %v2022, %v2051
      %v2059 = vmul.f32 %v2023, %v2051
      %v2060 = vmul.f32 %v2024, %v2051
      %v2061 = vmul.f32 %v2025, %v2051
      %v2062 = vmul.f32 %v2026, %v2051
      %v2063 = vmul.f32 %v2027, %v2051
      %v2064 = vmul.f32 %v2028, %v2051
      %v2065 = vmul.f32 %v2029, %v2051
      %v2066 = vmul.f32 %v2030, %v2051
      %v2067 = vmul.f32 %v2031, %v2051
      %v2068 = vmul.f32 %v2032, %v2051
      %v2069 = vmul.f32 %v2033, %v2051
      %v2070 = vmul.f32 %v2034, %v2051
      %v2071 = vmul.f32 %v2035, %v2051
      %v2072 = vmul.f32 %v2036, %v2051
      %v2073 = vmul.f32 %v2037, %v2051
      %v2074 = vmul.f32 %v2038, %v2051
      %v2075 = vmul.f32 %v2039, %v2051
      %v2076 = vmul.f32 %v2040, %v2051
      %v2077 = vmul.f32 %v2041, %v2051
      %v2078 = vmul.f32 %v2042, %v2051
      %v2079 = vmul.f32 %v2043, %v2051
      %v2080 = vmul.f32 %v2044, %v2051
      %v2081 = vmul.f32 %v2045, %v2051
      %v2082 = vmul.f32 %v2046, %v2051
      %v2083 = vmul.f32 %v2047, %v2051
      %v2084 = vmul.f32 %v2048, %v2051
      %v2085 = vld [vmem:[%s3] sm:$0x1]
      %v2087 = vperm.slane %v2085, 0
      %v2089 = vadd.f32 %v2053, %v2087
      %v2090 = vadd.f32 %v2054, %v2087
      %v2091 = vadd.f32 %v2055, %v2087
      %v2092 = vadd.f32 %v2056, %v2087
      %v2093 = vadd.f32 %v2057, %v2087
      %v2094 = vadd.f32 %v2058, %v2087
      %v2095 = vadd.f32 %v2059, %v2087
      %v2096 = vadd.f32 %v2060, %v2087
      %v2097 = vadd.f32 %v2061, %v2087
      %v2098 = vadd.f32 %v2062, %v2087
      %v2099 = vadd.f32 %v2063, %v2087
      %v2100 = vadd.f32 %v2064, %v2087
      %v2101 = vadd.f32 %v2065, %v2087
      %v2102 = vadd.f32 %v2066, %v2087
      %v2103 = vadd.f32 %v2067, %v2087
      %v2104 = vadd.f32 %v2068, %v2087
      %v2105 = vadd.f32 %v2069, %v2087
      %v2106 = vadd.f32 %v2070, %v2087
      %v2107 = vadd.f32 %v2071, %v2087
      %v2108 = vadd.f32 %v2072, %v2087
      %v2109 = vadd.f32 %v2073, %v2087
      %v2110 = vadd.f32 %v2074, %v2087
      %v2111 = vadd.f32 %v2075, %v2087
      %v2112 = vadd.f32 %v2076, %v2087
      %v2113 = vadd.f32 %v2077, %v2087
      %v2114 = vadd.f32 %v2078, %v2087
      %v2115 = vadd.f32 %v2079, %v2087
      %v2116 = vadd.f32 %v2080, %v2087
      %v2117 = vadd.f32 %v2081, %v2087
      %v2118 = vadd.f32 %v2082, %v2087
      %v2119 = vadd.f32 %v2083, %v2087
      %v2120 = vadd.f32 %v2084, %v2087
      %v2121 = vmax.f32 %v2089, 0.0
      %v2122 = vmax.f32 %v2090, 0.0
      %v2123 = vmax.f32 %v2091, 0.0
      %v2124 = vmax.f32 %v2092, 0.0
      %v2125 = vmax.f32 %v2093, 0.0
      %v2126 = vmax.f32 %v2094, 0.0
      %v2127 = vmax.f32 %v2095, 0.0
      %v2128 = vmax.f32 %v2096, 0.0
      %v2129 = vmax.f32 %v2097, 0.0
      %v2130 = vmax.f32 %v2098, 0.0
      %v2131 = vmax.f32 %v2099, 0.0
      %v2132 = vmax.f32 %v2100, 0.0
      %v2133 = vmax.f32 %v2101, 0.0
      %v2134 = vmax.f32 %v2102, 0.0
      %v2135 = vmax.f32 %v2103, 0.0
      %v2136 = vmax.f32 %v2104, 0.0
      %v2137 = vmax.f32 %v2105, 0.0
      %v2138 = vmax.f32 %v2106, 0.0
      %v2139 = vmax.f32 %v2107, 0.0
      %v2140 = vmax.f32 %v2108, 0.0
      %v2141 = vmax.f32 %v2109, 0.0
      %v2142 = vmax.f32 %v2110, 0.0
      %v2143 = vmax.f32 %v2111, 0.0
      %v2144 = vmax.f32 %v2112, 0.0
      %v2145 = vmax.f32 %v2113, 0.0
      %v2146 = vmax.f32 %v2114, 0.0
      %v2147 = vmax.f32 %v2115, 0.0
      %v2148 = vmax.f32 %v2116, 0.0
      %v2149 = vmax.f32 %v2117, 0.0
      %v2150 = vmax.f32 %v2118, 0.0
      %v2151 = vmax.f32 %v2119, 0.0
      %v2152 = vmax.f32 %v2120, 0.0
      %2153 = vst.msk [vmem:[#allocation3] sm:$0xff] %vm280, 0.0
      %2154 = vst.msk [vmem:[#allocation3 + $0x8] sm:$0xff] %vm280, 0.0
      %2155 = vst.msk [vmem:[#allocation3 + $0x10] sm:$0x3] %vm283, 0.0
      %2156 = vst.msk [vmem:[#allocation3 + $0x18] sm:$0xff] %vm280, 0.0
      %2157 = vst.msk [vmem:[#allocation3 + $0x20] sm:$0xff] %vm280, 0.0
      %2158 = vst.msk [vmem:[#allocation3 + $0x28] sm:$0x3] %vm283, 0.0
      %2159 = vst.msk [vmem:[#allocation3 + $0x30] sm:$0xff] %vm280, 0.0
      %2160 = vst.msk [vmem:[#allocation3 + $0x38] sm:$0xff] %vm280, 0.0
      %2161 = vst.msk [vmem:[#allocation3 + $0x40] sm:$0x3] %vm283, 0.0
      %2162 = vst.msk [vmem:[#allocation3 + $0x48] sm:$0xff] %vm280, 0.0
      %2163 = vst.msk [vmem:[#allocation3 + $0x50] sm:$0xff] %vm280, 0.0
      %2164 = vst.msk [vmem:[#allocation3 + $0x58] sm:$0x3] %vm283, 0.0
      %2165 = vst.msk [vmem:[#allocation3 + $0x60] sm:$0xff] %vm280, 0.0
      %2166 = vst.msk [vmem:[#allocation3 + $0x68] sm:$0xff] %vm280, 0.0
      %2167 = vst.msk [vmem:[#allocation3 + $0x70] sm:$0x3] %vm283, 0.0
      %2168 = vst.msk [vmem:[#allocation3 + $0x78] sm:$0xff] %vm280, 0.0
      %2169 = vst.msk [vmem:[#allocation3 + $0x80] sm:$0xff] %vm280, 0.0
      %2170 = vst.msk [vmem:[#allocation3 + $0x88] sm:$0x3] %vm283, 0.0
      %2171 = vst.msk [vmem:[#allocation3 + $0x90] sm:$0xff] %vm280, 0.0
      %2172 = vst.msk [vmem:[#allocation3 + $0x98] sm:$0xff] %vm280, 0.0
      %2173 = vst.msk [vmem:[#allocation3 + $0xa0] sm:$0x3] %vm283, 0.0
      %2174 = vst.msk [vmem:[#allocation3 + $0xa8] sm:$0xff] %vm280, 0.0
      %2175 = vst.msk [vmem:[#allocation3 + $0xb0] sm:$0xff] %vm280, 0.0
      %2176 = vst.msk [vmem:[#allocation3 + $0xb8] sm:$0x3] %vm283, 0.0
      %2177 = vst.msk [vmem:[#allocation3 + $0xc0] sm:$0xff] %vm280, 0.0
      %2178 = vst.msk [vmem:[#allocation3 + $0xc8] sm:$0xff] %vm280, 0.0
      %2179 = vst.msk [vmem:[#allocation3 + $0xd0] sm:$0x3] %vm283, 0.0
      %2180 = vst.msk [vmem:[#allocation3 + $0xd8] sm:$0xff] %vm280, 0.0
      %2181 = vst.msk [vmem:[#allocation3 + $0xe0] sm:$0xff] %vm280, 0.0
      %2182 = vst.msk [vmem:[#allocation3 + $0xe8] sm:$0x3] %vm283, 0.0
      %2183 = vst.msk [vmem:[#allocation3 + $0xf0] sm:$0xff] %vm280, 0.0
      %2184 = vst.msk [vmem:[#allocation3 + $0xf8] sm:$0xff] %vm280, 0.0
      %2185 = vst.msk [vmem:[#allocation3 + $0x100] sm:$0x3] %vm283, 0.0
      %2186 = vst.msk [vmem:[#allocation3 + $0x108] sm:$0xff] %vm280, 0.0
      %2187 = vst.msk [vmem:[#allocation3 + $0x110] sm:$0xff] %vm280, 0.0
      %2188 = vst.msk [vmem:[#allocation3 + $0x118] sm:$0x3] %vm283, 0.0
      %2189 = vst.msk [vmem:[#allocation3 + $0x120] sm:$0xff] %vm280, 0.0
      %2190 = vst.msk [vmem:[#allocation3 + $0x128] sm:$0xff] %vm280, 0.0
      %2191 = vst.msk [vmem:[#allocation3 + $0x130] sm:$0x3] %vm283, 0.0
      %2192 = vst.msk [vmem:[#allocation3 + $0x138] sm:$0xff] %vm280, 0.0
      %2193 = vst.msk [vmem:[#allocation3 + $0x140] sm:$0xff] %vm280, 0.0
      %2194 = vst.msk [vmem:[#allocation3 + $0x148] sm:$0x3] %vm283, 0.0
      %2195 = vst.msk [vmem:[#allocation3 + $0x150] sm:$0xff] %vm280, 0.0
      %2196 = vst.msk [vmem:[#allocation3 + $0x158] sm:$0xff] %vm280, 0.0
      %2197 = vst.msk [vmem:[#allocation3 + $0x160] sm:$0x3] %vm283, 0.0
      %2198 = vst.msk [vmem:[#allocation3 + $0x168] sm:$0xff] %vm280, 0.0
      %2199 = vst.msk [vmem:[#allocation3 + $0x170] sm:$0xff] %vm280, 0.0
      %2200 = vst.msk [vmem:[#allocation3 + $0x178] sm:$0x3] %vm283, 0.0
      %2201 = vst.msk [vmem:[#allocation3 + $0x180] sm:$0xff] %vm280, 0.0
      %2202 = vst.msk [vmem:[#allocation3 + $0x188] sm:$0xff] %vm280, 0.0
      %2203 = vst.msk [vmem:[#allocation3 + $0x190] sm:$0x3] %vm283, 0.0
      %2204 = vst.msk [vmem:[#allocation3 + $0x198] sm:$0xff] %vm280, 0.0
      %2205 = vst.msk [vmem:[#allocation3 + $0x1a0] sm:$0xff] %vm280, 0.0
      %2206 = vst.msk [vmem:[#allocation3 + $0x1a8] sm:$0x3] %vm283, 0.0
      %s2207 = scalar_lea.vmem [#allocation3], 24
      %2208 = vst.msk [vmem:[%s2207 + $0x1] sm:$0xff] %vm280, %v2121
      %2209 = vst.msk [vmem:[%s2207 + $0x9] sm:$0xff] %vm280, %v2122
      %2210 = vst.msk [vmem:[%s2207 + $0x19] sm:$0xff] %vm280, %v2123
      %2211 = vst.msk [vmem:[%s2207 + $0x21] sm:$0xff] %vm280, %v2124
      %2212 = vst.msk [vmem:[%s2207 + $0x31] sm:$0xff] %vm280, %v2125
      %2213 = vst.msk [vmem:[%s2207 + $0x39] sm:$0xff] %vm280, %v2126
      %2214 = vst.msk [vmem:[%s2207 + $0x49] sm:$0xff] %vm280, %v2127
      %2215 = vst.msk [vmem:[%s2207 + $0x51] sm:$0xff] %vm280, %v2128
      %2216 = vst.msk [vmem:[%s2207 + $0x61] sm:$0xff] %vm280, %v2129
      %2217 = vst.msk [vmem:[%s2207 + $0x69] sm:$0xff] %vm280, %v2130
      %2218 = vst.msk [vmem:[%s2207 + $0x79] sm:$0xff] %vm280, %v2131
      %2219 = vst.msk [vmem:[%s2207 + $0x81] sm:$0xff] %vm280, %v2132
      %2220 = vst.msk [vmem:[%s2207 + $0x91] sm:$0xff] %vm280, %v2133
      %2221 = vst.msk [vmem:[%s2207 + $0x99] sm:$0xff] %vm280, %v2134
      %2222 = vst.msk [vmem:[%s2207 + $0xa9] sm:$0xff] %vm280, %v2135
      %2223 = vst.msk [vmem:[%s2207 + $0xb1] sm:$0xff] %vm280, %v2136
      %2224 = vst.msk [vmem:[%s2207 + $0xc1] sm:$0xff] %vm280, %v2137
      %2225 = vst.msk [vmem:[%s2207 + $0xc9] sm:$0xff] %vm280, %v2138
      %2226 = vst.msk [vmem:[%s2207 + $0xd9] sm:$0xff] %vm280, %v2139
      %2227 = vst.msk [vmem:[%s2207 + $0xe1] sm:$0xff] %vm280, %v2140
      %2228 = vst.msk [vmem:[%s2207 + $0xf1] sm:$0xff] %vm280, %v2141
      %2229 = vst.msk [vmem:[%s2207 + $0xf9] sm:$0xff] %vm280, %v2142
      %2230 = vst.msk [vmem:[%s2207 + $0x109] sm:$0xff] %vm280, %v2143
      %2231 = vst.msk [vmem:[%s2207 + $0x111] sm:$0xff] %vm280, %v2144
      %2232 = vst.msk [vmem:[%s2207 + $0x121] sm:$0xff] %vm280, %v2145
      %2233 = vst.msk [vmem:[%s2207 + $0x129] sm:$0xff] %vm280, %v2146
      %2234 = vst.msk [vmem:[%s2207 + $0x139] sm:$0xff] %vm280, %v2147
      %2235 = vst.msk [vmem:[%s2207 + $0x141] sm:$0xff] %vm280, %v2148
      %2236 = vst.msk [vmem:[%s2207 + $0x151] sm:$0xff] %vm280, %v2149
      %2237 = vst.msk [vmem:[%s2207 + $0x159] sm:$0xff] %vm280, %v2150
      %2238 = vst.msk [vmem:[%s2207 + $0x169] sm:$0xff] %vm280, %v2151
      %2239 = vst.msk [vmem:[%s2207 + $0x171] sm:$0xff] %vm280, %v2152
      %v2240 = vld [vmem:[#allocation3] sm:$0xff]
      %v2241 = vld [vmem:[#allocation3 + $0x8] sm:$0xff]
      %v2242 = vld [vmem:[#allocation3 + $0x10] sm:$0x3]
      %v2243 = vld [vmem:[#allocation3 + $0x18] sm:$0xff]
      %v2244 = vld [vmem:[#allocation3 + $0x20] sm:$0xff]
      %v2245 = vld [vmem:[#allocation3 + $0x28] sm:$0x3]
      %v2246 = vld [vmem:[#allocation3 + $0x30] sm:$0xff]
      %v2247 = vld [vmem:[#allocation3 + $0x38] sm:$0xff]
      %v2248 = vld [vmem:[#allocation3 + $0x40] sm:$0x3]
      %v2249 = vld [vmem:[#allocation3 + $0x48] sm:$0xff]
      %v2250 = vld [vmem:[#allocation3 + $0x50] sm:$0xff]
      %v2251 = vld [vmem:[#allocation3 + $0x58] sm:$0x3]
      %v2252 = vld [vmem:[#allocation3 + $0x60] sm:$0xff]
      %v2253 = vld [vmem:[#allocation3 + $0x68] sm:$0xff]
      %v2254 = vld [vmem:[#allocation3 + $0x70] sm:$0x3]
      %v2255 = vld [vmem:[#allocation3 + $0x78] sm:$0xff]
      %v2256 = vld [vmem:[#allocation3 + $0x80] sm:$0xff]
      %v2257 = vld [vmem:[#allocation3 + $0x88] sm:$0x3]
      %v2258 = vld [vmem:[#allocation3 + $0x90] sm:$0xff]
      %v2259 = vld [vmem:[#allocation3 + $0x98] sm:$0xff]
      %v2260 = vld [vmem:[#allocation3 + $0xa0] sm:$0x3]
      %v2261 = vld [vmem:[#allocation3 + $0xa8] sm:$0xff]
      %v2262 = vld [vmem:[#allocation3 + $0xb0] sm:$0xff]
      %v2263 = vld [vmem:[#allocation3 + $0xb8] sm:$0x3]
      %v2264 = vld [vmem:[#allocation3 + $0xc0] sm:$0xff]
      %v2265 = vld [vmem:[#allocation3 + $0xc8] sm:$0xff]
      %v2266 = vld [vmem:[#allocation3 + $0xd0] sm:$0x3]
      %v2267 = vld [vmem:[#allocation3 + $0xd8] sm:$0xff]
      %v2268 = vld [vmem:[#allocation3 + $0xe0] sm:$0xff]
      %v2269 = vld [vmem:[#allocation3 + $0xe8] sm:$0x3]
      %v2270 = vld [vmem:[#allocation3 + $0xf0] sm:$0xff]
      %v2271 = vld [vmem:[#allocation3 + $0xf8] sm:$0xff]
      %v2272 = vld [vmem:[#allocation3 + $0x100] sm:$0x3]
      %v2273 = vld [vmem:[#allocation3 + $0x108] sm:$0xff]
      %v2274 = vld [vmem:[#allocation3 + $0x110] sm:$0xff]
      %v2275 = vld [vmem:[#allocation3 + $0x118] sm:$0x3]
      %v2276 = vld [vmem:[#allocation3 + $0x120] sm:$0xff]
      %v2277 = vld [vmem:[#allocation3 + $0x128] sm:$0xff]
      %v2278 = vld [vmem:[#allocation3 + $0x130] sm:$0x3]
      %v2279 = vld [vmem:[#allocation3 + $0x138] sm:$0xff]
      %v2280 = vld [vmem:[#allocation3 + $0x140] sm:$0xff]
      %v2281 = vld [vmem:[#allocation3 + $0x148] sm:$0x3]
      %v2282 = vld [vmem:[#allocation3 + $0x150] sm:$0xff]
      %v2283 = vld [vmem:[#allocation3 + $0x158] sm:$0xff]
      %v2284 = vld [vmem:[#allocation3 + $0x160] sm:$0x3]
      %v2285 = vld [vmem:[#allocation3 + $0x168] sm:$0xff]
      %v2286 = vld [vmem:[#allocation3 + $0x170] sm:$0xff]
      %v2287 = vld [vmem:[#allocation3 + $0x178] sm:$0x3]
      %v2288 = vld [vmem:[#allocation3 + $0x180] sm:$0xff]
      %v2289 = vld [vmem:[#allocation3 + $0x188] sm:$0xff]
      %v2290 = vld [vmem:[#allocation3 + $0x190] sm:$0x3]
      %v2291 = vld [vmem:[#allocation3 + $0x198] sm:$0xff]
      %v2292 = vld [vmem:[#allocation3 + $0x1a0] sm:$0xff]
      %v2293 = vld [vmem:[#allocation3 + $0x1a8] sm:$0x3]
      %v2294 = vpack.c.bf16 %v2241, %v2240
      %v2295 = vpack.c.bf16 %v2244, %v2243
      %v2296 = vpack.c.bf16 %v2247, %v2246
      %v2297 = vpack.c.bf16 %v2250, %v2249
      %v2298 = vpack.c.bf16 %v2253, %v2252
      %v2299 = vpack.c.bf16 %v2256, %v2255
      %v2300 = vpack.c.bf16 %v2259, %v2258
      %v2301 = vpack.c.bf16 %v2262, %v2261
      %v2302 = vpack.c.bf16 %v2265, %v2264
      %v2303 = vpack.c.bf16 %v2268, %v2267
      %v2304 = vpack.c.bf16 %v2271, %v2270
      %v2305 = vpack.c.bf16 %v2274, %v2273
      %v2306 = vpack.c.bf16 %v2277, %v2276
      %v2307 = vpack.c.bf16 %v2280, %v2279
      %v2308 = vpack.c.bf16 %v2283, %v2282
      %v2309 = vpack.c.bf16 %v2286, %v2285
      %v2310 = vld [vmem:[%s4] sm:$0xf]
      %v2359 = vrot.slane %v2240, 1
      %v2360 = vrot.slane %v2241, 1
      %v2361 = vsel %vm520, %v2359, %v2360
      %v2362 = vrot.slane %v2242, 1
      %v2363 = vsel %vm520, %v2360, %v2362
      %v2364 = vrot.slane %v2243, 1
      %v2365 = vrot.slane %v2244, 1
      %v2366 = vsel %vm520, %v2364, %v2365
      %v2367 = vrot.slane %v2245, 1
      %v2368 = vsel %vm520, %v2365, %v2367
      %v2369 = vrot.slane %v2246, 1
      %v2370 = vrot.slane %v2247, 1
      %v2371 = vsel %vm520, %v2369, %v2370
      %v2372 = vrot.slane %v2248, 1
      %v2373 = vsel %vm520, %v2370, %v2372
      %v2374 = vrot.slane %v2249, 1
      %v2375 = vrot.slane %v2250, 1
      %v2376 = vsel %vm520, %v2374, %v2375
      %v2377 = vrot.slane %v2251, 1
      %v2378 = vsel %vm520, %v2375, %v2377
      %v2379 = vrot.slane %v2252, 1
      %v2380 = vrot.slane %v2253, 1
      %v2381 = vsel %vm520, %v2379, %v2380
      %v2382 = vrot.slane %v2254, 1
      %v2383 = vsel %vm520, %v2380, %v2382
      %v2384 = vrot.slane %v2255, 1
      %v2385 = vrot.slane %v2256, 1
      %v2386 = vsel %vm520, %v2384, %v2385
      %v2387 = vrot.slane %v2257, 1
      %v2388 = vsel %vm520, %v2385, %v2387
      %v2389 = vrot.slane %v2258, 1
      %v2390 = vrot.slane %v2259, 1
      %v2391 = vsel %vm520, %v2389, %v2390
      %v2392 = vrot.slane %v2260, 1
      %v2393 = vsel %vm520, %v2390, %v2392
      %v2394 = vrot.slane %v2261, 1
      %v2395 = vrot.slane %v2262, 1
      %v2396 = vsel %vm520, %v2394, %v2395
      %v2397 = vrot.slane %v2263, 1
      %v2398 = vsel %vm520, %v2395, %v2397
      %v2399 = vrot.slane %v2264, 1
      %v2400 = vrot.slane %v2265, 1
      %v2401 = vsel %vm520, %v2399, %v2400
      %v2402 = vrot.slane %v2266, 1
      %v2403 = vsel %vm520, %v2400, %v2402
      %v2404 = vrot.slane %v2267, 1
      %v2405 = vrot.slane %v2268, 1
      %v2406 = vsel %vm520, %v2404, %v2405
      %v2407 = vrot.slane %v2269, 1
      %v2408 = vsel %vm520, %v2405, %v2407
      %v2409 = vrot.slane %v2270, 1
      %v2410 = vrot.slane %v2271, 1
      %v2411 = vsel %vm520, %v2409, %v2410
      %v2412 = vrot.slane %v2272, 1
      %v2413 = vsel %vm520, %v2410, %v2412
      %v2414 = vrot.slane %v2273, 1
      %v2415 = vrot.slane %v2274, 1
      %v2416 = vsel %vm520, %v2414, %v2415
      %v2417 = vrot.slane %v2275, 1
      %v2418 = vsel %vm520, %v2415, %v2417
      %v2419 = vrot.slane %v2276, 1
      %v2420 = vrot.slane %v2277, 1
      %v2421 = vsel %vm520, %v2419, %v2420
      %v2422 = vrot.slane %v2278, 1
      %v2423 = vsel %vm520, %v2420, %v2422
      %v2424 = vrot.slane %v2279, 1
      %v2425 = vrot.slane %v2280, 1
      %v2426 = vsel %vm520, %v2424, %v2425
      %v2427 = vrot.slane %v2281, 1
      %v2428 = vsel %vm520, %v2425, %v2427
      %v2429 = vrot.slane %v2282, 1
      %v2430 = vrot.slane %v2283, 1
      %v2431 = vsel %vm520, %v2429, %v2430
      %v2432 = vrot.slane %v2284, 1
      %v2433 = vsel %vm520, %v2430, %v2432
      %v2434 = vrot.slane %v2285, 1
      %v2435 = vrot.slane %v2286, 1
      %v2436 = vsel %vm520, %v2434, %v2435
      %v2437 = vrot.slane %v2287, 1
      %v2438 = vsel %vm520, %v2435, %v2437
      %v2471 = vpack.c.bf16 %v2363, %v2361
      %v2472 = vpack.c.bf16 %v2368, %v2366
      %v2473 = vpack.c.bf16 %v2373, %v2371
      %v2474 = vpack.c.bf16 %v2378, %v2376
      %v2475 = vpack.c.bf16 %v2383, %v2381
      %v2476 = vpack.c.bf16 %v2388, %v2386
      %v2477 = vpack.c.bf16 %v2393, %v2391
      %v2478 = vpack.c.bf16 %v2398, %v2396
      %v2479 = vpack.c.bf16 %v2403, %v2401
      %v2480 = vpack.c.bf16 %v2408, %v2406
      %v2481 = vpack.c.bf16 %v2413, %v2411
      %v2482 = vpack.c.bf16 %v2418, %v2416
      %v2483 = vpack.c.bf16 %v2423, %v2421
      %v2484 = vpack.c.bf16 %v2428, %v2426
      %v2485 = vpack.c.bf16 %v2433, %v2431
      %v2486 = vpack.c.bf16 %v2438, %v2436
      %s2487 = scalar_lea.vmem %s4, 4
      %v2488 = vld [vmem:[%s2487] sm:$0xf]
      %v2490 = vsel %vm280, %v2471, 0
      %v2493 = vsel %vm280, %v2472, 0
      %v2496 = vsel %vm280, %v2473, 0
      %v2499 = vsel %vm280, %v2474, 0
      %v2502 = vsel %vm280, %v2475, 0
      %v2505 = vsel %vm280, %v2476, 0
      %v2508 = vsel %vm280, %v2477, 0
      %v2511 = vsel %vm280, %v2478, 0
      %v2514 = vsel %vm280, %v2479, 0
      %v2517 = vsel %vm280, %v2480, 0
      %v2520 = vsel %vm280, %v2481, 0
      %v2523 = vsel %vm280, %v2482, 0
      %v2526 = vsel %vm280, %v2483, 0
      %v2529 = vsel %vm280, %v2484, 0
      %v2532 = vsel %vm280, %v2485, 0
      %v2535 = vsel %vm280, %v2486, 0
      %v2538 = vsel %vm699, %v2488, 0
      %2540 = vmatpush.bf16.msra.mxu0 0
      %2541 = vmatpush.bf16.msra.mxu0 0
      %2542 = vmatpush.bf16.msra.mxu0 0
      %2543 = vmatpush.bf16.msra.mxu0 0
      %2544 = vmatpush.bf16.msra.mxu0 0
      %2545 = vmatpush.bf16.msra.mxu0 0
      %2546 = vmatpush.bf16.msra.mxu0 0
      %2547 = vmatpush.bf16.msra.mxu0 %v2538
      %2548 = vmatmul.bf16.gmra.mxu0 %v2490
      %v2549 = vpop.f32.mrf.mxu0
      %v2550 = vadd.f32 0.0, %v2549
      %v2551 = vpop.f32.mrf.mxu0
      %v2552 = vadd.f32 0.0, %v2551
      %2553 = vmatmul.bf16.gmra.mxu0 %v2493
      %v2554 = vpop.f32.mrf.mxu0
      %v2555 = vadd.f32 0.0, %v2554
      %v2556 = vpop.f32.mrf.mxu0
      %v2557 = vadd.f32 0.0, %v2556
      %2558 = vmatmul.bf16.gmra.mxu0 %v2496
      %v2559 = vpop.f32.mrf.mxu0
      %v2560 = vadd.f32 0.0, %v2559
      %v2561 = vpop.f32.mrf.mxu0
      %v2562 = vadd.f32 0.0, %v2561
      %2563 = vmatmul.bf16.gmra.mxu0 %v2499
      %v2564 = vpop.f32.mrf.mxu0
      %v2565 = vadd.f32 0.0, %v2564
      %v2566 = vpop.f32.mrf.mxu0
      %v2567 = vadd.f32 0.0, %v2566
      %2568 = vmatmul.bf16.gmra.mxu0 %v2502
      %v2569 = vpop.f32.mrf.mxu0
      %v2570 = vadd.f32 0.0, %v2569
      %v2571 = vpop.f32.mrf.mxu0
      %v2572 = vadd.f32 0.0, %v2571
      %2573 = vmatmul.bf16.gmra.mxu0 %v2505
      %v2574 = vpop.f32.mrf.mxu0
      %v2575 = vadd.f32 0.0, %v2574
      %v2576 = vpop.f32.mrf.mxu0
      %v2577 = vadd.f32 0.0, %v2576
      %2578 = vmatmul.bf16.gmra.mxu0 %v2508
      %v2579 = vpop.f32.mrf.mxu0
      %v2580 = vadd.f32 0.0, %v2579
      %v2581 = vpop.f32.mrf.mxu0
      %v2582 = vadd.f32 0.0, %v2581
      %2583 = vmatmul.bf16.gmra.mxu0 %v2511
      %v2584 = vpop.f32.mrf.mxu0
      %v2585 = vadd.f32 0.0, %v2584
      %v2586 = vpop.f32.mrf.mxu0
      %v2587 = vadd.f32 0.0, %v2586
      %2588 = vmatmul.bf16.gmra.mxu0 %v2514
      %v2589 = vpop.f32.mrf.mxu0
      %v2590 = vadd.f32 0.0, %v2589
      %v2591 = vpop.f32.mrf.mxu0
      %v2592 = vadd.f32 0.0, %v2591
      %2593 = vmatmul.bf16.gmra.mxu0 %v2517
      %v2594 = vpop.f32.mrf.mxu0
      %v2595 = vadd.f32 0.0, %v2594
      %v2596 = vpop.f32.mrf.mxu0
      %v2597 = vadd.f32 0.0, %v2596
      %2598 = vmatmul.bf16.gmra.mxu0 %v2520
      %v2599 = vpop.f32.mrf.mxu0
      %v2600 = vadd.f32 0.0, %v2599
      %v2601 = vpop.f32.mrf.mxu0
      %v2602 = vadd.f32 0.0, %v2601
      %2603 = vmatmul.bf16.gmra.mxu0 %v2523
      %v2604 = vpop.f32.mrf.mxu0
      %v2605 = vadd.f32 0.0, %v2604
      %v2606 = vpop.f32.mrf.mxu0
      %v2607 = vadd.f32 0.0, %v2606
      %2608 = vmatmul.bf16.gmra.mxu0 %v2526
      %v2609 = vpop.f32.mrf.mxu0
      %v2610 = vadd.f32 0.0, %v2609
      %v2611 = vpop.f32.mrf.mxu0
      %v2612 = vadd.f32 0.0, %v2611
      %2613 = vmatmul.bf16.gmra.mxu0 %v2529
      %v2614 = vpop.f32.mrf.mxu0
      %v2615 = vadd.f32 0.0, %v2614
      %v2616 = vpop.f32.mrf.mxu0
      %v2617 = vadd.f32 0.0, %v2616
      %2618 = vmatmul.bf16.gmra.mxu0 %v2532
      %v2619 = vpop.f32.mrf.mxu0
      %v2620 = vadd.f32 0.0, %v2619
      %v2621 = vpop.f32.mrf.mxu0
      %v2622 = vadd.f32 0.0, %v2621
      %2623 = vmatmul.bf16.gmra.mxu0 %v2535
      %v2624 = vpop.f32.mrf.mxu0
      %v2625 = vadd.f32 0.0, %v2624
      %v2626 = vpop.f32.mrf.mxu0
      %v2627 = vadd.f32 0.0, %v2626
      %2628 = vdwg.mxu0
      %v2630 = vsel %vm280, %v2294, 0
      %v2633 = vsel %vm280, %v2295, 0
      %v2636 = vsel %vm280, %v2296, 0
      %v2639 = vsel %vm280, %v2297, 0
      %v2642 = vsel %vm280, %v2298, 0
      %v2645 = vsel %vm280, %v2299, 0
      %v2648 = vsel %vm280, %v2300, 0
      %v2651 = vsel %vm280, %v2301, 0
      %v2654 = vsel %vm280, %v2302, 0
      %v2657 = vsel %vm280, %v2303, 0
      %v2660 = vsel %vm280, %v2304, 0
      %v2663 = vsel %vm280, %v2305, 0
      %v2666 = vsel %vm280, %v2306, 0
      %v2669 = vsel %vm280, %v2307, 0
      %v2672 = vsel %vm280, %v2308, 0
      %v2675 = vsel %vm280, %v2309, 0
      %v2678 = vsel %vm699, %v2310, 0
      %2680 = vmatpush.bf16.msra.mxu0 0
      %2681 = vmatpush.bf16.msra.mxu0 0
      %2682 = vmatpush.bf16.msra.mxu0 0
      %2683 = vmatpush.bf16.msra.mxu0 0
      %2684 = vmatpush.bf16.msra.mxu0 0
      %2685 = vmatpush.bf16.msra.mxu0 0
      %2686 = vmatpush.bf16.msra.mxu0 0
      %2687 = vmatpush.bf16.msra.mxu0 %v2678
      %2688 = vmatmul.bf16.gmra.mxu0 %v2630
      %v2689 = vpop.f32.mrf.mxu0
      %v2690 = vadd.f32 %v2550, %v2689
      %v2691 = vpop.f32.mrf.mxu0
      %v2692 = vadd.f32 %v2552, %v2691
      %2693 = vmatmul.bf16.gmra.mxu0 %v2633
      %v2694 = vpop.f32.mrf.mxu0
      %v2695 = vadd.f32 %v2555, %v2694
      %v2696 = vpop.f32.mrf.mxu0
      %v2697 = vadd.f32 %v2557, %v2696
      %2698 = vmatmul.bf16.gmra.mxu0 %v2636
      %v2699 = vpop.f32.mrf.mxu0
      %v2700 = vadd.f32 %v2560, %v2699
      %v2701 = vpop.f32.mrf.mxu0
      %v2702 = vadd.f32 %v2562, %v2701
      %2703 = vmatmul.bf16.gmra.mxu0 %v2639
      %v2704 = vpop.f32.mrf.mxu0
      %v2705 = vadd.f32 %v2565, %v2704
      %v2706 = vpop.f32.mrf.mxu0
      %v2707 = vadd.f32 %v2567, %v2706
      %2708 = vmatmul.bf16.gmra.mxu0 %v2642
      %v2709 = vpop.f32.mrf.mxu0
      %v2710 = vadd.f32 %v2570, %v2709
      %v2711 = vpop.f32.mrf.mxu0
      %v2712 = vadd.f32 %v2572, %v2711
      %2713 = vmatmul.bf16.gmra.mxu0 %v2645
      %v2714 = vpop.f32.mrf.mxu0
      %v2715 = vadd.f32 %v2575, %v2714
      %v2716 = vpop.f32.mrf.mxu0
      %v2717 = vadd.f32 %v2577, %v2716
      %2718 = vmatmul.bf16.gmra.mxu0 %v2648
      %v2719 = vpop.f32.mrf.mxu0
      %v2720 = vadd.f32 %v2580, %v2719
      %v2721 = vpop.f32.mrf.mxu0
      %v2722 = vadd.f32 %v2582, %v2721
      %2723 = vmatmul.bf16.gmra.mxu0 %v2651
      %v2724 = vpop.f32.mrf.mxu0
      %v2725 = vadd.f32 %v2585, %v2724
      %v2726 = vpop.f32.mrf.mxu0
      %v2727 = vadd.f32 %v2587, %v2726
      %2728 = vmatmul.bf16.gmra.mxu0 %v2654
      %v2729 = vpop.f32.mrf.mxu0
      %v2730 = vadd.f32 %v2590, %v2729
      %v2731 = vpop.f32.mrf.mxu0
      %v2732 = vadd.f32 %v2592, %v2731
      %2733 = vmatmul.bf16.gmra.mxu0 %v2657
      %v2734 = vpop.f32.mrf.mxu0
      %v2735 = vadd.f32 %v2595, %v2734
      %v2736 = vpop.f32.mrf.mxu0
      %v2737 = vadd.f32 %v2597, %v2736
      %2738 = vmatmul.bf16.gmra.mxu0 %v2660
      %v2739 = vpop.f32.mrf.mxu0
      %v2740 = vadd.f32 %v2600, %v2739
      %v2741 = vpop.f32.mrf.mxu0
      %v2742 = vadd.f32 %v2602, %v2741
      %2743 = vmatmul.bf16.gmra.mxu0 %v2663
      %v2744 = vpop.f32.mrf.mxu0
      %v2745 = vadd.f32 %v2605, %v2744
      %v2746 = vpop.f32.mrf.mxu0
      %v2747 = vadd.f32 %v2607, %v2746
      %2748 = vmatmul.bf16.gmra.mxu0 %v2666
      %v2749 = vpop.f32.mrf.mxu0
      %v2750 = vadd.f32 %v2610, %v2749
      %v2751 = vpop.f32.mrf.mxu0
      %v2752 = vadd.f32 %v2612, %v2751
      %2753 = vmatmul.bf16.gmra.mxu0 %v2669
      %v2754 = vpop.f32.mrf.mxu0
      %v2755 = vadd.f32 %v2615, %v2754
      %v2756 = vpop.f32.mrf.mxu0
      %v2757 = vadd.f32 %v2617, %v2756
      %2758 = vmatmul.bf16.gmra.mxu0 %v2672
      %v2759 = vpop.f32.mrf.mxu0
      %v2760 = vadd.f32 %v2620, %v2759
      %v2761 = vpop.f32.mrf.mxu0
      %v2762 = vadd.f32 %v2622, %v2761
      %2763 = vmatmul.bf16.gmra.mxu0 %v2675
      %v2764 = vpop.f32.mrf.mxu0
      %v2765 = vadd.f32 %v2625, %v2764
      %v2766 = vpop.f32.mrf.mxu0
      %v2767 = vadd.f32 %v2627, %v2766
      %2768 = vdwg.mxu0
      %v2769 = vrot.slane %v2240, 2
      %v2770 = vrot.slane %v2241, 2
      %v2771 = vsel %vm932, %v2769, %v2770
      %v2772 = vrot.slane %v2242, 2
      %v2773 = vsel %vm932, %v2770, %v2772
      %v2774 = vrot.slane %v2243, 2
      %v2775 = vrot.slane %v2244, 2
      %v2776 = vsel %vm932, %v2774, %v2775
      %v2777 = vrot.slane %v2245, 2
      %v2778 = vsel %vm932, %v2775, %v2777
      %v2779 = vrot.slane %v2246, 2
      %v2780 = vrot.slane %v2247, 2
      %v2781 = vsel %vm932, %v2779, %v2780
      %v2782 = vrot.slane %v2248, 2
      %v2783 = vsel %vm932, %v2780, %v2782
      %v2784 = vrot.slane %v2249, 2
      %v2785 = vrot.slane %v2250, 2
      %v2786 = vsel %vm932, %v2784, %v2785
      %v2787 = vrot.slane %v2251, 2
      %v2788 = vsel %vm932, %v2785, %v2787
      %v2789 = vrot.slane %v2252, 2
      %v2790 = vrot.slane %v2253, 2
      %v2791 = vsel %vm932, %v2789, %v2790
      %v2792 = vrot.slane %v2254, 2
      %v2793 = vsel %vm932, %v2790, %v2792
      %v2794 = vrot.slane %v2255, 2
      %v2795 = vrot.slane %v2256, 2
      %v2796 = vsel %vm932, %v2794, %v2795
      %v2797 = vrot.slane %v2257, 2
      %v2798 = vsel %vm932, %v2795, %v2797
      %v2799 = vrot.slane %v2258, 2
      %v2800 = vrot.slane %v2259, 2
      %v2801 = vsel %vm932, %v2799, %v2800
      %v2802 = vrot.slane %v2260, 2
      %v2803 = vsel %vm932, %v2800, %v2802
      %v2804 = vrot.slane %v2261, 2
      %v2805 = vrot.slane %v2262, 2
      %v2806 = vsel %vm932, %v2804, %v2805
      %v2807 = vrot.slane %v2263, 2
      %v2808 = vsel %vm932, %v2805, %v2807
      %v2809 = vrot.slane %v2264, 2
      %v2810 = vrot.slane %v2265, 2
      %v2811 = vsel %vm932, %v2809, %v2810
      %v2812 = vrot.slane %v2266, 2
      %v2813 = vsel %vm932, %v2810, %v2812
      %v2814 = vrot.slane %v2267, 2
      %v2815 = vrot.slane %v2268, 2
      %v2816 = vsel %vm932, %v2814, %v2815
      %v2817 = vrot.slane %v2269, 2
      %v2818 = vsel %vm932, %v2815, %v2817
      %v2819 = vrot.slane %v2270, 2
      %v2820 = vrot.slane %v2271, 2
      %v2821 = vsel %vm932, %v2819, %v2820
      %v2822 = vrot.slane %v2272, 2
      %v2823 = vsel %vm932, %v2820, %v2822
      %v2824 = vrot.slane %v2273, 2
      %v2825 = vrot.slane %v2274, 2
      %v2826 = vsel %vm932, %v2824, %v2825
      %v2827 = vrot.slane %v2275, 2
      %v2828 = vsel %vm932, %v2825, %v2827
      %v2829 = vrot.slane %v2276, 2
      %v2830 = vrot.slane %v2277, 2
      %v2831 = vsel %vm932, %v2829, %v2830
      %v2832 = vrot.slane %v2278, 2
      %v2833 = vsel %vm932, %v2830, %v2832
      %v2834 = vrot.slane %v2279, 2
      %v2835 = vrot.slane %v2280, 2
      %v2836 = vsel %vm932, %v2834, %v2835
      %v2837 = vrot.slane %v2281, 2
      %v2838 = vsel %vm932, %v2835, %v2837
      %v2839 = vrot.slane %v2282, 2
      %v2840 = vrot.slane %v2283, 2
      %v2841 = vsel %vm932, %v2839, %v2840
      %v2842 = vrot.slane %v2284, 2
      %v2843 = vsel %vm932, %v2840, %v2842
      %v2844 = vrot.slane %v2285, 2
      %v2845 = vrot.slane %v2286, 2
      %v2846 = vsel %vm932, %v2844, %v2845
      %v2847 = vrot.slane %v2287, 2
      %v2848 = vsel %vm932, %v2845, %v2847
      %v2881 = vpack.c.bf16 %v2773, %v2771
      %v2882 = vpack.c.bf16 %v2778, %v2776
      %v2883 = vpack.c.bf16 %v2783, %v2781
      %v2884 = vpack.c.bf16 %v2788, %v2786
      %v2885 = vpack.c.bf16 %v2793, %v2791
      %v2886 = vpack.c.bf16 %v2798, %v2796
      %v2887 = vpack.c.bf16 %v2803, %v2801
      %v2888 = vpack.c.bf16 %v2808, %v2806
      %v2889 = vpack.c.bf16 %v2813, %v2811
      %v2890 = vpack.c.bf16 %v2818, %v2816
      %v2891 = vpack.c.bf16 %v2823, %v2821
      %v2892 = vpack.c.bf16 %v2828, %v2826
      %v2893 = vpack.c.bf16 %v2833, %v2831
      %v2894 = vpack.c.bf16 %v2838, %v2836
      %v2895 = vpack.c.bf16 %v2843, %v2841
      %v2896 = vpack.c.bf16 %v2848, %v2846
      %s2897 = scalar_lea.vmem %s4, 8
      %v2898 = vld [vmem:[%s2897] sm:$0xf]
      %v2900 = vsel %vm280, %v2881, 0
      %v2903 = vsel %vm280, %v2882, 0
      %v2906 = vsel %vm280, %v2883, 0
      %v2909 = vsel %vm280, %v2884, 0
      %v2912 = vsel %vm280, %v2885, 0
      %v2915 = vsel %vm280, %v2886, 0
      %v2918 = vsel %vm280, %v2887, 0
      %v2921 = vsel %vm280, %v2888, 0
      %v2924 = vsel %vm280, %v2889, 0
      %v2927 = vsel %vm280, %v2890, 0
      %v2930 = vsel %vm280, %v2891, 0
      %v2933 = vsel %vm280, %v2892, 0
      %v2936 = vsel %vm280, %v2893, 0
      %v2939 = vsel %vm280, %v2894, 0
      %v2942 = vsel %vm280, %v2895, 0
      %v2945 = vsel %vm280, %v2896, 0
      %v2948 = vsel %vm699, %v2898, 0
      %2950 = vmatpush.bf16.msra.mxu0 0
      %2951 = vmatpush.bf16.msra.mxu0 0
      %2952 = vmatpush.bf16.msra.mxu0 0
      %2953 = vmatpush.bf16.msra.mxu0 0
      %2954 = vmatpush.bf16.msra.mxu0 0
      %2955 = vmatpush.bf16.msra.mxu0 0
      %2956 = vmatpush.bf16.msra.mxu0 0
      %2957 = vmatpush.bf16.msra.mxu0 %v2948
      %2958 = vmatmul.bf16.gmra.mxu0 %v2900
      %v2959 = vpop.f32.mrf.mxu0
      %v2960 = vadd.f32 0.0, %v2959
      %v2961 = vpop.f32.mrf.mxu0
      %v2962 = vadd.f32 0.0, %v2961
      %2963 = vmatmul.bf16.gmra.mxu0 %v2903
      %v2964 = vpop.f32.mrf.mxu0
      %v2965 = vadd.f32 0.0, %v2964
      %v2966 = vpop.f32.mrf.mxu0
      %v2967 = vadd.f32 0.0, %v2966
      %2968 = vmatmul.bf16.gmra.mxu0 %v2906
      %v2969 = vpop.f32.mrf.mxu0
      %v2970 = vadd.f32 0.0, %v2969
      %v2971 = vpop.f32.mrf.mxu0
      %v2972 = vadd.f32 0.0, %v2971
      %2973 = vmatmul.bf16.gmra.mxu0 %v2909
      %v2974 = vpop.f32.mrf.mxu0
      %v2975 = vadd.f32 0.0, %v2974
      %v2976 = vpop.f32.mrf.mxu0
      %v2977 = vadd.f32 0.0, %v2976
      %2978 = vmatmul.bf16.gmra.mxu0 %v2912
      %v2979 = vpop.f32.mrf.mxu0
      %v2980 = vadd.f32 0.0, %v2979
      %v2981 = vpop.f32.mrf.mxu0
      %v2982 = vadd.f32 0.0, %v2981
      %2983 = vmatmul.bf16.gmra.mxu0 %v2915
      %v2984 = vpop.f32.mrf.mxu0
      %v2985 = vadd.f32 0.0, %v2984
      %v2986 = vpop.f32.mrf.mxu0
      %v2987 = vadd.f32 0.0, %v2986
      %2988 = vmatmul.bf16.gmra.mxu0 %v2918
      %v2989 = vpop.f32.mrf.mxu0
      %v2990 = vadd.f32 0.0, %v2989
      %v2991 = vpop.f32.mrf.mxu0
      %v2992 = vadd.f32 0.0, %v2991
      %2993 = vmatmul.bf16.gmra.mxu0 %v2921
      %v2994 = vpop.f32.mrf.mxu0
      %v2995 = vadd.f32 0.0, %v2994
      %v2996 = vpop.f32.mrf.mxu0
      %v2997 = vadd.f32 0.0, %v2996
      %2998 = vmatmul.bf16.gmra.mxu0 %v2924
      %v2999 = vpop.f32.mrf.mxu0
      %v3000 = vadd.f32 0.0, %v2999
      %v3001 = vpop.f32.mrf.mxu0
      %v3002 = vadd.f32 0.0, %v3001
      %3003 = vmatmul.bf16.gmra.mxu0 %v2927
      %v3004 = vpop.f32.mrf.mxu0
      %v3005 = vadd.f32 0.0, %v3004
      %v3006 = vpop.f32.mrf.mxu0
      %v3007 = vadd.f32 0.0, %v3006
      %3008 = vmatmul.bf16.gmra.mxu0 %v2930
      %v3009 = vpop.f32.mrf.mxu0
      %v3010 = vadd.f32 0.0, %v3009
      %v3011 = vpop.f32.mrf.mxu0
      %v3012 = vadd.f32 0.0, %v3011
      %3013 = vmatmul.bf16.gmra.mxu0 %v2933
      %v3014 = vpop.f32.mrf.mxu0
      %v3015 = vadd.f32 0.0, %v3014
      %v3016 = vpop.f32.mrf.mxu0
      %v3017 = vadd.f32 0.0, %v3016
      %3018 = vmatmul.bf16.gmra.mxu0 %v2936
      %v3019 = vpop.f32.mrf.mxu0
      %v3020 = vadd.f32 0.0, %v3019
      %v3021 = vpop.f32.mrf.mxu0
      %v3022 = vadd.f32 0.0, %v3021
      %3023 = vmatmul.bf16.gmra.mxu0 %v2939
      %v3024 = vpop.f32.mrf.mxu0
      %v3025 = vadd.f32 0.0, %v3024
      %v3026 = vpop.f32.mrf.mxu0
      %v3027 = vadd.f32 0.0, %v3026
      %3028 = vmatmul.bf16.gmra.mxu0 %v2942
      %v3029 = vpop.f32.mrf.mxu0
      %v3030 = vadd.f32 0.0, %v3029
      %v3031 = vpop.f32.mrf.mxu0
      %v3032 = vadd.f32 0.0, %v3031
      %3033 = vmatmul.bf16.gmra.mxu0 %v2945
      %v3034 = vpop.f32.mrf.mxu0
      %v3035 = vadd.f32 0.0, %v3034
      %v3036 = vpop.f32.mrf.mxu0
      %v3037 = vadd.f32 0.0, %v3036
      %3038 = vdwg.mxu0
      %v3039 = vadd.f32 %v2690, %v2960
      %v3040 = vadd.f32 %v2692, %v2962
      %v3041 = vadd.f32 %v2695, %v2965
      %v3042 = vadd.f32 %v2697, %v2967
      %v3043 = vadd.f32 %v2700, %v2970
      %v3044 = vadd.f32 %v2702, %v2972
      %v3045 = vadd.f32 %v2705, %v2975
      %v3046 = vadd.f32 %v2707, %v2977
      %v3047 = vadd.f32 %v2710, %v2980
      %v3048 = vadd.f32 %v2712, %v2982
      %v3049 = vadd.f32 %v2715, %v2985
      %v3050 = vadd.f32 %v2717, %v2987
      %v3051 = vadd.f32 %v2720, %v2990
      %v3052 = vadd.f32 %v2722, %v2992
      %v3053 = vadd.f32 %v2725, %v2995
      %v3054 = vadd.f32 %v2727, %v2997
      %v3055 = vadd.f32 %v2730, %v3000
      %v3056 = vadd.f32 %v2732, %v3002
      %v3057 = vadd.f32 %v2735, %v3005
      %v3058 = vadd.f32 %v2737, %v3007
      %v3059 = vadd.f32 %v2740, %v3010
      %v3060 = vadd.f32 %v2742, %v3012
      %v3061 = vadd.f32 %v2745, %v3015
      %v3062 = vadd.f32 %v2747, %v3017
      %v3063 = vadd.f32 %v2750, %v3020
      %v3064 = vadd.f32 %v2752, %v3022
      %v3065 = vadd.f32 %v2755, %v3025
      %v3066 = vadd.f32 %v2757, %v3027
      %v3067 = vadd.f32 %v2760, %v3030
      %v3068 = vadd.f32 %v2762, %v3032
      %v3069 = vadd.f32 %v2765, %v3035
      %v3070 = vadd.f32 %v2767, %v3037
      %v3071 = vpack.c.bf16 %v2289, %v2288
      %s3072 = scalar_lea.vmem %s4, 12
      %v3073 = vld [vmem:[%s3072] sm:$0xf]
      %v3075 = vsel %vm280, %v3071, 0
      %v3078 = vsel %vm699, %v3073, 0
      %3080 = vmatpush.bf16.msra.mxu0 0
      %3081 = vmatpush.bf16.msra.mxu0 0
      %3082 = vmatpush.bf16.msra.mxu0 0
      %3083 = vmatpush.bf16.msra.mxu0 0
      %3084 = vmatpush.bf16.msra.mxu0 0
      %3085 = vmatpush.bf16.msra.mxu0 0
      %3086 = vmatpush.bf16.msra.mxu0 0
      %3087 = vmatpush.bf16.msra.mxu0 %v3078
      %3088 = vmatmul.bf16.gmra.mxu0 %v2633
      %v3089 = vpop.f32.mrf.mxu0
      %v3090 = vadd.f32 0.0, %v3089
      %v3091 = vpop.f32.mrf.mxu0
      %v3092 = vadd.f32 0.0, %v3091
      %3093 = vmatmul.bf16.gmra.mxu0 %v2636
      %v3094 = vpop.f32.mrf.mxu0
      %v3095 = vadd.f32 0.0, %v3094
      %v3096 = vpop.f32.mrf.mxu0
      %v3097 = vadd.f32 0.0, %v3096
      %3098 = vmatmul.bf16.gmra.mxu0 %v2639
      %v3099 = vpop.f32.mrf.mxu0
      %v3100 = vadd.f32 0.0, %v3099
      %v3101 = vpop.f32.mrf.mxu0
      %v3102 = vadd.f32 0.0, %v3101
      %3103 = vmatmul.bf16.gmra.mxu0 %v2642
      %v3104 = vpop.f32.mrf.mxu0
      %v3105 = vadd.f32 0.0, %v3104
      %v3106 = vpop.f32.mrf.mxu0
      %v3107 = vadd.f32 0.0, %v3106
      %3108 = vmatmul.bf16.gmra.mxu0 %v2645
      %v3109 = vpop.f32.mrf.mxu0
      %v3110 = vadd.f32 0.0, %v3109
      %v3111 = vpop.f32.mrf.mxu0
      %v3112 = vadd.f32 0.0, %v3111
      %3113 = vmatmul.bf16.gmra.mxu0 %v2648
      %v3114 = vpop.f32.mrf.mxu0
      %v3115 = vadd.f32 0.0, %v3114
      %v3116 = vpop.f32.mrf.mxu0
      %v3117 = vadd.f32 0.0, %v3116
      %3118 = vmatmul.bf16.gmra.mxu0 %v2651
      %v3119 = vpop.f32.mrf.mxu0
      %v3120 = vadd.f32 0.0, %v3119
      %v3121 = vpop.f32.mrf.mxu0
      %v3122 = vadd.f32 0.0, %v3121
      %3123 = vmatmul.bf16.gmra.mxu0 %v2654
      %v3124 = vpop.f32.mrf.mxu0
      %v3125 = vadd.f32 0.0, %v3124
      %v3126 = vpop.f32.mrf.mxu0
      %v3127 = vadd.f32 0.0, %v3126
      %3128 = vmatmul.bf16.gmra.mxu0 %v2657
      %v3129 = vpop.f32.mrf.mxu0
      %v3130 = vadd.f32 0.0, %v3129
      %v3131 = vpop.f32.mrf.mxu0
      %v3132 = vadd.f32 0.0, %v3131
      %3133 = vmatmul.bf16.gmra.mxu0 %v2660
      %v3134 = vpop.f32.mrf.mxu0
      %v3135 = vadd.f32 0.0, %v3134
      %v3136 = vpop.f32.mrf.mxu0
      %v3137 = vadd.f32 0.0, %v3136
      %3138 = vmatmul.bf16.gmra.mxu0 %v2663
      %v3139 = vpop.f32.mrf.mxu0
      %v3140 = vadd.f32 0.0, %v3139
      %v3141 = vpop.f32.mrf.mxu0
      %v3142 = vadd.f32 0.0, %v3141
      %3143 = vmatmul.bf16.gmra.mxu0 %v2666
      %v3144 = vpop.f32.mrf.mxu0
      %v3145 = vadd.f32 0.0, %v3144
      %v3146 = vpop.f32.mrf.mxu0
      %v3147 = vadd.f32 0.0, %v3146
      %3148 = vmatmul.bf16.gmra.mxu0 %v2669
      %v3149 = vpop.f32.mrf.mxu0
      %v3150 = vadd.f32 0.0, %v3149
      %v3151 = vpop.f32.mrf.mxu0
      %v3152 = vadd.f32 0.0, %v3151
      %3153 = vmatmul.bf16.gmra.mxu0 %v2672
      %v3154 = vpop.f32.mrf.mxu0
      %v3155 = vadd.f32 0.0, %v3154
      %v3156 = vpop.f32.mrf.mxu0
      %v3157 = vadd.f32 0.0, %v3156
      %3158 = vmatmul.bf16.gmra.mxu0 %v2675
      %v3159 = vpop.f32.mrf.mxu0
      %v3160 = vadd.f32 0.0, %v3159
      %v3161 = vpop.f32.mrf.mxu0
      %v3162 = vadd.f32 0.0, %v3161
      %3163 = vmatmul.bf16.gmra.mxu0 %v3075
      %v3164 = vpop.f32.mrf.mxu0
      %v3165 = vadd.f32 0.0, %v3164
      %v3166 = vpop.f32.mrf.mxu0
      %v3167 = vadd.f32 0.0, %v3166
      %3168 = vdwg.mxu0
      %v3169 = vadd.f32 %v3039, %v3090
      %v3170 = vadd.f32 %v3040, %v3092
      %v3171 = vadd.f32 %v3041, %v3095
      %v3172 = vadd.f32 %v3042, %v3097
      %v3173 = vadd.f32 %v3043, %v3100
      %v3174 = vadd.f32 %v3044, %v3102
      %v3175 = vadd.f32 %v3045, %v3105
      %v3176 = vadd.f32 %v3046, %v3107
      %v3177 = vadd.f32 %v3047, %v3110
      %v3178 = vadd.f32 %v3048, %v3112
      %v3179 = vadd.f32 %v3049, %v3115
      %v3180 = vadd.f32 %v3050, %v3117
      %v3181 = vadd.f32 %v3051, %v3120
      %v3182 = vadd.f32 %v3052, %v3122
      %v3183 = vadd.f32 %v3053, %v3125
      %v3184 = vadd.f32 %v3054, %v3127
      %v3185 = vadd.f32 %v3055, %v3130
      %v3186 = vadd.f32 %v3056, %v3132
      %v3187 = vadd.f32 %v3057, %v3135
      %v3188 = vadd.f32 %v3058, %v3137
      %v3189 = vadd.f32 %v3059, %v3140
      %v3190 = vadd.f32 %v3060, %v3142
      %v3191 = vadd.f32 %v3061, %v3145
      %v3192 = vadd.f32 %v3062, %v3147
      %v3193 = vadd.f32 %v3063, %v3150
      %v3194 = vadd.f32 %v3064, %v3152
      %v3195 = vadd.f32 %v3065, %v3155
      %v3196 = vadd.f32 %v3066, %v3157
      %v3197 = vadd.f32 %v3067, %v3160
      %v3198 = vadd.f32 %v3068, %v3162
      %v3199 = vadd.f32 %v3069, %v3165
      %v3200 = vadd.f32 %v3070, %v3167
      %v3204 = vrot.slane %v2288, 1
      %v3205 = vrot.slane %v2289, 1
      %v3206 = vsel %vm520, %v3204, %v3205
      %v3207 = vrot.slane %v2290, 1
      %v3208 = vsel %vm520, %v3205, %v3207
      %v3211 = vpack.c.bf16 %v3208, %v3206
      %s3212 = scalar_lea.vmem %s4, 16
      %v3213 = vld [vmem:[%s3212] sm:$0xf]
      %v3215 = vsel %vm280, %v3211, 0
      %v3218 = vsel %vm699, %v3213, 0
      %3220 = vmatpush.bf16.msra.mxu0 0
      %3221 = vmatpush.bf16.msra.mxu0 0
      %3222 = vmatpush.bf16.msra.mxu0 0
      %3223 = vmatpush.bf16.msra.mxu0 0
      %3224 = vmatpush.bf16.msra.mxu0 0
      %3225 = vmatpush.bf16.msra.mxu0 0
      %3226 = vmatpush.bf16.msra.mxu0 0
      %3227 = vmatpush.bf16.msra.mxu0 %v3218
      %3228 = vmatmul.bf16.gmra.mxu0 %v2493
      %v3229 = vpop.f32.mrf.mxu0
      %v3230 = vadd.f32 0.0, %v3229
      %v3231 = vpop.f32.mrf.mxu0
      %v3232 = vadd.f32 0.0, %v3231
      %3233 = vmatmul.bf16.gmra.mxu0 %v2496
      %v3234 = vpop.f32.mrf.mxu0
      %v3235 = vadd.f32 0.0, %v3234
      %v3236 = vpop.f32.mrf.mxu0
      %v3237 = vadd.f32 0.0, %v3236
      %3238 = vmatmul.bf16.gmra.mxu0 %v2499
      %v3239 = vpop.f32.mrf.mxu0
      %v3240 = vadd.f32 0.0, %v3239
      %v3241 = vpop.f32.mrf.mxu0
      %v3242 = vadd.f32 0.0, %v3241
      %3243 = vmatmul.bf16.gmra.mxu0 %v2502
      %v3244 = vpop.f32.mrf.mxu0
      %v3245 = vadd.f32 0.0, %v3244
      %v3246 = vpop.f32.mrf.mxu0
      %v3247 = vadd.f32 0.0, %v3246
      %3248 = vmatmul.bf16.gmra.mxu0 %v2505
      %v3249 = vpop.f32.mrf.mxu0
      %v3250 = vadd.f32 0.0, %v3249
      %v3251 = vpop.f32.mrf.mxu0
      %v3252 = vadd.f32 0.0, %v3251
      %3253 = vmatmul.bf16.gmra.mxu0 %v2508
      %v3254 = vpop.f32.mrf.mxu0
      %v3255 = vadd.f32 0.0, %v3254
      %v3256 = vpop.f32.mrf.mxu0
      %v3257 = vadd.f32 0.0, %v3256
      %3258 = vmatmul.bf16.gmra.mxu0 %v2511
      %v3259 = vpop.f32.mrf.mxu0
      %v3260 = vadd.f32 0.0, %v3259
      %v3261 = vpop.f32.mrf.mxu0
      %v3262 = vadd.f32 0.0, %v3261
      %3263 = vmatmul.bf16.gmra.mxu0 %v2514
      %v3264 = vpop.f32.mrf.mxu0
      %v3265 = vadd.f32 0.0, %v3264
      %v3266 = vpop.f32.mrf.mxu0
      %v3267 = vadd.f32 0.0, %v3266
      %3268 = vmatmul.bf16.gmra.mxu0 %v2517
      %v3269 = vpop.f32.mrf.mxu0
      %v3270 = vadd.f32 0.0, %v3269
      %v3271 = vpop.f32.mrf.mxu0
      %v3272 = vadd.f32 0.0, %v3271
      %3273 = vmatmul.bf16.gmra.mxu0 %v2520
      %v3274 = vpop.f32.mrf.mxu0
      %v3275 = vadd.f32 0.0, %v3274
      %v3276 = vpop.f32.mrf.mxu0
      %v3277 = vadd.f32 0.0, %v3276
      %3278 = vmatmul.bf16.gmra.mxu0 %v2523
      %v3279 = vpop.f32.mrf.mxu0
      %v3280 = vadd.f32 0.0, %v3279
      %v3281 = vpop.f32.mrf.mxu0
      %v3282 = vadd.f32 0.0, %v3281
      %3283 = vmatmul.bf16.gmra.mxu0 %v2526
      %v3284 = vpop.f32.mrf.mxu0
      %v3285 = vadd.f32 0.0, %v3284
      %v3286 = vpop.f32.mrf.mxu0
      %v3287 = vadd.f32 0.0, %v3286
      %3288 = vmatmul.bf16.gmra.mxu0 %v2529
      %v3289 = vpop.f32.mrf.mxu0
      %v3290 = vadd.f32 0.0, %v3289
      %v3291 = vpop.f32.mrf.mxu0
      %v3292 = vadd.f32 0.0, %v3291
      %3293 = vmatmul.bf16.gmra.mxu0 %v2532
      %v3294 = vpop.f32.mrf.mxu0
      %v3295 = vadd.f32 0.0, %v3294
      %v3296 = vpop.f32.mrf.mxu0
      %v3297 = vadd.f32 0.0, %v3296
      %3298 = vmatmul.bf16.gmra.mxu0 %v2535
      %v3299 = vpop.f32.mrf.mxu0
      %v3300 = vadd.f32 0.0, %v3299
      %v3301 = vpop.f32.mrf.mxu0
      %v3302 = vadd.f32 0.0, %v3301
      %3303 = vmatmul.bf16.gmra.mxu0 %v3215
      %v3304 = vpop.f32.mrf.mxu0
      %v3305 = vadd.f32 0.0, %v3304
      %v3306 = vpop.f32.mrf.mxu0
      %v3307 = vadd.f32 0.0, %v3306
      %3308 = vdwg.mxu0
      %v3309 = vadd.f32 %v3169, %v3230
      %v3310 = vadd.f32 %v3170, %v3232
      %v3311 = vadd.f32 %v3171, %v3235
      %v3312 = vadd.f32 %v3172, %v3237
      %v3313 = vadd.f32 %v3173, %v3240
      %v3314 = vadd.f32 %v3174, %v3242
      %v3315 = vadd.f32 %v3175, %v3245
      %v3316 = vadd.f32 %v3176, %v3247
      %v3317 = vadd.f32 %v3177, %v3250
      %v3318 = vadd.f32 %v3178, %v3252
      %v3319 = vadd.f32 %v3179, %v3255
      %v3320 = vadd.f32 %v3180, %v3257
      %v3321 = vadd.f32 %v3181, %v3260
      %v3322 = vadd.f32 %v3182, %v3262
      %v3323 = vadd.f32 %v3183, %v3265
      %v3324 = vadd.f32 %v3184, %v3267
      %v3325 = vadd.f32 %v3185, %v3270
      %v3326 = vadd.f32 %v3186, %v3272
      %v3327 = vadd.f32 %v3187, %v3275
      %v3328 = vadd.f32 %v3188, %v3277
      %v3329 = vadd.f32 %v3189, %v3280
      %v3330 = vadd.f32 %v3190, %v3282
      %v3331 = vadd.f32 %v3191, %v3285
      %v3332 = vadd.f32 %v3192, %v3287
      %v3333 = vadd.f32 %v3193, %v3290
      %v3334 = vadd.f32 %v3194, %v3292
      %v3335 = vadd.f32 %v3195, %v3295
      %v3336 = vadd.f32 %v3196, %v3297
      %v3337 = vadd.f32 %v3197, %v3300
      %v3338 = vadd.f32 %v3198, %v3302
      %v3339 = vadd.f32 %v3199, %v3305
      %v3340 = vadd.f32 %v3200, %v3307
      %v3341 = vrot.slane %v2288, 2
      %v3342 = vrot.slane %v2289, 2
      %v3343 = vsel %vm932, %v3341, %v3342
      %v3344 = vrot.slane %v2290, 2
      %v3345 = vsel %vm932, %v3342, %v3344
      %v3348 = vpack.c.bf16 %v3345, %v3343
      %s3349 = scalar_lea.vmem %s4, 20
      %v3350 = vld [vmem:[%s3349] sm:$0xf]
      %v3352 = vsel %vm280, %v3348, 0
      %v3355 = vsel %vm699, %v3350, 0
      %3357 = vmatpush.bf16.msra.mxu0 0
      %3358 = vmatpush.bf16.msra.mxu0 0
      %3359 = vmatpush.bf16.msra.mxu0 0
      %3360 = vmatpush.bf16.msra.mxu0 0
      %3361 = vmatpush.bf16.msra.mxu0 0
      %3362 = vmatpush.bf16.msra.mxu0 0
      %3363 = vmatpush.bf16.msra.mxu0 0
      %3364 = vmatpush.bf16.msra.mxu0 %v3355
      %3365 = vmatmul.bf16.gmra.mxu0 %v2903
      %v3366 = vpop.f32.mrf.mxu0
      %v3367 = vadd.f32 0.0, %v3366
      %v3368 = vpop.f32.mrf.mxu0
      %v3369 = vadd.f32 0.0, %v3368
      %3370 = vmatmul.bf16.gmra.mxu0 %v2906
      %v3371 = vpop.f32.mrf.mxu0
      %v3372 = vadd.f32 0.0, %v3371
      %v3373 = vpop.f32.mrf.mxu0
      %v3374 = vadd.f32 0.0, %v3373
      %3375 = vmatmul.bf16.gmra.mxu0 %v2909
      %v3376 = vpop.f32.mrf.mxu0
      %v3377 = vadd.f32 0.0, %v3376
      %v3378 = vpop.f32.mrf.mxu0
      %v3379 = vadd.f32 0.0, %v3378
      %3380 = vmatmul.bf16.gmra.mxu0 %v2912
      %v3381 = vpop.f32.mrf.mxu0
      %v3382 = vadd.f32 0.0, %v3381
      %v3383 = vpop.f32.mrf.mxu0
      %v3384 = vadd.f32 0.0, %v3383
      %3385 = vmatmul.bf16.gmra.mxu0 %v2915
      %v3386 = vpop.f32.mrf.mxu0
      %v3387 = vadd.f32 0.0, %v3386
      %v3388 = vpop.f32.mrf.mxu0
      %v3389 = vadd.f32 0.0, %v3388
      %3390 = vmatmul.bf16.gmra.mxu0 %v2918
      %v3391 = vpop.f32.mrf.mxu0
      %v3392 = vadd.f32 0.0, %v3391
      %v3393 = vpop.f32.mrf.mxu0
      %v3394 = vadd.f32 0.0, %v3393
      %3395 = vmatmul.bf16.gmra.mxu0 %v2921
      %v3396 = vpop.f32.mrf.mxu0
      %v3397 = vadd.f32 0.0, %v3396
      %v3398 = vpop.f32.mrf.mxu0
      %v3399 = vadd.f32 0.0, %v3398
      %3400 = vmatmul.bf16.gmra.mxu0 %v2924
      %v3401 = vpop.f32.mrf.mxu0
      %v3402 = vadd.f32 0.0, %v3401
      %v3403 = vpop.f32.mrf.mxu0
      %v3404 = vadd.f32 0.0, %v3403
      %3405 = vmatmul.bf16.gmra.mxu0 %v2927
      %v3406 = vpop.f32.mrf.mxu0
      %v3407 = vadd.f32 0.0, %v3406
      %v3408 = vpop.f32.mrf.mxu0
      %v3409 = vadd.f32 0.0, %v3408
      %3410 = vmatmul.bf16.gmra.mxu0 %v2930
      %v3411 = vpop.f32.mrf.mxu0
      %v3412 = vadd.f32 0.0, %v3411
      %v3413 = vpop.f32.mrf.mxu0
      %v3414 = vadd.f32 0.0, %v3413
      %3415 = vmatmul.bf16.gmra.mxu0 %v2933
      %v3416 = vpop.f32.mrf.mxu0
      %v3417 = vadd.f32 0.0, %v3416
      %v3418 = vpop.f32.mrf.mxu0
      %v3419 = vadd.f32 0.0, %v3418
      %3420 = vmatmul.bf16.gmra.mxu0 %v2936
      %v3421 = vpop.f32.mrf.mxu0
      %v3422 = vadd.f32 0.0, %v3421
      %v3423 = vpop.f32.mrf.mxu0
      %v3424 = vadd.f32 0.0, %v3423
      %3425 = vmatmul.bf16.gmra.mxu0 %v2939
      %v3426 = vpop.f32.mrf.mxu0
      %v3427 = vadd.f32 0.0, %v3426
      %v3428 = vpop.f32.mrf.mxu0
      %v3429 = vadd.f32 0.0, %v3428
      %3430 = vmatmul.bf16.gmra.mxu0 %v2942
      %v3431 = vpop.f32.mrf.mxu0
      %v3432 = vadd.f32 0.0, %v3431
      %v3433 = vpop.f32.mrf.mxu0
      %v3434 = vadd.f32 0.0, %v3433
      %3435 = vmatmul.bf16.gmra.mxu0 %v2945
      %v3436 = vpop.f32.mrf.mxu0
      %v3437 = vadd.f32 0.0, %v3436
      %v3438 = vpop.f32.mrf.mxu0
      %v3439 = vadd.f32 0.0, %v3438
      %3440 = vmatmul.bf16.gmra.mxu0 %v3352
      %v3441 = vpop.f32.mrf.mxu0
      %v3442 = vadd.f32 0.0, %v3441
      %v3443 = vpop.f32.mrf.mxu0
      %v3444 = vadd.f32 0.0, %v3443
      %3445 = vdwg.mxu0
      %v3446 = vadd.f32 %v3309, %v3367
      %v3447 = vadd.f32 %v3310, %v3369
      %v3448 = vadd.f32 %v3311, %v3372
      %v3449 = vadd.f32 %v3312, %v3374
      %v3450 = vadd.f32 %v3313, %v3377
      %v3451 = vadd.f32 %v3314, %v3379
      %v3452 = vadd.f32 %v3315, %v3382
      %v3453 = vadd.f32 %v3316, %v3384
      %v3454 = vadd.f32 %v3317, %v3387
      %v3455 = vadd.f32 %v3318, %v3389
      %v3456 = vadd.f32 %v3319, %v3392
      %v3457 = vadd.f32 %v3320, %v3394
      %v3458 = vadd.f32 %v3321, %v3397
      %v3459 = vadd.f32 %v3322, %v3399
      %v3460 = vadd.f32 %v3323, %v3402
      %v3461 = vadd.f32 %v3324, %v3404
      %v3462 = vadd.f32 %v3325, %v3407
      %v3463 = vadd.f32 %v3326, %v3409
      %v3464 = vadd.f32 %v3327, %v3412
      %v3465 = vadd.f32 %v3328, %v3414
      %v3466 = vadd.f32 %v3329, %v3417
      %v3467 = vadd.f32 %v3330, %v3419
      %v3468 = vadd.f32 %v3331, %v3422
      %v3469 = vadd.f32 %v3332, %v3424
      %v3470 = vadd.f32 %v3333, %v3427
      %v3471 = vadd.f32 %v3334, %v3429
      %v3472 = vadd.f32 %v3335, %v3432
      %v3473 = vadd.f32 %v3336, %v3434
      %v3474 = vadd.f32 %v3337, %v3437
      %v3475 = vadd.f32 %v3338, %v3439
      %v3476 = vadd.f32 %v3339, %v3442
      %v3477 = vadd.f32 %v3340, %v3444
      %v3478 = vpack.c.bf16 %v2292, %v2291
      %s3479 = scalar_lea.vmem %s4, 24
      %v3480 = vld [vmem:[%s3479] sm:$0xf]
      %v3482 = vsel %vm280, %v3478, 0
      %v3485 = vsel %vm699, %v3480, 0
      %3487 = vmatpush.bf16.msra.mxu0 0
      %3488 = vmatpush.bf16.msra.mxu0 0
      %3489 = vmatpush.bf16.msra.mxu0 0
      %3490 = vmatpush.bf16.msra.mxu0 0
      %3491 = vmatpush.bf16.msra.mxu0 0
      %3492 = vmatpush.bf16.msra.mxu0 0
      %3493 = vmatpush.bf16.msra.mxu0 0
      %3494 = vmatpush.bf16.msra.mxu0 %v3485
      %3495 = vmatmul.bf16.gmra.mxu0 %v2636
      %v3496 = vpop.f32.mrf.mxu0
      %v3497 = vadd.f32 0.0, %v3496
      %v3498 = vpop.f32.mrf.mxu0
      %v3499 = vadd.f32 0.0, %v3498
      %3500 = vmatmul.bf16.gmra.mxu0 %v2639
      %v3501 = vpop.f32.mrf.mxu0
      %v3502 = vadd.f32 0.0, %v3501
      %v3503 = vpop.f32.mrf.mxu0
      %v3504 = vadd.f32 0.0, %v3503
      %3505 = vmatmul.bf16.gmra.mxu0 %v2642
      %v3506 = vpop.f32.mrf.mxu0
      %v3507 = vadd.f32 0.0, %v3506
      %v3508 = vpop.f32.mrf.mxu0
      %v3509 = vadd.f32 0.0, %v3508
      %3510 = vmatmul.bf16.gmra.mxu0 %v2645
      %v3511 = vpop.f32.mrf.mxu0
      %v3512 = vadd.f32 0.0, %v3511
      %v3513 = vpop.f32.mrf.mxu0
      %v3514 = vadd.f32 0.0, %v3513
      %3515 = vmatmul.bf16.gmra.mxu0 %v2648
      %v3516 = vpop.f32.mrf.mxu0
      %v3517 = vadd.f32 0.0, %v3516
      %v3518 = vpop.f32.mrf.mxu0
      %v3519 = vadd.f32 0.0, %v3518
      %3520 = vmatmul.bf16.gmra.mxu0 %v2651
      %v3521 = vpop.f32.mrf.mxu0
      %v3522 = vadd.f32 0.0, %v3521
      %v3523 = vpop.f32.mrf.mxu0
      %v3524 = vadd.f32 0.0, %v3523
      %3525 = vmatmul.bf16.gmra.mxu0 %v2654
      %v3526 = vpop.f32.mrf.mxu0
      %v3527 = vadd.f32 0.0, %v3526
      %v3528 = vpop.f32.mrf.mxu0
      %v3529 = vadd.f32 0.0, %v3528
      %3530 = vmatmul.bf16.gmra.mxu0 %v2657
      %v3531 = vpop.f32.mrf.mxu0
      %v3532 = vadd.f32 0.0, %v3531
      %v3533 = vpop.f32.mrf.mxu0
      %v3534 = vadd.f32 0.0, %v3533
      %3535 = vmatmul.bf16.gmra.mxu0 %v2660
      %v3536 = vpop.f32.mrf.mxu0
      %v3537 = vadd.f32 0.0, %v3536
      %v3538 = vpop.f32.mrf.mxu0
      %v3539 = vadd.f32 0.0, %v3538
      %3540 = vmatmul.bf16.gmra.mxu0 %v2663
      %v3541 = vpop.f32.mrf.mxu0
      %v3542 = vadd.f32 0.0, %v3541
      %v3543 = vpop.f32.mrf.mxu0
      %v3544 = vadd.f32 0.0, %v3543
      %3545 = vmatmul.bf16.gmra.mxu0 %v2666
      %v3546 = vpop.f32.mrf.mxu0
      %v3547 = vadd.f32 0.0, %v3546
      %v3548 = vpop.f32.mrf.mxu0
      %v3549 = vadd.f32 0.0, %v3548
      %3550 = vmatmul.bf16.gmra.mxu0 %v2669
      %v3551 = vpop.f32.mrf.mxu0
      %v3552 = vadd.f32 0.0, %v3551
      %v3553 = vpop.f32.mrf.mxu0
      %v3554 = vadd.f32 0.0, %v3553
      %3555 = vmatmul.bf16.gmra.mxu0 %v2672
      %v3556 = vpop.f32.mrf.mxu0
      %v3557 = vadd.f32 0.0, %v3556
      %v3558 = vpop.f32.mrf.mxu0
      %v3559 = vadd.f32 0.0, %v3558
      %3560 = vmatmul.bf16.gmra.mxu0 %v2675
      %v3561 = vpop.f32.mrf.mxu0
      %v3562 = vadd.f32 0.0, %v3561
      %v3563 = vpop.f32.mrf.mxu0
      %v3564 = vadd.f32 0.0, %v3563
      %3565 = vmatmul.bf16.gmra.mxu0 %v3075
      %v3566 = vpop.f32.mrf.mxu0
      %v3567 = vadd.f32 0.0, %v3566
      %v3568 = vpop.f32.mrf.mxu0
      %v3569 = vadd.f32 0.0, %v3568
      %3570 = vmatmul.bf16.gmra.mxu0 %v3482
      %v3571 = vpop.f32.mrf.mxu0
      %v3572 = vadd.f32 0.0, %v3571
      %v3573 = vpop.f32.mrf.mxu0
      %v3574 = vadd.f32 0.0, %v3573
      %3575 = vdwg.mxu0
      %v3576 = vadd.f32 %v3446, %v3497
      %v3577 = vadd.f32 %v3447, %v3499
      %v3578 = vadd.f32 %v3448, %v3502
      %v3579 = vadd.f32 %v3449, %v3504
      %v3580 = vadd.f32 %v3450, %v3507
      %v3581 = vadd.f32 %v3451, %v3509
      %v3582 = vadd.f32 %v3452, %v3512
      %v3583 = vadd.f32 %v3453, %v3514
      %v3584 = vadd.f32 %v3454, %v3517
      %v3585 = vadd.f32 %v3455, %v3519
      %v3586 = vadd.f32 %v3456, %v3522
      %v3587 = vadd.f32 %v3457, %v3524
      %v3588 = vadd.f32 %v3458, %v3527
      %v3589 = vadd.f32 %v3459, %v3529
      %v3590 = vadd.f32 %v3460, %v3532
      %v3591 = vadd.f32 %v3461, %v3534
      %v3592 = vadd.f32 %v3462, %v3537
      %v3593 = vadd.f32 %v3463, %v3539
      %v3594 = vadd.f32 %v3464, %v3542
      %v3595 = vadd.f32 %v3465, %v3544
      %v3596 = vadd.f32 %v3466, %v3547
      %v3597 = vadd.f32 %v3467, %v3549
      %v3598 = vadd.f32 %v3468, %v3552
      %v3599 = vadd.f32 %v3469, %v3554
      %v3600 = vadd.f32 %v3470, %v3557
      %v3601 = vadd.f32 %v3471, %v3559
      %v3602 = vadd.f32 %v3472, %v3562
      %v3603 = vadd.f32 %v3473, %v3564
      %v3604 = vadd.f32 %v3474, %v3567
      %v3605 = vadd.f32 %v3475, %v3569
      %v3606 = vadd.f32 %v3476, %v3572
      %v3607 = vadd.f32 %v3477, %v3574
      %v3611 = vrot.slane %v2291, 1
      %v3612 = vrot.slane %v2292, 1
      %v3613 = vsel %vm520, %v3611, %v3612
      %v3614 = vrot.slane %v2293, 1
      %v3615 = vsel %vm520, %v3612, %v3614
      %v3618 = vpack.c.bf16 %v3615, %v3613
      %s3619 = scalar_lea.vmem %s4, 28
      %v3620 = vld [vmem:[%s3619] sm:$0xf]
      %v3622 = vsel %vm280, %v3618, 0
      %v3625 = vsel %vm699, %v3620, 0
      %3627 = vmatpush.bf16.msra.mxu0 0
      %3628 = vmatpush.bf16.msra.mxu0 0
      %3629 = vmatpush.bf16.msra.mxu0 0
      %3630 = vmatpush.bf16.msra.mxu0 0
      %3631 = vmatpush.bf16.msra.mxu0 0
      %3632 = vmatpush.bf16.msra.mxu0 0
      %3633 = vmatpush.bf16.msra.mxu0 0
      %3634 = vmatpush.bf16.msra.mxu0 %v3625
      %3635 = vmatmul.bf16.gmra.mxu0 %v2496
      %v3636 = vpop.f32.mrf.mxu0
      %v3637 = vadd.f32 0.0, %v3636
      %v3638 = vpop.f32.mrf.mxu0
      %v3639 = vadd.f32 0.0, %v3638
      %3640 = vmatmul.bf16.gmra.mxu0 %v2499
      %v3641 = vpop.f32.mrf.mxu0
      %v3642 = vadd.f32 0.0, %v3641
      %v3643 = vpop.f32.mrf.mxu0
      %v3644 = vadd.f32 0.0, %v3643
      %3645 = vmatmul.bf16.gmra.mxu0 %v2502
      %v3646 = vpop.f32.mrf.mxu0
      %v3647 = vadd.f32 0.0, %v3646
      %v3648 = vpop.f32.mrf.mxu0
      %v3649 = vadd.f32 0.0, %v3648
      %3650 = vmatmul.bf16.gmra.mxu0 %v2505
      %v3651 = vpop.f32.mrf.mxu0
      %v3652 = vadd.f32 0.0, %v3651
      %v3653 = vpop.f32.mrf.mxu0
      %v3654 = vadd.f32 0.0, %v3653
      %3655 = vmatmul.bf16.gmra.mxu0 %v2508
      %v3656 = vpop.f32.mrf.mxu0
      %v3657 = vadd.f32 0.0, %v3656
      %v3658 = vpop.f32.mrf.mxu0
      %v3659 = vadd.f32 0.0, %v3658
      %3660 = vmatmul.bf16.gmra.mxu0 %v2511
      %v3661 = vpop.f32.mrf.mxu0
      %v3662 = vadd.f32 0.0, %v3661
      %v3663 = vpop.f32.mrf.mxu0
      %v3664 = vadd.f32 0.0, %v3663
      %3665 = vmatmul.bf16.gmra.mxu0 %v2514
      %v3666 = vpop.f32.mrf.mxu0
      %v3667 = vadd.f32 0.0, %v3666
      %v3668 = vpop.f32.mrf.mxu0
      %v3669 = vadd.f32 0.0, %v3668
      %3670 = vmatmul.bf16.gmra.mxu0 %v2517
      %v3671 = vpop.f32.mrf.mxu0
      %v3672 = vadd.f32 0.0, %v3671
      %v3673 = vpop.f32.mrf.mxu0
      %v3674 = vadd.f32 0.0, %v3673
      %3675 = vmatmul.bf16.gmra.mxu0 %v2520
      %v3676 = vpop.f32.mrf.mxu0
      %v3677 = vadd.f32 0.0, %v3676
      %v3678 = vpop.f32.mrf.mxu0
      %v3679 = vadd.f32 0.0, %v3678
      %3680 = vmatmul.bf16.gmra.mxu0 %v2523
      %v3681 = vpop.f32.mrf.mxu0
      %v3682 = vadd.f32 0.0, %v3681
      %v3683 = vpop.f32.mrf.mxu0
      %v3684 = vadd.f32 0.0, %v3683
      %3685 = vmatmul.bf16.gmra.mxu0 %v2526
      %v3686 = vpop.f32.mrf.mxu0
      %v3687 = vadd.f32 0.0, %v3686
      %v3688 = vpop.f32.mrf.mxu0
      %v3689 = vadd.f32 0.0, %v3688
      %3690 = vmatmul.bf16.gmra.mxu0 %v2529
      %v3691 = vpop.f32.mrf.mxu0
      %v3692 = vadd.f32 0.0, %v3691
      %v3693 = vpop.f32.mrf.mxu0
      %v3694 = vadd.f32 0.0, %v3693
      %3695 = vmatmul.bf16.gmra.mxu0 %v2532
      %v3696 = vpop.f32.mrf.mxu0
      %v3697 = vadd.f32 0.0, %v3696
      %v3698 = vpop.f32.mrf.mxu0
      %v3699 = vadd.f32 0.0, %v3698
      %3700 = vmatmul.bf16.gmra.mxu0 %v2535
      %v3701 = vpop.f32.mrf.mxu0
      %v3702 = vadd.f32 0.0, %v3701
      %v3703 = vpop.f32.mrf.mxu0
      %v3704 = vadd.f32 0.0, %v3703
      %3705 = vmatmul.bf16.gmra.mxu0 %v3215
      %v3706 = vpop.f32.mrf.mxu0
      %v3707 = vadd.f32 0.0, %v3706
      %v3708 = vpop.f32.mrf.mxu0
      %v3709 = vadd.f32 0.0, %v3708
      %3710 = vmatmul.bf16.gmra.mxu0 %v3622
      %v3711 = vpop.f32.mrf.mxu0
      %v3712 = vadd.f32 0.0, %v3711
      %v3713 = vpop.f32.mrf.mxu0
      %v3714 = vadd.f32 0.0, %v3713
      %3715 = vdwg.mxu0
      %v3716 = vadd.f32 %v3576, %v3637
      %v3717 = vadd.f32 %v3577, %v3639
      %v3718 = vadd.f32 %v3578, %v3642
      %v3719 = vadd.f32 %v3579, %v3644
      %v3720 = vadd.f32 %v3580, %v3647
      %v3721 = vadd.f32 %v3581, %v3649
      %v3722 = vadd.f32 %v3582, %v3652
      %v3723 = vadd.f32 %v3583, %v3654
      %v3724 = vadd.f32 %v3584, %v3657
      %v3725 = vadd.f32 %v3585, %v3659
      %v3726 = vadd.f32 %v3586, %v3662
      %v3727 = vadd.f32 %v3587, %v3664
      %v3728 = vadd.f32 %v3588, %v3667
      %v3729 = vadd.f32 %v3589, %v3669
      %v3730 = vadd.f32 %v3590, %v3672
      %v3731 = vadd.f32 %v3591, %v3674
      %v3732 = vadd.f32 %v3592, %v3677
      %v3733 = vadd.f32 %v3593, %v3679
      %v3734 = vadd.f32 %v3594, %v3682
      %v3735 = vadd.f32 %v3595, %v3684
      %v3736 = vadd.f32 %v3596, %v3687
      %v3737 = vadd.f32 %v3597, %v3689
      %v3738 = vadd.f32 %v3598, %v3692
      %v3739 = vadd.f32 %v3599, %v3694
      %v3740 = vadd.f32 %v3600, %v3697
      %v3741 = vadd.f32 %v3601, %v3699
      %v3742 = vadd.f32 %v3602, %v3702
      %v3743 = vadd.f32 %v3603, %v3704
      %v3744 = vadd.f32 %v3604, %v3707
      %v3745 = vadd.f32 %v3605, %v3709
      %v3746 = vadd.f32 %v3606, %v3712
      %v3747 = vadd.f32 %v3607, %v3714
      %v3748 = vrot.slane %v2291, 2
      %v3749 = vrot.slane %v2292, 2
      %v3750 = vsel %vm932, %v3748, %v3749
      %v3751 = vrot.slane %v2293, 2
      %v3752 = vsel %vm932, %v3749, %v3751
      %v3755 = vpack.c.bf16 %v3752, %v3750
      %s3756 = scalar_lea.vmem %s4, 32
      %v3757 = vld [vmem:[%s3756] sm:$0xf]
      %v3759 = vsel %vm280, %v3755, 0
      %v3762 = vsel %vm699, %v3757, 0
      %3764 = vmatpush.bf16.msra.mxu0 0
      %3765 = vmatpush.bf16.msra.mxu0 0
      %3766 = vmatpush.bf16.msra.mxu0 0
      %3767 = vmatpush.bf16.msra.mxu0 0
      %3768 = vmatpush.bf16.msra.mxu0 0
      %3769 = vmatpush.bf16.msra.mxu0 0
      %3770 = vmatpush.bf16.msra.mxu0 0
      %3771 = vmatpush.bf16.msra.mxu0 %v3762
      %3772 = vmatmul.bf16.gmra.mxu0 %v2906
      %v3773 = vpop.f32.mrf.mxu0
      %v3774 = vadd.f32 0.0, %v3773
      %v3775 = vpop.f32.mrf.mxu0
      %v3776 = vadd.f32 0.0, %v3775
      %3777 = vmatmul.bf16.gmra.mxu0 %v2909
      %v3778 = vpop.f32.mrf.mxu0
      %v3779 = vadd.f32 0.0, %v3778
      %v3780 = vpop.f32.mrf.mxu0
      %v3781 = vadd.f32 0.0, %v3780
      %3782 = vmatmul.bf16.gmra.mxu0 %v2912
      %v3783 = vpop.f32.mrf.mxu0
      %v3784 = vadd.f32 0.0, %v3783
      %v3785 = vpop.f32.mrf.mxu0
      %v3786 = vadd.f32 0.0, %v3785
      %3787 = vmatmul.bf16.gmra.mxu0 %v2915
      %v3788 = vpop.f32.mrf.mxu0
      %v3789 = vadd.f32 0.0, %v3788
      %v3790 = vpop.f32.mrf.mxu0
      %v3791 = vadd.f32 0.0, %v3790
      %3792 = vmatmul.bf16.gmra.mxu0 %v2918
      %v3793 = vpop.f32.mrf.mxu0
      %v3794 = vadd.f32 0.0, %v3793
      %v3795 = vpop.f32.mrf.mxu0
      %v3796 = vadd.f32 0.0, %v3795
      %3797 = vmatmul.bf16.gmra.mxu0 %v2921
      %v3798 = vpop.f32.mrf.mxu0
      %v3799 = vadd.f32 0.0, %v3798
      %v3800 = vpop.f32.mrf.mxu0
      %v3801 = vadd.f32 0.0, %v3800
      %3802 = vmatmul.bf16.gmra.mxu0 %v2924
      %v3803 = vpop.f32.mrf.mxu0
      %v3804 = vadd.f32 0.0, %v3803
      %v3805 = vpop.f32.mrf.mxu0
      %v3806 = vadd.f32 0.0, %v3805
      %3807 = vmatmul.bf16.gmra.mxu0 %v2927
      %v3808 = vpop.f32.mrf.mxu0
      %v3809 = vadd.f32 0.0, %v3808
      %v3810 = vpop.f32.mrf.mxu0
      %v3811 = vadd.f32 0.0, %v3810
      %3812 = vmatmul.bf16.gmra.mxu0 %v2930
      %v3813 = vpop.f32.mrf.mxu0
      %v3814 = vadd.f32 0.0, %v3813
      %v3815 = vpop.f32.mrf.mxu0
      %v3816 = vadd.f32 0.0, %v3815
      %3817 = vmatmul.bf16.gmra.mxu0 %v2933
      %v3818 = vpop.f32.mrf.mxu0
      %v3819 = vadd.f32 0.0, %v3818
      %v3820 = vpop.f32.mrf.mxu0
      %v3821 = vadd.f32 0.0, %v3820
      %3822 = vmatmul.bf16.gmra.mxu0 %v2936
      %v3823 = vpop.f32.mrf.mxu0
      %v3824 = vadd.f32 0.0, %v3823
      %v3825 = vpop.f32.mrf.mxu0
      %v3826 = vadd.f32 0.0, %v3825
      %3827 = vmatmul.bf16.gmra.mxu0 %v2939
      %v3828 = vpop.f32.mrf.mxu0
      %v3829 = vadd.f32 0.0, %v3828
      %v3830 = vpop.f32.mrf.mxu0
      %v3831 = vadd.f32 0.0, %v3830
      %3832 = vmatmul.bf16.gmra.mxu0 %v2942
      %v3833 = vpop.f32.mrf.mxu0
      %v3834 = vadd.f32 0.0, %v3833
      %v3835 = vpop.f32.mrf.mxu0
      %v3836 = vadd.f32 0.0, %v3835
      %3837 = vmatmul.bf16.gmra.mxu0 %v2945
      %v3838 = vpop.f32.mrf.mxu0
      %v3839 = vadd.f32 0.0, %v3838
      %v3840 = vpop.f32.mrf.mxu0
      %v3841 = vadd.f32 0.0, %v3840
      %3842 = vmatmul.bf16.gmra.mxu0 %v3352
      %v3843 = vpop.f32.mrf.mxu0
      %v3844 = vadd.f32 0.0, %v3843
      %v3845 = vpop.f32.mrf.mxu0
      %v3846 = vadd.f32 0.0, %v3845
      %3847 = vmatmul.bf16.gmra.mxu0 %v3759
      %v3848 = vpop.f32.mrf.mxu0
      %v3849 = vadd.f32 0.0, %v3848
      %v3850 = vpop.f32.mrf.mxu0
      %v3851 = vadd.f32 0.0, %v3850
      %3852 = vdwg.mxu0
      %v3853 = vadd.f32 %v3716, %v3774
      %v3854 = vadd.f32 %v3717, %v3776
      %v3855 = vadd.f32 %v3718, %v3779
      %v3856 = vadd.f32 %v3719, %v3781
      %v3857 = vadd.f32 %v3720, %v3784
      %v3858 = vadd.f32 %v3721, %v3786
      %v3859 = vadd.f32 %v3722, %v3789
      %v3860 = vadd.f32 %v3723, %v3791
      %v3861 = vadd.f32 %v3724, %v3794
      %v3862 = vadd.f32 %v3725, %v3796
      %v3863 = vadd.f32 %v3726, %v3799
      %v3864 = vadd.f32 %v3727, %v3801
      %v3865 = vadd.f32 %v3728, %v3804
      %v3866 = vadd.f32 %v3729, %v3806
      %v3867 = vadd.f32 %v3730, %v3809
      %v3868 = vadd.f32 %v3731, %v3811
      %v3869 = vadd.f32 %v3732, %v3814
      %v3870 = vadd.f32 %v3733, %v3816
      %v3871 = vadd.f32 %v3734, %v3819
      %v3872 = vadd.f32 %v3735, %v3821
      %v3873 = vadd.f32 %v3736, %v3824
      %v3874 = vadd.f32 %v3737, %v3826
      %v3875 = vadd.f32 %v3738, %v3829
      %v3876 = vadd.f32 %v3739, %v3831
      %v3877 = vadd.f32 %v3740, %v3834
      %v3878 = vadd.f32 %v3741, %v3836
      %v3879 = vadd.f32 %v3742, %v3839
      %v3880 = vadd.f32 %v3743, %v3841
      %v3881 = vadd.f32 %v3744, %v3844
      %v3882 = vadd.f32 %v3745, %v3846
      %v3883 = vadd.f32 %v3746, %v3849
      %v3884 = vadd.f32 %v3747, %v3851
      %v3885 = vld [vmem:[%s5] sm:$0x1]
      %v3887 = vperm.slane %v3885, 0
      %v3889 = vmul.f32 %v3853, %v3887
      %v3890 = vmul.f32 %v3854, %v3887
      %v3891 = vmul.f32 %v3855, %v3887
      %v3892 = vmul.f32 %v3856, %v3887
      %v3893 = vmul.f32 %v3857, %v3887
      %v3894 = vmul.f32 %v3858, %v3887
      %v3895 = vmul.f32 %v3859, %v3887
      %v3896 = vmul.f32 %v3860, %v3887
      %v3897 = vmul.f32 %v3861, %v3887
      %v3898 = vmul.f32 %v3862, %v3887
      %v3899 = vmul.f32 %v3863, %v3887
      %v3900 = vmul.f32 %v3864, %v3887
      %v3901 = vmul.f32 %v3865, %v3887
      %v3902 = vmul.f32 %v3866, %v3887
      %v3903 = vmul.f32 %v3867, %v3887
      %v3904 = vmul.f32 %v3868, %v3887
      %v3905 = vmul.f32 %v3869, %v3887
      %v3906 = vmul.f32 %v3870, %v3887
      %v3907 = vmul.f32 %v3871, %v3887
      %v3908 = vmul.f32 %v3872, %v3887
      %v3909 = vmul.f32 %v3873, %v3887
      %v3910 = vmul.f32 %v3874, %v3887
      %v3911 = vmul.f32 %v3875, %v3887
      %v3912 = vmul.f32 %v3876, %v3887
      %v3913 = vmul.f32 %v3877, %v3887
      %v3914 = vmul.f32 %v3878, %v3887
      %v3915 = vmul.f32 %v3879, %v3887
      %v3916 = vmul.f32 %v3880, %v3887
      %v3917 = vmul.f32 %v3881, %v3887
      %v3918 = vmul.f32 %v3882, %v3887
      %v3919 = vmul.f32 %v3883, %v3887
      %v3920 = vmul.f32 %v3884, %v3887
      %v3921 = vld [vmem:[%s6] sm:$0x1]
      %v3923 = vperm.slane %v3921, 0
      %v3925 = vadd.f32 %v3889, %v3923
      %v3926 = vadd.f32 %v3890, %v3923
      %v3927 = vadd.f32 %v3891, %v3923
      %v3928 = vadd.f32 %v3892, %v3923
      %v3929 = vadd.f32 %v3893, %v3923
      %v3930 = vadd.f32 %v3894, %v3923
      %v3931 = vadd.f32 %v3895, %v3923
      %v3932 = vadd.f32 %v3896, %v3923
      %v3933 = vadd.f32 %v3897, %v3923
      %v3934 = vadd.f32 %v3898, %v3923
      %v3935 = vadd.f32 %v3899, %v3923
      %v3936 = vadd.f32 %v3900, %v3923
      %v3937 = vadd.f32 %v3901, %v3923
      %v3938 = vadd.f32 %v3902, %v3923
      %v3939 = vadd.f32 %v3903, %v3923
      %v3940 = vadd.f32 %v3904, %v3923
      %v3941 = vadd.f32 %v3905, %v3923
      %v3942 = vadd.f32 %v3906, %v3923
      %v3943 = vadd.f32 %v3907, %v3923
      %v3944 = vadd.f32 %v3908, %v3923
      %v3945 = vadd.f32 %v3909, %v3923
      %v3946 = vadd.f32 %v3910, %v3923
      %v3947 = vadd.f32 %v3911, %v3923
      %v3948 = vadd.f32 %v3912, %v3923
      %v3949 = vadd.f32 %v3913, %v3923
      %v3950 = vadd.f32 %v3914, %v3923
      %v3951 = vadd.f32 %v3915, %v3923
      %v3952 = vadd.f32 %v3916, %v3923
      %v3953 = vadd.f32 %v3917, %v3923
      %v3954 = vadd.f32 %v3918, %v3923
      %v3955 = vadd.f32 %v3919, %v3923
      %v3956 = vadd.f32 %v3920, %v3923
      %v3957 = vmax.f32 %v3925, 0.0
      %v3958 = vmax.f32 %v3926, 0.0
      %v3959 = vmax.f32 %v3927, 0.0
      %v3960 = vmax.f32 %v3928, 0.0
      %v3961 = vmax.f32 %v3929, 0.0
      %v3962 = vmax.f32 %v3930, 0.0
      %v3963 = vmax.f32 %v3931, 0.0
      %v3964 = vmax.f32 %v3932, 0.0
      %v3965 = vmax.f32 %v3933, 0.0
      %v3966 = vmax.f32 %v3934, 0.0
      %v3967 = vmax.f32 %v3935, 0.0
      %v3968 = vmax.f32 %v3936, 0.0
      %v3969 = vmax.f32 %v3937, 0.0
      %v3970 = vmax.f32 %v3938, 0.0
      %v3971 = vmax.f32 %v3939, 0.0
      %v3972 = vmax.f32 %v3940, 0.0
      %v3973 = vmax.f32 %v3941, 0.0
      %v3974 = vmax.f32 %v3942, 0.0
      %v3975 = vmax.f32 %v3943, 0.0
      %v3976 = vmax.f32 %v3944, 0.0
      %v3977 = vmax.f32 %v3945, 0.0
      %v3978 = vmax.f32 %v3946, 0.0
      %v3979 = vmax.f32 %v3947, 0.0
      %v3980 = vmax.f32 %v3948, 0.0
      %v3981 = vmax.f32 %v3949, 0.0
      %v3982 = vmax.f32 %v3950, 0.0
      %v3983 = vmax.f32 %v3951, 0.0
      %v3984 = vmax.f32 %v3952, 0.0
      %v3985 = vmax.f32 %v3953, 0.0
      %v3986 = vmax.f32 %v3954, 0.0
      %v3987 = vmax.f32 %v3955, 0.0
      %v3988 = vmax.f32 %v3956, 0.0
      %v3989 = vld [vmem:[%s273] sm:$0xff]
      %v3990 = vld [vmem:[%s273 + $0x8] sm:$0xff]
      %v3991 = vld [vmem:[%s273 + $0x10] sm:$0xff]
      %v3992 = vld [vmem:[%s273 + $0x18] sm:$0xff]
      %v3993 = vld [vmem:[%s273 + $0x20] sm:$0xff]
      %v3994 = vld [vmem:[%s273 + $0x28] sm:$0xff]
      %v3995 = vld [vmem:[%s273 + $0x30] sm:$0xff]
      %v3996 = vld [vmem:[%s273 + $0x38] sm:$0xff]
      %v3997 = vld [vmem:[%s273 + $0x40] sm:$0xff]
      %v3998 = vld [vmem:[%s273 + $0x48] sm:$0xff]
      %v3999 = vld [vmem:[%s273 + $0x50] sm:$0xff]
      %v4000 = vld [vmem:[%s273 + $0x58] sm:$0xff]
      %v4001 = vld [vmem:[%s273 + $0x60] sm:$0xff]
      %v4002 = vld [vmem:[%s273 + $0x68] sm:$0xff]
      %v4003 = vld [vmem:[%s273 + $0x70] sm:$0xff]
      %v4004 = vld [vmem:[%s273 + $0x78] sm:$0xff]
      %v4005 = vld [vmem:[%s273 + $0x80] sm:$0xff]
      %v4006 = vld [vmem:[%s273 + $0x88] sm:$0xff]
      %v4007 = vld [vmem:[%s273 + $0x90] sm:$0xff]
      %v4008 = vld [vmem:[%s273 + $0x98] sm:$0xff]
      %v4009 = vld [vmem:[%s273 + $0xa0] sm:$0xff]
      %v4010 = vld [vmem:[%s273 + $0xa8] sm:$0xff]
      %v4011 = vld [vmem:[%s273 + $0xb0] sm:$0xff]
      %v4012 = vld [vmem:[%s273 + $0xb8] sm:$0xff]
      %v4013 = vld [vmem:[%s273 + $0xc0] sm:$0xff]
      %v4014 = vld [vmem:[%s273 + $0xc8] sm:$0xff]
      %v4015 = vld [vmem:[%s273 + $0xd0] sm:$0xff]
      %v4016 = vld [vmem:[%s273 + $0xd8] sm:$0xff]
      %v4017 = vld [vmem:[%s273 + $0xe0] sm:$0xff]
      %v4018 = vld [vmem:[%s273 + $0xe8] sm:$0xff]
      %v4019 = vld [vmem:[%s273 + $0xf0] sm:$0xff]
      %v4020 = vld [vmem:[%s273 + $0xf8] sm:$0xff]
      %v4021 = vadd.f32 %v3957, %v3989
      %v4022 = vadd.f32 %v3958, %v3990
      %v4023 = vadd.f32 %v3959, %v3991
      %v4024 = vadd.f32 %v3960, %v3992
      %v4025 = vadd.f32 %v3961, %v3993
      %v4026 = vadd.f32 %v3962, %v3994
      %v4027 = vadd.f32 %v3963, %v3995
      %v4028 = vadd.f32 %v3964, %v3996
      %v4029 = vadd.f32 %v3965, %v3997
      %v4030 = vadd.f32 %v3966, %v3998
      %v4031 = vadd.f32 %v3967, %v3999
      %v4032 = vadd.f32 %v3968, %v4000
      %v4033 = vadd.f32 %v3969, %v4001
      %v4034 = vadd.f32 %v3970, %v4002
      %v4035 = vadd.f32 %v3971, %v4003
      %v4036 = vadd.f32 %v3972, %v4004
      %v4037 = vadd.f32 %v3973, %v4005
      %v4038 = vadd.f32 %v3974, %v4006
      %v4039 = vadd.f32 %v3975, %v4007
      %v4040 = vadd.f32 %v3976, %v4008
      %v4041 = vadd.f32 %v3977, %v4009
      %v4042 = vadd.f32 %v3978, %v4010
      %v4043 = vadd.f32 %v3979, %v4011
      %v4044 = vadd.f32 %v3980, %v4012
      %v4045 = vadd.f32 %v3981, %v4013
      %v4046 = vadd.f32 %v3982, %v4014
      %v4047 = vadd.f32 %v3983, %v4015
      %v4048 = vadd.f32 %v3984, %v4016
      %v4049 = vadd.f32 %v3985, %v4017
      %v4050 = vadd.f32 %v3986, %v4018
      %v4051 = vadd.f32 %v3987, %v4019
      %v4052 = vadd.f32 %v3988, %v4020
      %4053 = vst.msk [vmem:[%s278] sm:$0xff] %vm280, %v4021
      %4054 = vst.msk [vmem:[%s278 + $0x8] sm:$0xff] %vm280, %v4022
      %4055 = vst.msk [vmem:[%s278 + $0x10] sm:$0xff] %vm280, %v4023
      %4056 = vst.msk [vmem:[%s278 + $0x18] sm:$0xff] %vm280, %v4024
      %4057 = vst.msk [vmem:[%s278 + $0x20] sm:$0xff] %vm280, %v4025
      %4058 = vst.msk [vmem:[%s278 + $0x28] sm:$0xff] %vm280, %v4026
      %4059 = vst.msk [vmem:[%s278 + $0x30] sm:$0xff] %vm280, %v4027
      %4060 = vst.msk [vmem:[%s278 + $0x38] sm:$0xff] %vm280, %v4028
      %4061 = vst.msk [vmem:[%s278 + $0x40] sm:$0xff] %vm280, %v4029
      %4062 = vst.msk [vmem:[%s278 + $0x48] sm:$0xff] %vm280, %v4030
      %4063 = vst.msk [vmem:[%s278 + $0x50] sm:$0xff] %vm280, %v4031
      %4064 = vst.msk [vmem:[%s278 + $0x58] sm:$0xff] %vm280, %v4032
      %4065 = vst.msk [vmem:[%s278 + $0x60] sm:$0xff] %vm280, %v4033
      %4066 = vst.msk [vmem:[%s278 + $0x68] sm:$0xff] %vm280, %v4034
      %4067 = vst.msk [vmem:[%s278 + $0x70] sm:$0xff] %vm280, %v4035
      %4068 = vst.msk [vmem:[%s278 + $0x78] sm:$0xff] %vm280, %v4036
      %4069 = vst.msk [vmem:[%s278 + $0x80] sm:$0xff] %vm280, %v4037
      %4070 = vst.msk [vmem:[%s278 + $0x88] sm:$0xff] %vm280, %v4038
      %4071 = vst.msk [vmem:[%s278 + $0x90] sm:$0xff] %vm280, %v4039
      %4072 = vst.msk [vmem:[%s278 + $0x98] sm:$0xff] %vm280, %v4040
      %4073 = vst.msk [vmem:[%s278 + $0xa0] sm:$0xff] %vm280, %v4041
      %4074 = vst.msk [vmem:[%s278 + $0xa8] sm:$0xff] %vm280, %v4042
      %4075 = vst.msk [vmem:[%s278 + $0xb0] sm:$0xff] %vm280, %v4043
      %4076 = vst.msk [vmem:[%s278 + $0xb8] sm:$0xff] %vm280, %v4044
      %4077 = vst.msk [vmem:[%s278 + $0xc0] sm:$0xff] %vm280, %v4045
      %4078 = vst.msk [vmem:[%s278 + $0xc8] sm:$0xff] %vm280, %v4046
      %4079 = vst.msk [vmem:[%s278 + $0xd0] sm:$0xff] %vm280, %v4047
      %4080 = vst.msk [vmem:[%s278 + $0xd8] sm:$0xff] %vm280, %v4048
      %4081 = vst.msk [vmem:[%s278 + $0xe0] sm:$0xff] %vm280, %v4049
      %4082 = vst.msk [vmem:[%s278 + $0xe8] sm:$0xff] %vm280, %v4050
      %4083 = vst.msk [vmem:[%s278 + $0xf0] sm:$0xff] %vm280, %v4051
      %4084 = vst.msk [vmem:[%s278 + $0xf8] sm:$0xff] %vm280, %v4052
      %p4085 = scmp.lt.s32.totalorder %s18, 1
      %s4086 = scalar_select %p4085, %s18, 1
      %s4087 = smul.addr %s4086, 32
      %s4088 = smul.addr %s4087, 8
      %s4089 = scalar_lea.vmem %s7, %s4088
      // Predicated region
      $region49: #{intermediate_fwd.5} parent=47 // pred_check
        %p4090 = pneg %p188
      $region50: #{intermediate_fwd.5} parent=47 // pred_check_branch
        %4092 = sbr.rel (%p4090) target = $region52
      $region51: #{intermediate_fwd.5} parent=47 // pred_region
        _
      $region52: #{intermediate_fwd.5} parent=47 // pred_fallthru
        _
    $region48: #{intermediate_fwd.5} parent=5 // pred_fallthru
      _
    %p4093 = scmp.le.s32.totalorder 2, %s13
    // Predicated region
    $region53: #{intermediate_fwd.5} parent=5 // pred_check
      %p4094 = pneg %p4093
    $region54: #{intermediate_fwd.5} parent=5 // pred_check_branch
      %4096 = sbr.rel (%p4094) target = $region56
    $region55: #{intermediate_fwd.5} parent=5 // pred_region
      %s4097 = ssub.s32 %s13, 2
      // Predicated region
      $region57: #{intermediate_fwd.5} parent=55 // pred_check
        %p4098 = pneg %p194
      $region58: #{intermediate_fwd.5} parent=55 // pred_check_branch
        %4100 = sbr.rel (%p4098) target = $region60
      $region59: #{intermediate_fwd.5} parent=55 // pred_region
        %p4101 = scmp.lt.s32.totalorder %s19, 1
        %s4102 = scalar_select %p4101, %s19, 1
        %s4103 = smul.addr %s4102, 32
        %s4104 = smul.addr %s4103, 8
        %s4105 = scalar_lea.vmem %s7, %s4104
      $region60: #{intermediate_fwd.5} parent=55 // pred_fallthru
        _
    $region56: #{intermediate_fwd.5} parent=5 // pred_fallthru
      _
  $region6: #{intermediate_fwd.5} parent=0 // loop_footer
    %s17 = sadd.s32 1, %s13
  $region7: #{intermediate_fwd.5} parent=0 // loop_footer_branch
    %12 = sbr.rel target = $region3
  $region8: #{intermediate_fwd.5} parent=0 // loop_exit
    _

// kernel: intermediate_fwd.4
$region0: #{intermediate_fwd.4}
  #allocation0 [shape = 'u32[]', space=smem, size = 0x4, offset = 0x4, fixed_abs, tag = 'smem constant byte address 0x4 - core index']
  #allocation1 [shape = 'u32[72,128]{1,0:T(1,128)}', space=vmem, size = 0x9000, scoped, tag = 'internal scratch']
  #allocation2 [shape = 'f32[18,18,4]{2,1,0:T(8,128)}', space=vmem, size = 0x36000, scoped, tag = 'scratch operand']
  #allocation3 [shape = 'f32[18,18,8]{2,1,0:T(8,128)}', space=vmem, size = 0x36000, scoped, tag = 'scratch operand']
  %s0 = inlined_call_operand.vmem [shape: f32[2,16,16,4], index: 0, kind: input, shape index: {}]
  %s1 = inlined_call_operand.vmem [shape: bf16[9,4,8], index: 1, kind: input, shape index: {}]
  %s2 = inlined_call_operand.vmem [shape: f32[1,8], index: 2, kind: input, shape index: {}]
  %s3 = inlined_call_operand.vmem [shape: f32[1,8], index: 3, kind: input, shape index: {}]
  %s4 = inlined_call_operand.vmem [shape: bf16[9,8,8], index: 4, kind: input, shape index: {}]
  %s5 = inlined_call_operand.vmem [shape: f32[1,8], index: 5, kind: input, shape index: {}]
  %s6 = inlined_call_operand.vmem [shape: f32[1,8], index: 6, kind: input, shape index: {}]
  %s7 = inlined_call_operand.vmem [shape: bf16[4,8], index: 7, kind: input, shape index: {}]
  %s8 = inlined_call_operand.vmem [shape: f32[1,8], index: 8, kind: input, shape index: {}]
  %s9 = inlined_call_operand.vmem [shape: f32[2,16,16,8], index: 9, kind: output, shape index: {}]
  %s10 = sld [smem:[#allocation0]]
  $region69: #{intermediate_fwd.4} parent=0
    _
  %s12 = ssub.s32 1, %s10
  %s13 = scalar_select 0, %s12, %s10
  loop: start=0, step=1, limit=4
  $region2: #{intermediate_fwd.4} parent=0 // loop_pre_header
    _
  $region3: #{intermediate_fwd.4} parent=0 // loop_header
    %s15 = sphi 0, %s19
    %p16 = scmp.ge.s32.totalorder %s15, 4
    %s25 = sphi 0, %s27
    %s28 = sphi 0, %s25
    %s29 = sphi 0, %s28
    %s45 = sphi 0, %s29
    %s49 = sphi 0, %s49
    %s51 = sphi 0, %s49
    %s52 = sphi 0, %s51
    %s66 = sphi 0, %s52
    %s70 = sphi 0, %s70
    %s72 = sphi 0, %s70
    %s73 = sphi 0, %s72
    %s87 = sphi 0, %s73
    %s91 = sphi 0, %s91
    %s93 = sphi 0, %s91
    %s94 = sphi 0, %s93
    %s108 = sphi 0, %s94
    %s112 = sphi 0, %s112
    %s114 = sphi 0, %s112
    %s115 = sphi 0, %s114
    %s129 = sphi 0, %s115
    %s133 = sphi 0, %s133
    %s135 = sphi 0, %s133
    %s136 = sphi 0, %s135
    %s150 = sphi 0, %s136
    %s154 = sphi 0, %s154
    %s156 = sphi 0, %s154
    %s157 = sphi 0, %s156
    %s171 = sphi 0, %s157
    %s175 = sphi 0, %s175
    %s177 = sphi 0, %s175
    %s178 = sphi 0, %s177
    %s192 = sphi 0, %s178
    %s196 = sphi 0, %s196
    %s198 = sphi 0, %s196
    %s199 = sphi 0, %s198
    %s213 = sphi 0, %s199
    %s219 = sphi 0, %s221
    %s222 = sphi 0, %s219
    %s223 = sphi 0, %s222
    %s239 = sphi 0, %s223
  $region4: #{intermediate_fwd.4} parent=0 // loop_header_branch
    %18 = sbr.rel (%p16) target = $region8
  $region5: #{intermediate_fwd.4} parent=0 // loop_body
    %s20 = ssub.s32 %s15, 1
    %s21 = ssub.s32 %s15, 2
    %s22 = sadd.s32 %s15, 1
    %s23 = ssub.s32 %s15, %s22
    %p24 = scmp.eq.s32.totalorder %s23, 0
    %s26 = sadd.s32 %s25, 1
    %s27 = scalar_select %p24, %s25, %s26
    %p30 = pneg %p24
    %p31 = scmp.eq.s32.totalorder %s15, 1
    %p32 = por %p30, %p31
    %p33 = scmp.ne.s32.totalorder %s25, %s28
    %p34 = scmp.eq.s32.totalorder %s15, 0
    %p35 = por %p33, %p34
    %p36 = scmp.ne.s32.totalorder %s25, %s28
    %p37 = scmp.eq.s32.totalorder %s20, 1
    %p38 = por %p36, %p37
    %p39 = scmp.ne.s32.totalorder %s28, %s29
    %p40 = scmp.eq.s32.totalorder %s20, 0
    %p41 = por %p39, %p40
    %p42 = scmp.ne.s32.totalorder %s28, %s29
    %p43 = scmp.eq.s32.totalorder %s21, 1
    %p44 = por %p42, %p43
    %p46 = scmp.ne.s32.totalorder %s29, %s45
    %p47 = scmp.eq.s32.totalorder %s21, 0
    %p48 = por %p46, %p47
    %s50 = sadd.s32 %s49, 1
    %p53 = scmp.eq.s32.totalorder %s15, 1
    %p54 = scmp.ne.s32.totalorder %s49, %s51
    %p55 = scmp.eq.s32.totalorder %s15, 0
    %p56 = por %p54, %p55
    %p57 = scmp.ne.s32.totalorder %s49, %s51
    %p58 = scmp.eq.s32.totalorder %s20, 1
    %p59 = por %p57, %p58
    %p60 = scmp.ne.s32.totalorder %s51, %s52
    %p61 = scmp.eq.s32.totalorder %s20, 0
    %p62 = por %p60, %p61
    %p63 = scmp.ne.s32.totalorder %s51, %s52
    %p64 = scmp.eq.s32.totalorder %s21, 1
    %p65 = por %p63, %p64
    %p67 = scmp.ne.s32.totalorder %s52, %s66
    %p68 = scmp.eq.s32.totalorder %s21, 0
    %p69 = por %p67, %p68
    %s71 = sadd.s32 %s70, 1
    %p74 = scmp.eq.s32.totalorder %s15, 1
    %p75 = scmp.ne.s32.totalorder %s70, %s72
    %p76 = scmp.eq.s32.totalorder %s15, 0
    %p77 = por %p75, %p76
    %p78 = scmp.ne.s32.totalorder %s70, %s72
    %p79 = scmp.eq.s32.totalorder %s20, 1
    %p80 = por %p78, %p79
    %p81 = scmp.ne.s32.totalorder %s72, %s73
    %p82 = scmp.eq.s32.totalorder %s20, 0
    %p83 = por %p81, %p82
    %p84 = scmp.ne.s32.totalorder %s72, %s73
    %p85 = scmp.eq.s32.totalorder %s21, 1
    %p86 = por %p84, %p85
    %p88 = scmp.ne.s32.totalorder %s73, %s87
    %p89 = scmp.eq.s32.totalorder %s21, 0
    %p90 = por %p88, %p89
    %s92 = sadd.s32 %s91, 1
    %p95 = scmp.eq.s32.totalorder %s15, 1
    %p96 = scmp.ne.s32.totalorder %s91, %s93
    %p97 = scmp.eq.s32.totalorder %s15, 0
    %p98 = por %p96, %p97
    %p99 = scmp.ne.s32.totalorder %s91, %s93
    %p100 = scmp.eq.s32.totalorder %s20, 1
    %p101 = por %p99, %p100
    %p102 = scmp.ne.s32.totalorder %s93, %s94
    %p103 = scmp.eq.s32.totalorder %s20, 0
    %p104 = por %p102, %p103
    %p105 = scmp.ne.s32.totalorder %s93, %s94
    %p106 = scmp.eq.s32.totalorder %s21, 1
    %p107 = por %p105, %p106
    %p109 = scmp.ne.s32.totalorder %s94, %s108
    %p110 = scmp.eq.s32.totalorder %s21, 0
    %p111 = por %p109, %p110
    %s113 = sadd.s32 %s112, 1
    %p116 = scmp.eq.s32.totalorder %s15, 1
    %p117 = scmp.ne.s32.totalorder %s112, %s114
    %p118 = scmp.eq.s32.totalorder %s15, 0
    %p119 = por %p117, %p118
    %p120 = scmp.ne.s32.totalorder %s112, %s114
    %p121 = scmp.eq.s32.totalorder %s20, 1
    %p122 = por %p120, %p121
    %p123 = scmp.ne.s32.totalorder %s114, %s115
    %p124 = scmp.eq.s32.totalorder %s20, 0
    %p125 = por %p123, %p124
    %p126 = scmp.ne.s32.totalorder %s114, %s115
    %p127 = scmp.eq.s32.totalorder %s21, 1
    %p128 = por %p126, %p127
    %p130 = scmp.ne.s32.totalorder %s115, %s129
    %p131 = scmp.eq.s32.totalorder %s21, 0
    %p132 = por %p130, %p131
    %s134 = sadd.s32 %s133, 1
    %p137 = scmp.eq.s32.totalorder %s15, 1
    %p138 = scmp.ne.s32.totalorder %s133, %s135
    %p139 = scmp.eq.s32.totalorder %s15, 0
    %p140 = por %p138, %p139
    %p141 = scmp.ne.s32.totalorder %s133, %s135
    %p142 = scmp.eq.s32.totalorder %s20, 1
    %p143 = por %p141, %p142
    %p144 = scmp.ne.s32.totalorder %s135, %s136
    %p145 = scmp.eq.s32.totalorder %s20, 0
    %p146 = por %p144, %p145
    %p147 = scmp.ne.s32.totalorder %s135, %s136
    %p148 = scmp.eq.s32.totalorder %s21, 1
    %p149 = por %p147, %p148
    %p151 = scmp.ne.s32.totalorder %s136, %s150
    %p152 = scmp.eq.s32.totalorder %s21, 0
    %p153 = por %p151, %p152
    %s155 = sadd.s32 %s154, 1
    %p158 = scmp.eq.s32.totalorder %s15, 1
    %p159 = scmp.ne.s32.totalorder %s154, %s156
    %p160 = scmp.eq.s32.totalorder %s15, 0
    %p161 = por %p159, %p160
    %p162 = scmp.ne.s32.totalorder %s154, %s156
    %p163 = scmp.eq.s32.totalorder %s20, 1
    %p164 = por %p162, %p163
    %p165 = scmp.ne.s32.totalorder %s156, %s157
    %p166 = scmp.eq.s32.totalorder %s20, 0
    %p167 = por %p165, %p166
    %p168 = scmp.ne.s32.totalorder %s156, %s157
    %p169 = scmp.eq.s32.totalorder %s21, 1
    %p170 = por %p168, %p169
    %p172 = scmp.ne.s32.totalorder %s157, %s171
    %p173 = scmp.eq.s32.totalorder %s21, 0
    %p174 = por %p172, %p173
    %s176 = sadd.s32 %s175, 1
    %p179 = scmp.eq.s32.totalorder %s15, 1
    %p180 = scmp.ne.s32.totalorder %s175, %s177
    %p181 = scmp.eq.s32.totalorder %s15, 0
    %p182 = por %p180, %p181
    %p183 = scmp.ne.s32.totalorder %s175, %s177
    %p184 = scmp.eq.s32.totalorder %s20, 1
    %p185 = por %p183, %p184
    %p186 = scmp.ne.s32.totalorder %s177, %s178
    %p187 = scmp.eq.s32.totalorder %s20, 0
    %p188 = por %p186, %p187
    %p189 = scmp.ne.s32.totalorder %s177, %s178
    %p190 = scmp.eq.s32.totalorder %s21, 1
    %p191 = por %p189, %p190
    %p193 = scmp.ne.s32.totalorder %s178, %s192
    %p194 = scmp.eq.s32.totalorder %s21, 0
    %p195 = por %p193, %p194
    %s197 = sadd.s32 %s196, 1
    %p200 = scmp.eq.s32.totalorder %s15, 1
    %p201 = scmp.ne.s32.totalorder %s196, %s198
    %p202 = scmp.eq.s32.totalorder %s15, 0
    %p203 = por %p201, %p202
    %p204 = scmp.ne.s32.totalorder %s196, %s198
    %p205 = scmp.eq.s32.totalorder %s20, 1
    %p206 = por %p204, %p205
    %p207 = scmp.ne.s32.totalorder %s198, %s199
    %p208 = scmp.eq.s32.totalorder %s20, 0
    %p209 = por %p207, %p208
    %p210 = scmp.ne.s32.totalorder %s198, %s199
    %p211 = scmp.eq.s32.totalorder %s21, 1
    %p212 = por %p210, %p211
    %p214 = scmp.ne.s32.totalorder %s199, %s213
    %p215 = scmp.eq.s32.totalorder %s21, 0
    %p216 = por %p214, %p215
    %s217 = ssub.s32 %s15, %s22
    %p218 = scmp.eq.s32.totalorder %s217, 0
    %s220 = sadd.s32 %s219, 1
    %s221 = scalar_select %p218, %s219, %s220
    %p224 = pneg %p218
    %p225 = scmp.eq.s32.totalorder %s15, 1
    %p226 = por %p224, %p225
    %p227 = scmp.ne.s32.totalorder %s219, %s222
    %p228 = scmp.eq.s32.totalorder %s15, 0
    %p229 = por %p227, %p228
    %p230 = scmp.ne.s32.totalorder %s219, %s222
    %p231 = scmp.eq.s32.totalorder %s20, 1
    %p232 = por %p230, %p231
    %p233 = scmp.ne.s32.totalorder %s222, %s223
    %p234 = scmp.eq.s32.totalorder %s20, 0
    %p235 = por %p233, %p234
    %p236 = scmp.ne.s32.totalorder %s222, %s223
    %p237 = scmp.eq.s32.totalorder %s21, 1
    %p238 = por %p236, %p237
    %p240 = scmp.ne.s32.totalorder %s223, %s239
    %p241 = scmp.eq.s32.totalorder %s21, 0
    %p242 = por %p240, %p241
    %p243 = scmp.le.s32.totalorder 1, %s15
    %p244 = scmp.lt.s32.totalorder %s15, 3
    %p245 = pnand %p243, %p244
    %p246 = pneg %p245
    // Predicated region
    $region9: #{intermediate_fwd.4} parent=5 // pred_check
      _
    $region10: #{intermediate_fwd.4} parent=5 // pred_check_branch
      %248 = sbr.rel (%p245) target = $region12
    $region11: #{intermediate_fwd.4} parent=5 // pred_region
      %s249 = ssub.s32 %s15, 1
      // Predicated region
      $region13: #{intermediate_fwd.4} parent=11 // pred_check
        %p250 = pneg %p62
      $region14: #{intermediate_fwd.4} parent=11 // pred_check_branch
        %252 = sbr.rel (%p250) target = $region16
      $region15: #{intermediate_fwd.4} parent=11 // pred_region
        _
      $region16: #{intermediate_fwd.4} parent=11 // pred_fallthru
        _
      // Predicated region
      $region17: #{intermediate_fwd.4} parent=11 // pred_check
        %p253 = pneg %p83
      $region18: #{intermediate_fwd.4} parent=11 // pred_check_branch
        %255 = sbr.rel (%p253) target = $region20
      $region19: #{intermediate_fwd.4} parent=11 // pred_region
        _
      $region20: #{intermediate_fwd.4} parent=11 // pred_fallthru
        _
      // Predicated region
      $region21: #{intermediate_fwd.4} parent=11 // pred_check
        %p256 = pneg %p104
      $region22: #{intermediate_fwd.4} parent=11 // pred_check_branch
        %258 = sbr.rel (%p256) target = $region24
      $region23: #{intermediate_fwd.4} parent=11 // pred_region
        _
      $region24: #{intermediate_fwd.4} parent=11 // pred_fallthru
        _
      // Predicated region
      $region25: #{intermediate_fwd.4} parent=11 // pred_check
        %p259 = pneg %p125
      $region26: #{intermediate_fwd.4} parent=11 // pred_check_branch
        %261 = sbr.rel (%p259) target = $region28
      $region27: #{intermediate_fwd.4} parent=11 // pred_region
        _
      $region28: #{intermediate_fwd.4} parent=11 // pred_fallthru
        _
      // Predicated region
      $region29: #{intermediate_fwd.4} parent=11 // pred_check
        %p262 = pneg %p146
      $region30: #{intermediate_fwd.4} parent=11 // pred_check_branch
        %264 = sbr.rel (%p262) target = $region32
      $region31: #{intermediate_fwd.4} parent=11 // pred_region
        _
      $region32: #{intermediate_fwd.4} parent=11 // pred_fallthru
        _
      // Predicated region
      $region33: #{intermediate_fwd.4} parent=11 // pred_check
        %p265 = pneg %p167
      $region34: #{intermediate_fwd.4} parent=11 // pred_check_branch
        %267 = sbr.rel (%p265) target = $region36
      $region35: #{intermediate_fwd.4} parent=11 // pred_region
        _
      $region36: #{intermediate_fwd.4} parent=11 // pred_fallthru
        _
      // Predicated region
      $region37: #{intermediate_fwd.4} parent=11 // pred_check
        %p268 = pneg %p188
      $region38: #{intermediate_fwd.4} parent=11 // pred_check_branch
        %270 = sbr.rel (%p268) target = $region40
      $region39: #{intermediate_fwd.4} parent=11 // pred_region
        _
      $region40: #{intermediate_fwd.4} parent=11 // pred_fallthru
        _
      // Predicated region
      $region41: #{intermediate_fwd.4} parent=11 // pred_check
        %p271 = pneg %p209
      $region42: #{intermediate_fwd.4} parent=11 // pred_check_branch
        %273 = sbr.rel (%p271) target = $region44
      $region43: #{intermediate_fwd.4} parent=11 // pred_region
        _
      $region44: #{intermediate_fwd.4} parent=11 // pred_fallthru
        _
    $region12: #{intermediate_fwd.4} parent=5 // pred_fallthru
      _
    %p274 = scmp.lt.s32.totalorder %s15, 2
    // Predicated region
    $region45: #{intermediate_fwd.4} parent=5 // pred_check
      %p275 = pneg %p274
    $region46: #{intermediate_fwd.4} parent=5 // pred_check_branch
      %277 = sbr.rel (%p275) target = $region48
    $region47: #{intermediate_fwd.4} parent=5 // pred_region
      // Predicated region
      $region49: #{intermediate_fwd.4} parent=47 // pred_check
        %p278 = pneg %p35
      $region50: #{intermediate_fwd.4} parent=47 // pred_check_branch
        %280 = sbr.rel (%p278) target = $region52
      $region51: #{intermediate_fwd.4} parent=47 // pred_region
        %p281 = scmp.lt.s32.totalorder %s15, 1
        %s282 = scalar_select %p281, %s15, 1
        %s283 = smul.addr %s282, 32
        %s284 = smul.addr %s283, 8
        %s285 = scalar_lea.vmem %s0, %s284
      $region52: #{intermediate_fwd.4} parent=47 // pred_fallthru
        _
    $region48: #{intermediate_fwd.4} parent=5 // pred_fallthru
      _
    %p286 = scmp.le.s32.totalorder 1, %s15
    %p287 = scmp.lt.s32.totalorder %s15, 3
    %p288 = pnand %p286, %p287
    %p289 = pneg %p288
    // Predicated region
    $region53: #{intermediate_fwd.4} parent=5 // pred_check
      _
    $region54: #{intermediate_fwd.4} parent=5 // pred_check_branch
      %291 = sbr.rel (%p288) target = $region56
    $region55: #{intermediate_fwd.4} parent=5 // pred_region
      %s292 = ssub.s32 %s15, 1
      %p293 = scmp.lt.s32.totalorder %s20, 1
      %s294 = scalar_select %p293, %s20, 1
      %s295 = smul.addr %s294, 32
      %s296 = smul.addr %s295, 8
      %s297 = scalar_lea.vmem %s0, %s296
      %p298 = pneg %p41
      %p299 = pneg %p38
      %p300 = pneg %p62
      %p301 = pneg %p59
      %p302 = pneg %p83
      %p303 = pneg %p80
      %p304 = pneg %p104
      %p305 = pneg %p101
      %p306 = pneg %p125
      %p307 = pneg %p122
      %p308 = pneg %p146
      %p309 = pneg %p143
      %p310 = pneg %p167
      %p311 = pneg %p164
      %p312 = pneg %p188
      %p313 = pneg %p185
      %p314 = pneg %p209
      %p315 = pneg %p206
      %p316 = pneg %p235
      %p317 = pneg %p232
      %p318 = scmp.lt.s32.totalorder %s20, 1
      %s319 = scalar_select %p318, %s20, 1
      %s320 = smul.addr %s319, 32
      %s321 = smul.addr %s320, 8
      %s322 = scalar_lea.vmem %s9, %s321
      %p323 = scmp.lt.s32.totalorder %s20, 1
      %s324 = scalar_select %p323, %s20, 1
      %s325 = smul.addr %s324, 32
      %s326 = smul.addr %s325, 8
      %s327 = scalar_lea.vmem %s0, %s326
      %p328 = scmp.lt.s32.totalorder %s20, 1
      %s329 = scalar_select %p328, %s20, 1
      %s330 = smul.addr %s329, 32
      %s331 = smul.addr %s330, 8
      %s332 = scalar_lea.vmem %s9, %s331
      %vm334 = vcmask 31744
      %335 = vst.msk [vmem:[#allocation2] sm:$0xff] %vm334, 0.0
      %336 = vst.msk [vmem:[#allocation2 + $0x8] sm:$0xff] %vm334, 0.0
      %vm337 = vcmask 25600
      %338 = vst.msk [vmem:[#allocation2 + $0x10] sm:$0x3] %vm337, 0.0
      %339 = vst.msk [vmem:[#allocation2 + $0x18] sm:$0xff] %vm334, 0.0
      %340 = vst.msk [vmem:[#allocation2 + $0x20] sm:$0xff] %vm334, 0.0
      %341 = vst.msk [vmem:[#allocation2 + $0x28] sm:$0x3] %vm337, 0.0
      %342 = vst.msk [vmem:[#allocation2 + $0x30] sm:$0xff] %vm334, 0.0
      %343 = vst.msk [vmem:[#allocation2 + $0x38] sm:$0xff] %vm334, 0.0
      %344 = vst.msk [vmem:[#allocation2 + $0x40] sm:$0x3] %vm337, 0.0
      %345 = vst.msk [vmem:[#allocation2 + $0x48] sm:$0xff] %vm334, 0.0
      %346 = vst.msk [vmem:[#allocation2 + $0x50] sm:$0xff] %vm334, 0.0
      %347 = vst.msk [vmem:[#allocation2 + $0x58] sm:$0x3] %vm337, 0.0
      %348 = vst.msk [vmem:[#allocation2 + $0x60] sm:$0xff] %vm334, 0.0
      %349 = vst.msk [vmem:[#allocation2 + $0x68] sm:$0xff] %vm334, 0.0
      %350 = vst.msk [vmem:[#allocation2 + $0x70] sm:$0x3] %vm337, 0.0
      %351 = vst.msk [vmem:[#allocation2 + $0x78] sm:$0xff] %vm334, 0.0
      %352 = vst.msk [vmem:[#allocation2 + $0x80] sm:$0xff] %vm334, 0.0
      %353 = vst.msk [vmem:[#allocation2 + $0x88] sm:$0x3] %vm337, 0.0
      %354 = vst.msk [vmem:[#allocation2 + $0x90] sm:$0xff] %vm334, 0.0
      %355 = vst.msk [vmem:[#allocation2 + $0x98] sm:$0xff] %vm334, 0.0
      %356 = vst.msk [vmem:[#allocation2 + $0xa0] sm:$0x3] %vm337, 0.0
      %357 = vst.msk [vmem:[#allocation2 + $0xa8] sm:$0xff] %vm334, 0.0
      %358 = vst.msk [vmem:[#allocation2 + $0xb0] sm:$0xff] %vm334, 0.0
      %359 = vst.msk [vmem:[#allocation2 + $0xb8] sm:$0x3] %vm337, 0.0
      %360 = vst.msk [vmem:[#allocation2 + $0xc0] sm:$0xff] %vm334, 0.0
      %361 = vst.msk [vmem:[#allocation2 + $0xc8] sm:$0xff] %vm334, 0.0
      %362 = vst.msk [vmem:[#allocation2 + $0xd0] sm:$0x3] %vm337, 0.0
      %363 = vst.msk [vmem:[#allocation2 + $0xd8] sm:$0xff] %vm334, 0.0
      %364 = vst.msk [vmem:[#allocation2 + $0xe0] sm:$0xff] %vm334, 0.0
      %365 = vst.msk [vmem:[#allocation2 + $0xe8] sm:$0x3] %vm337, 0.0
      %366 = vst.msk [vmem:[#allocation2 + $0xf0] sm:$0xff] %vm334, 0.0
      %367 = vst.msk [vmem:[#allocation2 + $0xf8] sm:$0xff] %vm334, 0.0
      %368 = vst.msk [vmem:[#allocation2 + $0x100] sm:$0x3] %vm337, 0.0
      %369 = vst.msk [vmem:[#allocation2 + $0x108] sm:$0xff] %vm334, 0.0
      %370 = vst.msk [vmem:[#allocation2 + $0x110] sm:$0xff] %vm334, 0.0
      %371 = vst.msk [vmem:[#allocation2 + $0x118] sm:$0x3] %vm337, 0.0
      %372 = vst.msk [vmem:[#allocation2 + $0x120] sm:$0xff] %vm334, 0.0
      %373 = vst.msk [vmem:[#allocation2 + $0x128] sm:$0xff] %vm334, 0.0
      %374 = vst.msk [vmem:[#allocation2 + $0x130] sm:$0x3] %vm337, 0.0
      %375 = vst.msk [vmem:[#allocation2 + $0x138] sm:$0xff] %vm334, 0.0
      %376 = vst.msk [vmem:[#allocation2 + $0x140] sm:$0xff] %vm334, 0.0
      %377 = vst.msk [vmem:[#allocation2 + $0x148] sm:$0x3] %vm337, 0.0
      %378 = vst.msk [vmem:[#allocation2 + $0x150] sm:$0xff] %vm334, 0.0
      %379 = vst.msk [vmem:[#allocation2 + $0x158] sm:$0xff] %vm334, 0.0
      %380 = vst.msk [vmem:[#allocation2 + $0x160] sm:$0x3] %vm337, 0.0
      %381 = vst.msk [vmem:[#allocation2 + $0x168] sm:$0xff] %vm334, 0.0
      %382 = vst.msk [vmem:[#allocation2 + $0x170] sm:$0xff] %vm334, 0.0
      %383 = vst.msk [vmem:[#allocation2 + $0x178] sm:$0x3] %vm337, 0.0
      %384 = vst.msk [vmem:[#allocation2 + $0x180] sm:$0xff] %vm334, 0.0
      %385 = vst.msk [vmem:[#allocation2 + $0x188] sm:$0xff] %vm334, 0.0
      %386 = vst.msk [vmem:[#allocation2 + $0x190] sm:$0x3] %vm337, 0.0
      %387 = vst.msk [vmem:[#allocation2 + $0x198] sm:$0xff] %vm334, 0.0
      %388 = vst.msk [vmem:[#allocation2 + $0x1a0] sm:$0xff] %vm334, 0.0
      %389 = vst.msk [vmem:[#allocation2 + $0x1a8] sm:$0x3] %vm337, 0.0
      %v390 = vld [vmem:[%s327] sm:$0xff]
      %v391 = vld [vmem:[%s327 + $0x8] sm:$0xff]
      %v392 = vld [vmem:[%s327 + $0x10] sm:$0xff]
      %v393 = vld [vmem:[%s327 + $0x18] sm:$0xff]
      %v394 = vld [vmem:[%s327 + $0x20] sm:$0xff]
      %v395 = vld [vmem:[%s327 + $0x28] sm:$0xff]
      %v396 = vld [vmem:[%s327 + $0x30] sm:$0xff]
      %v397 = vld [vmem:[%s327 + $0x38] sm:$0xff]
      %v398 = vld [vmem:[%s327 + $0x40] sm:$0xff]
      %v399 = vld [vmem:[%s327 + $0x48] sm:$0xff]
      %v400 = vld [vmem:[%s327 + $0x50] sm:$0xff]
      %v401 = vld [vmem:[%s327 + $0x58] sm:$0xff]
      %v402 = vld [vmem:[%s327 + $0x60] sm:$0xff]
      %v403 = vld [vmem:[%s327 + $0x68] sm:$0xff]
      %v404 = vld [vmem:[%s327 + $0x70] sm:$0xff]
      %v405 = vld [vmem:[%s327 + $0x78] sm:$0xff]
      %v406 = vld [vmem:[%s327 + $0x80] sm:$0xff]
      %v407 = vld [vmem:[%s327 + $0x88] sm:$0xff]
      %v408 = vld [vmem:[%s327 + $0x90] sm:$0xff]
      %v409 = vld [vmem:[%s327 + $0x98] sm:$0xff]
      %v410 = vld [vmem:[%s327 + $0xa0] sm:$0xff]
      %v411 = vld [vmem:[%s327 + $0xa8] sm:$0xff]
      %v412 = vld [vmem:[%s327 + $0xb0] sm:$0xff]
      %v413 = vld [vmem:[%s327 + $0xb8] sm:$0xff]
      %v414 = vld [vmem:[%s327 + $0xc0] sm:$0xff]
      %v415 = vld [vmem:[%s327 + $0xc8] sm:$0xff]
      %v416 = vld [vmem:[%s327 + $0xd0] sm:$0xff]
      %v417 = vld [vmem:[%s327 + $0xd8] sm:$0xff]
      %v418 = vld [vmem:[%s327 + $0xe0] sm:$0xff]
      %v419 = vld [vmem:[%s327 + $0xe8] sm:$0xff]
      %v420 = vld [vmem:[%s327 + $0xf0] sm:$0xff]
      %v421 = vld [vmem:[%s327 + $0xf8] sm:$0xff]
      %s422 = scalar_lea.vmem [#allocation2], 24
      %423 = vst.msk [vmem:[%s422 + $0x1] sm:$0xff] %vm334, %v390
      %424 = vst.msk [vmem:[%s422 + $0x9] sm:$0xff] %vm334, %v391
      %425 = vst.msk [vmem:[%s422 + $0x19] sm:$0xff] %vm334, %v392
      %426 = vst.msk [vmem:[%s422 + $0x21] sm:$0xff] %vm334, %v393
      %427 = vst.msk [vmem:[%s422 + $0x31] sm:$0xff] %vm334, %v394
      %428 = vst.msk [vmem:[%s422 + $0x39] sm:$0xff] %vm334, %v395
      %429 = vst.msk [vmem:[%s422 + $0x49] sm:$0xff] %vm334, %v396
      %430 = vst.msk [vmem:[%s422 + $0x51] sm:$0xff] %vm334, %v397
      %431 = vst.msk [vmem:[%s422 + $0x61] sm:$0xff] %vm334, %v398
      %432 = vst.msk [vmem:[%s422 + $0x69] sm:$0xff] %vm334, %v399
      %433 = vst.msk [vmem:[%s422 + $0x79] sm:$0xff] %vm334, %v400
      %434 = vst.msk [vmem:[%s422 + $0x81] sm:$0xff] %vm334, %v401
      %435 = vst.msk [vmem:[%s422 + $0x91] sm:$0xff] %vm334, %v402
      %436 = vst.msk [vmem:[%s422 + $0x99] sm:$0xff] %vm334, %v403
      %437 = vst.msk [vmem:[%s422 + $0xa9] sm:$0xff] %vm334, %v404
      %438 = vst.msk [vmem:[%s422 + $0xb1] sm:$0xff] %vm334, %v405
      %439 = vst.msk [vmem:[%s422 + $0xc1] sm:$0xff] %vm334, %v406
      %440 = vst.msk [vmem:[%s422 + $0xc9] sm:$0xff] %vm334, %v407
      %441 = vst.msk [vmem:[%s422 + $0xd9] sm:$0xff] %vm334, %v408
      %442 = vst.msk [vmem:[%s422 + $0xe1] sm:$0xff] %vm334, %v409
      %443 = vst.msk [vmem:[%s422 + $0xf1] sm:$0xff] %vm334, %v410
      %444 = vst.msk [vmem:[%s422 + $0xf9] sm:$0xff] %vm334, %v411
      %445 = vst.msk [vmem:[%s422 + $0x109] sm:$0xff] %vm334, %v412
      %446 = vst.msk [vmem:[%s422 + $0x111] sm:$0xff] %vm334, %v413
      %447 = vst.msk [vmem:[%s422 + $0x121] sm:$0xff] %vm334, %v414
      %448 = vst.msk [vmem:[%s422 + $0x129] sm:$0xff] %vm334, %v415
      %449 = vst.msk [vmem:[%s422 + $0x139] sm:$0xff] %vm334, %v416
      %450 = vst.msk [vmem:[%s422 + $0x141] sm:$0xff] %vm334, %v417
      %451 = vst.msk [vmem:[%s422 + $0x151] sm:$0xff] %vm334, %v418
      %452 = vst.msk [vmem:[%s422 + $0x159] sm:$0xff] %vm334, %v419
      %453 = vst.msk [vmem:[%s422 + $0x169] sm:$0xff] %vm334, %v420
      %454 = vst.msk [vmem:[%s422 + $0x171] sm:$0xff] %vm334, %v421
      %v455 = vld [vmem:[#allocation2] sm:$0xff]
      %v456 = vld [vmem:[#allocation2 + $0x8] sm:$0xff]
      %v457 = vld [vmem:[#allocation2 + $0x10] sm:$0x3]
      %v458 = vld [vmem:[#allocation2 + $0x18] sm:$0xff]
      %v459 = vld [vmem:[#allocation2 + $0x20] sm:$0xff]
      %v460 = vld [vmem:[#allocation2 + $0x28] sm:$0x3]
      %v461 = vld [vmem:[#allocation2 + $0x30] sm:$0xff]
      %v462 = vld [vmem:[#allocation2 + $0x38] sm:$0xff]
      %v463 = vld [vmem:[#allocation2 + $0x40] sm:$0x3]
      %v464 = vld [vmem:[#allocation2 + $0x48] sm:$0xff]
      %v465 = vld [vmem:[#allocation2 + $0x50] sm:$0xff]
      %v466 = vld [vmem:[#allocation2 + $0x58] sm:$0x3]
      %v467 = vld [vmem:[#allocation2 + $0x60] sm:$0xff]
      %v468 = vld [vmem:[#allocation2 + $0x68] sm:$0xff]
      %v469 = vld [vmem:[#allocation2 + $0x70] sm:$0x3]
      %v470 = vld [vmem:[#allocation2 + $0x78] sm:$0xff]
      %v471 = vld [vmem:[#allocation2 + $0x80] sm:$0xff]
      %v472 = vld [vmem:[#allocation2 + $0x88] sm:$0x3]
      %v473 = vld [vmem:[#allocation2 + $0x90] sm:$0xff]
      %v474 = vld [vmem:[#allocation2 + $0x98] sm:$0xff]
      %v475 = vld [vmem:[#allocation2 + $0xa0] sm:$0x3]
      %v476 = vld [vmem:[#allocation2 + $0xa8] sm:$0xff]
      %v477 = vld [vmem:[#allocation2 + $0xb0] sm:$0xff]
      %v478 = vld [vmem:[#allocation2 + $0xb8] sm:$0x3]
      %v479 = vld [vmem:[#allocation2 + $0xc0] sm:$0xff]
      %v480 = vld [vmem:[#allocation2 + $0xc8] sm:$0xff]
      %v481 = vld [vmem:[#allocation2 + $0xd0] sm:$0x3]
      %v482 = vld [vmem:[#allocation2 + $0xd8] sm:$0xff]
      %v483 = vld [vmem:[#allocation2 + $0xe0] sm:$0xff]
      %v484 = vld [vmem:[#allocation2 + $0xe8] sm:$0x3]
      %v485 = vld [vmem:[#allocation2 + $0xf0] sm:$0xff]
      %v486 = vld [vmem:[#allocation2 + $0xf8] sm:$0xff]
      %v487 = vld [vmem:[#allocation2 + $0x100] sm:$0x3]
      %v488 = vld [vmem:[#allocation2 + $0x108] sm:$0xff]
      %v489 = vld [vmem:[#allocation2 + $0x110] sm:$0xff]
      %v490 = vld [vmem:[#allocation2 + $0x118] sm:$0x3]
      %v491 = vld [vmem:[#allocation2 + $0x120] sm:$0xff]
      %v492 = vld [vmem:[#allocation2 + $0x128] sm:$0xff]
      %v493 = vld [vmem:[#allocation2 + $0x130] sm:$0x3]
      %v494 = vld [vmem:[#allocation2 + $0x138] sm:$0xff]
      %v495 = vld [vmem:[#allocation2 + $0x140] sm:$0xff]
      %v496 = vld [vmem:[#allocation2 + $0x148] sm:$0x3]
      %v497 = vld [vmem:[#allocation2 + $0x150] sm:$0xff]
      %v498 = vld [vmem:[#allocation2 + $0x158] sm:$0xff]
      %v499 = vld [vmem:[#allocation2 + $0x160] sm:$0x3]
      %v500 = vld [vmem:[#allocation2 + $0x168] sm:$0xff]
      %v501 = vld [vmem:[#allocation2 + $0x170] sm:$0xff]
      %v502 = vld [vmem:[#allocation2 + $0x178] sm:$0x3]
      %v503 = vld [vmem:[#allocation2 + $0x180] sm:$0xff]
      %v504 = vld [vmem:[#allocation2 + $0x188] sm:$0xff]
      %v505 = vld [vmem:[#allocation2 + $0x190] sm:$0x3]
      %v506 = vld [vmem:[#allocation2 + $0x198] sm:$0xff]
      %v507 = vld [vmem:[#allocation2 + $0x1a0] sm:$0xff]
      %v508 = vld [vmem:[#allocation2 + $0x1a8] sm:$0x3]
      %v509 = vpack.c.bf16 %v456, %v455
      %v510 = vpack.c.bf16 %v459, %v458
      %v511 = vpack.c.bf16 %v462, %v461
      %v512 = vpack.c.bf16 %v465, %v464
      %v513 = vpack.c.bf16 %v468, %v467
      %v514 = vpack.c.bf16 %v471, %v470
      %v515 = vpack.c.bf16 %v474, %v473
      %v516 = vpack.c.bf16 %v477, %v476
      %v517 = vpack.c.bf16 %v480, %v479
      %v518 = vpack.c.bf16 %v483, %v482
      %v519 = vpack.c.bf16 %v486, %v485
      %v520 = vpack.c.bf16 %v489, %v488
      %v521 = vpack.c.bf16 %v492, %v491
      %v522 = vpack.c.bf16 %v495, %v494
      %v523 = vpack.c.bf16 %v498, %v497
      %v524 = vpack.c.bf16 %v501, %v500
      %v525 = vld [vmem:[%s1] sm:$0x3]
      %vm574 = vcmask 1046528
      %v575 = vrot.slane %v455, 1
      %v576 = vrot.slane %v456, 1
      %v577 = vsel %vm574, %v575, %v576
      %v578 = vrot.slane %v457, 1
      %v579 = vsel %vm574, %v576, %v578
      %v580 = vrot.slane %v458, 1
      %v581 = vrot.slane %v459, 1
      %v582 = vsel %vm574, %v580, %v581
      %v583 = vrot.slane %v460, 1
      %v584 = vsel %vm574, %v581, %v583
      %v585 = vrot.slane %v461, 1
      %v586 = vrot.slane %v462, 1
      %v587 = vsel %vm574, %v585, %v586
      %v588 = vrot.slane %v463, 1
      %v589 = vsel %vm574, %v586, %v588
      %v590 = vrot.slane %v464, 1
      %v591 = vrot.slane %v465, 1
      %v592 = vsel %vm574, %v590, %v591
      %v593 = vrot.slane %v466, 1
      %v594 = vsel %vm574, %v591, %v593
      %v595 = vrot.slane %v467, 1
      %v596 = vrot.slane %v468, 1
      %v597 = vsel %vm574, %v595, %v596
      %v598 = vrot.slane %v469, 1
      %v599 = vsel %vm574, %v596, %v598
      %v600 = vrot.slane %v470, 1
      %v601 = vrot.slane %v471, 1
      %v602 = vsel %vm574, %v600, %v601
      %v603 = vrot.slane %v472, 1
      %v604 = vsel %vm574, %v601, %v603
      %v605 = vrot.slane %v473, 1
      %v606 = vrot.slane %v474, 1
      %v607 = vsel %vm574, %v605, %v606
      %v608 = vrot.slane %v475, 1
      %v609 = vsel %vm574, %v606, %v608
      %v610 = vrot.slane %v476, 1
      %v611 = vrot.slane %v477, 1
      %v612 = vsel %vm574, %v610, %v611
      %v613 = vrot.slane %v478, 1
      %v614 = vsel %vm574, %v611, %v613
      %v615 = vrot.slane %v479, 1
      %v616 = vrot.slane %v480, 1
      %v617 = vsel %vm574, %v615, %v616
      %v618 = vrot.slane %v481, 1
      %v619 = vsel %vm574, %v616, %v618
      %v620 = vrot.slane %v482, 1
      %v621 = vrot.slane %v483, 1
      %v622 = vsel %vm574, %v620, %v621
      %v623 = vrot.slane %v484, 1
      %v624 = vsel %vm574, %v621, %v623
      %v625 = vrot.slane %v485, 1
      %v626 = vrot.slane %v486, 1
      %v627 = vsel %vm574, %v625, %v626
      %v628 = vrot.slane %v487, 1
      %v629 = vsel %vm574, %v626, %v628
      %v630 = vrot.slane %v488, 1
      %v631 = vrot.slane %v489, 1
      %v632 = vsel %vm574, %v630, %v631
      %v633 = vrot.slane %v490, 1
      %v634 = vsel %vm574, %v631, %v633
      %v635 = vrot.slane %v491, 1
      %v636 = vrot.slane %v492, 1
      %v637 = vsel %vm574, %v635, %v636
      %v638 = vrot.slane %v493, 1
      %v639 = vsel %vm574, %v636, %v638
      %v640 = vrot.slane %v494, 1
      %v641 = vrot.slane %v495, 1
      %v642 = vsel %vm574, %v640, %v641
      %v643 = vrot.slane %v496, 1
      %v644 = vsel %vm574, %v641, %v643
      %v645 = vrot.slane %v497, 1
      %v646 = vrot.slane %v498, 1
      %v647 = vsel %vm574, %v645, %v646
      %v648 = vrot.slane %v499, 1
      %v649 = vsel %vm574, %v646, %v648
      %v650 = vrot.slane %v500, 1
      %v651 = vrot.slane %v501, 1
      %v652 = vsel %vm574, %v650, %v651
      %v653 = vrot.slane %v502, 1
      %v654 = vsel %vm574, %v651, %v653
      %v687 = vpack.c.bf16 %v579, %v577
      %v688 = vpack.c.bf16 %v584, %v582
      %v689 = vpack.c.bf16 %v589, %v587
      %v690 = vpack.c.bf16 %v594, %v592
      %v691 = vpack.c.bf16 %v599, %v597
      %v692 = vpack.c.bf16 %v604, %v602
      %v693 = vpack.c.bf16 %v609, %v607
      %v694 = vpack.c.bf16 %v614, %v612
      %v695 = vpack.c.bf16 %v619, %v617
      %v696 = vpack.c.bf16 %v624, %v622
      %v697 = vpack.c.bf16 %v629, %v627
      %v698 = vpack.c.bf16 %v634, %v632
      %v699 = vpack.c.bf16 %v639, %v637
      %v700 = vpack.c.bf16 %v644, %v642
      %v701 = vpack.c.bf16 %v649, %v647
      %v702 = vpack.c.bf16 %v654, %v652
      %s703 = scalar_lea.vmem %s1, 2
      %v704 = vld [vmem:[%s703] sm:$0x3]
      %v706 = vsel %vm334, %v687, 0
      %v709 = vsel %vm334, %v688, 0
      %v712 = vsel %vm334, %v689, 0
      %v715 = vsel %vm334, %v690, 0
      %v718 = vsel %vm334, %v691, 0
      %v721 = vsel %vm334, %v692, 0
      %v724 = vsel %vm334, %v693, 0
      %v727 = vsel %vm334, %v694, 0
      %v730 = vsel %vm334, %v695, 0
      %v733 = vsel %vm334, %v696, 0
      %v736 = vsel %vm334, %v697, 0
      %v739 = vsel %vm334, %v698, 0
      %v742 = vsel %vm334, %v699, 0
      %v745 = vsel %vm334, %v700, 0
      %v748 = vsel %vm334, %v701, 0
      %v751 = vsel %vm334, %v702, 0
      %vm753 = vcmask 1041408
      %v755 = vsel %vm753, %v704, 0
      %757 = vmatpush.bf16.msra.mxu0 0
      %758 = vmatpush.bf16.msra.mxu0 0
      %759 = vmatpush.bf16.msra.mxu0 0
      %760 = vmatpush.bf16.msra.mxu0 0
      %761 = vmatpush.bf16.msra.mxu0 0
      %762 = vmatpush.bf16.msra.mxu0 0
      %763 = vmatpush.bf16.msra.mxu0 0
      %764 = vmatpush.bf16.msra.mxu0 %v755
      %765 = vmatmul.bf16.gmra.mxu0 %v706
      %v766 = vpop.f32.mrf.mxu0
      %v767 = vadd.f32 0.0, %v766
      %v768 = vpop.f32.mrf.mxu0
      %v769 = vadd.f32 0.0, %v768
      %770 = vmatmul.bf16.gmra.mxu0 %v709
      %v771 = vpop.f32.mrf.mxu0
      %v772 = vadd.f32 0.0, %v771
      %v773 = vpop.f32.mrf.mxu0
      %v774 = vadd.f32 0.0, %v773
      %775 = vmatmul.bf16.gmra.mxu0 %v712
      %v776 = vpop.f32.mrf.mxu0
      %v777 = vadd.f32 0.0, %v776
      %v778 = vpop.f32.mrf.mxu0
      %v779 = vadd.f32 0.0, %v778
      %780 = vmatmul.bf16.gmra.mxu0 %v715
      %v781 = vpop.f32.mrf.mxu0
      %v782 = vadd.f32 0.0, %v781
      %v783 = vpop.f32.mrf.mxu0
      %v784 = vadd.f32 0.0, %v783
      %785 = vmatmul.bf16.gmra.mxu0 %v718
      %v786 = vpop.f32.mrf.mxu0
      %v787 = vadd.f32 0.0, %v786
      %v788 = vpop.f32.mrf.mxu0
      %v789 = vadd.f32 0.0, %v788
      %790 = vmatmul.bf16.gmra.mxu0 %v721
      %v791 = vpop.f32.mrf.mxu0
      %v792 = vadd.f32 0.0, %v791
      %v793 = vpop.f32.mrf.mxu0
      %v794 = vadd.f32 0.0, %v793
      %795 = vmatmul.bf16.gmra.mxu0 %v724
      %v796 = vpop.f32.mrf.mxu0
      %v797 = vadd.f32 0.0, %v796
      %v798 = vpop.f32.mrf.mxu0
      %v799 = vadd.f32 0.0, %v798
      %800 = vmatmul.bf16.gmra.mxu0 %v727
      %v801 = vpop.f32.mrf.mxu0
      %v802 = vadd.f32 0.0, %v801
      %v803 = vpop.f32.mrf.mxu0
      %v804 = vadd.f32 0.0, %v803
      %805 = vmatmul.bf16.gmra.mxu0 %v730
      %v806 = vpop.f32.mrf.mxu0
      %v807 = vadd.f32 0.0, %v806
      %v808 = vpop.f32.mrf.mxu0
      %v809 = vadd.f32 0.0, %v808
      %810 = vmatmul.bf16.gmra.mxu0 %v733
      %v811 = vpop.f32.mrf.mxu0
      %v812 = vadd.f32 0.0, %v811
      %v813 = vpop.f32.mrf.mxu0
      %v814 = vadd.f32 0.0, %v813
      %815 = vmatmul.bf16.gmra.mxu0 %v736
      %v816 = vpop.f32.mrf.mxu0
      %v817 = vadd.f32 0.0, %v816
      %v818 = vpop.f32.mrf.mxu0
      %v819 = vadd.f32 0.0, %v818
      %820 = vmatmul.bf16.gmra.mxu0 %v739
      %v821 = vpop.f32.mrf.mxu0
      %v822 = vadd.f32 0.0, %v821
      %v823 = vpop.f32.mrf.mxu0
      %v824 = vadd.f32 0.0, %v823
      %825 = vmatmul.bf16.gmra.mxu0 %v742
      %v826 = vpop.f32.mrf.mxu0
      %v827 = vadd.f32 0.0, %v826
      %v828 = vpop.f32.mrf.mxu0
      %v829 = vadd.f32 0.0, %v828
      %830 = vmatmul.bf16.gmra.mxu0 %v745
      %v831 = vpop.f32.mrf.mxu0
      %v832 = vadd.f32 0.0, %v831
      %v833 = vpop.f32.mrf.mxu0
      %v834 = vadd.f32 0.0, %v833
      %835 = vmatmul.bf16.gmra.mxu0 %v748
      %v836 = vpop.f32.mrf.mxu0
      %v837 = vadd.f32 0.0, %v836
      %v838 = vpop.f32.mrf.mxu0
      %v839 = vadd.f32 0.0, %v838
      %840 = vmatmul.bf16.gmra.mxu0 %v751
      %v841 = vpop.f32.mrf.mxu0
      %v842 = vadd.f32 0.0, %v841
      %v843 = vpop.f32.mrf.mxu0
      %v844 = vadd.f32 0.0, %v843
      %845 = vdwg.mxu0
      %v847 = vsel %vm334, %v509, 0
      %v850 = vsel %vm334, %v510, 0
      %v853 = vsel %vm334, %v511, 0
      %v856 = vsel %vm334, %v512, 0
      %v859 = vsel %vm334, %v513, 0
      %v862 = vsel %vm334, %v514, 0
      %v865 = vsel %vm334, %v515, 0
      %v868 = vsel %vm334, %v516, 0
      %v871 = vsel %vm334, %v517, 0
      %v874 = vsel %vm334, %v518, 0
      %v877 = vsel %vm334, %v519, 0
      %v880 = vsel %vm334, %v520, 0
      %v883 = vsel %vm334, %v521, 0
      %v886 = vsel %vm334, %v522, 0
      %v889 = vsel %vm334, %v523, 0
      %v892 = vsel %vm334, %v524, 0
      %v895 = vsel %vm753, %v525, 0
      %897 = vmatpush.bf16.msra.mxu0 0
      %898 = vmatpush.bf16.msra.mxu0 0
      %899 = vmatpush.bf16.msra.mxu0 0
      %900 = vmatpush.bf16.msra.mxu0 0
      %901 = vmatpush.bf16.msra.mxu0 0
      %902 = vmatpush.bf16.msra.mxu0 0
      %903 = vmatpush.bf16.msra.mxu0 0
      %904 = vmatpush.bf16.msra.mxu0 %v895
      %905 = vmatmul.bf16.gmra.mxu0 %v847
      %v906 = vpop.f32.mrf.mxu0
      %v907 = vadd.f32 %v767, %v906
      %v908 = vpop.f32.mrf.mxu0
      %v909 = vadd.f32 %v769, %v908
      %910 = vmatmul.bf16.gmra.mxu0 %v850
      %v911 = vpop.f32.mrf.mxu0
      %v912 = vadd.f32 %v772, %v911
      %v913 = vpop.f32.mrf.mxu0
      %v914 = vadd.f32 %v774, %v913
      %915 = vmatmul.bf16.gmra.mxu0 %v853
      %v916 = vpop.f32.mrf.mxu0
      %v917 = vadd.f32 %v777, %v916
      %v918 = vpop.f32.mrf.mxu0
      %v919 = vadd.f32 %v779, %v918
      %920 = vmatmul.bf16.gmra.mxu0 %v856
      %v921 = vpop.f32.mrf.mxu0
      %v922 = vadd.f32 %v782, %v921
      %v923 = vpop.f32.mrf.mxu0
      %v924 = vadd.f32 %v784, %v923
      %925 = vmatmul.bf16.gmra.mxu0 %v859
      %v926 = vpop.f32.mrf.mxu0
      %v927 = vadd.f32 %v787, %v926
      %v928 = vpop.f32.mrf.mxu0
      %v929 = vadd.f32 %v789, %v928
      %930 = vmatmul.bf16.gmra.mxu0 %v862
      %v931 = vpop.f32.mrf.mxu0
      %v932 = vadd.f32 %v792, %v931
      %v933 = vpop.f32.mrf.mxu0
      %v934 = vadd.f32 %v794, %v933
      %935 = vmatmul.bf16.gmra.mxu0 %v865
      %v936 = vpop.f32.mrf.mxu0
      %v937 = vadd.f32 %v797, %v936
      %v938 = vpop.f32.mrf.mxu0
      %v939 = vadd.f32 %v799, %v938
      %940 = vmatmul.bf16.gmra.mxu0 %v868
      %v941 = vpop.f32.mrf.mxu0
      %v942 = vadd.f32 %v802, %v941
      %v943 = vpop.f32.mrf.mxu0
      %v944 = vadd.f32 %v804, %v943
      %945 = vmatmul.bf16.gmra.mxu0 %v871
      %v946 = vpop.f32.mrf.mxu0
      %v947 = vadd.f32 %v807, %v946
      %v948 = vpop.f32.mrf.mxu0
      %v949 = vadd.f32 %v809, %v948
      %950 = vmatmul.bf16.gmra.mxu0 %v874
      %v951 = vpop.f32.mrf.mxu0
      %v952 = vadd.f32 %v812, %v951
      %v953 = vpop.f32.mrf.mxu0
      %v954 = vadd.f32 %v814, %v953
      %955 = vmatmul.bf16.gmra.mxu0 %v877
      %v956 = vpop.f32.mrf.mxu0
      %v957 = vadd.f32 %v817, %v956
      %v958 = vpop.f32.mrf.mxu0
      %v959 = vadd.f32 %v819, %v958
      %960 = vmatmul.bf16.gmra.mxu0 %v880
      %v961 = vpop.f32.mrf.mxu0
      %v962 = vadd.f32 %v822, %v961
      %v963 = vpop.f32.mrf.mxu0
      %v964 = vadd.f32 %v824, %v963
      %965 = vmatmul.bf16.gmra.mxu0 %v883
      %v966 = vpop.f32.mrf.mxu0
      %v967 = vadd.f32 %v827, %v966
      %v968 = vpop.f32.mrf.mxu0
      %v969 = vadd.f32 %v829, %v968
      %970 = vmatmul.bf16.gmra.mxu0 %v886
      %v971 = vpop.f32.mrf.mxu0
      %v972 = vadd.f32 %v832, %v971
      %v973 = vpop.f32.mrf.mxu0
      %v974 = vadd.f32 %v834, %v973
      %975 = vmatmul.bf16.gmra.mxu0 %v889
      %v976 = vpop.f32.mrf.mxu0
      %v977 = vadd.f32 %v837, %v976
      %v978 = vpop.f32.mrf.mxu0
      %v979 = vadd.f32 %v839, %v978
      %980 = vmatmul.bf16.gmra.mxu0 %v892
      %v981 = vpop.f32.mrf.mxu0
      %v982 = vadd.f32 %v842, %v981
      %v983 = vpop.f32.mrf.mxu0
      %v984 = vadd.f32 %v844, %v983
      %985 = vdwg.mxu0
      %vm986 = vcmask 1045504
      %v987 = vrot.slane %v455, 2
      %v988 = vrot.slane %v456, 2
      %v989 = vsel %vm986, %v987, %v988
      %v990 = vrot.slane %v457, 2
      %v991 = vsel %vm986, %v988, %v990
      %v992 = vrot.slane %v458, 2
      %v993 = vrot.slane %v459, 2
      %v994 = vsel %vm986, %v992, %v993
      %v995 = vrot.slane %v460, 2
      %v996 = vsel %vm986, %v993, %v995
      %v997 = vrot.slane %v461, 2
      %v998 = vrot.slane %v462, 2
      %v999 = vsel %vm986, %v997, %v998
      %v1000 = vrot.slane %v463, 2
      %v1001 = vsel %vm986, %v998, %v1000
      %v1002 = vrot.slane %v464, 2
      %v1003 = vrot.slane %v465, 2
      %v1004 = vsel %vm986, %v1002, %v1003
      %v1005 = vrot.slane %v466, 2
      %v1006 = vsel %vm986, %v1003, %v1005
      %v1007 = vrot.slane %v467, 2
      %v1008 = vrot.slane %v468, 2
      %v1009 = vsel %vm986, %v1007, %v1008
      %v1010 = vrot.slane %v469, 2
      %v1011 = vsel %vm986, %v1008, %v1010
      %v1012 = vrot.slane %v470, 2
      %v1013 = vrot.slane %v471, 2
      %v1014 = vsel %vm986, %v1012, %v1013
      %v1015 = vrot.slane %v472, 2
      %v1016 = vsel %vm986, %v1013, %v1015
      %v1017 = vrot.slane %v473, 2
      %v1018 = vrot.slane %v474, 2
      %v1019 = vsel %vm986, %v1017, %v1018
      %v1020 = vrot.slane %v475, 2
      %v1021 = vsel %vm986, %v1018, %v1020
      %v1022 = vrot.slane %v476, 2
      %v1023 = vrot.slane %v477, 2
      %v1024 = vsel %vm986, %v1022, %v1023
      %v1025 = vrot.slane %v478, 2
      %v1026 = vsel %vm986, %v1023, %v1025
      %v1027 = vrot.slane %v479, 2
      %v1028 = vrot.slane %v480, 2
      %v1029 = vsel %vm986, %v1027, %v1028
      %v1030 = vrot.slane %v481, 2
      %v1031 = vsel %vm986, %v1028, %v1030
      %v1032 = vrot.slane %v482, 2
      %v1033 = vrot.slane %v483, 2
      %v1034 = vsel %vm986, %v1032, %v1033
      %v1035 = vrot.slane %v484, 2
      %v1036 = vsel %vm986, %v1033, %v1035
      %v1037 = vrot.slane %v485, 2
      %v1038 = vrot.slane %v486, 2
      %v1039 = vsel %vm986, %v1037, %v1038
      %v1040 = vrot.slane %v487, 2
      %v1041 = vsel %vm986, %v1038, %v1040
      %v1042 = vrot.slane %v488, 2
      %v1043 = vrot.slane %v489, 2
      %v1044 = vsel %vm986, %v1042, %v1043
      %v1045 = vrot.slane %v490, 2
      %v1046 = vsel %vm986, %v1043, %v1045
      %v1047 = vrot.slane %v491, 2
      %v1048 = vrot.slane %v492, 2
      %v1049 = vsel %vm986, %v1047, %v1048
      %v1050 = vrot.slane %v493, 2
      %v1051 = vsel %vm986, %v1048, %v1050
      %v1052 = vrot.slane %v494, 2
      %v1053 = vrot.slane %v495, 2
      %v1054 = vsel %vm986, %v1052, %v1053
      %v1055 = vrot.slane %v496, 2
      %v1056 = vsel %vm986, %v1053, %v1055
      %v1057 = vrot.slane %v497, 2
      %v1058 = vrot.slane %v498, 2
      %v1059 = vsel %vm986, %v1057, %v1058
      %v1060 = vrot.slane %v499, 2
      %v1061 = vsel %vm986, %v1058, %v1060
      %v1062 = vrot.slane %v500, 2
      %v1063 = vrot.slane %v501, 2
      %v1064 = vsel %vm986, %v1062, %v1063
      %v1065 = vrot.slane %v502, 2
      %v1066 = vsel %vm986, %v1063, %v1065
      %v1099 = vpack.c.bf16 %v991, %v989
      %v1100 = vpack.c.bf16 %v996, %v994
      %v1101 = vpack.c.bf16 %v1001, %v999
      %v1102 = vpack.c.bf16 %v1006, %v1004
      %v1103 = vpack.c.bf16 %v1011, %v1009
      %v1104 = vpack.c.bf16 %v1016, %v1014
      %v1105 = vpack.c.bf16 %v1021, %v1019
      %v1106 = vpack.c.bf16 %v1026, %v1024
      %v1107 = vpack.c.bf16 %v1031, %v1029
      %v1108 = vpack.c.bf16 %v1036, %v1034
      %v1109 = vpack.c.bf16 %v1041, %v1039
      %v1110 = vpack.c.bf16 %v1046, %v1044
      %v1111 = vpack.c.bf16 %v1051, %v1049
      %v1112 = vpack.c.bf16 %v1056, %v1054
      %v1113 = vpack.c.bf16 %v1061, %v1059
      %v1114 = vpack.c.bf16 %v1066, %v1064
      %s1115 = scalar_lea.vmem %s1, 4
      %v1116 = vld [vmem:[%s1115] sm:$0x3]
      %v1118 = vsel %vm334, %v1099, 0
      %v1121 = vsel %vm334, %v1100, 0
      %v1124 = vsel %vm334, %v1101, 0
      %v1127 = vsel %vm334, %v1102, 0
      %v1130 = vsel %vm334, %v1103, 0
      %v1133 = vsel %vm334, %v1104, 0
      %v1136 = vsel %vm334, %v1105, 0
      %v1139 = vsel %vm334, %v1106, 0
      %v1142 = vsel %vm334, %v1107, 0
      %v1145 = vsel %vm334, %v1108, 0
      %v1148 = vsel %vm334, %v1109, 0
      %v1151 = vsel %vm334, %v1110, 0
      %v1154 = vsel %vm334, %v1111, 0
      %v1157 = vsel %vm334, %v1112, 0
      %v1160 = vsel %vm334, %v1113, 0
      %v1163 = vsel %vm334, %v1114, 0
      %v1166 = vsel %vm753, %v1116, 0
      %1168 = vmatpush.bf16.msra.mxu0 0
      %1169 = vmatpush.bf16.msra.mxu0 0
      %1170 = vmatpush.bf16.msra.mxu0 0
      %1171 = vmatpush.bf16.msra.mxu0 0
      %1172 = vmatpush.bf16.msra.mxu0 0
      %1173 = vmatpush.bf16.msra.mxu0 0
      %1174 = vmatpush.bf16.msra.mxu0 0
      %1175 = vmatpush.bf16.msra.mxu0 %v1166
      %1176 = vmatmul.bf16.gmra.mxu0 %v1118
      %v1177 = vpop.f32.mrf.mxu0
      %v1178 = vadd.f32 0.0, %v1177
      %v1179 = vpop.f32.mrf.mxu0
      %v1180 = vadd.f32 0.0, %v1179
      %1181 = vmatmul.bf16.gmra.mxu0 %v1121
      %v1182 = vpop.f32.mrf.mxu0
      %v1183 = vadd.f32 0.0, %v1182
      %v1184 = vpop.f32.mrf.mxu0
      %v1185 = vadd.f32 0.0, %v1184
      %1186 = vmatmul.bf16.gmra.mxu0 %v1124
      %v1187 = vpop.f32.mrf.mxu0
      %v1188 = vadd.f32 0.0, %v1187
      %v1189 = vpop.f32.mrf.mxu0
      %v1190 = vadd.f32 0.0, %v1189
      %1191 = vmatmul.bf16.gmra.mxu0 %v1127
      %v1192 = vpop.f32.mrf.mxu0
      %v1193 = vadd.f32 0.0, %v1192
      %v1194 = vpop.f32.mrf.mxu0
      %v1195 = vadd.f32 0.0, %v1194
      %1196 = vmatmul.bf16.gmra.mxu0 %v1130
      %v1197 = vpop.f32.mrf.mxu0
      %v1198 = vadd.f32 0.0, %v1197
      %v1199 = vpop.f32.mrf.mxu0
      %v1200 = vadd.f32 0.0, %v1199
      %1201 = vmatmul.bf16.gmra.mxu0 %v1133
      %v1202 = vpop.f32.mrf.mxu0
      %v1203 = vadd.f32 0.0, %v1202
      %v1204 = vpop.f32.mrf.mxu0
      %v1205 = vadd.f32 0.0, %v1204
      %1206 = vmatmul.bf16.gmra.mxu0 %v1136
      %v1207 = vpop.f32.mrf.mxu0
      %v1208 = vadd.f32 0.0, %v1207
      %v1209 = vpop.f32.mrf.mxu0
      %v1210 = vadd.f32 0.0, %v1209
      %1211 = vmatmul.bf16.gmra.mxu0 %v1139
      %v1212 = vpop.f32.mrf.mxu0
      %v1213 = vadd.f32 0.0, %v1212
      %v1214 = vpop.f32.mrf.mxu0
      %v1215 = vadd.f32 0.0, %v1214
      %1216 = vmatmul.bf16.gmra.mxu0 %v1142
      %v1217 = vpop.f32.mrf.mxu0
      %v1218 = vadd.f32 0.0, %v1217
      %v1219 = vpop.f32.mrf.mxu0
      %v1220 = vadd.f32 0.0, %v1219
      %1221 = vmatmul.bf16.gmra.mxu0 %v1145
      %v1222 = vpop.f32.mrf.mxu0
      %v1223 = vadd.f32 0.0, %v1222
      %v1224 = vpop.f32.mrf.mxu0
      %v1225 = vadd.f32 0.0, %v1224
      %1226 = vmatmul.bf16.gmra.mxu0 %v1148
      %v1227 = vpop.f32.mrf.mxu0
      %v1228 = vadd.f32 0.0, %v1227
      %v1229 = vpop.f32.mrf.mxu0
      %v1230 = vadd.f32 0.0, %v1229
      %1231 = vmatmul.bf16.gmra.mxu0 %v1151
      %v1232 = vpop.f32.mrf.mxu0
      %v1233 = vadd.f32 0.0, %v1232
      %v1234 = vpop.f32.mrf.mxu0
      %v1235 = vadd.f32 0.0, %v1234
      %1236 = vmatmul.bf16.gmra.mxu0 %v1154
      %v1237 = vpop.f32.mrf.mxu0
      %v1238 = vadd.f32 0.0, %v1237
      %v1239 = vpop.f32.mrf.mxu0
      %v1240 = vadd.f32 0.0, %v1239
      %1241 = vmatmul.bf16.gmra.mxu0 %v1157
      %v1242 = vpop.f32.mrf.mxu0
      %v1243 = vadd.f32 0.0, %v1242
      %v1244 = vpop.f32.mrf.mxu0
      %v1245 = vadd.f32 0.0, %v1244
      %1246 = vmatmul.bf16.gmra.mxu0 %v1160
      %v1247 = vpop.f32.mrf.mxu0
      %v1248 = vadd.f32 0.0, %v1247
      %v1249 = vpop.f32.mrf.mxu0
      %v1250 = vadd.f32 0.0, %v1249
      %1251 = vmatmul.bf16.gmra.mxu0 %v1163
      %v1252 = vpop.f32.mrf.mxu0
      %v1253 = vadd.f32 0.0, %v1252
      %v1254 = vpop.f32.mrf.mxu0
      %v1255 = vadd.f32 0.0, %v1254
      %1256 = vdwg.mxu0
      %v1257 = vadd.f32 %v907, %v1178
      %v1258 = vadd.f32 %v909, %v1180
      %v1259 = vadd.f32 %v912, %v1183
      %v1260 = vadd.f32 %v914, %v1185
      %v1261 = vadd.f32 %v917, %v1188
      %v1262 = vadd.f32 %v919, %v1190
      %v1263 = vadd.f32 %v922, %v1193
      %v1264 = vadd.f32 %v924, %v1195
      %v1265 = vadd.f32 %v927, %v1198
      %v1266 = vadd.f32 %v929, %v1200
      %v1267 = vadd.f32 %v932, %v1203
      %v1268 = vadd.f32 %v934, %v1205
      %v1269 = vadd.f32 %v937, %v1208
      %v1270 = vadd.f32 %v939, %v1210
      %v1271 = vadd.f32 %v942, %v1213
      %v1272 = vadd.f32 %v944, %v1215
      %v1273 = vadd.f32 %v947, %v1218
      %v1274 = vadd.f32 %v949, %v1220
      %v1275 = vadd.f32 %v952, %v1223
      %v1276 = vadd.f32 %v954, %v1225
      %v1277 = vadd.f32 %v957, %v1228
      %v1278 = vadd.f32 %v959, %v1230
      %v1279 = vadd.f32 %v962, %v1233
      %v1280 = vadd.f32 %v964, %v1235
      %v1281 = vadd.f32 %v967, %v1238
      %v1282 = vadd.f32 %v969, %v1240
      %v1283 = vadd.f32 %v972, %v1243
      %v1284 = vadd.f32 %v974, %v1245
      %v1285 = vadd.f32 %v977, %v1248
      %v1286 = vadd.f32 %v979, %v1250
      %v1287 = vadd.f32 %v982, %v1253
      %v1288 = vadd.f32 %v984, %v1255
      %v1289 = vpack.c.bf16 %v504, %v503
      %s1290 = scalar_lea.vmem %s1, 6
      %v1291 = vld [vmem:[%s1290] sm:$0x3]
      %v1293 = vsel %vm334, %v1289, 0
      %v1296 = vsel %vm753, %v1291, 0
      %1298 = vmatpush.bf16.msra.mxu0 0
      %1299 = vmatpush.bf16.msra.mxu0 0
      %1300 = vmatpush.bf16.msra.mxu0 0
      %1301 = vmatpush.bf16.msra.mxu0 0
      %1302 = vmatpush.bf16.msra.mxu0 0
      %1303 = vmatpush.bf16.msra.mxu0 0
      %1304 = vmatpush.bf16.msra.mxu0 0
      %1305 = vmatpush.bf16.msra.mxu0 %v1296
      %1306 = vmatmul.bf16.gmra.mxu0 %v850
      %v1307 = vpop.f32.mrf.mxu0
      %v1308 = vadd.f32 0.0, %v1307
      %v1309 = vpop.f32.mrf.mxu0
      %v1310 = vadd.f32 0.0, %v1309
      %1311 = vmatmul.bf16.gmra.mxu0 %v853
      %v1312 = vpop.f32.mrf.mxu0
      %v1313 = vadd.f32 0.0, %v1312
      %v1314 = vpop.f32.mrf.mxu0
      %v1315 = vadd.f32 0.0, %v1314
      %1316 = vmatmul.bf16.gmra.mxu0 %v856
      %v1317 = vpop.f32.mrf.mxu0
      %v1318 = vadd.f32 0.0, %v1317
      %v1319 = vpop.f32.mrf.mxu0
      %v1320 = vadd.f32 0.0, %v1319
      %1321 = vmatmul.bf16.gmra.mxu0 %v859
      %v1322 = vpop.f32.mrf.mxu0
      %v1323 = vadd.f32 0.0, %v1322
      %v1324 = vpop.f32.mrf.mxu0
      %v1325 = vadd.f32 0.0, %v1324
      %1326 = vmatmul.bf16.gmra.mxu0 %v862
      %v1327 = vpop.f32.mrf.mxu0
      %v1328 = vadd.f32 0.0, %v1327
      %v1329 = vpop.f32.mrf.mxu0
      %v1330 = vadd.f32 0.0, %v1329
      %1331 = vmatmul.bf16.gmra.mxu0 %v865
      %v1332 = vpop.f32.mrf.mxu0
      %v1333 = vadd.f32 0.0, %v1332
      %v1334 = vpop.f32.mrf.mxu0
      %v1335 = vadd.f32 0.0, %v1334
      %1336 = vmatmul.bf16.gmra.mxu0 %v868
      %v1337 = vpop.f32.mrf.mxu0
      %v1338 = vadd.f32 0.0, %v1337
      %v1339 = vpop.f32.mrf.mxu0
      %v1340 = vadd.f32 0.0, %v1339
      %1341 = vmatmul.bf16.gmra.mxu0 %v871
      %v1342 = vpop.f32.mrf.mxu0
      %v1343 = vadd.f32 0.0, %v1342
      %v1344 = vpop.f32.mrf.mxu0
      %v1345 = vadd.f32 0.0, %v1344
      %1346 = vmatmul.bf16.gmra.mxu0 %v874
      %v1347 = vpop.f32.mrf.mxu0
      %v1348 = vadd.f32 0.0, %v1347
      %v1349 = vpop.f32.mrf.mxu0
      %v1350 = vadd.f32 0.0, %v1349
      %1351 = vmatmul.bf16.gmra.mxu0 %v877
      %v1352 = vpop.f32.mrf.mxu0
      %v1353 = vadd.f32 0.0, %v1352
      %v1354 = vpop.f32.mrf.mxu0
      %v1355 = vadd.f32 0.0, %v1354
      %1356 = vmatmul.bf16.gmra.mxu0 %v880
      %v1357 = vpop.f32.mrf.mxu0
      %v1358 = vadd.f32 0.0, %v1357
      %v1359 = vpop.f32.mrf.mxu0
      %v1360 = vadd.f32 0.0, %v1359
      %1361 = vmatmul.bf16.gmra.mxu0 %v883
      %v1362 = vpop.f32.mrf.mxu0
      %v1363 = vadd.f32 0.0, %v1362
      %v1364 = vpop.f32.mrf.mxu0
      %v1365 = vadd.f32 0.0, %v1364
      %1366 = vmatmul.bf16.gmra.mxu0 %v886
      %v1367 = vpop.f32.mrf.mxu0
      %v1368 = vadd.f32 0.0, %v1367
      %v1369 = vpop.f32.mrf.mxu0
      %v1370 = vadd.f32 0.0, %v1369
      %1371 = vmatmul.bf16.gmra.mxu0 %v889
      %v1372 = vpop.f32.mrf.mxu0
      %v1373 = vadd.f32 0.0, %v1372
      %v1374 = vpop.f32.mrf.mxu0
      %v1375 = vadd.f32 0.0, %v1374
      %1376 = vmatmul.bf16.gmra.mxu0 %v892
      %v1377 = vpop.f32.mrf.mxu0
      %v1378 = vadd.f32 0.0, %v1377
      %v1379 = vpop.f32.mrf.mxu0
      %v1380 = vadd.f32 0.0, %v1379
      %1381 = vmatmul.bf16.gmra.mxu0 %v1293
      %v1382 = vpop.f32.mrf.mxu0
      %v1383 = vadd.f32 0.0, %v1382
      %v1384 = vpop.f32.mrf.mxu0
      %v1385 = vadd.f32 0.0, %v1384
      %1386 = vdwg.mxu0
      %v1387 = vadd.f32 %v1257, %v1308
      %v1388 = vadd.f32 %v1258, %v1310
      %v1389 = vadd.f32 %v1259, %v1313
      %v1390 = vadd.f32 %v1260, %v1315
      %v1391 = vadd.f32 %v1261, %v1318
      %v1392 = vadd.f32 %v1262, %v1320
      %v1393 = vadd.f32 %v1263, %v1323
      %v1394 = vadd.f32 %v1264, %v1325
      %v1395 = vadd.f32 %v1265, %v1328
      %v1396 = vadd.f32 %v1266, %v1330
      %v1397 = vadd.f32 %v1267, %v1333
      %v1398 = vadd.f32 %v1268, %v1335
      %v1399 = vadd.f32 %v1269, %v1338
      %v1400 = vadd.f32 %v1270, %v1340
      %v1401 = vadd.f32 %v1271, %v1343
      %v1402 = vadd.f32 %v1272, %v1345
      %v1403 = vadd.f32 %v1273, %v1348
      %v1404 = vadd.f32 %v1274, %v1350
      %v1405 = vadd.f32 %v1275, %v1353
      %v1406 = vadd.f32 %v1276, %v1355
      %v1407 = vadd.f32 %v1277, %v1358
      %v1408 = vadd.f32 %v1278, %v1360
      %v1409 = vadd.f32 %v1279, %v1363
      %v1410 = vadd.f32 %v1280, %v1365
      %v1411 = vadd.f32 %v1281, %v1368
      %v1412 = vadd.f32 %v1282, %v1370
      %v1413 = vadd.f32 %v1283, %v1373
      %v1414 = vadd.f32 %v1284, %v1375
      %v1415 = vadd.f32 %v1285, %v1378
      %v1416 = vadd.f32 %v1286, %v1380
      %v1417 = vadd.f32 %v1287, %v1383
      %v1418 = vadd.f32 %v1288, %v1385
      %v1422 = vrot.slane %v503, 1
      %v1423 = vrot.slane %v504, 1
      %v1424 = vsel %vm574, %v1422, %v1423
      %v1425 = vrot.slane %v505, 1
      %v1426 = vsel %vm574, %v1423, %v1425
      %v1429 = vpack.c.bf16 %v1426, %v1424
      %s1430 = scalar_lea.vmem %s1, 8
      %v1431 = vld [vmem:[%s1430] sm:$0x3]
      %v1433 = vsel %vm334, %v1429, 0
      %v1436 = vsel %vm753, %v1431, 0
      %1438 = vmatpush.bf16.msra.mxu0 0
      %1439 = vmatpush.bf16.msra.mxu0 0
      %1440 = vmatpush.bf16.msra.mxu0 0
      %1441 = vmatpush.bf16.msra.mxu0 0
      %1442 = vmatpush.bf16.msra.mxu0 0
      %1443 = vmatpush.bf16.msra.mxu0 0
      %1444 = vmatpush.bf16.msra.mxu0 0
      %1445 = vmatpush.bf16.msra.mxu0 %v1436
      %1446 = vmatmul.bf16.gmra.mxu0 %v709
      %v1447 = vpop.f32.mrf.mxu0
      %v1448 = vadd.f32 0.0, %v1447
      %v1449 = vpop.f32.mrf.mxu0
      %v1450 = vadd.f32 0.0, %v1449
      %1451 = vmatmul.bf16.gmra.mxu0 %v712
      %v1452 = vpop.f32.mrf.mxu0
      %v1453 = vadd.f32 0.0, %v1452
      %v1454 = vpop.f32.mrf.mxu0
      %v1455 = vadd.f32 0.0, %v1454
      %1456 = vmatmul.bf16.gmra.mxu0 %v715
      %v1457 = vpop.f32.mrf.mxu0
      %v1458 = vadd.f32 0.0, %v1457
      %v1459 = vpop.f32.mrf.mxu0
      %v1460 = vadd.f32 0.0, %v1459
      %1461 = vmatmul.bf16.gmra.mxu0 %v718
      %v1462 = vpop.f32.mrf.mxu0
      %v1463 = vadd.f32 0.0, %v1462
      %v1464 = vpop.f32.mrf.mxu0
      %v1465 = vadd.f32 0.0, %v1464
      %1466 = vmatmul.bf16.gmra.mxu0 %v721
      %v1467 = vpop.f32.mrf.mxu0
      %v1468 = vadd.f32 0.0, %v1467
      %v1469 = vpop.f32.mrf.mxu0
      %v1470 = vadd.f32 0.0, %v1469
      %1471 = vmatmul.bf16.gmra.mxu0 %v724
      %v1472 = vpop.f32.mrf.mxu0
      %v1473 = vadd.f32 0.0, %v1472
      %v1474 = vpop.f32.mrf.mxu0
      %v1475 = vadd.f32 0.0, %v1474
      %1476 = vmatmul.bf16.gmra.mxu0 %v727
      %v1477 = vpop.f32.mrf.mxu0
      %v1478 = vadd.f32 0.0, %v1477
      %v1479 = vpop.f32.mrf.mxu0
      %v1480 = vadd.f32 0.0, %v1479
      %1481 = vmatmul.bf16.gmra.mxu0 %v730
      %v1482 = vpop.f32.mrf.mxu0
      %v1483 = vadd.f32 0.0, %v1482
      %v1484 = vpop.f32.mrf.mxu0
      %v1485 = vadd.f32 0.0, %v1484
      %1486 = vmatmul.bf16.gmra.mxu0 %v733
      %v1487 = vpop.f32.mrf.mxu0
      %v1488 = vadd.f32 0.0, %v1487
      %v1489 = vpop.f32.mrf.mxu0
      %v1490 = vadd.f32 0.0, %v1489
      %1491 = vmatmul.bf16.gmra.mxu0 %v736
      %v1492 = vpop.f32.mrf.mxu0
      %v1493 = vadd.f32 0.0, %v1492
      %v1494 = vpop.f32.mrf.mxu0
      %v1495 = vadd.f32 0.0, %v1494
      %1496 = vmatmul.bf16.gmra.mxu0 %v739
      %v1497 = vpop.f32.mrf.mxu0
      %v1498 = vadd.f32 0.0, %v1497
      %v1499 = vpop.f32.mrf.mxu0
      %v1500 = vadd.f32 0.0, %v1499
      %1501 = vmatmul.bf16.gmra.mxu0 %v742
      %v1502 = vpop.f32.mrf.mxu0
      %v1503 = vadd.f32 0.0, %v1502
      %v1504 = vpop.f32.mrf.mxu0
      %v1505 = vadd.f32 0.0, %v1504
      %1506 = vmatmul.bf16.gmra.mxu0 %v745
      %v1507 = vpop.f32.mrf.mxu0
      %v1508 = vadd.f32 0.0, %v1507
      %v1509 = vpop.f32.mrf.mxu0
      %v1510 = vadd.f32 0.0, %v1509
      %1511 = vmatmul.bf16.gmra.mxu0 %v748
      %v1512 = vpop.f32.mrf.mxu0
      %v1513 = vadd.f32 0.0, %v1512
      %v1514 = vpop.f32.mrf.mxu0
      %v1515 = vadd.f32 0.0, %v1514
      %1516 = vmatmul.bf16.gmra.mxu0 %v751
      %v1517 = vpop.f32.mrf.mxu0
      %v1518 = vadd.f32 0.0, %v1517
      %v1519 = vpop.f32.mrf.mxu0
      %v1520 = vadd.f32 0.0, %v1519
      %1521 = vmatmul.bf16.gmra.mxu0 %v1433
      %v1522 = vpop.f32.mrf.mxu0
      %v1523 = vadd.f32 0.0, %v1522
      %v1524 = vpop.f32.mrf.mxu0
      %v1525 = vadd.f32 0.0, %v1524
      %1526 = vdwg.mxu0
      %v1527 = vadd.f32 %v1387, %v1448
      %v1528 = vadd.f32 %v1388, %v1450
      %v1529 = vadd.f32 %v1389, %v1453
      %v1530 = vadd.f32 %v1390, %v1455
      %v1531 = vadd.f32 %v1391, %v1458
      %v1532 = vadd.f32 %v1392, %v1460
      %v1533 = vadd.f32 %v1393, %v1463
      %v1534 = vadd.f32 %v1394, %v1465
      %v1535 = vadd.f32 %v1395, %v1468
      %v1536 = vadd.f32 %v1396, %v1470
      %v1537 = vadd.f32 %v1397, %v1473
      %v1538 = vadd.f32 %v1398, %v1475
      %v1539 = vadd.f32 %v1399, %v1478
      %v1540 = vadd.f32 %v1400, %v1480
      %v1541 = vadd.f32 %v1401, %v1483
      %v1542 = vadd.f32 %v1402, %v1485
      %v1543 = vadd.f32 %v1403, %v1488
      %v1544 = vadd.f32 %v1404, %v1490
      %v1545 = vadd.f32 %v1405, %v1493
      %v1546 = vadd.f32 %v1406, %v1495
      %v1547 = vadd.f32 %v1407, %v1498
      %v1548 = vadd.f32 %v1408, %v1500
      %v1549 = vadd.f32 %v1409, %v1503
      %v1550 = vadd.f32 %v1410, %v1505
      %v1551 = vadd.f32 %v1411, %v1508
      %v1552 = vadd.f32 %v1412, %v1510
      %v1553 = vadd.f32 %v1413, %v1513
      %v1554 = vadd.f32 %v1414, %v1515
      %v1555 = vadd.f32 %v1415, %v1518
      %v1556 = vadd.f32 %v1416, %v1520
      %v1557 = vadd.f32 %v1417, %v1523
      %v1558 = vadd.f32 %v1418, %v1525
      %v1559 = vrot.slane %v503, 2
      %v1560 = vrot.slane %v504, 2
      %v1561 = vsel %vm986, %v1559, %v1560
      %v1562 = vrot.slane %v505, 2
      %v1563 = vsel %vm986, %v1560, %v1562
      %v1566 = vpack.c.bf16 %v1563, %v1561
      %s1567 = scalar_lea.vmem %s1, 10
      %v1568 = vld [vmem:[%s1567] sm:$0x3]
      %v1570 = vsel %vm334, %v1566, 0
      %v1573 = vsel %vm753, %v1568, 0
      %1575 = vmatpush.bf16.msra.mxu0 0
      %1576 = vmatpush.bf16.msra.mxu0 0
      %1577 = vmatpush.bf16.msra.mxu0 0
      %1578 = vmatpush.bf16.msra.mxu0 0
      %1579 = vmatpush.bf16.msra.mxu0 0
      %1580 = vmatpush.bf16.msra.mxu0 0
      %1581 = vmatpush.bf16.msra.mxu0 0
      %1582 = vmatpush.bf16.msra.mxu0 %v1573
      %1583 = vmatmul.bf16.gmra.mxu0 %v1121
      %v1584 = vpop.f32.mrf.mxu0
      %v1585 = vadd.f32 0.0, %v1584
      %v1586 = vpop.f32.mrf.mxu0
      %v1587 = vadd.f32 0.0, %v1586
      %1588 = vmatmul.bf16.gmra.mxu0 %v1124
      %v1589 = vpop.f32.mrf.mxu0
      %v1590 = vadd.f32 0.0, %v1589
      %v1591 = vpop.f32.mrf.mxu0
      %v1592 = vadd.f32 0.0, %v1591
      %1593 = vmatmul.bf16.gmra.mxu0 %v1127
      %v1594 = vpop.f32.mrf.mxu0
      %v1595 = vadd.f32 0.0, %v1594
      %v1596 = vpop.f32.mrf.mxu0
      %v1597 = vadd.f32 0.0, %v1596
      %1598 = vmatmul.bf16.gmra.mxu0 %v1130
      %v1599 = vpop.f32.mrf.mxu0
      %v1600 = vadd.f32 0.0, %v1599
      %v1601 = vpop.f32.mrf.mxu0
      %v1602 = vadd.f32 0.0, %v1601
      %1603 = vmatmul.bf16.gmra.mxu0 %v1133
      %v1604 = vpop.f32.mrf.mxu0
      %v1605 = vadd.f32 0.0, %v1604
      %v1606 = vpop.f32.mrf.mxu0
      %v1607 = vadd.f32 0.0, %v1606
      %1608 = vmatmul.bf16.gmra.mxu0 %v1136
      %v1609 = vpop.f32.mrf.mxu0
      %v1610 = vadd.f32 0.0, %v1609
      %v1611 = vpop.f32.mrf.mxu0
      %v1612 = vadd.f32 0.0, %v1611
      %1613 = vmatmul.bf16.gmra.mxu0 %v1139
      %v1614 = vpop.f32.mrf.mxu0
      %v1615 = vadd.f32 0.0, %v1614
      %v1616 = vpop.f32.mrf.mxu0
      %v1617 = vadd.f32 0.0, %v1616
      %1618 = vmatmul.bf16.gmra.mxu0 %v1142
      %v1619 = vpop.f32.mrf.mxu0
      %v1620 = vadd.f32 0.0, %v1619
      %v1621 = vpop.f32.mrf.mxu0
      %v1622 = vadd.f32 0.0, %v1621
      %1623 = vmatmul.bf16.gmra.mxu0 %v1145
      %v1624 = vpop.f32.mrf.mxu0
      %v1625 = vadd.f32 0.0, %v1624
      %v1626 = vpop.f32.mrf.mxu0
      %v1627 = vadd.f32 0.0, %v1626
      %1628 = vmatmul.bf16.gmra.mxu0 %v1148
      %v1629 = vpop.f32.mrf.mxu0
      %v1630 = vadd.f32 0.0, %v1629
      %v1631 = vpop.f32.mrf.mxu0
      %v1632 = vadd.f32 0.0, %v1631
      %1633 = vmatmul.bf16.gmra.mxu0 %v1151
      %v1634 = vpop.f32.mrf.mxu0
      %v1635 = vadd.f32 0.0, %v1634
      %v1636 = vpop.f32.mrf.mxu0
      %v1637 = vadd.f32 0.0, %v1636
      %1638 = vmatmul.bf16.gmra.mxu0 %v1154
      %v1639 = vpop.f32.mrf.mxu0
      %v1640 = vadd.f32 0.0, %v1639
      %v1641 = vpop.f32.mrf.mxu0
      %v1642 = vadd.f32 0.0, %v1641
      %1643 = vmatmul.bf16.gmra.mxu0 %v1157
      %v1644 = vpop.f32.mrf.mxu0
      %v1645 = vadd.f32 0.0, %v1644
      %v1646 = vpop.f32.mrf.mxu0
      %v1647 = vadd.f32 0.0, %v1646
      %1648 = vmatmul.bf16.gmra.mxu0 %v1160
      %v1649 = vpop.f32.mrf.mxu0
      %v1650 = vadd.f32 0.0, %v1649
      %v1651 = vpop.f32.mrf.mxu0
      %v1652 = vadd.f32 0.0, %v1651
      %1653 = vmatmul.bf16.gmra.mxu0 %v1163
      %v1654 = vpop.f32.mrf.mxu0
      %v1655 = vadd.f32 0.0, %v1654
      %v1656 = vpop.f32.mrf.mxu0
      %v1657 = vadd.f32 0.0, %v1656
      %1658 = vmatmul.bf16.gmra.mxu0 %v1570
      %v1659 = vpop.f32.mrf.mxu0
      %v1660 = vadd.f32 0.0, %v1659
      %v1661 = vpop.f32.mrf.mxu0
      %v1662 = vadd.f32 0.0, %v1661
      %1663 = vdwg.mxu0
      %v1664 = vadd.f32 %v1527, %v1585
      %v1665 = vadd.f32 %v1528, %v1587
      %v1666 = vadd.f32 %v1529, %v1590
      %v1667 = vadd.f32 %v1530, %v1592
      %v1668 = vadd.f32 %v1531, %v1595
      %v1669 = vadd.f32 %v1532, %v1597
      %v1670 = vadd.f32 %v1533, %v1600
      %v1671 = vadd.f32 %v1534, %v1602
      %v1672 = vadd.f32 %v1535, %v1605
      %v1673 = vadd.f32 %v1536, %v1607
      %v1674 = vadd.f32 %v1537, %v1610
      %v1675 = vadd.f32 %v1538, %v1612
      %v1676 = vadd.f32 %v1539, %v1615
      %v1677 = vadd.f32 %v1540, %v1617
      %v1678 = vadd.f32 %v1541, %v1620
      %v1679 = vadd.f32 %v1542, %v1622
      %v1680 = vadd.f32 %v1543, %v1625
      %v1681 = vadd.f32 %v1544, %v1627
      %v1682 = vadd.f32 %v1545, %v1630
      %v1683 = vadd.f32 %v1546, %v1632
      %v1684 = vadd.f32 %v1547, %v1635
      %v1685 = vadd.f32 %v1548, %v1637
      %v1686 = vadd.f32 %v1549, %v1640
      %v1687 = vadd.f32 %v1550, %v1642
      %v1688 = vadd.f32 %v1551, %v1645
      %v1689 = vadd.f32 %v1552, %v1647
      %v1690 = vadd.f32 %v1553, %v1650
      %v1691 = vadd.f32 %v1554, %v1652
      %v1692 = vadd.f32 %v1555, %v1655
      %v1693 = vadd.f32 %v1556, %v1657
      %v1694 = vadd.f32 %v1557, %v1660
      %v1695 = vadd.f32 %v1558, %v1662
      %v1696 = vpack.c.bf16 %v507, %v506
      %s1697 = scalar_lea.vmem %s1, 12
      %v1698 = vld [vmem:[%s1697] sm:$0x3]
      %v1700 = vsel %vm334, %v1696, 0
      %v1703 = vsel %vm753, %v1698, 0
      %1705 = vmatpush.bf16.msra.mxu0 0
      %1706 = vmatpush.bf16.msra.mxu0 0
      %1707 = vmatpush.bf16.msra.mxu0 0
      %1708 = vmatpush.bf16.msra.mxu0 0
      %1709 = vmatpush.bf16.msra.mxu0 0
      %1710 = vmatpush.bf16.msra.mxu0 0
      %1711 = vmatpush.bf16.msra.mxu0 0
      %1712 = vmatpush.bf16.msra.mxu0 %v1703
      %1713 = vmatmul.bf16.gmra.mxu0 %v853
      %v1714 = vpop.f32.mrf.mxu0
      %v1715 = vadd.f32 0.0, %v1714
      %v1716 = vpop.f32.mrf.mxu0
      %v1717 = vadd.f32 0.0, %v1716
      %1718 = vmatmul.bf16.gmra.mxu0 %v856
      %v1719 = vpop.f32.mrf.mxu0
      %v1720 = vadd.f32 0.0, %v1719
      %v1721 = vpop.f32.mrf.mxu0
      %v1722 = vadd.f32 0.0, %v1721
      %1723 = vmatmul.bf16.gmra.mxu0 %v859
      %v1724 = vpop.f32.mrf.mxu0
      %v1725 = vadd.f32 0.0, %v1724
      %v1726 = vpop.f32.mrf.mxu0
      %v1727 = vadd.f32 0.0, %v1726
      %1728 = vmatmul.bf16.gmra.mxu0 %v862
      %v1729 = vpop.f32.mrf.mxu0
      %v1730 = vadd.f32 0.0, %v1729
      %v1731 = vpop.f32.mrf.mxu0
      %v1732 = vadd.f32 0.0, %v1731
      %1733 = vmatmul.bf16.gmra.mxu0 %v865
      %v1734 = vpop.f32.mrf.mxu0
      %v1735 = vadd.f32 0.0, %v1734
      %v1736 = vpop.f32.mrf.mxu0
      %v1737 = vadd.f32 0.0, %v1736
      %1738 = vmatmul.bf16.gmra.mxu0 %v868
      %v1739 = vpop.f32.mrf.mxu0
      %v1740 = vadd.f32 0.0, %v1739
      %v1741 = vpop.f32.mrf.mxu0
      %v1742 = vadd.f32 0.0, %v1741
      %1743 = vmatmul.bf16.gmra.mxu0 %v871
      %v1744 = vpop.f32.mrf.mxu0
      %v1745 = vadd.f32 0.0, %v1744
      %v1746 = vpop.f32.mrf.mxu0
      %v1747 = vadd.f32 0.0, %v1746
      %1748 = vmatmul.bf16.gmra.mxu0 %v874
      %v1749 = vpop.f32.mrf.mxu0
      %v1750 = vadd.f32 0.0, %v1749
      %v1751 = vpop.f32.mrf.mxu0
      %v1752 = vadd.f32 0.0, %v1751
      %1753 = vmatmul.bf16.gmra.mxu0 %v877
      %v1754 = vpop.f32.mrf.mxu0
      %v1755 = vadd.f32 0.0, %v1754
      %v1756 = vpop.f32.mrf.mxu0
      %v1757 = vadd.f32 0.0, %v1756
      %1758 = vmatmul.bf16.gmra.mxu0 %v880
      %v1759 = vpop.f32.mrf.mxu0
      %v1760 = vadd.f32 0.0, %v1759
      %v1761 = vpop.f32.mrf.mxu0
      %v1762 = vadd.f32 0.0, %v1761
      %1763 = vmatmul.bf16.gmra.mxu0 %v883
      %v1764 = vpop.f32.mrf.mxu0
      %v1765 = vadd.f32 0.0, %v1764
      %v1766 = vpop.f32.mrf.mxu0
      %v1767 = vadd.f32 0.0, %v1766
      %1768 = vmatmul.bf16.gmra.mxu0 %v886
      %v1769 = vpop.f32.mrf.mxu0
      %v1770 = vadd.f32 0.0, %v1769
      %v1771 = vpop.f32.mrf.mxu0
      %v1772 = vadd.f32 0.0, %v1771
      %1773 = vmatmul.bf16.gmra.mxu0 %v889
      %v1774 = vpop.f32.mrf.mxu0
      %v1775 = vadd.f32 0.0, %v1774
      %v1776 = vpop.f32.mrf.mxu0
      %v1777 = vadd.f32 0.0, %v1776
      %1778 = vmatmul.bf16.gmra.mxu0 %v892
      %v1779 = vpop.f32.mrf.mxu0
      %v1780 = vadd.f32 0.0, %v1779
      %v1781 = vpop.f32.mrf.mxu0
      %v1782 = vadd.f32 0.0, %v1781
      %1783 = vmatmul.bf16.gmra.mxu0 %v1293
      %v1784 = vpop.f32.mrf.mxu0
      %v1785 = vadd.f32 0.0, %v1784
      %v1786 = vpop.f32.mrf.mxu0
      %v1787 = vadd.f32 0.0, %v1786
      %1788 = vmatmul.bf16.gmra.mxu0 %v1700
      %v1789 = vpop.f32.mrf.mxu0
      %v1790 = vadd.f32 0.0, %v1789
      %v1791 = vpop.f32.mrf.mxu0
      %v1792 = vadd.f32 0.0, %v1791
      %1793 = vdwg.mxu0
      %v1794 = vadd.f32 %v1664, %v1715
      %v1795 = vadd.f32 %v1665, %v1717
      %v1796 = vadd.f32 %v1666, %v1720
      %v1797 = vadd.f32 %v1667, %v1722
      %v1798 = vadd.f32 %v1668, %v1725
      %v1799 = vadd.f32 %v1669, %v1727
      %v1800 = vadd.f32 %v1670, %v1730
      %v1801 = vadd.f32 %v1671, %v1732
      %v1802 = vadd.f32 %v1672, %v1735
      %v1803 = vadd.f32 %v1673, %v1737
      %v1804 = vadd.f32 %v1674, %v1740
      %v1805 = vadd.f32 %v1675, %v1742
      %v1806 = vadd.f32 %v1676, %v1745
      %v1807 = vadd.f32 %v1677, %v1747
      %v1808 = vadd.f32 %v1678, %v1750
      %v1809 = vadd.f32 %v1679, %v1752
      %v1810 = vadd.f32 %v1680, %v1755
      %v1811 = vadd.f32 %v1681, %v1757
      %v1812 = vadd.f32 %v1682, %v1760
      %v1813 = vadd.f32 %v1683, %v1762
      %v1814 = vadd.f32 %v1684, %v1765
      %v1815 = vadd.f32 %v1685, %v1767
      %v1816 = vadd.f32 %v1686, %v1770
      %v1817 = vadd.f32 %v1687, %v1772
      %v1818 = vadd.f32 %v1688, %v1775
      %v1819 = vadd.f32 %v1689, %v1777
      %v1820 = vadd.f32 %v1690, %v1780
      %v1821 = vadd.f32 %v1691, %v1782
      %v1822 = vadd.f32 %v1692, %v1785
      %v1823 = vadd.f32 %v1693, %v1787
      %v1824 = vadd.f32 %v1694, %v1790
      %v1825 = vadd.f32 %v1695, %v1792
      %v1829 = vrot.slane %v506, 1
      %v1830 = vrot.slane %v507, 1
      %v1831 = vsel %vm574, %v1829, %v1830
      %v1832 = vrot.slane %v508, 1
      %v1833 = vsel %vm574, %v1830, %v1832
      %v1836 = vpack.c.bf16 %v1833, %v1831
      %s1837 = scalar_lea.vmem %s1, 14
      %v1838 = vld [vmem:[%s1837] sm:$0x3]
      %v1840 = vsel %vm334, %v1836, 0
      %v1843 = vsel %vm753, %v1838, 0
      %1845 = vmatpush.bf16.msra.mxu0 0
      %1846 = vmatpush.bf16.msra.mxu0 0
      %1847 = vmatpush.bf16.msra.mxu0 0
      %1848 = vmatpush.bf16.msra.mxu0 0
      %1849 = vmatpush.bf16.msra.mxu0 0
      %1850 = vmatpush.bf16.msra.mxu0 0
      %1851 = vmatpush.bf16.msra.mxu0 0
      %1852 = vmatpush.bf16.msra.mxu0 %v1843
      %1853 = vmatmul.bf16.gmra.mxu0 %v712
      %v1854 = vpop.f32.mrf.mxu0
      %v1855 = vadd.f32 0.0, %v1854
      %v1856 = vpop.f32.mrf.mxu0
      %v1857 = vadd.f32 0.0, %v1856
      %1858 = vmatmul.bf16.gmra.mxu0 %v715
      %v1859 = vpop.f32.mrf.mxu0
      %v1860 = vadd.f32 0.0, %v1859
      %v1861 = vpop.f32.mrf.mxu0
      %v1862 = vadd.f32 0.0, %v1861
      %1863 = vmatmul.bf16.gmra.mxu0 %v718
      %v1864 = vpop.f32.mrf.mxu0
      %v1865 = vadd.f32 0.0, %v1864
      %v1866 = vpop.f32.mrf.mxu0
      %v1867 = vadd.f32 0.0, %v1866
      %1868 = vmatmul.bf16.gmra.mxu0 %v721
      %v1869 = vpop.f32.mrf.mxu0
      %v1870 = vadd.f32 0.0, %v1869
      %v1871 = vpop.f32.mrf.mxu0
      %v1872 = vadd.f32 0.0, %v1871
      %1873 = vmatmul.bf16.gmra.mxu0 %v724
      %v1874 = vpop.f32.mrf.mxu0
      %v1875 = vadd.f32 0.0, %v1874
      %v1876 = vpop.f32.mrf.mxu0
      %v1877 = vadd.f32 0.0, %v1876
      %1878 = vmatmul.bf16.gmra.mxu0 %v727
      %v1879 = vpop.f32.mrf.mxu0
      %v1880 = vadd.f32 0.0, %v1879
      %v1881 = vpop.f32.mrf.mxu0
      %v1882 = vadd.f32 0.0, %v1881
      %1883 = vmatmul.bf16.gmra.mxu0 %v730
      %v1884 = vpop.f32.mrf.mxu0
      %v1885 = vadd.f32 0.0, %v1884
      %v1886 = vpop.f32.mrf.mxu0
      %v1887 = vadd.f32 0.0, %v1886
      %1888 = vmatmul.bf16.gmra.mxu0 %v733
      %v1889 = vpop.f32.mrf.mxu0
      %v1890 = vadd.f32 0.0, %v1889
      %v1891 = vpop.f32.mrf.mxu0
      %v1892 = vadd.f32 0.0, %v1891
      %1893 = vmatmul.bf16.gmra.mxu0 %v736
      %v1894 = vpop.f32.mrf.mxu0
      %v1895 = vadd.f32 0.0, %v1894
      %v1896 = vpop.f32.mrf.mxu0
      %v1897 = vadd.f32 0.0, %v1896
      %1898 = vmatmul.bf16.gmra.mxu0 %v739
      %v1899 = vpop.f32.mrf.mxu0
      %v1900 = vadd.f32 0.0, %v1899
      %v1901 = vpop.f32.mrf.mxu0
      %v1902 = vadd.f32 0.0, %v1901
      %1903 = vmatmul.bf16.gmra.mxu0 %v742
      %v1904 = vpop.f32.mrf.mxu0
      %v1905 = vadd.f32 0.0, %v1904
      %v1906 = vpop.f32.mrf.mxu0
      %v1907 = vadd.f32 0.0, %v1906
      %1908 = vmatmul.bf16.gmra.mxu0 %v745
      %v1909 = vpop.f32.mrf.mxu0
      %v1910 = vadd.f32 0.0, %v1909
      %v1911 = vpop.f32.mrf.mxu0
      %v1912 = vadd.f32 0.0, %v1911
      %1913 = vmatmul.bf16.gmra.mxu0 %v748
      %v1914 = vpop.f32.mrf.mxu0
      %v1915 = vadd.f32 0.0, %v1914
      %v1916 = vpop.f32.mrf.mxu0
      %v1917 = vadd.f32 0.0, %v1916
      %1918 = vmatmul.bf16.gmra.mxu0 %v751
      %v1919 = vpop.f32.mrf.mxu0
      %v1920 = vadd.f32 0.0, %v1919
      %v1921 = vpop.f32.mrf.mxu0
      %v1922 = vadd.f32 0.0, %v1921
      %1923 = vmatmul.bf16.gmra.mxu0 %v1433
      %v1924 = vpop.f32.mrf.mxu0
      %v1925 = vadd.f32 0.0, %v1924
      %v1926 = vpop.f32.mrf.mxu0
      %v1927 = vadd.f32 0.0, %v1926
      %1928 = vmatmul.bf16.gmra.mxu0 %v1840
      %v1929 = vpop.f32.mrf.mxu0
      %v1930 = vadd.f32 0.0, %v1929
      %v1931 = vpop.f32.mrf.mxu0
      %v1932 = vadd.f32 0.0, %v1931
      %1933 = vdwg.mxu0
      %v1934 = vadd.f32 %v1794, %v1855
      %v1935 = vadd.f32 %v1795, %v1857
      %v1936 = vadd.f32 %v1796, %v1860
      %v1937 = vadd.f32 %v1797, %v1862
      %v1938 = vadd.f32 %v1798, %v1865
      %v1939 = vadd.f32 %v1799, %v1867
      %v1940 = vadd.f32 %v1800, %v1870
      %v1941 = vadd.f32 %v1801, %v1872
      %v1942 = vadd.f32 %v1802, %v1875
      %v1943 = vadd.f32 %v1803, %v1877
      %v1944 = vadd.f32 %v1804, %v1880
      %v1945 = vadd.f32 %v1805, %v1882
      %v1946 = vadd.f32 %v1806, %v1885
      %v1947 = vadd.f32 %v1807, %v1887
      %v1948 = vadd.f32 %v1808, %v1890
      %v1949 = vadd.f32 %v1809, %v1892
      %v1950 = vadd.f32 %v1810, %v1895
      %v1951 = vadd.f32 %v1811, %v1897
      %v1952 = vadd.f32 %v1812, %v1900
      %v1953 = vadd.f32 %v1813, %v1902
      %v1954 = vadd.f32 %v1814, %v1905
      %v1955 = vadd.f32 %v1815, %v1907
      %v1956 = vadd.f32 %v1816, %v1910
      %v1957 = vadd.f32 %v1817, %v1912
      %v1958 = vadd.f32 %v1818, %v1915
      %v1959 = vadd.f32 %v1819, %v1917
      %v1960 = vadd.f32 %v1820, %v1920
      %v1961 = vadd.f32 %v1821, %v1922
      %v1962 = vadd.f32 %v1822, %v1925
      %v1963 = vadd.f32 %v1823, %v1927
      %v1964 = vadd.f32 %v1824, %v1930
      %v1965 = vadd.f32 %v1825, %v1932
      %v1966 = vrot.slane %v506, 2
      %v1967 = vrot.slane %v507, 2
      %v1968 = vsel %vm986, %v1966, %v1967
      %v1969 = vrot.slane %v508, 2
      %v1970 = vsel %vm986, %v1967, %v1969
      %v1973 = vpack.c.bf16 %v1970, %v1968
      %s1974 = scalar_lea.vmem %s1, 16
      %v1975 = vld [vmem:[%s1974] sm:$0x3]
      %v1977 = vsel %vm334, %v1973, 0
      %v1980 = vsel %vm753, %v1975, 0
      %1982 = vmatpush.bf16.msra.mxu0 0
      %1983 = vmatpush.bf16.msra.mxu0 0
      %1984 = vmatpush.bf16.msra.mxu0 0
      %1985 = vmatpush.bf16.msra.mxu0 0
      %1986 = vmatpush.bf16.msra.mxu0 0
      %1987 = vmatpush.bf16.msra.mxu0 0
      %1988 = vmatpush.bf16.msra.mxu0 0
      %1989 = vmatpush.bf16.msra.mxu0 %v1980
      %1990 = vmatmul.bf16.gmra.mxu0 %v1124
      %v1991 = vpop.f32.mrf.mxu0
      %v1992 = vadd.f32 0.0, %v1991
      %v1993 = vpop.f32.mrf.mxu0
      %v1994 = vadd.f32 0.0, %v1993
      %1995 = vmatmul.bf16.gmra.mxu0 %v1127
      %v1996 = vpop.f32.mrf.mxu0
      %v1997 = vadd.f32 0.0, %v1996
      %v1998 = vpop.f32.mrf.mxu0
      %v1999 = vadd.f32 0.0, %v1998
      %2000 = vmatmul.bf16.gmra.mxu0 %v1130
      %v2001 = vpop.f32.mrf.mxu0
      %v2002 = vadd.f32 0.0, %v2001
      %v2003 = vpop.f32.mrf.mxu0
      %v2004 = vadd.f32 0.0, %v2003
      %2005 = vmatmul.bf16.gmra.mxu0 %v1133
      %v2006 = vpop.f32.mrf.mxu0
      %v2007 = vadd.f32 0.0, %v2006
      %v2008 = vpop.f32.mrf.mxu0
      %v2009 = vadd.f32 0.0, %v2008
      %2010 = vmatmul.bf16.gmra.mxu0 %v1136
      %v2011 = vpop.f32.mrf.mxu0
      %v2012 = vadd.f32 0.0, %v2011
      %v2013 = vpop.f32.mrf.mxu0
      %v2014 = vadd.f32 0.0, %v2013
      %2015 = vmatmul.bf16.gmra.mxu0 %v1139
      %v2016 = vpop.f32.mrf.mxu0
      %v2017 = vadd.f32 0.0, %v2016
      %v2018 = vpop.f32.mrf.mxu0
      %v2019 = vadd.f32 0.0, %v2018
      %2020 = vmatmul.bf16.gmra.mxu0 %v1142
      %v2021 = vpop.f32.mrf.mxu0
      %v2022 = vadd.f32 0.0, %v2021
      %v2023 = vpop.f32.mrf.mxu0
      %v2024 = vadd.f32 0.0, %v2023
      %2025 = vmatmul.bf16.gmra.mxu0 %v1145
      %v2026 = vpop.f32.mrf.mxu0
      %v2027 = vadd.f32 0.0, %v2026
      %v2028 = vpop.f32.mrf.mxu0
      %v2029 = vadd.f32 0.0, %v2028
      %2030 = vmatmul.bf16.gmra.mxu0 %v1148
      %v2031 = vpop.f32.mrf.mxu0
      %v2032 = vadd.f32 0.0, %v2031
      %v2033 = vpop.f32.mrf.mxu0
      %v2034 = vadd.f32 0.0, %v2033
      %2035 = vmatmul.bf16.gmra.mxu0 %v1151
      %v2036 = vpop.f32.mrf.mxu0
      %v2037 = vadd.f32 0.0, %v2036
      %v2038 = vpop.f32.mrf.mxu0
      %v2039 = vadd.f32 0.0, %v2038
      %2040 = vmatmul.bf16.gmra.mxu0 %v1154
      %v2041 = vpop.f32.mrf.mxu0
      %v2042 = vadd.f32 0.0, %v2041
      %v2043 = vpop.f32.mrf.mxu0
      %v2044 = vadd.f32 0.0, %v2043
      %2045 = vmatmul.bf16.gmra.mxu0 %v1157
      %v2046 = vpop.f32.mrf.mxu0
      %v2047 = vadd.f32 0.0, %v2046
      %v2048 = vpop.f32.mrf.mxu0
      %v2049 = vadd.f32 0.0, %v2048
      %2050 = vmatmul.bf16.gmra.mxu0 %v1160
      %v2051 = vpop.f32.mrf.mxu0
      %v2052 = vadd.f32 0.0, %v2051
      %v2053 = vpop.f32.mrf.mxu0
      %v2054 = vadd.f32 0.0, %v2053
      %2055 = vmatmul.bf16.gmra.mxu0 %v1163
      %v2056 = vpop.f32.mrf.mxu0
      %v2057 = vadd.f32 0.0, %v2056
      %v2058 = vpop.f32.mrf.mxu0
      %v2059 = vadd.f32 0.0, %v2058
      %2060 = vmatmul.bf16.gmra.mxu0 %v1570
      %v2061 = vpop.f32.mrf.mxu0
      %v2062 = vadd.f32 0.0, %v2061
      %v2063 = vpop.f32.mrf.mxu0
      %v2064 = vadd.f32 0.0, %v2063
      %2065 = vmatmul.bf16.gmra.mxu0 %v1977
      %v2066 = vpop.f32.mrf.mxu0
      %v2067 = vadd.f32 0.0, %v2066
      %v2068 = vpop.f32.mrf.mxu0
      %v2069 = vadd.f32 0.0, %v2068
      %2070 = vdwg.mxu0
      %v2071 = vadd.f32 %v1934, %v1992
      %v2072 = vadd.f32 %v1935, %v1994
      %v2073 = vadd.f32 %v1936, %v1997
      %v2074 = vadd.f32 %v1937, %v1999
      %v2075 = vadd.f32 %v1938, %v2002
      %v2076 = vadd.f32 %v1939, %v2004
      %v2077 = vadd.f32 %v1940, %v2007
      %v2078 = vadd.f32 %v1941, %v2009
      %v2079 = vadd.f32 %v1942, %v2012
      %v2080 = vadd.f32 %v1943, %v2014
      %v2081 = vadd.f32 %v1944, %v2017
      %v2082 = vadd.f32 %v1945, %v2019
      %v2083 = vadd.f32 %v1946, %v2022
      %v2084 = vadd.f32 %v1947, %v2024
      %v2085 = vadd.f32 %v1948, %v2027
      %v2086 = vadd.f32 %v1949, %v2029
      %v2087 = vadd.f32 %v1950, %v2032
      %v2088 = vadd.f32 %v1951, %v2034
      %v2089 = vadd.f32 %v1952, %v2037
      %v2090 = vadd.f32 %v1953, %v2039
      %v2091 = vadd.f32 %v1954, %v2042
      %v2092 = vadd.f32 %v1955, %v2044
      %v2093 = vadd.f32 %v1956, %v2047
      %v2094 = vadd.f32 %v1957, %v2049
      %v2095 = vadd.f32 %v1958, %v2052
      %v2096 = vadd.f32 %v1959, %v2054
      %v2097 = vadd.f32 %v1960, %v2057
      %v2098 = vadd.f32 %v1961, %v2059
      %v2099 = vadd.f32 %v1962, %v2062
      %v2100 = vadd.f32 %v1963, %v2064
      %v2101 = vadd.f32 %v1964, %v2067
      %v2102 = vadd.f32 %v1965, %v2069
      %v2103 = vld [vmem:[%s2] sm:$0x1]
      %v2105 = vperm.slane %v2103, 0
      %v2107 = vmul.f32 %v2071, %v2105
      %v2108 = vmul.f32 %v2072, %v2105
      %v2109 = vmul.f32 %v2073, %v2105
      %v2110 = vmul.f32 %v2074, %v2105
      %v2111 = vmul.f32 %v2075, %v2105
      %v2112 = vmul.f32 %v2076, %v2105
      %v2113 = vmul.f32 %v2077, %v2105
      %v2114 = vmul.f32 %v2078, %v2105
      %v2115 = vmul.f32 %v2079, %v2105
      %v2116 = vmul.f32 %v2080, %v2105
      %v2117 = vmul.f32 %v2081, %v2105
      %v2118 = vmul.f32 %v2082, %v2105
      %v2119 = vmul.f32 %v2083, %v2105
      %v2120 = vmul.f32 %v2084, %v2105
      %v2121 = vmul.f32 %v2085, %v2105
      %v2122 = vmul.f32 %v2086, %v2105
      %v2123 = vmul.f32 %v2087, %v2105
      %v2124 = vmul.f32 %v2088, %v2105
      %v2125 = vmul.f32 %v2089, %v2105
      %v2126 = vmul.f32 %v2090, %v2105
      %v2127 = vmul.f32 %v2091, %v2105
      %v2128 = vmul.f32 %v2092, %v2105
      %v2129 = vmul.f32 %v2093, %v2105
      %v2130 = vmul.f32 %v2094, %v2105
      %v2131 = vmul.f32 %v2095, %v2105
      %v2132 = vmul.f32 %v2096, %v2105
      %v2133 = vmul.f32 %v2097, %v2105
      %v2134 = vmul.f32 %v2098, %v2105
      %v2135 = vmul.f32 %v2099, %v2105
      %v2136 = vmul.f32 %v2100, %v2105
      %v2137 = vmul.f32 %v2101, %v2105
      %v2138 = vmul.f32 %v2102, %v2105
      %v2139 = vld [vmem:[%s3] sm:$0x1]
      %v2141 = vperm.slane %v2139, 0
      %v2143 = vadd.f32 %v2107, %v2141
      %v2144 = vadd.f32 %v2108, %v2141
      %v2145 = vadd.f32 %v2109, %v2141
      %v2146 = vadd.f32 %v2110, %v2141
      %v2147 = vadd.f32 %v2111, %v2141
      %v2148 = vadd.f32 %v2112, %v2141
      %v2149 = vadd.f32 %v2113, %v2141
      %v2150 = vadd.f32 %v2114, %v2141
      %v2151 = vadd.f32 %v2115, %v2141
      %v2152 = vadd.f32 %v2116, %v2141
      %v2153 = vadd.f32 %v2117, %v2141
      %v2154 = vadd.f32 %v2118, %v2141
      %v2155 = vadd.f32 %v2119, %v2141
      %v2156 = vadd.f32 %v2120, %v2141
      %v2157 = vadd.f32 %v2121, %v2141
      %v2158 = vadd.f32 %v2122, %v2141
      %v2159 = vadd.f32 %v2123, %v2141
      %v2160 = vadd.f32 %v2124, %v2141
      %v2161 = vadd.f32 %v2125, %v2141
      %v2162 = vadd.f32 %v2126, %v2141
      %v2163 = vadd.f32 %v2127, %v2141
      %v2164 = vadd.f32 %v2128, %v2141
      %v2165 = vadd.f32 %v2129, %v2141
      %v2166 = vadd.f32 %v2130, %v2141
      %v2167 = vadd.f32 %v2131, %v2141
      %v2168 = vadd.f32 %v2132, %v2141
      %v2169 = vadd.f32 %v2133, %v2141
      %v2170 = vadd.f32 %v2134, %v2141
      %v2171 = vadd.f32 %v2135, %v2141
      %v2172 = vadd.f32 %v2136, %v2141
      %v2173 = vadd.f32 %v2137, %v2141
      %v2174 = vadd.f32 %v2138, %v2141
      %v2175 = vmax.f32 %v2143, 0.0
      %v2176 = vmax.f32 %v2144, 0.0
      %v2177 = vmax.f32 %v2145, 0.0
      %v2178 = vmax.f32 %v2146, 0.0
      %v2179 = vmax.f32 %v2147, 0.0
      %v2180 = vmax.f32 %v2148, 0.0
      %v2181 = vmax.f32 %v2149, 0.0
      %v2182 = vmax.f32 %v2150, 0.0
      %v2183 = vmax.f32 %v2151, 0.0
      %v2184 = vmax.f32 %v2152, 0.0
      %v2185 = vmax.f32 %v2153, 0.0
      %v2186 = vmax.f32 %v2154, 0.0
      %v2187 = vmax.f32 %v2155, 0.0
      %v2188 = vmax.f32 %v2156, 0.0
      %v2189 = vmax.f32 %v2157, 0.0
      %v2190 = vmax.f32 %v2158, 0.0
      %v2191 = vmax.f32 %v2159, 0.0
      %v2192 = vmax.f32 %v2160, 0.0
      %v2193 = vmax.f32 %v2161, 0.0
      %v2194 = vmax.f32 %v2162, 0.0
      %v2195 = vmax.f32 %v2163, 0.0
      %v2196 = vmax.f32 %v2164, 0.0
      %v2197 = vmax.f32 %v2165, 0.0
      %v2198 = vmax.f32 %v2166, 0.0
      %v2199 = vmax.f32 %v2167, 0.0
      %v2200 = vmax.f32 %v2168, 0.0
      %v2201 = vmax.f32 %v2169, 0.0
      %v2202 = vmax.f32 %v2170, 0.0
      %v2203 = vmax.f32 %v2171, 0.0
      %v2204 = vmax.f32 %v2172, 0.0
      %v2205 = vmax.f32 %v2173, 0.0
      %v2206 = vmax.f32 %v2174, 0.0
      %vm2207 = vcmask 64512
      %2208 = vst.msk [vmem:[#allocation3] sm:$0xff] %vm2207, 0.0
      %2209 = vst.msk [vmem:[#allocation3 + $0x8] sm:$0xff] %vm2207, 0.0
      %vm2210 = vcmask 58368
      %2211 = vst.msk [vmem:[#allocation3 + $0x10] sm:$0x3] %vm2210, 0.0
      %2212 = vst.msk [vmem:[#allocation3 + $0x18] sm:$0xff] %vm2207, 0.0
      %2213 = vst.msk [vmem:[#allocation3 + $0x20] sm:$0xff] %vm2207, 0.0
      %2214 = vst.msk [vmem:[#allocation3 + $0x28] sm:$0x3] %vm2210, 0.0
      %2215 = vst.msk [vmem:[#allocation3 + $0x30] sm:$0xff] %vm2207, 0.0
      %2216 = vst.msk [vmem:[#allocation3 + $0x38] sm:$0xff] %vm2207, 0.0
      %2217 = vst.msk [vmem:[#allocation3 + $0x40] sm:$0x3] %vm2210, 0.0
      %2218 = vst.msk [vmem:[#allocation3 + $0x48] sm:$0xff] %vm2207, 0.0
      %2219 = vst.msk [vmem:[#allocation3 + $0x50] sm:$0xff] %vm2207, 0.0
      %2220 = vst.msk [vmem:[#allocation3 + $0x58] sm:$0x3] %vm2210, 0.0
      %2221 = vst.msk [vmem:[#allocation3 + $0x60] sm:$0xff] %vm2207, 0.0
      %2222 = vst.msk [vmem:[#allocation3 + $0x68] sm:$0xff] %vm2207, 0.0
      %2223 = vst.msk [vmem:[#allocation3 + $0x70] sm:$0x3] %vm2210, 0.0
      %2224 = vst.msk [vmem:[#allocation3 + $0x78] sm:$0xff] %vm2207, 0.0
      %2225 = vst.msk [vmem:[#allocation3 + $0x80] sm:$0xff] %vm2207, 0.0
      %2226 = vst.msk [vmem:[#allocation3 + $0x88] sm:$0x3] %vm2210, 0.0
      %2227 = vst.msk [vmem:[#allocation3 + $0x90] sm:$0xff] %vm2207, 0.0
      %2228 = vst.msk [vmem:[#allocation3 + $0x98] sm:$0xff] %vm2207, 0.0
      %2229 = vst.msk [vmem:[#allocation3 + $0xa0] sm:$0x3] %vm2210, 0.0
      %2230 = vst.msk [vmem:[#allocation3 + $0xa8] sm:$0xff] %vm2207, 0.0
      %2231 = vst.msk [vmem:[#allocation3 + $0xb0] sm:$0xff] %vm2207, 0.0
      %2232 = vst.msk [vmem:[#allocation3 + $0xb8] sm:$0x3] %vm2210, 0.0
      %2233 = vst.msk [vmem:[#allocation3 + $0xc0] sm:$0xff] %vm2207, 0.0
      %2234 = vst.msk [vmem:[#allocation3 + $0xc8] sm:$0xff] %vm2207, 0.0
      %2235 = vst.msk [vmem:[#allocation3 + $0xd0] sm:$0x3] %vm2210, 0.0
      %2236 = vst.msk [vmem:[#allocation3 + $0xd8] sm:$0xff] %vm2207, 0.0
      %2237 = vst.msk [vmem:[#allocation3 + $0xe0] sm:$0xff] %vm2207, 0.0
      %2238 = vst.msk [vmem:[#allocation3 + $0xe8] sm:$0x3] %vm2210, 0.0
      %2239 = vst.msk [vmem:[#allocation3 + $0xf0] sm:$0xff] %vm2207, 0.0
      %2240 = vst.msk [vmem:[#allocation3 + $0xf8] sm:$0xff] %vm2207, 0.0
      %2241 = vst.msk [vmem:[#allocation3 + $0x100] sm:$0x3] %vm2210, 0.0
      %2242 = vst.msk [vmem:[#allocation3 + $0x108] sm:$0xff] %vm2207, 0.0
      %2243 = vst.msk [vmem:[#allocation3 + $0x110] sm:$0xff] %vm2207, 0.0
      %2244 = vst.msk [vmem:[#allocation3 + $0x118] sm:$0x3] %vm2210, 0.0
      %2245 = vst.msk [vmem:[#allocation3 + $0x120] sm:$0xff] %vm2207, 0.0
      %2246 = vst.msk [vmem:[#allocation3 + $0x128] sm:$0xff] %vm2207, 0.0
      %2247 = vst.msk [vmem:[#allocation3 + $0x130] sm:$0x3] %vm2210, 0.0
      %2248 = vst.msk [vmem:[#allocation3 + $0x138] sm:$0xff] %vm2207, 0.0
      %2249 = vst.msk [vmem:[#allocation3 + $0x140] sm:$0xff] %vm2207, 0.0
      %2250 = vst.msk [vmem:[#allocation3 + $0x148] sm:$0x3] %vm2210, 0.0
      %2251 = vst.msk [vmem:[#allocation3 + $0x150] sm:$0xff] %vm2207, 0.0
      %2252 = vst.msk [vmem:[#allocation3 + $0x158] sm:$0xff] %vm2207, 0.0
      %2253 = vst.msk [vmem:[#allocation3 + $0x160] sm:$0x3] %vm2210, 0.0
      %2254 = vst.msk [vmem:[#allocation3 + $0x168] sm:$0xff] %vm2207, 0.0
      %2255 = vst.msk [vmem:[#allocation3 + $0x170] sm:$0xff] %vm2207, 0.0
      %2256 = vst.msk [vmem:[#allocation3 + $0x178] sm:$0x3] %vm2210, 0.0
      %2257 = vst.msk [vmem:[#allocation3 + $0x180] sm:$0xff] %vm2207, 0.0
      %2258 = vst.msk [vmem:[#allocation3 + $0x188] sm:$0xff] %vm2207, 0.0
      %2259 = vst.msk [vmem:[#allocation3 + $0x190] sm:$0x3] %vm2210, 0.0
      %2260 = vst.msk [vmem:[#allocation3 + $0x198] sm:$0xff] %vm2207, 0.0
      %2261 = vst.msk [vmem:[#allocation3 + $0x1a0] sm:$0xff] %vm2207, 0.0
      %2262 = vst.msk [vmem:[#allocation3 + $0x1a8] sm:$0x3] %vm2210, 0.0
      %s2263 = scalar_lea.vmem [#allocation3], 24
      %2264 = vst.msk [vmem:[%s2263 + $0x1] sm:$0xff] %vm2207, %v2175
      %2265 = vst.msk [vmem:[%s2263 + $0x9] sm:$0xff] %vm2207, %v2176
      %2266 = vst.msk [vmem:[%s2263 + $0x19] sm:$0xff] %vm2207, %v2177
      %2267 = vst.msk [vmem:[%s2263 + $0x21] sm:$0xff] %vm2207, %v2178
      %2268 = vst.msk [vmem:[%s2263 + $0x31] sm:$0xff] %vm2207, %v2179
      %2269 = vst.msk [vmem:[%s2263 + $0x39] sm:$0xff] %vm2207, %v2180
      %2270 = vst.msk [vmem:[%s2263 + $0x49] sm:$0xff] %vm2207, %v2181
      %2271 = vst.msk [vmem:[%s2263 + $0x51] sm:$0xff] %vm2207, %v2182
      %2272 = vst.msk [vmem:[%s2263 + $0x61] sm:$0xff] %vm2207, %v2183
      %2273 = vst.msk [vmem:[%s2263 + $0x69] sm:$0xff] %vm2207, %v2184
      %2274 = vst.msk [vmem:[%s2263 + $0x79] sm:$0xff] %vm2207, %v2185
      %2275 = vst.msk [vmem:[%s2263 + $0x81] sm:$0xff] %vm2207, %v2186
      %2276 = vst.msk [vmem:[%s2263 + $0x91] sm:$0xff] %vm2207, %v2187
      %2277 = vst.msk [vmem:[%s2263 + $0x99] sm:$0xff] %vm2207, %v2188
      %2278 = vst.msk [vmem:[%s2263 + $0xa9] sm:$0xff] %vm2207, %v2189
      %2279 = vst.msk [vmem:[%s2263 + $0xb1] sm:$0xff] %vm2207, %v2190
      %2280 = vst.msk [vmem:[%s2263 + $0xc1] sm:$0xff] %vm2207, %v2191
      %2281 = vst.msk [vmem:[%s2263 + $0xc9] sm:$0xff] %vm2207, %v2192
      %2282 = vst.msk [vmem:[%s2263 + $0xd9] sm:$0xff] %vm2207, %v2193
      %2283 = vst.msk [vmem:[%s2263 + $0xe1] sm:$0xff] %vm2207, %v2194
      %2284 = vst.msk [vmem:[%s2263 + $0xf1] sm:$0xff] %vm2207, %v2195
      %2285 = vst.msk [vmem:[%s2263 + $0xf9] sm:$0xff] %vm2207, %v2196
      %2286 = vst.msk [vmem:[%s2263 + $0x109] sm:$0xff] %vm2207, %v2197
      %2287 = vst.msk [vmem:[%s2263 + $0x111] sm:$0xff] %vm2207, %v2198
      %2288 = vst.msk [vmem:[%s2263 + $0x121] sm:$0xff] %vm2207, %v2199
      %2289 = vst.msk [vmem:[%s2263 + $0x129] sm:$0xff] %vm2207, %v2200
      %2290 = vst.msk [vmem:[%s2263 + $0x139] sm:$0xff] %vm2207, %v2201
      %2291 = vst.msk [vmem:[%s2263 + $0x141] sm:$0xff] %vm2207, %v2202
      %2292 = vst.msk [vmem:[%s2263 + $0x151] sm:$0xff] %vm2207, %v2203
      %2293 = vst.msk [vmem:[%s2263 + $0x159] sm:$0xff] %vm2207, %v2204
      %2294 = vst.msk [vmem:[%s2263 + $0x169] sm:$0xff] %vm2207, %v2205
      %2295 = vst.msk [vmem:[%s2263 + $0x171] sm:$0xff] %vm2207, %v2206
      %v2296 = vld [vmem:[#allocation3] sm:$0xff]
      %v2297 = vld [vmem:[#allocation3 + $0x8] sm:$0xff]
      %v2298 = vld [vmem:[#allocation3 + $0x10] sm:$0x3]
      %v2299 = vld [vmem:[#allocation3 + $0x18] sm:$0xff]
      %v2300 = vld [vmem:[#allocation3 + $0x20] sm:$0xff]
      %v2301 = vld [vmem:[#allocation3 + $0x28] sm:$0x3]
      %v2302 = vld [vmem:[#allocation3 + $0x30] sm:$0xff]
      %v2303 = vld [vmem:[#allocation3 + $0x38] sm:$0xff]
      %v2304 = vld [vmem:[#allocation3 + $0x40] sm:$0x3]
      %v2305 = vld [vmem:[#allocation3 + $0x48] sm:$0xff]
      %v2306 = vld [vmem:[#allocation3 + $0x50] sm:$0xff]
      %v2307 = vld [vmem:[#allocation3 + $0x58] sm:$0x3]
      %v2308 = vld [vmem:[#allocation3 + $0x60] sm:$0xff]
      %v2309 = vld [vmem:[#allocation3 + $0x68] sm:$0xff]
      %v2310 = vld [vmem:[#allocation3 + $0x70] sm:$0x3]
      %v2311 = vld [vmem:[#allocation3 + $0x78] sm:$0xff]
      %v2312 = vld [vmem:[#allocation3 + $0x80] sm:$0xff]
      %v2313 = vld [vmem:[#allocation3 + $0x88] sm:$0x3]
      %v2314 = vld [vmem:[#allocation3 + $0x90] sm:$0xff]
      %v2315 = vld [vmem:[#allocation3 + $0x98] sm:$0xff]
      %v2316 = vld [vmem:[#allocation3 + $0xa0] sm:$0x3]
      %v2317 = vld [vmem:[#allocation3 + $0xa8] sm:$0xff]
      %v2318 = vld [vmem:[#allocation3 + $0xb0] sm:$0xff]
      %v2319 = vld [vmem:[#allocation3 + $0xb8] sm:$0x3]
      %v2320 = vld [vmem:[#allocation3 + $0xc0] sm:$0xff]
      %v2321 = vld [vmem:[#allocation3 + $0xc8] sm:$0xff]
      %v2322 = vld [vmem:[#allocation3 + $0xd0] sm:$0x3]
      %v2323 = vld [vmem:[#allocation3 + $0xd8] sm:$0xff]
      %v2324 = vld [vmem:[#allocation3 + $0xe0] sm:$0xff]
      %v2325 = vld [vmem:[#allocation3 + $0xe8] sm:$0x3]
      %v2326 = vld [vmem:[#allocation3 + $0xf0] sm:$0xff]
      %v2327 = vld [vmem:[#allocation3 + $0xf8] sm:$0xff]
      %v2328 = vld [vmem:[#allocation3 + $0x100] sm:$0x3]
      %v2329 = vld [vmem:[#allocation3 + $0x108] sm:$0xff]
      %v2330 = vld [vmem:[#allocation3 + $0x110] sm:$0xff]
      %v2331 = vld [vmem:[#allocation3 + $0x118] sm:$0x3]
      %v2332 = vld [vmem:[#allocation3 + $0x120] sm:$0xff]
      %v2333 = vld [vmem:[#allocation3 + $0x128] sm:$0xff]
      %v2334 = vld [vmem:[#allocation3 + $0x130] sm:$0x3]
      %v2335 = vld [vmem:[#allocation3 + $0x138] sm:$0xff]
      %v2336 = vld [vmem:[#allocation3 + $0x140] sm:$0xff]
      %v2337 = vld [vmem:[#allocation3 + $0x148] sm:$0x3]
      %v2338 = vld [vmem:[#allocation3 + $0x150] sm:$0xff]
      %v2339 = vld [vmem:[#allocation3 + $0x158] sm:$0xff]
      %v2340 = vld [vmem:[#allocation3 + $0x160] sm:$0x3]
      %v2341 = vld [vmem:[#allocation3 + $0x168] sm:$0xff]
      %v2342 = vld [vmem:[#allocation3 + $0x170] sm:$0xff]
      %v2343 = vld [vmem:[#allocation3 + $0x178] sm:$0x3]
      %v2344 = vld [vmem:[#allocation3 + $0x180] sm:$0xff]
      %v2345 = vld [vmem:[#allocation3 + $0x188] sm:$0xff]
      %v2346 = vld [vmem:[#allocation3 + $0x190] sm:$0x3]
      %v2347 = vld [vmem:[#allocation3 + $0x198] sm:$0xff]
      %v2348 = vld [vmem:[#allocation3 + $0x1a0] sm:$0xff]
      %v2349 = vld [vmem:[#allocation3 + $0x1a8] sm:$0x3]
      %v2350 = vpack.c.bf16 %v2297, %v2296
      %v2351 = vpack.c.bf16 %v2300, %v2299
      %v2352 = vpack.c.bf16 %v2303, %v2302
      %v2353 = vpack.c.bf16 %v2306, %v2305
      %v2354 = vpack.c.bf16 %v2309, %v2308
      %v2355 = vpack.c.bf16 %v2312, %v2311
      %v2356 = vpack.c.bf16 %v2315, %v2314
      %v2357 = vpack.c.bf16 %v2318, %v2317
      %v2358 = vpack.c.bf16 %v2321, %v2320
      %v2359 = vpack.c.bf16 %v2324, %v2323
      %v2360 = vpack.c.bf16 %v2327, %v2326
      %v2361 = vpack.c.bf16 %v2330, %v2329
      %v2362 = vpack.c.bf16 %v2333, %v2332
      %v2363 = vpack.c.bf16 %v2336, %v2335
      %v2364 = vpack.c.bf16 %v2339, %v2338
      %v2365 = vpack.c.bf16 %v2342, %v2341
      %v2366 = vld [vmem:[%s4] sm:$0xf]
      %v2415 = vrot.slane %v2296, 1
      %v2416 = vrot.slane %v2297, 1
      %v2417 = vsel %vm574, %v2415, %v2416
      %v2418 = vrot.slane %v2298, 1
      %v2419 = vsel %vm574, %v2416, %v2418
      %v2420 = vrot.slane %v2299, 1
      %v2421 = vrot.slane %v2300, 1
      %v2422 = vsel %vm574, %v2420, %v2421
      %v2423 = vrot.slane %v2301, 1
      %v2424 = vsel %vm574, %v2421, %v2423
      %v2425 = vrot.slane %v2302, 1
      %v2426 = vrot.slane %v2303, 1
      %v2427 = vsel %vm574, %v2425, %v2426
      %v2428 = vrot.slane %v2304, 1
      %v2429 = vsel %vm574, %v2426, %v2428
      %v2430 = vrot.slane %v2305, 1
      %v2431 = vrot.slane %v2306, 1
      %v2432 = vsel %vm574, %v2430, %v2431
      %v2433 = vrot.slane %v2307, 1
      %v2434 = vsel %vm574, %v2431, %v2433
      %v2435 = vrot.slane %v2308, 1
      %v2436 = vrot.slane %v2309, 1
      %v2437 = vsel %vm574, %v2435, %v2436
      %v2438 = vrot.slane %v2310, 1
      %v2439 = vsel %vm574, %v2436, %v2438
      %v2440 = vrot.slane %v2311, 1
      %v2441 = vrot.slane %v2312, 1
      %v2442 = vsel %vm574, %v2440, %v2441
      %v2443 = vrot.slane %v2313, 1
      %v2444 = vsel %vm574, %v2441, %v2443
      %v2445 = vrot.slane %v2314, 1
      %v2446 = vrot.slane %v2315, 1
      %v2447 = vsel %vm574, %v2445, %v2446
      %v2448 = vrot.slane %v2316, 1
      %v2449 = vsel %vm574, %v2446, %v2448
      %v2450 = vrot.slane %v2317, 1
      %v2451 = vrot.slane %v2318, 1
      %v2452 = vsel %vm574, %v2450, %v2451
      %v2453 = vrot.slane %v2319, 1
      %v2454 = vsel %vm574, %v2451, %v2453
      %v2455 = vrot.slane %v2320, 1
      %v2456 = vrot.slane %v2321, 1
      %v2457 = vsel %vm574, %v2455, %v2456
      %v2458 = vrot.slane %v2322, 1
      %v2459 = vsel %vm574, %v2456, %v2458
      %v2460 = vrot.slane %v2323, 1
      %v2461 = vrot.slane %v2324, 1
      %v2462 = vsel %vm574, %v2460, %v2461
      %v2463 = vrot.slane %v2325, 1
      %v2464 = vsel %vm574, %v2461, %v2463
      %v2465 = vrot.slane %v2326, 1
      %v2466 = vrot.slane %v2327, 1
      %v2467 = vsel %vm574, %v2465, %v2466
      %v2468 = vrot.slane %v2328, 1
      %v2469 = vsel %vm574, %v2466, %v2468
      %v2470 = vrot.slane %v2329, 1
      %v2471 = vrot.slane %v2330, 1
      %v2472 = vsel %vm574, %v2470, %v2471
      %v2473 = vrot.slane %v2331, 1
      %v2474 = vsel %vm574, %v2471, %v2473
      %v2475 = vrot.slane %v2332, 1
      %v2476 = vrot.slane %v2333, 1
      %v2477 = vsel %vm574, %v2475, %v2476
      %v2478 = vrot.slane %v2334, 1
      %v2479 = vsel %vm574, %v2476, %v2478
      %v2480 = vrot.slane %v2335, 1
      %v2481 = vrot.slane %v2336, 1
      %v2482 = vsel %vm574, %v2480, %v2481
      %v2483 = vrot.slane %v2337, 1
      %v2484 = vsel %vm574, %v2481, %v2483
      %v2485 = vrot.slane %v2338, 1
      %v2486 = vrot.slane %v2339, 1
      %v2487 = vsel %vm574, %v2485, %v2486
      %v2488 = vrot.slane %v2340, 1
      %v2489 = vsel %vm574, %v2486, %v2488
      %v2490 = vrot.slane %v2341, 1
      %v2491 = vrot.slane %v2342, 1
      %v2492 = vsel %vm574, %v2490, %v2491
      %v2493 = vrot.slane %v2343, 1
      %v2494 = vsel %vm574, %v2491, %v2493
      %v2527 = vpack.c.bf16 %v2419, %v2417
      %v2528 = vpack.c.bf16 %v2424, %v2422
      %v2529 = vpack.c.bf16 %v2429, %v2427
      %v2530 = vpack.c.bf16 %v2434, %v2432
      %v2531 = vpack.c.bf16 %v2439, %v2437
      %v2532 = vpack.c.bf16 %v2444, %v2442
      %v2533 = vpack.c.bf16 %v2449, %v2447
      %v2534 = vpack.c.bf16 %v2454, %v2452
      %v2535 = vpack.c.bf16 %v2459, %v2457
      %v2536 = vpack.c.bf16 %v2464, %v2462
      %v2537 = vpack.c.bf16 %v2469, %v2467
      %v2538 = vpack.c.bf16 %v2474, %v2472
      %v2539 = vpack.c.bf16 %v2479, %v2477
      %v2540 = vpack.c.bf16 %v2484, %v2482
      %v2541 = vpack.c.bf16 %v2489, %v2487
      %v2542 = vpack.c.bf16 %v2494, %v2492
      %s2543 = scalar_lea.vmem %s4, 4
      %v2544 = vld [vmem:[%s2543] sm:$0xf]
      %v2546 = vsel %vm2207, %v2527, 0
      %v2549 = vsel %vm2207, %v2528, 0
      %v2552 = vsel %vm2207, %v2529, 0
      %v2555 = vsel %vm2207, %v2530, 0
      %v2558 = vsel %vm2207, %v2531, 0
      %v2561 = vsel %vm2207, %v2532, 0
      %v2564 = vsel %vm2207, %v2533, 0
      %v2567 = vsel %vm2207, %v2534, 0
      %v2570 = vsel %vm2207, %v2535, 0
      %v2573 = vsel %vm2207, %v2536, 0
      %v2576 = vsel %vm2207, %v2537, 0
      %v2579 = vsel %vm2207, %v2538, 0
      %v2582 = vsel %vm2207, %v2539, 0
      %v2585 = vsel %vm2207, %v2540, 0
      %v2588 = vsel %vm2207, %v2541, 0
      %v2591 = vsel %vm2207, %v2542, 0
      %vm2593 = vcmask 1043456
      %v2595 = vsel %vm2593, %v2544, 0
      %2597 = vmatpush.bf16.msra.mxu0 0
      %2598 = vmatpush.bf16.msra.mxu0 0
      %2599 = vmatpush.bf16.msra.mxu0 0
      %2600 = vmatpush.bf16.msra.mxu0 0
      %2601 = vmatpush.bf16.msra.mxu0 0
      %2602 = vmatpush.bf16.msra.mxu0 0
      %2603 = vmatpush.bf16.msra.mxu0 0
      %2604 = vmatpush.bf16.msra.mxu0 %v2595
      %2605 = vmatmul.bf16.gmra.mxu0 %v2546
      %v2606 = vpop.f32.mrf.mxu0
      %v2607 = vadd.f32 0.0, %v2606
      %v2608 = vpop.f32.mrf.mxu0
      %v2609 = vadd.f32 0.0, %v2608
      %2610 = vmatmul.bf16.gmra.mxu0 %v2549
      %v2611 = vpop.f32.mrf.mxu0
      %v2612 = vadd.f32 0.0, %v2611
      %v2613 = vpop.f32.mrf.mxu0
      %v2614 = vadd.f32 0.0, %v2613
      %2615 = vmatmul.bf16.gmra.mxu0 %v2552
      %v2616 = vpop.f32.mrf.mxu0
      %v2617 = vadd.f32 0.0, %v2616
      %v2618 = vpop.f32.mrf.mxu0
      %v2619 = vadd.f32 0.0, %v2618
      %2620 = vmatmul.bf16.gmra.mxu0 %v2555
      %v2621 = vpop.f32.mrf.mxu0
      %v2622 = vadd.f32 0.0, %v2621
      %v2623 = vpop.f32.mrf.mxu0
      %v2624 = vadd.f32 0.0, %v2623
      %2625 = vmatmul.bf16.gmra.mxu0 %v2558
      %v2626 = vpop.f32.mrf.mxu0
      %v2627 = vadd.f32 0.0, %v2626
      %v2628 = vpop.f32.mrf.mxu0
      %v2629 = vadd.f32 0.0, %v2628
      %2630 = vmatmul.bf16.gmra.mxu0 %v2561
      %v2631 = vpop.f32.mrf.mxu0
      %v2632 = vadd.f32 0.0, %v2631
      %v2633 = vpop.f32.mrf.mxu0
      %v2634 = vadd.f32 0.0, %v2633
      %2635 = vmatmul.bf16.gmra.mxu0 %v2564
      %v2636 = vpop.f32.mrf.mxu0
      %v2637 = vadd.f32 0.0, %v2636
      %v2638 = vpop.f32.mrf.mxu0
      %v2639 = vadd.f32 0.0, %v2638
      %2640 = vmatmul.bf16.gmra.mxu0 %v2567
      %v2641 = vpop.f32.mrf.mxu0
      %v2642 = vadd.f32 0.0, %v2641
      %v2643 = vpop.f32.mrf.mxu0
      %v2644 = vadd.f32 0.0, %v2643
      %2645 = vmatmul.bf16.gmra.mxu0 %v2570
      %v2646 = vpop.f32.mrf.mxu0
      %v2647 = vadd.f32 0.0, %v2646
      %v2648 = vpop.f32.mrf.mxu0
      %v2649 = vadd.f32 0.0, %v2648
      %2650 = vmatmul.bf16.gmra.mxu0 %v2573
      %v2651 = vpop.f32.mrf.mxu0
      %v2652 = vadd.f32 0.0, %v2651
      %v2653 = vpop.f32.mrf.mxu0
      %v2654 = vadd.f32 0.0, %v2653
      %2655 = vmatmul.bf16.gmra.mxu0 %v2576
      %v2656 = vpop.f32.mrf.mxu0
      %v2657 = vadd.f32 0.0, %v2656
      %v2658 = vpop.f32.mrf.mxu0
      %v2659 = vadd.f32 0.0, %v2658
      %2660 = vmatmul.bf16.gmra.mxu0 %v2579
      %v2661 = vpop.f32.mrf.mxu0
      %v2662 = vadd.f32 0.0, %v2661
      %v2663 = vpop.f32.mrf.mxu0
      %v2664 = vadd.f32 0.0, %v2663
      %2665 = vmatmul.bf16.gmra.mxu0 %v2582
      %v2666 = vpop.f32.mrf.mxu0
      %v2667 = vadd.f32 0.0, %v2666
      %v2668 = vpop.f32.mrf.mxu0
      %v2669 = vadd.f32 0.0, %v2668
      %2670 = vmatmul.bf16.gmra.mxu0 %v2585
      %v2671 = vpop.f32.mrf.mxu0
      %v2672 = vadd.f32 0.0, %v2671
      %v2673 = vpop.f32.mrf.mxu0
      %v2674 = vadd.f32 0.0, %v2673
      %2675 = vmatmul.bf16.gmra.mxu0 %v2588
      %v2676 = vpop.f32.mrf.mxu0
      %v2677 = vadd.f32 0.0, %v2676
      %v2678 = vpop.f32.mrf.mxu0
      %v2679 = vadd.f32 0.0, %v2678
      %2680 = vmatmul.bf16.gmra.mxu0 %v2591
      %v2681 = vpop.f32.mrf.mxu0
      %v2682 = vadd.f32 0.0, %v2681
      %v2683 = vpop.f32.mrf.mxu0
      %v2684 = vadd.f32 0.0, %v2683
      %2685 = vdwg.mxu0
      %v2687 = vsel %vm2207, %v2350, 0
      %v2690 = vsel %vm2207, %v2351, 0
      %v2693 = vsel %vm2207, %v2352, 0
      %v2696 = vsel %vm2207, %v2353, 0
      %v2699 = vsel %vm2207, %v2354, 0
      %v2702 = vsel %vm2207, %v2355, 0
      %v2705 = vsel %vm2207, %v2356, 0
      %v2708 = vsel %vm2207, %v2357, 0
      %v2711 = vsel %vm2207, %v2358, 0
      %v2714 = vsel %vm2207, %v2359, 0
      %v2717 = vsel %vm2207, %v2360, 0
      %v2720 = vsel %vm2207, %v2361, 0
      %v2723 = vsel %vm2207, %v2362, 0
      %v2726 = vsel %vm2207, %v2363, 0
      %v2729 = vsel %vm2207, %v2364, 0
      %v2732 = vsel %vm2207, %v2365, 0
      %v2735 = vsel %vm2593, %v2366, 0
      %2737 = vmatpush.bf16.msra.mxu0 0
      %2738 = vmatpush.bf16.msra.mxu0 0
      %2739 = vmatpush.bf16.msra.mxu0 0
      %2740 = vmatpush.bf16.msra.mxu0 0
      %2741 = vmatpush.bf16.msra.mxu0 0
      %2742 = vmatpush.bf16.msra.mxu0 0
      %2743 = vmatpush.bf16.msra.mxu0 0
      %2744 = vmatpush.bf16.msra.mxu0 %v2735
      %2745 = vmatmul.bf16.gmra.mxu0 %v2687
      %v2746 = vpop.f32.mrf.mxu0
      %v2747 = vadd.f32 %v2607, %v2746
      %v2748 = vpop.f32.mrf.mxu0
      %v2749 = vadd.f32 %v2609, %v2748
      %2750 = vmatmul.bf16.gmra.mxu0 %v2690
      %v2751 = vpop.f32.mrf.mxu0
      %v2752 = vadd.f32 %v2612, %v2751
      %v2753 = vpop.f32.mrf.mxu0
      %v2754 = vadd.f32 %v2614, %v2753
      %2755 = vmatmul.bf16.gmra.mxu0 %v2693
      %v2756 = vpop.f32.mrf.mxu0
      %v2757 = vadd.f32 %v2617, %v2756
      %v2758 = vpop.f32.mrf.mxu0
      %v2759 = vadd.f32 %v2619, %v2758
      %2760 = vmatmul.bf16.gmra.mxu0 %v2696
      %v2761 = vpop.f32.mrf.mxu0
      %v2762 = vadd.f32 %v2622, %v2761
      %v2763 = vpop.f32.mrf.mxu0
      %v2764 = vadd.f32 %v2624, %v2763
      %2765 = vmatmul.bf16.gmra.mxu0 %v2699
      %v2766 = vpop.f32.mrf.mxu0
      %v2767 = vadd.f32 %v2627, %v2766
      %v2768 = vpop.f32.mrf.mxu0
      %v2769 = vadd.f32 %v2629, %v2768
      %2770 = vmatmul.bf16.gmra.mxu0 %v2702
      %v2771 = vpop.f32.mrf.mxu0
      %v2772 = vadd.f32 %v2632, %v2771
      %v2773 = vpop.f32.mrf.mxu0
      %v2774 = vadd.f32 %v2634, %v2773
      %2775 = vmatmul.bf16.gmra.mxu0 %v2705
      %v2776 = vpop.f32.mrf.mxu0
      %v2777 = vadd.f32 %v2637, %v2776
      %v2778 = vpop.f32.mrf.mxu0
      %v2779 = vadd.f32 %v2639, %v2778
      %2780 = vmatmul.bf16.gmra.mxu0 %v2708
      %v2781 = vpop.f32.mrf.mxu0
      %v2782 = vadd.f32 %v2642, %v2781
      %v2783 = vpop.f32.mrf.mxu0
      %v2784 = vadd.f32 %v2644, %v2783
      %2785 = vmatmul.bf16.gmra.mxu0 %v2711
      %v2786 = vpop.f32.mrf.mxu0
      %v2787 = vadd.f32 %v2647, %v2786
      %v2788 = vpop.f32.mrf.mxu0
      %v2789 = vadd.f32 %v2649, %v2788
      %2790 = vmatmul.bf16.gmra.mxu0 %v2714
      %v2791 = vpop.f32.mrf.mxu0
      %v2792 = vadd.f32 %v2652, %v2791
      %v2793 = vpop.f32.mrf.mxu0
      %v2794 = vadd.f32 %v2654, %v2793
      %2795 = vmatmul.bf16.gmra.mxu0 %v2717
      %v2796 = vpop.f32.mrf.mxu0
      %v2797 = vadd.f32 %v2657, %v2796
      %v2798 = vpop.f32.mrf.mxu0
      %v2799 = vadd.f32 %v2659, %v2798
      %2800 = vmatmul.bf16.gmra.mxu0 %v2720
      %v2801 = vpop.f32.mrf.mxu0
      %v2802 = vadd.f32 %v2662, %v2801
      %v2803 = vpop.f32.mrf.mxu0
      %v2804 = vadd.f32 %v2664, %v2803
      %2805 = vmatmul.bf16.gmra.mxu0 %v2723
      %v2806 = vpop.f32.mrf.mxu0
      %v2807 = vadd.f32 %v2667, %v2806
      %v2808 = vpop.f32.mrf.mxu0
      %v2809 = vadd.f32 %v2669, %v2808
      %2810 = vmatmul.bf16.gmra.mxu0 %v2726
      %v2811 = vpop.f32.mrf.mxu0
      %v2812 = vadd.f32 %v2672, %v2811
      %v2813 = vpop.f32.mrf.mxu0
      %v2814 = vadd.f32 %v2674, %v2813
      %2815 = vmatmul.bf16.gmra.mxu0 %v2729
      %v2816 = vpop.f32.mrf.mxu0
      %v2817 = vadd.f32 %v2677, %v2816
      %v2818 = vpop.f32.mrf.mxu0
      %v2819 = vadd.f32 %v2679, %v2818
      %2820 = vmatmul.bf16.gmra.mxu0 %v2732
      %v2821 = vpop.f32.mrf.mxu0
      %v2822 = vadd.f32 %v2682, %v2821
      %v2823 = vpop.f32.mrf.mxu0
      %v2824 = vadd.f32 %v2684, %v2823
      %2825 = vdwg.mxu0
      %v2826 = vrot.slane %v2296, 2
      %v2827 = vrot.slane %v2297, 2
      %v2828 = vsel %vm986, %v2826, %v2827
      %v2829 = vrot.slane %v2298, 2
      %v2830 = vsel %vm986, %v2827, %v2829
      %v2831 = vrot.slane %v2299, 2
      %v2832 = vrot.slane %v2300, 2
      %v2833 = vsel %vm986, %v2831, %v2832
      %v2834 = vrot.slane %v2301, 2
      %v2835 = vsel %vm986, %v2832, %v2834
      %v2836 = vrot.slane %v2302, 2
      %v2837 = vrot.slane %v2303, 2
      %v2838 = vsel %vm986, %v2836, %v2837
      %v2839 = vrot.slane %v2304, 2
      %v2840 = vsel %vm986, %v2837, %v2839
      %v2841 = vrot.slane %v2305, 2
      %v2842 = vrot.slane %v2306, 2
      %v2843 = vsel %vm986, %v2841, %v2842
      %v2844 = vrot.slane %v2307, 2
      %v2845 = vsel %vm986, %v2842, %v2844
      %v2846 = vrot.slane %v2308, 2
      %v2847 = vrot.slane %v2309, 2
      %v2848 = vsel %vm986, %v2846, %v2847
      %v2849 = vrot.slane %v2310, 2
      %v2850 = vsel %vm986, %v2847, %v2849
      %v2851 = vrot.slane %v2311, 2
      %v2852 = vrot.slane %v2312, 2
      %v2853 = vsel %vm986, %v2851, %v2852
      %v2854 = vrot.slane %v2313, 2
      %v2855 = vsel %vm986, %v2852, %v2854
      %v2856 = vrot.slane %v2314, 2
      %v2857 = vrot.slane %v2315, 2
      %v2858 = vsel %vm986, %v2856, %v2857
      %v2859 = vrot.slane %v2316, 2
      %v2860 = vsel %vm986, %v2857, %v2859
      %v2861 = vrot.slane %v2317, 2
      %v2862 = vrot.slane %v2318, 2
      %v2863 = vsel %vm986, %v2861, %v2862
      %v2864 = vrot.slane %v2319, 2
      %v2865 = vsel %vm986, %v2862, %v2864
      %v2866 = vrot.slane %v2320, 2
      %v2867 = vrot.slane %v2321, 2
      %v2868 = vsel %vm986, %v2866, %v2867
      %v2869 = vrot.slane %v2322, 2
      %v2870 = vsel %vm986, %v2867, %v2869
      %v2871 = vrot.slane %v2323, 2
      %v2872 = vrot.slane %v2324, 2
      %v2873 = vsel %vm986, %v2871, %v2872
      %v2874 = vrot.slane %v2325, 2
      %v2875 = vsel %vm986, %v2872, %v2874
      %v2876 = vrot.slane %v2326, 2
      %v2877 = vrot.slane %v2327, 2
      %v2878 = vsel %vm986, %v2876, %v2877
      %v2879 = vrot.slane %v2328, 2
      %v2880 = vsel %vm986, %v2877, %v2879
      %v2881 = vrot.slane %v2329, 2
      %v2882 = vrot.slane %v2330, 2
      %v2883 = vsel %vm986, %v2881, %v2882
      %v2884 = vrot.slane %v2331, 2
      %v2885 = vsel %vm986, %v2882, %v2884
      %v2886 = vrot.slane %v2332, 2
      %v2887 = vrot.slane %v2333, 2
      %v2888 = vsel %vm986, %v2886, %v2887
      %v2889 = vrot.slane %v2334, 2
      %v2890 = vsel %vm986, %v2887, %v2889
      %v2891 = vrot.slane %v2335, 2
      %v2892 = vrot.slane %v2336, 2
      %v2893 = vsel %vm986, %v2891, %v2892
      %v2894 = vrot.slane %v2337, 2
      %v2895 = vsel %vm986, %v2892, %v2894
      %v2896 = vrot.slane %v2338, 2
      %v2897 = vrot.slane %v2339, 2
      %v2898 = vsel %vm986, %v2896, %v2897
      %v2899 = vrot.slane %v2340, 2
      %v2900 = vsel %vm986, %v2897, %v2899
      %v2901 = vrot.slane %v2341, 2
      %v2902 = vrot.slane %v2342, 2
      %v2903 = vsel %vm986, %v2901, %v2902
      %v2904 = vrot.slane %v2343, 2
      %v2905 = vsel %vm986, %v2902, %v2904
      %v2938 = vpack.c.bf16 %v2830, %v2828
      %v2939 = vpack.c.bf16 %v2835, %v2833
      %v2940 = vpack.c.bf16 %v2840, %v2838
      %v2941 = vpack.c.bf16 %v2845, %v2843
      %v2942 = vpack.c.bf16 %v2850, %v2848
      %v2943 = vpack.c.bf16 %v2855, %v2853
      %v2944 = vpack.c.bf16 %v2860, %v2858
      %v2945 = vpack.c.bf16 %v2865, %v2863
      %v2946 = vpack.c.bf16 %v2870, %v2868
      %v2947 = vpack.c.bf16 %v2875, %v2873
      %v2948 = vpack.c.bf16 %v2880, %v2878
      %v2949 = vpack.c.bf16 %v2885, %v2883
      %v2950 = vpack.c.bf16 %v2890, %v2888
      %v2951 = vpack.c.bf16 %v2895, %v2893
      %v2952 = vpack.c.bf16 %v2900, %v2898
      %v2953 = vpack.c.bf16 %v2905, %v2903
      %s2954 = scalar_lea.vmem %s4, 8
      %v2955 = vld [vmem:[%s2954] sm:$0xf]
      %v2957 = vsel %vm2207, %v2938, 0
      %v2960 = vsel %vm2207, %v2939, 0
      %v2963 = vsel %vm2207, %v2940, 0
      %v2966 = vsel %vm2207, %v2941, 0
      %v2969 = vsel %vm2207, %v2942, 0
      %v2972 = vsel %vm2207, %v2943, 0
      %v2975 = vsel %vm2207, %v2944, 0
      %v2978 = vsel %vm2207, %v2945, 0
      %v2981 = vsel %vm2207, %v2946, 0
      %v2984 = vsel %vm2207, %v2947, 0
      %v2987 = vsel %vm2207, %v2948, 0
      %v2990 = vsel %vm2207, %v2949, 0
      %v2993 = vsel %vm2207, %v2950, 0
      %v2996 = vsel %vm2207, %v2951, 0
      %v2999 = vsel %vm2207, %v2952, 0
      %v3002 = vsel %vm2207, %v2953, 0
      %v3005 = vsel %vm2593, %v2955, 0
      %3007 = vmatpush.bf16.msra.mxu0 0
      %3008 = vmatpush.bf16.msra.mxu0 0
      %3009 = vmatpush.bf16.msra.mxu0 0
      %3010 = vmatpush.bf16.msra.mxu0 0
      %3011 = vmatpush.bf16.msra.mxu0 0
      %3012 = vmatpush.bf16.msra.mxu0 0
      %3013 = vmatpush.bf16.msra.mxu0 0
      %3014 = vmatpush.bf16.msra.mxu0 %v3005
      %3015 = vmatmul.bf16.gmra.mxu0 %v2957
      %v3016 = vpop.f32.mrf.mxu0
      %v3017 = vadd.f32 0.0, %v3016
      %v3018 = vpop.f32.mrf.mxu0
      %v3019 = vadd.f32 0.0, %v3018
      %3020 = vmatmul.bf16.gmra.mxu0 %v2960
      %v3021 = vpop.f32.mrf.mxu0
      %v3022 = vadd.f32 0.0, %v3021
      %v3023 = vpop.f32.mrf.mxu0
      %v3024 = vadd.f32 0.0, %v3023
      %3025 = vmatmul.bf16.gmra.mxu0 %v2963
      %v3026 = vpop.f32.mrf.mxu0
      %v3027 = vadd.f32 0.0, %v3026
      %v3028 = vpop.f32.mrf.mxu0
      %v3029 = vadd.f32 0.0, %v3028
      %3030 = vmatmul.bf16.gmra.mxu0 %v2966
      %v3031 = vpop.f32.mrf.mxu0
      %v3032 = vadd.f32 0.0, %v3031
      %v3033 = vpop.f32.mrf.mxu0
      %v3034 = vadd.f32 0.0, %v3033
      %3035 = vmatmul.bf16.gmra.mxu0 %v2969
      %v3036 = vpop.f32.mrf.mxu0
      %v3037 = vadd.f32 0.0, %v3036
      %v3038 = vpop.f32.mrf.mxu0
      %v3039 = vadd.f32 0.0, %v3038
      %3040 = vmatmul.bf16.gmra.mxu0 %v2972
      %v3041 = vpop.f32.mrf.mxu0
      %v3042 = vadd.f32 0.0, %v3041
      %v3043 = vpop.f32.mrf.mxu0
      %v3044 = vadd.f32 0.0, %v3043
      %3045 = vmatmul.bf16.gmra.mxu0 %v2975
      %v3046 = vpop.f32.mrf.mxu0
      %v3047 = vadd.f32 0.0, %v3046
      %v3048 = vpop.f32.mrf.mxu0
      %v3049 = vadd.f32 0.0, %v3048
      %3050 = vmatmul.bf16.gmra.mxu0 %v2978
      %v3051 = vpop.f32.mrf.mxu0
      %v3052 = vadd.f32 0.0, %v3051
      %v3053 = vpop.f32.mrf.mxu0
      %v3054 = vadd.f32 0.0, %v3053
      %3055 = vmatmul.bf16.gmra.mxu0 %v2981
      %v3056 = vpop.f32.mrf.mxu0
      %v3057 = vadd.f32 0.0, %v3056
      %v3058 = vpop.f32.mrf.mxu0
      %v3059 = vadd.f32 0.0, %v3058
      %3060 = vmatmul.bf16.gmra.mxu0 %v2984
      %v3061 = vpop.f32.mrf.mxu0
      %v3062 = vadd.f32 0.0, %v3061
      %v3063 = vpop.f32.mrf.mxu0
      %v3064 = vadd.f32 0.0, %v3063
      %3065 = vmatmul.bf16.gmra.mxu0 %v2987
      %v3066 = vpop.f32.mrf.mxu0
      %v3067 = vadd.f32 0.0, %v3066
      %v3068 = vpop.f32.mrf.mxu0
      %v3069 = vadd.f32 0.0, %v3068
      %3070 = vmatmul.bf16.gmra.mxu0 %v2990
      %v3071 = vpop.f32.mrf.mxu0
      %v3072 = vadd.f32 0.0, %v3071
      %v3073 = vpop.f32.mrf.mxu0
      %v3074 = vadd.f32 0.0, %v3073
      %3075 = vmatmul.bf16.gmra.mxu0 %v2993
      %v3076 = vpop.f32.mrf.mxu0
      %v3077 = vadd.f32 0.0, %v3076
      %v3078 = vpop.f32.mrf.mxu0
      %v3079 = vadd.f32 0.0, %v3078
      %3080 = vmatmul.bf16.gmra.mxu0 %v2996
      %v3081 = vpop.f32.mrf.mxu0
      %v3082 = vadd.f32 0.0, %v3081
      %v3083 = vpop.f32.mrf.mxu0
      %v3084 = vadd.f32 0.0, %v3083
      %3085 = vmatmul.bf16.gmra.mxu0 %v2999
      %v3086 = vpop.f32.mrf.mxu0
      %v3087 = vadd.f32 0.0, %v3086
      %v3088 = vpop.f32.mrf.mxu0
      %v3089 = vadd.f32 0.0, %v3088
      %3090 = vmatmul.bf16.gmra.mxu0 %v3002
      %v3091 = vpop.f32.mrf.mxu0
      %v3092 = vadd.f32 0.0, %v3091
      %v3093 = vpop.f32.mrf.mxu0
      %v3094 = vadd.f32 0.0, %v3093
      %3095 = vdwg.mxu0
      %v3096 = vadd.f32 %v2747, %v3017
      %v3097 = vadd.f32 %v2749, %v3019
      %v3098 = vadd.f32 %v2752, %v3022
      %v3099 = vadd.f32 %v2754, %v3024
      %v3100 = vadd.f32 %v2757, %v3027
      %v3101 = vadd.f32 %v2759, %v3029
      %v3102 = vadd.f32 %v2762, %v3032
      %v3103 = vadd.f32 %v2764, %v3034
      %v3104 = vadd.f32 %v2767, %v3037
      %v3105 = vadd.f32 %v2769, %v3039
      %v3106 = vadd.f32 %v2772, %v3042
      %v3107 = vadd.f32 %v2774, %v3044
      %v3108 = vadd.f32 %v2777, %v3047
      %v3109 = vadd.f32 %v2779, %v3049
      %v3110 = vadd.f32 %v2782, %v3052
      %v3111 = vadd.f32 %v2784, %v3054
      %v3112 = vadd.f32 %v2787, %v3057
      %v3113 = vadd.f32 %v2789, %v3059
      %v3114 = vadd.f32 %v2792, %v3062
      %v3115 = vadd.f32 %v2794, %v3064
      %v3116 = vadd.f32 %v2797, %v3067
      %v3117 = vadd.f32 %v2799, %v3069
      %v3118 = vadd.f32 %v2802, %v3072
      %v3119 = vadd.f32 %v2804, %v3074
      %v3120 = vadd.f32 %v2807, %v3077
      %v3121 = vadd.f32 %v2809, %v3079
      %v3122 = vadd.f32 %v2812, %v3082
      %v3123 = vadd.f32 %v2814, %v3084
      %v3124 = vadd.f32 %v2817, %v3087
      %v3125 = vadd.f32 %v2819, %v3089
      %v3126 = vadd.f32 %v2822, %v3092
      %v3127 = vadd.f32 %v2824, %v3094
      %v3128 = vpack.c.bf16 %v2345, %v2344
      %s3129 = scalar_lea.vmem %s4, 12
      %v3130 = vld [vmem:[%s3129] sm:$0xf]
      %v3132 = vsel %vm2207, %v3128, 0
      %v3135 = vsel %vm2593, %v3130, 0
      %3137 = vmatpush.bf16.msra.mxu0 0
      %3138 = vmatpush.bf16.msra.mxu0 0
      %3139 = vmatpush.bf16.msra.mxu0 0
      %3140 = vmatpush.bf16.msra.mxu0 0
      %3141 = vmatpush.bf16.msra.mxu0 0
      %3142 = vmatpush.bf16.msra.mxu0 0
      %3143 = vmatpush.bf16.msra.mxu0 0
      %3144 = vmatpush.bf16.msra.mxu0 %v3135
      %3145 = vmatmul.bf16.gmra.mxu0 %v2690
      %v3146 = vpop.f32.mrf.mxu0
      %v3147 = vadd.f32 0.0, %v3146
      %v3148 = vpop.f32.mrf.mxu0
      %v3149 = vadd.f32 0.0, %v3148
      %3150 = vmatmul.bf16.gmra.mxu0 %v2693
      %v3151 = vpop.f32.mrf.mxu0
      %v3152 = vadd.f32 0.0, %v3151
      %v3153 = vpop.f32.mrf.mxu0
      %v3154 = vadd.f32 0.0, %v3153
      %3155 = vmatmul.bf16.gmra.mxu0 %v2696
      %v3156 = vpop.f32.mrf.mxu0
      %v3157 = vadd.f32 0.0, %v3156
      %v3158 = vpop.f32.mrf.mxu0
      %v3159 = vadd.f32 0.0, %v3158
      %3160 = vmatmul.bf16.gmra.mxu0 %v2699
      %v3161 = vpop.f32.mrf.mxu0
      %v3162 = vadd.f32 0.0, %v3161
      %v3163 = vpop.f32.mrf.mxu0
      %v3164 = vadd.f32 0.0, %v3163
      %3165 = vmatmul.bf16.gmra.mxu0 %v2702
      %v3166 = vpop.f32.mrf.mxu0
      %v3167 = vadd.f32 0.0, %v3166
      %v3168 = vpop.f32.mrf.mxu0
      %v3169 = vadd.f32 0.0, %v3168
      %3170 = vmatmul.bf16.gmra.mxu0 %v2705
      %v3171 = vpop.f32.mrf.mxu0
      %v3172 = vadd.f32 0.0, %v3171
      %v3173 = vpop.f32.mrf.mxu0
      %v3174 = vadd.f32 0.0, %v3173
      %3175 = vmatmul.bf16.gmra.mxu0 %v2708
      %v3176 = vpop.f32.mrf.mxu0
      %v3177 = vadd.f32 0.0, %v3176
      %v3178 = vpop.f32.mrf.mxu0
      %v3179 = vadd.f32 0.0, %v3178
      %3180 = vmatmul.bf16.gmra.mxu0 %v2711
      %v3181 = vpop.f32.mrf.mxu0
      %v3182 = vadd.f32 0.0, %v3181
      %v3183 = vpop.f32.mrf.mxu0
      %v3184 = vadd.f32 0.0, %v3183
      %3185 = vmatmul.bf16.gmra.mxu0 %v2714
      %v3186 = vpop.f32.mrf.mxu0
      %v3187 = vadd.f32 0.0, %v3186
      %v3188 = vpop.f32.mrf.mxu0
      %v3189 = vadd.f32 0.0, %v3188
      %3190 = vmatmul.bf16.gmra.mxu0 %v2717
      %v3191 = vpop.f32.mrf.mxu0
      %v3192 = vadd.f32 0.0, %v3191
      %v3193 = vpop.f32.mrf.mxu0
      %v3194 = vadd.f32 0.0, %v3193
      %3195 = vmatmul.bf16.gmra.mxu0 %v2720
      %v3196 = vpop.f32.mrf.mxu0
      %v3197 = vadd.f32 0.0, %v3196
      %v3198 = vpop.f32.mrf.mxu0
      %v3199 = vadd.f32 0.0, %v3198
      %3200 = vmatmul.bf16.gmra.mxu0 %v2723
      %v3201 = vpop.f32.mrf.mxu0
      %v3202 = vadd.f32 0.0, %v3201
      %v3203 = vpop.f32.mrf.mxu0
      %v3204 = vadd.f32 0.0, %v3203
      %3205 = vmatmul.bf16.gmra.mxu0 %v2726
      %v3206 = vpop.f32.mrf.mxu0
      %v3207 = vadd.f32 0.0, %v3206
      %v3208 = vpop.f32.mrf.mxu0
      %v3209 = vadd.f32 0.0, %v3208
      %3210 = vmatmul.bf16.gmra.mxu0 %v2729
      %v3211 = vpop.f32.mrf.mxu0
      %v3212 = vadd.f32 0.0, %v3211
      %v3213 = vpop.f32.mrf.mxu0
      %v3214 = vadd.f32 0.0, %v3213
      %3215 = vmatmul.bf16.gmra.mxu0 %v2732
      %v3216 = vpop.f32.mrf.mxu0
      %v3217 = vadd.f32 0.0, %v3216
      %v3218 = vpop.f32.mrf.mxu0
      %v3219 = vadd.f32 0.0, %v3218
      %3220 = vmatmul.bf16.gmra.mxu0 %v3132
      %v3221 = vpop.f32.mrf.mxu0
      %v3222 = vadd.f32 0.0, %v3221
      %v3223 = vpop.f32.mrf.mxu0
      %v3224 = vadd.f32 0.0, %v3223
      %3225 = vdwg.mxu0
      %v3226 = vadd.f32 %v3096, %v3147
      %v3227 = vadd.f32 %v3097, %v3149
      %v3228 = vadd.f32 %v3098, %v3152
      %v3229 = vadd.f32 %v3099, %v3154
      %v3230 = vadd.f32 %v3100, %v3157
      %v3231 = vadd.f32 %v3101, %v3159
      %v3232 = vadd.f32 %v3102, %v3162
      %v3233 = vadd.f32 %v3103, %v3164
      %v3234 = vadd.f32 %v3104, %v3167
      %v3235 = vadd.f32 %v3105, %v3169
      %v3236 = vadd.f32 %v3106, %v3172
      %v3237 = vadd.f32 %v3107, %v3174
      %v3238 = vadd.f32 %v3108, %v3177
      %v3239 = vadd.f32 %v3109, %v3179
      %v3240 = vadd.f32 %v3110, %v3182
      %v3241 = vadd.f32 %v3111, %v3184
      %v3242 = vadd.f32 %v3112, %v3187
      %v3243 = vadd.f32 %v3113, %v3189
      %v3244 = vadd.f32 %v3114, %v3192
      %v3245 = vadd.f32 %v3115, %v3194
      %v3246 = vadd.f32 %v3116, %v3197
      %v3247 = vadd.f32 %v3117, %v3199
      %v3248 = vadd.f32 %v3118, %v3202
      %v3249 = vadd.f32 %v3119, %v3204
      %v3250 = vadd.f32 %v3120, %v3207
      %v3251 = vadd.f32 %v3121, %v3209
      %v3252 = vadd.f32 %v3122, %v3212
      %v3253 = vadd.f32 %v3123, %v3214
      %v3254 = vadd.f32 %v3124, %v3217
      %v3255 = vadd.f32 %v3125, %v3219
      %v3256 = vadd.f32 %v3126, %v3222
      %v3257 = vadd.f32 %v3127, %v3224
      %v3261 = vrot.slane %v2344, 1
      %v3262 = vrot.slane %v2345, 1
      %v3263 = vsel %vm574, %v3261, %v3262
      %v3264 = vrot.slane %v2346, 1
      %v3265 = vsel %vm574, %v3262, %v3264
      %v3268 = vpack.c.bf16 %v3265, %v3263
      %s3269 = scalar_lea.vmem %s4, 16
      %v3270 = vld [vmem:[%s3269] sm:$0xf]
      %v3272 = vsel %vm2207, %v3268, 0
      %v3275 = vsel %vm2593, %v3270, 0
      %3277 = vmatpush.bf16.msra.mxu0 0
      %3278 = vmatpush.bf16.msra.mxu0 0
      %3279 = vmatpush.bf16.msra.mxu0 0
      %3280 = vmatpush.bf16.msra.mxu0 0
      %3281 = vmatpush.bf16.msra.mxu0 0
      %3282 = vmatpush.bf16.msra.mxu0 0
      %3283 = vmatpush.bf16.msra.mxu0 0
      %3284 = vmatpush.bf16.msra.mxu0 %v3275
      %3285 = vmatmul.bf16.gmra.mxu0 %v2549
      %v3286 = vpop.f32.mrf.mxu0
      %v3287 = vadd.f32 0.0, %v3286
      %v3288 = vpop.f32.mrf.mxu0
      %v3289 = vadd.f32 0.0, %v3288
      %3290 = vmatmul.bf16.gmra.mxu0 %v2552
      %v3291 = vpop.f32.mrf.mxu0
      %v3292 = vadd.f32 0.0, %v3291
      %v3293 = vpop.f32.mrf.mxu0
      %v3294 = vadd.f32 0.0, %v3293
      %3295 = vmatmul.bf16.gmra.mxu0 %v2555
      %v3296 = vpop.f32.mrf.mxu0
      %v3297 = vadd.f32 0.0, %v3296
      %v3298 = vpop.f32.mrf.mxu0
      %v3299 = vadd.f32 0.0, %v3298
      %3300 = vmatmul.bf16.gmra.mxu0 %v2558
      %v3301 = vpop.f32.mrf.mxu0
      %v3302 = vadd.f32 0.0, %v3301
      %v3303 = vpop.f32.mrf.mxu0
      %v3304 = vadd.f32 0.0, %v3303
      %3305 = vmatmul.bf16.gmra.mxu0 %v2561
      %v3306 = vpop.f32.mrf.mxu0
      %v3307 = vadd.f32 0.0, %v3306
      %v3308 = vpop.f32.mrf.mxu0
      %v3309 = vadd.f32 0.0, %v3308
      %3310 = vmatmul.bf16.gmra.mxu0 %v2564
      %v3311 = vpop.f32.mrf.mxu0
      %v3312 = vadd.f32 0.0, %v3311
      %v3313 = vpop.f32.mrf.mxu0
      %v3314 = vadd.f32 0.0, %v3313
      %3315 = vmatmul.bf16.gmra.mxu0 %v2567
      %v3316 = vpop.f32.mrf.mxu0
      %v3317 = vadd.f32 0.0, %v3316
      %v3318 = vpop.f32.mrf.mxu0
      %v3319 = vadd.f32 0.0, %v3318
      %3320 = vmatmul.bf16.gmra.mxu0 %v2570
      %v3321 = vpop.f32.mrf.mxu0
      %v3322 = vadd.f32 0.0, %v3321
      %v3323 = vpop.f32.mrf.mxu0
      %v3324 = vadd.f32 0.0, %v3323
      %3325 = vmatmul.bf16.gmra.mxu0 %v2573
      %v3326 = vpop.f32.mrf.mxu0
      %v3327 = vadd.f32 0.0, %v3326
      %v3328 = vpop.f32.mrf.mxu0
      %v3329 = vadd.f32 0.0, %v3328
      %3330 = vmatmul.bf16.gmra.mxu0 %v2576
      %v3331 = vpop.f32.mrf.mxu0
      %v3332 = vadd.f32 0.0, %v3331
      %v3333 = vpop.f32.mrf.mxu0
      %v3334 = vadd.f32 0.0, %v3333
      %3335 = vmatmul.bf16.gmra.mxu0 %v2579
      %v3336 = vpop.f32.mrf.mxu0
      %v3337 = vadd.f32 0.0, %v3336
      %v3338 = vpop.f32.mrf.mxu0
      %v3339 = vadd.f32 0.0, %v3338
      %3340 = vmatmul.bf16.gmra.mxu0 %v2582
      %v3341 = vpop.f32.mrf.mxu0
      %v3342 = vadd.f32 0.0, %v3341
      %v3343 = vpop.f32.mrf.mxu0
      %v3344 = vadd.f32 0.0, %v3343
      %3345 = vmatmul.bf16.gmra.mxu0 %v2585
      %v3346 = vpop.f32.mrf.mxu0
      %v3347 = vadd.f32 0.0, %v3346
      %v3348 = vpop.f32.mrf.mxu0
      %v3349 = vadd.f32 0.0, %v3348
      %3350 = vmatmul.bf16.gmra.mxu0 %v2588
      %v3351 = vpop.f32.mrf.mxu0
      %v3352 = vadd.f32 0.0, %v3351
      %v3353 = vpop.f32.mrf.mxu0
      %v3354 = vadd.f32 0.0, %v3353
      %3355 = vmatmul.bf16.gmra.mxu0 %v2591
      %v3356 = vpop.f32.mrf.mxu0
      %v3357 = vadd.f32 0.0, %v3356
      %v3358 = vpop.f32.mrf.mxu0
      %v3359 = vadd.f32 0.0, %v3358
      %3360 = vmatmul.bf16.gmra.mxu0 %v3272
      %v3361 = vpop.f32.mrf.mxu0
      %v3362 = vadd.f32 0.0, %v3361
      %v3363 = vpop.f32.mrf.mxu0
      %v3364 = vadd.f32 0.0, %v3363
      %3365 = vdwg.mxu0
      %v3366 = vadd.f32 %v3226, %v3287
      %v3367 = vadd.f32 %v3227, %v3289
      %v3368 = vadd.f32 %v3228, %v3292
      %v3369 = vadd.f32 %v3229, %v3294
      %v3370 = vadd.f32 %v3230, %v3297
      %v3371 = vadd.f32 %v3231, %v3299
      %v3372 = vadd.f32 %v3232, %v3302
      %v3373 = vadd.f32 %v3233, %v3304
      %v3374 = vadd.f32 %v3234, %v3307
      %v3375 = vadd.f32 %v3235, %v3309
      %v3376 = vadd.f32 %v3236, %v3312
      %v3377 = vadd.f32 %v3237, %v3314
      %v3378 = vadd.f32 %v3238, %v3317
      %v3379 = vadd.f32 %v3239, %v3319
      %v3380 = vadd.f32 %v3240, %v3322
      %v3381 = vadd.f32 %v3241, %v3324
      %v3382 = vadd.f32 %v3242, %v3327
      %v3383 = vadd.f32 %v3243, %v3329
      %v3384 = vadd.f32 %v3244, %v3332
      %v3385 = vadd.f32 %v3245, %v3334
      %v3386 = vadd.f32 %v3246, %v3337
      %v3387 = vadd.f32 %v3247, %v3339
      %v3388 = vadd.f32 %v3248, %v3342
      %v3389 = vadd.f32 %v3249, %v3344
      %v3390 = vadd.f32 %v3250, %v3347
      %v3391 = vadd.f32 %v3251, %v3349
      %v3392 = vadd.f32 %v3252, %v3352
      %v3393 = vadd.f32 %v3253, %v3354
      %v3394 = vadd.f32 %v3254, %v3357
      %v3395 = vadd.f32 %v3255, %v3359
      %v3396 = vadd.f32 %v3256, %v3362
      %v3397 = vadd.f32 %v3257, %v3364
      %v3398 = vrot.slane %v2344, 2
      %v3399 = vrot.slane %v2345, 2
      %v3400 = vsel %vm986, %v3398, %v3399
      %v3401 = vrot.slane %v2346, 2
      %v3402 = vsel %vm986, %v3399, %v3401
      %v3405 = vpack.c.bf16 %v3402, %v3400
      %s3406 = scalar_lea.vmem %s4, 20
      %v3407 = vld [vmem:[%s3406] sm:$0xf]
      %v3409 = vsel %vm2207, %v3405, 0
      %v3412 = vsel %vm2593, %v3407, 0
      %3414 = vmatpush.bf16.msra.mxu0 0
      %3415 = vmatpush.bf16.msra.mxu0 0
      %3416 = vmatpush.bf16.msra.mxu0 0
      %3417 = vmatpush.bf16.msra.mxu0 0
      %3418 = vmatpush.bf16.msra.mxu0 0
      %3419 = vmatpush.bf16.msra.mxu0 0
      %3420 = vmatpush.bf16.msra.mxu0 0
      %3421 = vmatpush.bf16.msra.mxu0 %v3412
      %3422 = vmatmul.bf16.gmra.mxu0 %v2960
      %v3423 = vpop.f32.mrf.mxu0
      %v3424 = vadd.f32 0.0, %v3423
      %v3425 = vpop.f32.mrf.mxu0
      %v3426 = vadd.f32 0.0, %v3425
      %3427 = vmatmul.bf16.gmra.mxu0 %v2963
      %v3428 = vpop.f32.mrf.mxu0
      %v3429 = vadd.f32 0.0, %v3428
      %v3430 = vpop.f32.mrf.mxu0
      %v3431 = vadd.f32 0.0, %v3430
      %3432 = vmatmul.bf16.gmra.mxu0 %v2966
      %v3433 = vpop.f32.mrf.mxu0
      %v3434 = vadd.f32 0.0, %v3433
      %v3435 = vpop.f32.mrf.mxu0
      %v3436 = vadd.f32 0.0, %v3435
      %3437 = vmatmul.bf16.gmra.mxu0 %v2969
      %v3438 = vpop.f32.mrf.mxu0
      %v3439 = vadd.f32 0.0, %v3438
      %v3440 = vpop.f32.mrf.mxu0
      %v3441 = vadd.f32 0.0, %v3440
      %3442 = vmatmul.bf16.gmra.mxu0 %v2972
      %v3443 = vpop.f32.mrf.mxu0
      %v3444 = vadd.f32 0.0, %v3443
      %v3445 = vpop.f32.mrf.mxu0
      %v3446 = vadd.f32 0.0, %v3445
      %3447 = vmatmul.bf16.gmra.mxu0 %v2975
      %v3448 = vpop.f32.mrf.mxu0
      %v3449 = vadd.f32 0.0, %v3448
      %v3450 = vpop.f32.mrf.mxu0
      %v3451 = vadd.f32 0.0, %v3450
      %3452 = vmatmul.bf16.gmra.mxu0 %v2978
      %v3453 = vpop.f32.mrf.mxu0
      %v3454 = vadd.f32 0.0, %v3453
      %v3455 = vpop.f32.mrf.mxu0
      %v3456 = vadd.f32 0.0, %v3455
      %3457 = vmatmul.bf16.gmra.mxu0 %v2981
      %v3458 = vpop.f32.mrf.mxu0
      %v3459 = vadd.f32 0.0, %v3458
      %v3460 = vpop.f32.mrf.mxu0
      %v3461 = vadd.f32 0.0, %v3460
      %3462 = vmatmul.bf16.gmra.mxu0 %v2984
      %v3463 = vpop.f32.mrf.mxu0
      %v3464 = vadd.f32 0.0, %v3463
      %v3465 = vpop.f32.mrf.mxu0
      %v3466 = vadd.f32 0.0, %v3465
      %3467 = vmatmul.bf16.gmra.mxu0 %v2987
      %v3468 = vpop.f32.mrf.mxu0
      %v3469 = vadd.f32 0.0, %v3468
      %v3470 = vpop.f32.mrf.mxu0
      %v3471 = vadd.f32 0.0, %v3470
      %3472 = vmatmul.bf16.gmra.mxu0 %v2990
      %v3473 = vpop.f32.mrf.mxu0
      %v3474 = vadd.f32 0.0, %v3473
      %v3475 = vpop.f32.mrf.mxu0
      %v3476 = vadd.f32 0.0, %v3475
      %3477 = vmatmul.bf16.gmra.mxu0 %v2993
      %v3478 = vpop.f32.mrf.mxu0
      %v3479 = vadd.f32 0.0, %v3478
      %v3480 = vpop.f32.mrf.mxu0
      %v3481 = vadd.f32 0.0, %v3480
      %3482 = vmatmul.bf16.gmra.mxu0 %v2996
      %v3483 = vpop.f32.mrf.mxu0
      %v3484 = vadd.f32 0.0, %v3483
      %v3485 = vpop.f32.mrf.mxu0
      %v3486 = vadd.f32 0.0, %v3485
      %3487 = vmatmul.bf16.gmra.mxu0 %v2999
      %v3488 = vpop.f32.mrf.mxu0
      %v3489 = vadd.f32 0.0, %v3488
      %v3490 = vpop.f32.mrf.mxu0
      %v3491 = vadd.f32 0.0, %v3490
      %3492 = vmatmul.bf16.gmra.mxu0 %v3002
      %v3493 = vpop.f32.mrf.mxu0
      %v3494 = vadd.f32 0.0, %v3493
      %v3495 = vpop.f32.mrf.mxu0
      %v3496 = vadd.f32 0.0, %v3495
      %3497 = vmatmul.bf16.gmra.mxu0 %v3409
      %v3498 = vpop.f32.mrf.mxu0
      %v3499 = vadd.f32 0.0, %v3498
      %v3500 = vpop.f32.mrf.mxu0
      %v3501 = vadd.f32 0.0, %v3500
      %3502 = vdwg.mxu0
      %v3503 = vadd.f32 %v3366, %v3424
      %v3504 = vadd.f32 %v3367, %v3426
      %v3505 = vadd.f32 %v3368, %v3429
      %v3506 = vadd.f32 %v3369, %v3431
      %v3507 = vadd.f32 %v3370, %v3434
      %v3508 = vadd.f32 %v3371, %v3436
      %v3509 = vadd.f32 %v3372, %v3439
      %v3510 = vadd.f32 %v3373, %v3441
      %v3511 = vadd.f32 %v3374, %v3444
      %v3512 = vadd.f32 %v3375, %v3446
      %v3513 = vadd.f32 %v3376, %v3449
      %v3514 = vadd.f32 %v3377, %v3451
      %v3515 = vadd.f32 %v3378, %v3454
      %v3516 = vadd.f32 %v3379, %v3456
      %v3517 = vadd.f32 %v3380, %v3459
      %v3518 = vadd.f32 %v3381, %v3461
      %v3519 = vadd.f32 %v3382, %v3464
      %v3520 = vadd.f32 %v3383, %v3466
      %v3521 = vadd.f32 %v3384, %v3469
      %v3522 = vadd.f32 %v3385, %v3471
      %v3523 = vadd.f32 %v3386, %v3474
      %v3524 = vadd.f32 %v3387, %v3476
      %v3525 = vadd.f32 %v3388, %v3479
      %v3526 = vadd.f32 %v3389, %v3481
      %v3527 = vadd.f32 %v3390, %v3484
      %v3528 = vadd.f32 %v3391, %v3486
      %v3529 = vadd.f32 %v3392, %v3489
      %v3530 = vadd.f32 %v3393, %v3491
      %v3531 = vadd.f32 %v3394, %v3494
      %v3532 = vadd.f32 %v3395, %v3496
      %v3533 = vadd.f32 %v3396, %v3499
      %v3534 = vadd.f32 %v3397, %v3501
      %v3535 = vpack.c.bf16 %v2348, %v2347
      %s3536 = scalar_lea.vmem %s4, 24
      %v3537 = vld [vmem:[%s3536] sm:$0xf]
      %v3539 = vsel %vm2207, %v3535, 0
      %v3542 = vsel %vm2593, %v3537, 0
      %3544 = vmatpush.bf16.msra.mxu0 0
      %3545 = vmatpush.bf16.msra.mxu0 0
      %3546 = vmatpush.bf16.msra.mxu0 0
      %3547 = vmatpush.bf16.msra.mxu0 0
      %3548 = vmatpush.bf16.msra.mxu0 0
      %3549 = vmatpush.bf16.msra.mxu0 0
      %3550 = vmatpush.bf16.msra.mxu0 0
      %3551 = vmatpush.bf16.msra.mxu0 %v3542
      %3552 = vmatmul.bf16.gmra.mxu0 %v2693
      %v3553 = vpop.f32.mrf.mxu0
      %v3554 = vadd.f32 0.0, %v3553
      %v3555 = vpop.f32.mrf.mxu0
      %v3556 = vadd.f32 0.0, %v3555
      %3557 = vmatmul.bf16.gmra.mxu0 %v2696
      %v3558 = vpop.f32.mrf.mxu0
      %v3559 = vadd.f32 0.0, %v3558
      %v3560 = vpop.f32.mrf.mxu0
      %v3561 = vadd.f32 0.0, %v3560
      %3562 = vmatmul.bf16.gmra.mxu0 %v2699
      %v3563 = vpop.f32.mrf.mxu0
      %v3564 = vadd.f32 0.0, %v3563
      %v3565 = vpop.f32.mrf.mxu0
      %v3566 = vadd.f32 0.0, %v3565
      %3567 = vmatmul.bf16.gmra.mxu0 %v2702
      %v3568 = vpop.f32.mrf.mxu0
      %v3569 = vadd.f32 0.0, %v3568
      %v3570 = vpop.f32.mrf.mxu0
      %v3571 = vadd.f32 0.0, %v3570
      %3572 = vmatmul.bf16.gmra.mxu0 %v2705
      %v3573 = vpop.f32.mrf.mxu0
      %v3574 = vadd.f32 0.0, %v3573
      %v3575 = vpop.f32.mrf.mxu0
      %v3576 = vadd.f32 0.0, %v3575
      %3577 = vmatmul.bf16.gmra.mxu0 %v2708
      %v3578 = vpop.f32.mrf.mxu0
      %v3579 = vadd.f32 0.0, %v3578
      %v3580 = vpop.f32.mrf.mxu0
      %v3581 = vadd.f32 0.0, %v3580
      %3582 = vmatmul.bf16.gmra.mxu0 %v2711
      %v3583 = vpop.f32.mrf.mxu0
      %v3584 = vadd.f32 0.0, %v3583
      %v3585 = vpop.f32.mrf.mxu0
      %v3586 = vadd.f32 0.0, %v3585
      %3587 = vmatmul.bf16.gmra.mxu0 %v2714
      %v3588 = vpop.f32.mrf.mxu0
      %v3589 = vadd.f32 0.0, %v3588
      %v3590 = vpop.f32.mrf.mxu0
      %v3591 = vadd.f32 0.0, %v3590
      %3592 = vmatmul.bf16.gmra.mxu0 %v2717
      %v3593 = vpop.f32.mrf.mxu0
      %v3594 = vadd.f32 0.0, %v3593
      %v3595 = vpop.f32.mrf.mxu0
      %v3596 = vadd.f32 0.0, %v3595
      %3597 = vmatmul.bf16.gmra.mxu0 %v2720
      %v3598 = vpop.f32.mrf.mxu0
      %v3599 = vadd.f32 0.0, %v3598
      %v3600 = vpop.f32.mrf.mxu0
      %v3601 = vadd.f32 0.0, %v3600
      %3602 = vmatmul.bf16.gmra.mxu0 %v2723
      %v3603 = vpop.f32.mrf.mxu0
      %v3604 = vadd.f32 0.0, %v3603
      %v3605 = vpop.f32.mrf.mxu0
      %v3606 = vadd.f32 0.0, %v3605
      %3607 = vmatmul.bf16.gmra.mxu0 %v2726
      %v3608 = vpop.f32.mrf.mxu0
      %v3609 = vadd.f32 0.0, %v3608
      %v3610 = vpop.f32.mrf.mxu0
      %v3611 = vadd.f32 0.0, %v3610
      %3612 = vmatmul.bf16.gmra.mxu0 %v2729
      %v3613 = vpop.f32.mrf.mxu0
      %v3614 = vadd.f32 0.0, %v3613
      %v3615 = vpop.f32.mrf.mxu0
      %v3616 = vadd.f32 0.0, %v3615
      %3617 = vmatmul.bf16.gmra.mxu0 %v2732
      %v3618 = vpop.f32.mrf.mxu0
      %v3619 = vadd.f32 0.0, %v3618
      %v3620 = vpop.f32.mrf.mxu0
      %v3621 = vadd.f32 0.0, %v3620
      %3622 = vmatmul.bf16.gmra.mxu0 %v3132
      %v3623 = vpop.f32.mrf.mxu0
      %v3624 = vadd.f32 0.0, %v3623
      %v3625 = vpop.f32.mrf.mxu0
      %v3626 = vadd.f32 0.0, %v3625
      %3627 = vmatmul.bf16.gmra.mxu0 %v3539
      %v3628 = vpop.f32.mrf.mxu0
      %v3629 = vadd.f32 0.0, %v3628
      %v3630 = vpop.f32.mrf.mxu0
      %v3631 = vadd.f32 0.0, %v3630
      %3632 = vdwg.mxu0
      %v3633 = vadd.f32 %v3503, %v3554
      %v3634 = vadd.f32 %v3504, %v3556
      %v3635 = vadd.f32 %v3505, %v3559
      %v3636 = vadd.f32 %v3506, %v3561
      %v3637 = vadd.f32 %v3507, %v3564
      %v3638 = vadd.f32 %v3508, %v3566
      %v3639 = vadd.f32 %v3509, %v3569
      %v3640 = vadd.f32 %v3510, %v3571
      %v3641 = vadd.f32 %v3511, %v3574
      %v3642 = vadd.f32 %v3512, %v3576
      %v3643 = vadd.f32 %v3513, %v3579
      %v3644 = vadd.f32 %v3514, %v3581
      %v3645 = vadd.f32 %v3515, %v3584
      %v3646 = vadd.f32 %v3516, %v3586
      %v3647 = vadd.f32 %v3517, %v3589
      %v3648 = vadd.f32 %v3518, %v3591
      %v3649 = vadd.f32 %v3519, %v3594
      %v3650 = vadd.f32 %v3520, %v3596
      %v3651 = vadd.f32 %v3521, %v3599
      %v3652 = vadd.f32 %v3522, %v3601
      %v3653 = vadd.f32 %v3523, %v3604
      %v3654 = vadd.f32 %v3524, %v3606
      %v3655 = vadd.f32 %v3525, %v3609
      %v3656 = vadd.f32 %v3526, %v3611
      %v3657 = vadd.f32 %v3527, %v3614
      %v3658 = vadd.f32 %v3528, %v3616
      %v3659 = vadd.f32 %v3529, %v3619
      %v3660 = vadd.f32 %v3530, %v3621
      %v3661 = vadd.f32 %v3531, %v3624
      %v3662 = vadd.f32 %v3532, %v3626
      %v3663 = vadd.f32 %v3533, %v3629
      %v3664 = vadd.f32 %v3534, %v3631
      %v3668 = vrot.slane %v2347, 1
      %v3669 = vrot.slane %v2348, 1
      %v3670 = vsel %vm574, %v3668, %v3669
      %v3671 = vrot.slane %v2349, 1
      %v3672 = vsel %vm574, %v3669, %v3671
      %v3675 = vpack.c.bf16 %v3672, %v3670
      %s3676 = scalar_lea.vmem %s4, 28
      %v3677 = vld [vmem:[%s3676] sm:$0xf]
      %v3679 = vsel %vm2207, %v3675, 0
      %v3682 = vsel %vm2593, %v3677, 0
      %3684 = vmatpush.bf16.msra.mxu0 0
      %3685 = vmatpush.bf16.msra.mxu0 0
      %3686 = vmatpush.bf16.msra.mxu0 0
      %3687 = vmatpush.bf16.msra.mxu0 0
      %3688 = vmatpush.bf16.msra.mxu0 0
      %3689 = vmatpush.bf16.msra.mxu0 0
      %3690 = vmatpush.bf16.msra.mxu0 0
      %3691 = vmatpush.bf16.msra.mxu0 %v3682
      %3692 = vmatmul.bf16.gmra.mxu0 %v2552
      %v3693 = vpop.f32.mrf.mxu0
      %v3694 = vadd.f32 0.0, %v3693
      %v3695 = vpop.f32.mrf.mxu0
      %v3696 = vadd.f32 0.0, %v3695
      %3697 = vmatmul.bf16.gmra.mxu0 %v2555
      %v3698 = vpop.f32.mrf.mxu0
      %v3699 = vadd.f32 0.0, %v3698
      %v3700 = vpop.f32.mrf.mxu0
      %v3701 = vadd.f32 0.0, %v3700
      %3702 = vmatmul.bf16.gmra.mxu0 %v2558
      %v3703 = vpop.f32.mrf.mxu0
      %v3704 = vadd.f32 0.0, %v3703
      %v3705 = vpop.f32.mrf.mxu0
      %v3706 = vadd.f32 0.0, %v3705
      %3707 = vmatmul.bf16.gmra.mxu0 %v2561
      %v3708 = vpop.f32.mrf.mxu0
      %v3709 = vadd.f32 0.0, %v3708
      %v3710 = vpop.f32.mrf.mxu0
      %v3711 = vadd.f32 0.0, %v3710
      %3712 = vmatmul.bf16.gmra.mxu0 %v2564
      %v3713 = vpop.f32.mrf.mxu0
      %v3714 = vadd.f32 0.0, %v3713
      %v3715 = vpop.f32.mrf.mxu0
      %v3716 = vadd.f32 0.0, %v3715
      %3717 = vmatmul.bf16.gmra.mxu0 %v2567
      %v3718 = vpop.f32.mrf.mxu0
      %v3719 = vadd.f32 0.0, %v3718
      %v3720 = vpop.f32.mrf.mxu0
      %v3721 = vadd.f32 0.0, %v3720
      %3722 = vmatmul.bf16.gmra.mxu0 %v2570
      %v3723 = vpop.f32.mrf.mxu0
      %v3724 = vadd.f32 0.0, %v3723
      %v3725 = vpop.f32.mrf.mxu0
      %v3726 = vadd.f32 0.0, %v3725
      %3727 = vmatmul.bf16.gmra.mxu0 %v2573
      %v3728 = vpop.f32.mrf.mxu0
      %v3729 = vadd.f32 0.0, %v3728
      %v3730 = vpop.f32.mrf.mxu0
      %v3731 = vadd.f32 0.0, %v3730
      %3732 = vmatmul.bf16.gmra.mxu0 %v2576
      %v3733 = vpop.f32.mrf.mxu0
      %v3734 = vadd.f32 0.0, %v3733
      %v3735 = vpop.f32.mrf.mxu0
      %v3736 = vadd.f32 0.0, %v3735
      %3737 = vmatmul.bf16.gmra.mxu0 %v2579
      %v3738 = vpop.f32.mrf.mxu0
      %v3739 = vadd.f32 0.0, %v3738
      %v3740 = vpop.f32.mrf.mxu0
      %v3741 = vadd.f32 0.0, %v3740
      %3742 = vmatmul.bf16.gmra.mxu0 %v2582
      %v3743 = vpop.f32.mrf.mxu0
      %v3744 = vadd.f32 0.0, %v3743
      %v3745 = vpop.f32.mrf.mxu0
      %v3746 = vadd.f32 0.0, %v3745
      %3747 = vmatmul.bf16.gmra.mxu0 %v2585
      %v3748 = vpop.f32.mrf.mxu0
      %v3749 = vadd.f32 0.0, %v3748
      %v3750 = vpop.f32.mrf.mxu0
      %v3751 = vadd.f32 0.0, %v3750
      %3752 = vmatmul.bf16.gmra.mxu0 %v2588
      %v3753 = vpop.f32.mrf.mxu0
      %v3754 = vadd.f32 0.0, %v3753
      %v3755 = vpop.f32.mrf.mxu0
      %v3756 = vadd.f32 0.0, %v3755
      %3757 = vmatmul.bf16.gmra.mxu0 %v2591
      %v3758 = vpop.f32.mrf.mxu0
      %v3759 = vadd.f32 0.0, %v3758
      %v3760 = vpop.f32.mrf.mxu0
      %v3761 = vadd.f32 0.0, %v3760
      %3762 = vmatmul.bf16.gmra.mxu0 %v3272
      %v3763 = vpop.f32.mrf.mxu0
      %v3764 = vadd.f32 0.0, %v3763
      %v3765 = vpop.f32.mrf.mxu0
      %v3766 = vadd.f32 0.0, %v3765
      %3767 = vmatmul.bf16.gmra.mxu0 %v3679
      %v3768 = vpop.f32.mrf.mxu0
      %v3769 = vadd.f32 0.0, %v3768
      %v3770 = vpop.f32.mrf.mxu0
      %v3771 = vadd.f32 0.0, %v3770
      %3772 = vdwg.mxu0
      %v3773 = vadd.f32 %v3633, %v3694
      %v3774 = vadd.f32 %v3634, %v3696
      %v3775 = vadd.f32 %v3635, %v3699
      %v3776 = vadd.f32 %v3636, %v3701
      %v3777 = vadd.f32 %v3637, %v3704
      %v3778 = vadd.f32 %v3638, %v3706
      %v3779 = vadd.f32 %v3639, %v3709
      %v3780 = vadd.f32 %v3640, %v3711
      %v3781 = vadd.f32 %v3641, %v3714
      %v3782 = vadd.f32 %v3642, %v3716
      %v3783 = vadd.f32 %v3643, %v3719
      %v3784 = vadd.f32 %v3644, %v3721
      %v3785 = vadd.f32 %v3645, %v3724
      %v3786 = vadd.f32 %v3646, %v3726
      %v3787 = vadd.f32 %v3647, %v3729
      %v3788 = vadd.f32 %v3648, %v3731
      %v3789 = vadd.f32 %v3649, %v3734
      %v3790 = vadd.f32 %v3650, %v3736
      %v3791 = vadd.f32 %v3651, %v3739
      %v3792 = vadd.f32 %v3652, %v3741
      %v3793 = vadd.f32 %v3653, %v3744
      %v3794 = vadd.f32 %v3654, %v3746
      %v3795 = vadd.f32 %v3655, %v3749
      %v3796 = vadd.f32 %v3656, %v3751
      %v3797 = vadd.f32 %v3657, %v3754
      %v3798 = vadd.f32 %v3658, %v3756
      %v3799 = vadd.f32 %v3659, %v3759
      %v3800 = vadd.f32 %v3660, %v3761
      %v3801 = vadd.f32 %v3661, %v3764
      %v3802 = vadd.f32 %v3662, %v3766
      %v3803 = vadd.f32 %v3663, %v3769
      %v3804 = vadd.f32 %v3664, %v3771
      %v3805 = vrot.slane %v2347, 2
      %v3806 = vrot.slane %v2348, 2
      %v3807 = vsel %vm986, %v3805, %v3806
      %v3808 = vrot.slane %v2349, 2
      %v3809 = vsel %vm986, %v3806, %v3808
      %v3812 = vpack.c.bf16 %v3809, %v3807
      %s3813 = scalar_lea.vmem %s4, 32
      %v3814 = vld [vmem:[%s3813] sm:$0xf]
      %v3816 = vsel %vm2207, %v3812, 0
      %v3819 = vsel %vm2593, %v3814, 0
      %3821 = vmatpush.bf16.msra.mxu0 0
      %3822 = vmatpush.bf16.msra.mxu0 0
      %3823 = vmatpush.bf16.msra.mxu0 0
      %3824 = vmatpush.bf16.msra.mxu0 0
      %3825 = vmatpush.bf16.msra.mxu0 0
      %3826 = vmatpush.bf16.msra.mxu0 0
      %3827 = vmatpush.bf16.msra.mxu0 0
      %3828 = vmatpush.bf16.msra.mxu0 %v3819
      %3829 = vmatmul.bf16.gmra.mxu0 %v2963
      %v3830 = vpop.f32.mrf.mxu0
      %v3831 = vadd.f32 0.0, %v3830
      %v3832 = vpop.f32.mrf.mxu0
      %v3833 = vadd.f32 0.0, %v3832
      %3834 = vmatmul.bf16.gmra.mxu0 %v2966
      %v3835 = vpop.f32.mrf.mxu0
      %v3836 = vadd.f32 0.0, %v3835
      %v3837 = vpop.f32.mrf.mxu0
      %v3838 = vadd.f32 0.0, %v3837
      %3839 = vmatmul.bf16.gmra.mxu0 %v2969
      %v3840 = vpop.f32.mrf.mxu0
      %v3841 = vadd.f32 0.0, %v3840
      %v3842 = vpop.f32.mrf.mxu0
      %v3843 = vadd.f32 0.0, %v3842
      %3844 = vmatmul.bf16.gmra.mxu0 %v2972
      %v3845 = vpop.f32.mrf.mxu0
      %v3846 = vadd.f32 0.0, %v3845
      %v3847 = vpop.f32.mrf.mxu0
      %v3848 = vadd.f32 0.0, %v3847
      %3849 = vmatmul.bf16.gmra.mxu0 %v2975
      %v3850 = vpop.f32.mrf.mxu0
      %v3851 = vadd.f32 0.0, %v3850
      %v3852 = vpop.f32.mrf.mxu0
      %v3853 = vadd.f32 0.0, %v3852
      %3854 = vmatmul.bf16.gmra.mxu0 %v2978
      %v3855 = vpop.f32.mrf.mxu0
      %v3856 = vadd.f32 0.0, %v3855
      %v3857 = vpop.f32.mrf.mxu0
      %v3858 = vadd.f32 0.0, %v3857
      %3859 = vmatmul.bf16.gmra.mxu0 %v2981
      %v3860 = vpop.f32.mrf.mxu0
      %v3861 = vadd.f32 0.0, %v3860
      %v3862 = vpop.f32.mrf.mxu0
      %v3863 = vadd.f32 0.0, %v3862
      %3864 = vmatmul.bf16.gmra.mxu0 %v2984
      %v3865 = vpop.f32.mrf.mxu0
      %v3866 = vadd.f32 0.0, %v3865
      %v3867 = vpop.f32.mrf.mxu0
      %v3868 = vadd.f32 0.0, %v3867
      %3869 = vmatmul.bf16.gmra.mxu0 %v2987
      %v3870 = vpop.f32.mrf.mxu0
      %v3871 = vadd.f32 0.0, %v3870
      %v3872 = vpop.f32.mrf.mxu0
      %v3873 = vadd.f32 0.0, %v3872
      %3874 = vmatmul.bf16.gmra.mxu0 %v2990
      %v3875 = vpop.f32.mrf.mxu0
      %v3876 = vadd.f32 0.0, %v3875
      %v3877 = vpop.f32.mrf.mxu0
      %v3878 = vadd.f32 0.0, %v3877
      %3879 = vmatmul.bf16.gmra.mxu0 %v2993
      %v3880 = vpop.f32.mrf.mxu0
      %v3881 = vadd.f32 0.0, %v3880
      %v3882 = vpop.f32.mrf.mxu0
      %v3883 = vadd.f32 0.0, %v3882
      %3884 = vmatmul.bf16.gmra.mxu0 %v2996
      %v3885 = vpop.f32.mrf.mxu0
      %v3886 = vadd.f32 0.0, %v3885
      %v3887 = vpop.f32.mrf.mxu0
      %v3888 = vadd.f32 0.0, %v3887
      %3889 = vmatmul.bf16.gmra.mxu0 %v2999
      %v3890 = vpop.f32.mrf.mxu0
      %v3891 = vadd.f32 0.0, %v3890
      %v3892 = vpop.f32.mrf.mxu0
      %v3893 = vadd.f32 0.0, %v3892
      %3894 = vmatmul.bf16.gmra.mxu0 %v3002
      %v3895 = vpop.f32.mrf.mxu0
      %v3896 = vadd.f32 0.0, %v3895
      %v3897 = vpop.f32.mrf.mxu0
      %v3898 = vadd.f32 0.0, %v3897
      %3899 = vmatmul.bf16.gmra.mxu0 %v3409
      %v3900 = vpop.f32.mrf.mxu0
      %v3901 = vadd.f32 0.0, %v3900
      %v3902 = vpop.f32.mrf.mxu0
      %v3903 = vadd.f32 0.0, %v3902
      %3904 = vmatmul.bf16.gmra.mxu0 %v3816
      %v3905 = vpop.f32.mrf.mxu0
      %v3906 = vadd.f32 0.0, %v3905
      %v3907 = vpop.f32.mrf.mxu0
      %v3908 = vadd.f32 0.0, %v3907
      %3909 = vdwg.mxu0
      %v3910 = vadd.f32 %v3773, %v3831
      %v3911 = vadd.f32 %v3774, %v3833
      %v3912 = vadd.f32 %v3775, %v3836
      %v3913 = vadd.f32 %v3776, %v3838
      %v3914 = vadd.f32 %v3777, %v3841
      %v3915 = vadd.f32 %v3778, %v3843
      %v3916 = vadd.f32 %v3779, %v3846
      %v3917 = vadd.f32 %v3780, %v3848
      %v3918 = vadd.f32 %v3781, %v3851
      %v3919 = vadd.f32 %v3782, %v3853
      %v3920 = vadd.f32 %v3783, %v3856
      %v3921 = vadd.f32 %v3784, %v3858
      %v3922 = vadd.f32 %v3785, %v3861
      %v3923 = vadd.f32 %v3786, %v3863
      %v3924 = vadd.f32 %v3787, %v3866
      %v3925 = vadd.f32 %v3788, %v3868
      %v3926 = vadd.f32 %v3789, %v3871
      %v3927 = vadd.f32 %v3790, %v3873
      %v3928 = vadd.f32 %v3791, %v3876
      %v3929 = vadd.f32 %v3792, %v3878
      %v3930 = vadd.f32 %v3793, %v3881
      %v3931 = vadd.f32 %v3794, %v3883
      %v3932 = vadd.f32 %v3795, %v3886
      %v3933 = vadd.f32 %v3796, %v3888
      %v3934 = vadd.f32 %v3797, %v3891
      %v3935 = vadd.f32 %v3798, %v3893
      %v3936 = vadd.f32 %v3799, %v3896
      %v3937 = vadd.f32 %v3800, %v3898
      %v3938 = vadd.f32 %v3801, %v3901
      %v3939 = vadd.f32 %v3802, %v3903
      %v3940 = vadd.f32 %v3803, %v3906
      %v3941 = vadd.f32 %v3804, %v3908
      %v3942 = vld [vmem:[%s5] sm:$0x1]
      %v3944 = vperm.slane %v3942, 0
      %v3946 = vmul.f32 %v3910, %v3944
      %v3947 = vmul.f32 %v3911, %v3944
      %v3948 = vmul.f32 %v3912, %v3944
      %v3949 = vmul.f32 %v3913, %v3944
      %v3950 = vmul.f32 %v3914, %v3944
      %v3951 = vmul.f32 %v3915, %v3944
      %v3952 = vmul.f32 %v3916, %v3944
      %v3953 = vmul.f32 %v3917, %v3944
      %v3954 = vmul.f32 %v3918, %v3944
      %v3955 = vmul.f32 %v3919, %v3944
      %v3956 = vmul.f32 %v3920, %v3944
      %v3957 = vmul.f32 %v3921, %v3944
      %v3958 = vmul.f32 %v3922, %v3944
      %v3959 = vmul.f32 %v3923, %v3944
      %v3960 = vmul.f32 %v3924, %v3944
      %v3961 = vmul.f32 %v3925, %v3944
      %v3962 = vmul.f32 %v3926, %v3944
      %v3963 = vmul.f32 %v3927, %v3944
      %v3964 = vmul.f32 %v3928, %v3944
      %v3965 = vmul.f32 %v3929, %v3944
      %v3966 = vmul.f32 %v3930, %v3944
      %v3967 = vmul.f32 %v3931, %v3944
      %v3968 = vmul.f32 %v3932, %v3944
      %v3969 = vmul.f32 %v3933, %v3944
      %v3970 = vmul.f32 %v3934, %v3944
      %v3971 = vmul.f32 %v3935, %v3944
      %v3972 = vmul.f32 %v3936, %v3944
      %v3973 = vmul.f32 %v3937, %v3944
      %v3974 = vmul.f32 %v3938, %v3944
      %v3975 = vmul.f32 %v3939, %v3944
      %v3976 = vmul.f32 %v3940, %v3944
      %v3977 = vmul.f32 %v3941, %v3944
      %v3978 = vld [vmem:[%s6] sm:$0x1]
      %v3980 = vperm.slane %v3978, 0
      %v3982 = vadd.f32 %v3946, %v3980
      %v3983 = vadd.f32 %v3947, %v3980
      %v3984 = vadd.f32 %v3948, %v3980
      %v3985 = vadd.f32 %v3949, %v3980
      %v3986 = vadd.f32 %v3950, %v3980
      %v3987 = vadd.f32 %v3951, %v3980
      %v3988 = vadd.f32 %v3952, %v3980
      %v3989 = vadd.f32 %v3953, %v3980
      %v3990 = vadd.f32 %v3954, %v3980
      %v3991 = vadd.f32 %v3955, %v3980
      %v3992 = vadd.f32 %v3956, %v3980
      %v3993 = vadd.f32 %v3957, %v3980
      %v3994 = vadd.f32 %v3958, %v3980
      %v3995 = vadd.f32 %v3959, %v3980
      %v3996 = vadd.f32 %v3960, %v3980
      %v3997 = vadd.f32 %v3961, %v3980
      %v3998 = vadd.f32 %v3962, %v3980
      %v3999 = vadd.f32 %v3963, %v3980
      %v4000 = vadd.f32 %v3964, %v3980
      %v4001 = vadd.f32 %v3965, %v3980
      %v4002 = vadd.f32 %v3966, %v3980
      %v4003 = vadd.f32 %v3967, %v3980
      %v4004 = vadd.f32 %v3968, %v3980
      %v4005 = vadd.f32 %v3969, %v3980
      %v4006 = vadd.f32 %v3970, %v3980
      %v4007 = vadd.f32 %v3971, %v3980
      %v4008 = vadd.f32 %v3972, %v3980
      %v4009 = vadd.f32 %v3973, %v3980
      %v4010 = vadd.f32 %v3974, %v3980
      %v4011 = vadd.f32 %v3975, %v3980
      %v4012 = vadd.f32 %v3976, %v3980
      %v4013 = vadd.f32 %v3977, %v3980
      %v4014 = vmax.f32 %v3982, 0.0
      %v4015 = vmax.f32 %v3983, 0.0
      %v4016 = vmax.f32 %v3984, 0.0
      %v4017 = vmax.f32 %v3985, 0.0
      %v4018 = vmax.f32 %v3986, 0.0
      %v4019 = vmax.f32 %v3987, 0.0
      %v4020 = vmax.f32 %v3988, 0.0
      %v4021 = vmax.f32 %v3989, 0.0
      %v4022 = vmax.f32 %v3990, 0.0
      %v4023 = vmax.f32 %v3991, 0.0
      %v4024 = vmax.f32 %v3992, 0.0
      %v4025 = vmax.f32 %v3993, 0.0
      %v4026 = vmax.f32 %v3994, 0.0
      %v4027 = vmax.f32 %v3995, 0.0
      %v4028 = vmax.f32 %v3996, 0.0
      %v4029 = vmax.f32 %v3997, 0.0
      %v4030 = vmax.f32 %v3998, 0.0
      %v4031 = vmax.f32 %v3999, 0.0
      %v4032 = vmax.f32 %v4000, 0.0
      %v4033 = vmax.f32 %v4001, 0.0
      %v4034 = vmax.f32 %v4002, 0.0
      %v4035 = vmax.f32 %v4003, 0.0
      %v4036 = vmax.f32 %v4004, 0.0
      %v4037 = vmax.f32 %v4005, 0.0
      %v4038 = vmax.f32 %v4006, 0.0
      %v4039 = vmax.f32 %v4007, 0.0
      %v4040 = vmax.f32 %v4008, 0.0
      %v4041 = vmax.f32 %v4009, 0.0
      %v4042 = vmax.f32 %v4010, 0.0
      %v4043 = vmax.f32 %v4011, 0.0
      %v4044 = vmax.f32 %v4012, 0.0
      %v4045 = vmax.f32 %v4013, 0.0
      %v4046 = vld [vmem:[%s327] sm:$0xff]
      %v4047 = vld [vmem:[%s327 + $0x8] sm:$0xff]
      %v4048 = vld [vmem:[%s327 + $0x10] sm:$0xff]
      %v4049 = vld [vmem:[%s327 + $0x18] sm:$0xff]
      %v4050 = vld [vmem:[%s327 + $0x20] sm:$0xff]
      %v4051 = vld [vmem:[%s327 + $0x28] sm:$0xff]
      %v4052 = vld [vmem:[%s327 + $0x30] sm:$0xff]
      %v4053 = vld [vmem:[%s327 + $0x38] sm:$0xff]
      %v4054 = vld [vmem:[%s327 + $0x40] sm:$0xff]
      %v4055 = vld [vmem:[%s327 + $0x48] sm:$0xff]
      %v4056 = vld [vmem:[%s327 + $0x50] sm:$0xff]
      %v4057 = vld [vmem:[%s327 + $0x58] sm:$0xff]
      %v4058 = vld [vmem:[%s327 + $0x60] sm:$0xff]
      %v4059 = vld [vmem:[%s327 + $0x68] sm:$0xff]
      %v4060 = vld [vmem:[%s327 + $0x70] sm:$0xff]
      %v4061 = vld [vmem:[%s327 + $0x78] sm:$0xff]
      %v4062 = vld [vmem:[%s327 + $0x80] sm:$0xff]
      %v4063 = vld [vmem:[%s327 + $0x88] sm:$0xff]
      %v4064 = vld [vmem:[%s327 + $0x90] sm:$0xff]
      %v4065 = vld [vmem:[%s327 + $0x98] sm:$0xff]
      %v4066 = vld [vmem:[%s327 + $0xa0] sm:$0xff]
      %v4067 = vld [vmem:[%s327 + $0xa8] sm:$0xff]
      %v4068 = vld [vmem:[%s327 + $0xb0] sm:$0xff]
      %v4069 = vld [vmem:[%s327 + $0xb8] sm:$0xff]
      %v4070 = vld [vmem:[%s327 + $0xc0] sm:$0xff]
      %v4071 = vld [vmem:[%s327 + $0xc8] sm:$0xff]
      %v4072 = vld [vmem:[%s327 + $0xd0] sm:$0xff]
      %v4073 = vld [vmem:[%s327 + $0xd8] sm:$0xff]
      %v4074 = vld [vmem:[%s327 + $0xe0] sm:$0xff]
      %v4075 = vld [vmem:[%s327 + $0xe8] sm:$0xff]
      %v4076 = vld [vmem:[%s327 + $0xf0] sm:$0xff]
      %v4077 = vld [vmem:[%s327 + $0xf8] sm:$0xff]
      %v4078 = vpack.c.bf16 %v4047, %v4046
      %v4079 = vpack.c.bf16 %v4049, %v4048
      %v4080 = vpack.c.bf16 %v4051, %v4050
      %v4081 = vpack.c.bf16 %v4053, %v4052
      %v4082 = vpack.c.bf16 %v4055, %v4054
      %v4083 = vpack.c.bf16 %v4057, %v4056
      %v4084 = vpack.c.bf16 %v4059, %v4058
      %v4085 = vpack.c.bf16 %v4061, %v4060
      %v4086 = vpack.c.bf16 %v4063, %v4062
      %v4087 = vpack.c.bf16 %v4065, %v4064
      %v4088 = vpack.c.bf16 %v4067, %v4066
      %v4089 = vpack.c.bf16 %v4069, %v4068
      %v4090 = vpack.c.bf16 %v4071, %v4070
      %v4091 = vpack.c.bf16 %v4073, %v4072
      %v4092 = vpack.c.bf16 %v4075, %v4074
      %v4093 = vpack.c.bf16 %v4077, %v4076
      %v4094 = vld [vmem:[%s7] sm:$0x3]
      %v4095 = vld [vmem:[%s8] sm:$0x1]
      %v4097 = vperm.slane %v4095, 0
      %v4100 = vsel %vm334, %v4078, 0
      %v4103 = vsel %vm334, %v4079, 0
      %v4106 = vsel %vm334, %v4080, 0
      %v4109 = vsel %vm334, %v4081, 0
      %v4112 = vsel %vm334, %v4082, 0
      %v4115 = vsel %vm334, %v4083, 0
      %v4118 = vsel %vm334, %v4084, 0
      %v4121 = vsel %vm334, %v4085, 0
      %v4124 = vsel %vm334, %v4086, 0
      %v4127 = vsel %vm334, %v4087, 0
      %v4130 = vsel %vm334, %v4088, 0
      %v4133 = vsel %vm334, %v4089, 0
      %v4136 = vsel %vm334, %v4090, 0
      %v4139 = vsel %vm334, %v4091, 0
      %v4142 = vsel %vm334, %v4092, 0
      %v4145 = vsel %vm334, %v4093, 0
      %v4148 = vsel %vm753, %v4094, 0
      %4150 = vmatpush.bf16.msra.mxu0 0
      %4151 = vmatpush.bf16.msra.mxu0 0
      %4152 = vmatpush.bf16.msra.mxu0 0
      %4153 = vmatpush.bf16.msra.mxu0 0
      %4154 = vmatpush.bf16.msra.mxu0 0
      %4155 = vmatpush.bf16.msra.mxu0 0
      %4156 = vmatpush.bf16.msra.mxu0 0
      %4157 = vmatpush.bf16.msra.mxu0 %v4148
      %4158 = vmatmul.bf16.gmra.mxu0 %v4100
      %v4159 = vpop.f32.mrf.mxu0
      %v4160 = vadd.f32 %v4097, %v4159
      %v4161 = vpop.f32.mrf.mxu0
      %v4162 = vadd.f32 %v4097, %v4161
      %4163 = vmatmul.bf16.gmra.mxu0 %v4103
      %v4164 = vpop.f32.mrf.mxu0
      %v4165 = vadd.f32 %v4097, %v4164
      %v4166 = vpop.f32.mrf.mxu0
      %v4167 = vadd.f32 %v4097, %v4166
      %4168 = vmatmul.bf16.gmra.mxu0 %v4106
      %v4169 = vpop.f32.mrf.mxu0
      %v4170 = vadd.f32 %v4097, %v4169
      %v4171 = vpop.f32.mrf.mxu0
      %v4172 = vadd.f32 %v4097, %v4171
      %4173 = vmatmul.bf16.gmra.mxu0 %v4109
      %v4174 = vpop.f32.mrf.mxu0
      %v4175 = vadd.f32 %v4097, %v4174
      %v4176 = vpop.f32.mrf.mxu0
      %v4177 = vadd.f32 %v4097, %v4176
      %4178 = vmatmul.bf16.gmra.mxu0 %v4112
      %v4179 = vpop.f32.mrf.mxu0
      %v4180 = vadd.f32 %v4097, %v4179
      %v4181 = vpop.f32.mrf.mxu0
      %v4182 = vadd.f32 %v4097, %v4181
      %4183 = vmatmul.bf16.gmra.mxu0 %v4115
      %v4184 = vpop.f32.mrf.mxu0
      %v4185 = vadd.f32 %v4097, %v4184
      %v4186 = vpop.f32.mrf.mxu0
      %v4187 = vadd.f32 %v4097, %v4186
      %4188 = vmatmul.bf16.gmra.mxu0 %v4118
      %v4189 = vpop.f32.mrf.mxu0
      %v4190 = vadd.f32 %v4097, %v4189
      %v4191 = vpop.f32.mrf.mxu0
      %v4192 = vadd.f32 %v4097, %v4191
      %4193 = vmatmul.bf16.gmra.mxu0 %v4121
      %v4194 = vpop.f32.mrf.mxu0
      %v4195 = vadd.f32 %v4097, %v4194
      %v4196 = vpop.f32.mrf.mxu0
      %v4197 = vadd.f32 %v4097, %v4196
      %4198 = vmatmul.bf16.gmra.mxu0 %v4124
      %v4199 = vpop.f32.mrf.mxu0
      %v4200 = vadd.f32 %v4097, %v4199
      %v4201 = vpop.f32.mrf.mxu0
      %v4202 = vadd.f32 %v4097, %v4201
      %4203 = vmatmul.bf16.gmra.mxu0 %v4127
      %v4204 = vpop.f32.mrf.mxu0
      %v4205 = vadd.f32 %v4097, %v4204
      %v4206 = vpop.f32.mrf.mxu0
      %v4207 = vadd.f32 %v4097, %v4206
      %4208 = vmatmul.bf16.gmra.mxu0 %v4130
      %v4209 = vpop.f32.mrf.mxu0
      %v4210 = vadd.f32 %v4097, %v4209
      %v4211 = vpop.f32.mrf.mxu0
      %v4212 = vadd.f32 %v4097, %v4211
      %4213 = vmatmul.bf16.gmra.mxu0 %v4133
      %v4214 = vpop.f32.mrf.mxu0
      %v4215 = vadd.f32 %v4097, %v4214
      %v4216 = vpop.f32.mrf.mxu0
      %v4217 = vadd.f32 %v4097, %v4216
      %4218 = vmatmul.bf16.gmra.mxu0 %v4136
      %v4219 = vpop.f32.mrf.mxu0
      %v4220 = vadd.f32 %v4097, %v4219
      %v4221 = vpop.f32.mrf.mxu0
      %v4222 = vadd.f32 %v4097, %v4221
      %4223 = vmatmul.bf16.gmra.mxu0 %v4139
      %v4224 = vpop.f32.mrf.mxu0
      %v4225 = vadd.f32 %v4097, %v4224
      %v4226 = vpop.f32.mrf.mxu0
      %v4227 = vadd.f32 %v4097, %v4226
      %4228 = vmatmul.bf16.gmra.mxu0 %v4142
      %v4229 = vpop.f32.mrf.mxu0
      %v4230 = vadd.f32 %v4097, %v4229
      %v4231 = vpop.f32.mrf.mxu0
      %v4232 = vadd.f32 %v4097, %v4231
      %4233 = vmatmul.bf16.gmra.mxu0 %v4145
      %v4234 = vpop.f32.mrf.mxu0
      %v4235 = vadd.f32 %v4097, %v4234
      %v4236 = vpop.f32.mrf.mxu0
      %v4237 = vadd.f32 %v4097, %v4236
      %4238 = vdwg.mxu0
      %v4239 = vadd.f32 %v4014, %v4160
      %v4240 = vadd.f32 %v4015, %v4162
      %v4241 = vadd.f32 %v4016, %v4165
      %v4242 = vadd.f32 %v4017, %v4167
      %v4243 = vadd.f32 %v4018, %v4170
      %v4244 = vadd.f32 %v4019, %v4172
      %v4245 = vadd.f32 %v4020, %v4175
      %v4246 = vadd.f32 %v4021, %v4177
      %v4247 = vadd.f32 %v4022, %v4180
      %v4248 = vadd.f32 %v4023, %v4182
      %v4249 = vadd.f32 %v4024, %v4185
      %v4250 = vadd.f32 %v4025, %v4187
      %v4251 = vadd.f32 %v4026, %v4190
      %v4252 = vadd.f32 %v4027, %v4192
      %v4253 = vadd.f32 %v4028, %v4195
      %v4254 = vadd.f32 %v4029, %v4197
      %v4255 = vadd.f32 %v4030, %v4200
      %v4256 = vadd.f32 %v4031, %v4202
      %v4257 = vadd.f32 %v4032, %v4205
      %v4258 = vadd.f32 %v4033, %v4207
      %v4259 = vadd.f32 %v4034, %v4210
      %v4260 = vadd.f32 %v4035, %v4212
      %v4261 = vadd.f32 %v4036, %v4215
      %v4262 = vadd.f32 %v4037, %v4217
      %v4263 = vadd.f32 %v4038, %v4220
      %v4264 = vadd.f32 %v4039, %v4222
      %v4265 = vadd.f32 %v4040, %v4225
      %v4266 = vadd.f32 %v4041, %v4227
      %v4267 = vadd.f32 %v4042, %v4230
      %v4268 = vadd.f32 %v4043, %v4232
      %v4269 = vadd.f32 %v4044, %v4235
      %v4270 = vadd.f32 %v4045, %v4237
      %4271 = vst.msk [vmem:[%s332] sm:$0xff] %vm2207, %v4239
      %4272 = vst.msk [vmem:[%s332 + $0x8] sm:$0xff] %vm2207, %v4240
      %4273 = vst.msk [vmem:[%s332 + $0x10] sm:$0xff] %vm2207, %v4241
      %4274 = vst.msk [vmem:[%s332 + $0x18] sm:$0xff] %vm2207, %v4242
      %4275 = vst.msk [vmem:[%s332 + $0x20] sm:$0xff] %vm2207, %v4243
      %4276 = vst.msk [vmem:[%s332 + $0x28] sm:$0xff] %vm2207, %v4244
      %4277 = vst.msk [vmem:[%s332 + $0x30] sm:$0xff] %vm2207, %v4245
      %4278 = vst.msk [vmem:[%s332 + $0x38] sm:$0xff] %vm2207, %v4246
      %4279 = vst.msk [vmem:[%s332 + $0x40] sm:$0xff] %vm2207, %v4247
      %4280 = vst.msk [vmem:[%s332 + $0x48] sm:$0xff] %vm2207, %v4248
      %4281 = vst.msk [vmem:[%s332 + $0x50] sm:$0xff] %vm2207, %v4249
      %4282 = vst.msk [vmem:[%s332 + $0x58] sm:$0xff] %vm2207, %v4250
      %4283 = vst.msk [vmem:[%s332 + $0x60] sm:$0xff] %vm2207, %v4251
      %4284 = vst.msk [vmem:[%s332 + $0x68] sm:$0xff] %vm2207, %v4252
      %4285 = vst.msk [vmem:[%s332 + $0x70] sm:$0xff] %vm2207, %v4253
      %4286 = vst.msk [vmem:[%s332 + $0x78] sm:$0xff] %vm2207, %v4254
      %4287 = vst.msk [vmem:[%s332 + $0x80] sm:$0xff] %vm2207, %v4255
      %4288 = vst.msk [vmem:[%s332 + $0x88] sm:$0xff] %vm2207, %v4256
      %4289 = vst.msk [vmem:[%s332 + $0x90] sm:$0xff] %vm2207, %v4257
      %4290 = vst.msk [vmem:[%s332 + $0x98] sm:$0xff] %vm2207, %v4258
      %4291 = vst.msk [vmem:[%s332 + $0xa0] sm:$0xff] %vm2207, %v4259
      %4292 = vst.msk [vmem:[%s332 + $0xa8] sm:$0xff] %vm2207, %v4260
      %4293 = vst.msk [vmem:[%s332 + $0xb0] sm:$0xff] %vm2207, %v4261
      %4294 = vst.msk [vmem:[%s332 + $0xb8] sm:$0xff] %vm2207, %v4262
      %4295 = vst.msk [vmem:[%s332 + $0xc0] sm:$0xff] %vm2207, %v4263
      %4296 = vst.msk [vmem:[%s332 + $0xc8] sm:$0xff] %vm2207, %v4264
      %4297 = vst.msk [vmem:[%s332 + $0xd0] sm:$0xff] %vm2207, %v4265
      %4298 = vst.msk [vmem:[%s332 + $0xd8] sm:$0xff] %vm2207, %v4266
      %4299 = vst.msk [vmem:[%s332 + $0xe0] sm:$0xff] %vm2207, %v4267
      %4300 = vst.msk [vmem:[%s332 + $0xe8] sm:$0xff] %vm2207, %v4268
      %4301 = vst.msk [vmem:[%s332 + $0xf0] sm:$0xff] %vm2207, %v4269
      %4302 = vst.msk [vmem:[%s332 + $0xf8] sm:$0xff] %vm2207, %v4270
      %p4303 = scmp.lt.s32.totalorder %s20, 1
      %s4304 = scalar_select %p4303, %s20, 1
      %s4305 = smul.addr %s4304, 32
      %s4306 = smul.addr %s4305, 8
      %s4307 = scalar_lea.vmem %s9, %s4306
      // Predicated region
      $region57: #{intermediate_fwd.4} parent=55 // pred_check
        %p4308 = pneg %p232
      $region58: #{intermediate_fwd.4} parent=55 // pred_check_branch
        %4310 = sbr.rel (%p4308) target = $region60
      $region59: #{intermediate_fwd.4} parent=55 // pred_region
        _
      $region60: #{intermediate_fwd.4} parent=55 // pred_fallthru
        _
    $region56: #{intermediate_fwd.4} parent=5 // pred_fallthru
      _
    %p4311 = scmp.le.s32.totalorder 2, %s15
    // Predicated region
    $region61: #{intermediate_fwd.4} parent=5 // pred_check
      %p4312 = pneg %p4311
    $region62: #{intermediate_fwd.4} parent=5 // pred_check_branch
      %4314 = sbr.rel (%p4312) target = $region64
    $region63: #{intermediate_fwd.4} parent=5 // pred_region
      %s4315 = ssub.s32 %s15, 2
      // Predicated region
      $region65: #{intermediate_fwd.4} parent=63 // pred_check
        %p4316 = pneg %p238
      $region66: #{intermediate_fwd.4} parent=63 // pred_check_branch
        %4318 = sbr.rel (%p4316) target = $region68
      $region67: #{intermediate_fwd.4} parent=63 // pred_region
        %p4319 = scmp.lt.s32.totalorder %s21, 1
        %s4320 = scalar_select %p4319, %s21, 1
        %s4321 = smul.addr %s4320, 32
        %s4322 = smul.addr %s4321, 8
        %s4323 = scalar_lea.vmem %s9, %s4322
      $region68: #{intermediate_fwd.4} parent=63 // pred_fallthru
        _
    $region64: #{intermediate_fwd.4} parent=5 // pred_fallthru
      _
  $region6: #{intermediate_fwd.4} parent=0 // loop_footer
    %s19 = sadd.s32 1, %s15
  $region7: #{intermediate_fwd.4} parent=0 // loop_footer_branch
    %14 = sbr.rel target = $region3
  $region8: #{intermediate_fwd.4} parent=0 // loop_exit
    _

</llo_original>
